<compile_context>
chip_gen: v7x
topology: tpu7x:2x2x1
jax: 0.10.0
libtpu: 0.0.40
codegen_flags: <defaults>
</compile_context>

<pallas_src>
import numpy as np
import jax
import jax.numpy as jnp
from jax.experimental import pallas as pl
from jax.experimental.pallas import tpu as pltpu

# ---- PrediNet hyper-parameters (from Model.__init__) ----
Z_SIZE = 128          # encoder output size
KEY_SIZE = 16
N_HEADS = 32
N_RELATIONS = 16
MLP_HIDDEN = 8
C_PAD = Z_SIZE + 8    # readout channels kept in-kernel: Z normalized + tag + 7 zero pad


def _mmh(a, b):
    # Small real-valued f32 matmul at full MXU precision (all tiny here).
    return jnp.dot(a, b, precision=jax.lax.Precision.HIGHEST,
                   preferred_element_type=jnp.float32)


# ------------------------- kernel -------------------------
def predinet_kernel(
    x_ref,                                   # (bt*T, HW)        f32
    we1_ref, be1_ref, we2_ref, be2_ref,      # encoder MLP
    gamma_ref, beta_ref,                     # context norm (1, Z)
    tagcols_ref,                             # (bt*T, 8)   col 0 = temporal tag
    wq_ref,                                  # (T, Z, 2*NH*KS)   bf16, Q1|Q2 fused, col = k*NH+h
    qtag_ref,                                # (1, 2*NH*KS)      tag contribution to Q
    wkrep2_ref,                              # (Z, 2*NH*KS)      key weight replicated per head/branch
    ktagrep2_ref,                            # (bt*T, 2*NH*KS)   tag contribution to K, replicated
    hsel2_ref,                               # (2*NH*KS, 2*NH)   0/1 per-head key-sum selection
    hrep2_ref,                               # (2*NH, 2*bt*NH)   0/1 head replication across samples
    emaskt_ref,                              # (bt*T, 2*bt*NH)   0/1 same-sample mask
    out_ref,                                 # (C_PAD, 2*bt*NH)  fused E1|E2 readout (lane-dense)
):
    T, Z, nq2 = wq_ref.shape
    bt = x_ref.shape[0] // T
    nh2 = hsel2_ref.shape[1]

    x = x_ref[...]

    # ---- per-frame encoder MLP, fused over the whole tile (M = bt*T rows) ----
    h1 = jnp.maximum(_mmh(x, we1_ref[...]) + be1_ref[...], 0.0)
    z0 = _mmh(h1, we2_ref[...]) + be2_ref[...]                      # (bt*T, Z)

    # ---- context norm per sample over its T frames (sub-axis reduce, no mask matmuls) ----
    z03 = z0.reshape(bt, T, Z)
    mu = jnp.mean(z03, axis=1, keepdims=True)
    dev = z03 - mu
    var = jnp.sum(dev * dev, axis=1, keepdims=True) * (1.0 / (T - 1))   # unbiased
    zn3 = dev * jax.lax.rsqrt(var + 1e-8) * gamma_ref[...] + beta_ref[...]
    zn2 = zn3.reshape(bt * T, Z)                                     # (bt*T, Z)

    # ---- Q1|Q2 fused, computed at bt rows (no per-frame redundant weight work) ----
    q = qtag_ref[...]                                                # (1, nq2) -> (bt, nq2)
    for t in range(T):                                               # static, T small
        q = q + jnp.dot(zn3[:, t, :].astype(jnp.bfloat16), wq_ref[t],
                        preferred_element_type=jnp.float32)

    # ---- attention scores: K replicated per head, both branches fused ----
    krep3 = (_mmh(zn2, wkrep2_ref[...]) + ktagrep2_ref[...]).reshape(bt, T, nq2)
    prod = (krep3 * q[:, None, :]).reshape(bt * T, nq2)
    s2d = jnp.dot(prod, hsel2_ref[...],                              # 0/1 selection -> default prec
                  preferred_element_type=jnp.float32)                # (bt*T, 2*NH)

    # ---- per-sample softmax over the T frames (per-sample max; EUP reciprocal) ----
    s3 = s2d.reshape(bt, T, nh2)
    smax = jnp.max(s3, axis=1, keepdims=True)
    e = jnp.exp(s3 - smax)
    denom = jnp.sum(e, axis=1, keepdims=True)
    a2d = (e * pl.reciprocal(denom, approx=True)).reshape(bt * T, nh2)

    # ---- fused E1|E2 readout: one matmul, lane-dense (C_PAD, 2*bt*NH) output ----
    a_e = jnp.dot(a2d, hrep2_ref[...],                               # 0/1 replication -> default prec
                  preferred_element_type=jnp.float32) * emaskt_ref[...]
    z_aug = jnp.concatenate([zn2, tagcols_ref[...]], axis=1)         # (bt*T, C_PAD)
    out_ref[...] = jax.lax.dot_general(                              # contract row axis of both:
        z_aug, a_e,                                                  # MXU absorbs the transpose
        dimension_numbers=(((0,), (0,)), ((), ())),
        precision=jax.lax.Precision.HIGHEST,
        preferred_element_type=jnp.float32)


# ------------------------- parameters -------------------------
def init_params(key, seq_len, hw, y_dim):
    ks = jax.random.split(key, 8)
    zt = Z_SIZE + 1

    def xavier(k, shape):
        std = float(np.sqrt(2.0 / (shape[0] + shape[1])))
        return std * jax.random.normal(k, shape, jnp.float32)

    def kaiming(k, shape):
        std = float(np.sqrt(2.0 / shape[0]))
        return std * jax.random.normal(k, shape, jnp.float32)

    return dict(
        we1=xavier(ks[0], (hw, Z_SIZE)),
        be1=jnp.zeros((Z_SIZE,), jnp.float32),
        we2=xavier(ks[1], (Z_SIZE, Z_SIZE)),
        be2=jnp.zeros((Z_SIZE,), jnp.float32),
        gamma=jnp.ones((Z_SIZE,), jnp.float32),
        beta=jnp.zeros((Z_SIZE,), jnp.float32),
        wk=xavier(ks[2], (zt, KEY_SIZE)),
        wq1=xavier(ks[3], (seq_len * zt, N_HEADS * KEY_SIZE)),
        wq2=xavier(ks[4], (seq_len * zt, N_HEADS * KEY_SIZE)),
        ws=xavier(ks[5], (zt, N_RELATIONS)),
        wh=kaiming(ks[6], (N_HEADS * (N_RELATIONS + 2), MLP_HIDDEN)),
        bh=jnp.zeros((MLP_HIDDEN,), jnp.float32),
        wy=xavier(ks[7], (MLP_HIDDEN, y_dim)),
        by=jnp.zeros((y_dim,), jnp.float32),
    )


def prepare_kernel_inputs(p, bt, T):
    """Host-side reshuffle of parameters into lane-friendly kernel layouts."""
    Z, KS, NH = Z_SIZE, KEY_SIZE, N_HEADS
    zt = Z + 1
    nq = NH * KS                 # 512
    nq2 = 2 * nq                 # 1024 (Q1 | Q2 fused)
    nh2 = 2 * NH                 # 64
    no = 2 * bt * NH             # fused readout lanes
    m = np.arange(bt * T)

    # fused-Q column j = k*NH + h (per branch)  <-  original column h*KS + k
    perm = (np.arange(nq) % NH) * KS + (np.arange(nq) // NH)
    tags = jnp.arange(T, dtype=jnp.float32)

    def q_split(wq):
        w3 = wq.reshape(T, zt, nq)
        wz = w3[:, :Z, :][:, :, perm]                                # (T, Z, nq)
        wtag = (tags[:, None] * w3[:, Z, :][:, perm]).sum(axis=0)    # (nq,)
        return wz, wtag

    wq1z, q1tag = q_split(p['wq1'])
    wq2z, q2tag = q_split(p['wq2'])
    wq_fused = jnp.concatenate([wq1z, wq2z], axis=2).astype(jnp.bfloat16)   # (T, Z, nq2)
    qtag = jnp.concatenate([q1tag, q2tag])[None, :].astype(jnp.float32)     # (1, nq2)

    colk2 = (np.arange(nq2) % nq) // NH                   # key index of each fused column
    # (kept f32 here; could be bf16 on v5e per the review)
    wkrep2 = p['wk'][:Z][:, colk2]                                           # (Z, nq2)
    ktagrep2 = (jnp.asarray((m % T).astype(np.float32))[:, None] *
                p['wk'][Z][colk2][None, :])                                  # (bt*T, nq2)

    o = np.arange(nq2)
    hsel2 = jnp.asarray((((o // nq) * NH + (o % NH))[:, None] ==
                         np.arange(nh2)[None, :]).astype(np.float32))        # (nq2, nh2)

    o2 = np.arange(no)                       # readout column o2 = q*bt*NH + b*NH + h
    q_of, b_of, h_of = o2 // (bt * NH), (o2 % (bt * NH)) // NH, o2 % NH
    j2 = np.arange(nh2)
    hrep2 = jnp.asarray((((j2[:, None] // NH) == q_of[None, :]) &
                         ((j2[:, None] % NH) == h_of[None, :])).astype(np.float32))  # (nh2, no)
    emaskt = jnp.asarray(((m // T)[:, None] == b_of[None, :]).astype(np.float32))    # (bt*T, no)

    tagcols = np.zeros((bt * T, 8), np.float32)
    tagcols[:, 0] = m % T
    tagcols = jnp.asarray(tagcols)

    return [p['we1'], p['be1'].reshape(1, -1), p['we2'], p['be2'].reshape(1, -1),
            p['gamma'].reshape(1, -1), p['beta'].reshape(1, -1),
            tagcols, wq_fused, qtag, wkrep2, ktagrep2, hsel2, hrep2, emaskt]


# ------------------------- wrapper -------------------------
def predinet_pallas(x, params):
    B, T, H, W = x.shape
    HW = H * W
    Z, NH = Z_SIZE, N_HEADS

    # Tile sizing: the whole (tiny) batch in one step here.  For larger B, grow
    # bt first so bt*T >= 256 rows (fill the MXU on v6e/v7x; >=128 on v5e), and
    # only then add tiles -- keep num_tiles >= 2 on v7x so the "parallel" axis
    # spans both TensorCores.
    bt = B
    num_tiles = B // bt

    x2d = x.reshape(B * T, HW).astype(jnp.float32)
    consts = prepare_kernel_inputs(params, bt, T)

    no = 2 * bt * NH

    def const_spec(a):
        nd = a.ndim
        return pl.BlockSpec(a.shape, lambda i, _nd=nd: (0,) * _nd)

    in_specs = [pl.BlockSpec((bt * T, HW), lambda i: (i, 0))]
    in_specs += [const_spec(a) for a in consts]
    out_specs = pl.BlockSpec((None, C_PAD, no), lambda i: (i, 0, 0))
    out_shape = jax.ShapeDtypeStruct((num_tiles, C_PAD, no), jnp.float32)

    nq2 = 2 * NH * KEY_SIZE
    nh2 = 2 * NH
    BT = B * T
    flops = 2 * BT * (HW * Z + Z * Z            # encoder
                      + Z * nq2                 # fused Q
                      + Z * nq2                 # replicated K
                      + nq2 * nh2               # head-selection scores
                      + nh2 * no                # readout replication
                      + C_PAD * no)             # fused readout
    bytes_accessed = int(
        x2d.size * x2d.dtype.itemsize
        + sum(int(np.prod(c.shape)) * c.dtype.itemsize for c in consts)
        + num_tiles * C_PAD * no * 4)
    cost = pl.CostEstimate(flops=int(flops), transcendentals=int(BT * nh2),
                           bytes_accessed=bytes_accessed)

    out = pl.pallas_call(
        predinet_kernel,
        grid=(num_tiles,),
        in_specs=in_specs,
        out_specs=out_specs,
        out_shape=out_shape,
        compiler_params=pltpu.CompilerParams(
            dimension_semantics=("parallel",),
            vmem_limit_bytes=16 * 1024 * 1024,
        ),
        cost_estimate=cost,
    )(x2d, *consts)                                   # (num_tiles, C_PAD, 2*bt*NH)

    # unpack fused readout: column o = q*bt*NH + b_local*NH + h
    e = out.reshape(num_tiles, C_PAD, 2, bt, NH)
    e = jnp.transpose(e, (2, 0, 3, 4, 1)).reshape(2, B, NH, C_PAD)
    E1, E2 = e[0], e[1]

    # Tiny relational / output-MLP tail left to XLA (lane-sparse epilogue work).
    hp = jax.lax.Precision.HIGHEST
    zt = Z + 1
    D = jnp.einsum('bhc,cr->bhr', E1[:, :, :zt] - E2[:, :, :zt],
                   params['ws'], precision=hp)
    Dcat = jnp.concatenate([D, E1[:, :, Z:zt], E2[:, :, Z:zt]], axis=2)
    R = Dcat.reshape(B, NH * (N_RELATIONS + 2))
    hidden = jax.nn.relu(jnp.dot(R, params['wh'], precision=hp) + params['bh'])
    y = jnp.dot(hidden, params['wy'], precision=hp) + params['by']
    return y, jnp.argmax(y, axis=1)


# --------------- pure-JAX reference (faithful transcription) ---------------
def predinet_reference(x, p):
    hp = jax.lax.Precision.HIGHEST
    B, T, H, W = x.shape
    xf = x.reshape(B * T, H * W).astype(jnp.float32)
    h1 = jax.nn.relu(jnp.dot(xf, p['we1'], precision=hp) + p['be1'])
    z = jnp.dot(h1, p['we2'], precision=hp) + p['be2']
    z = z.reshape(B, T, Z_SIZE)
    mu = z.mean(axis=1, keepdims=True)
    var = jnp.var(z, axis=1, ddof=1, keepdims=True)
    z = (z - mu) / jnp.sqrt(var + 1e-8) * p['gamma'] + p['beta']
    tag = jnp.broadcast_to(jnp.arange(T, dtype=jnp.float32)[None, :, None], (B, T, 1))
    zt = jnp.concatenate([z, tag], axis=2)                         # (B, T, 129)
    K = jnp.einsum('btc,ck->btk', zt, p['wk'], precision=hp)
    zf = zt.reshape(B, T * (Z_SIZE + 1))
    Q1 = jnp.dot(zf, p['wq1'], precision=hp).reshape(B, N_HEADS, KEY_SIZE)
    Q2 = jnp.dot(zf, p['wq2'], precision=hp).reshape(B, N_HEADS, KEY_SIZE)
    s1 = jnp.einsum('bhk,btk->bth', Q1, K, precision=hp)
    s2 = jnp.einsum('bhk,btk->bth', Q2, K, precision=hp)
    A1 = jax.nn.softmax(s1, axis=1)
    A2 = jax.nn.softmax(s2, axis=1)
    E1 = jnp.einsum('bth,btc->bhc', A1, zt, precision=hp)
    E2 = jnp.einsum('bth,btc->bhc', A2, zt, precision=hp)
    D = jnp.einsum('bhc,cr->bhr', E1 - E2, p['ws'], precision=hp)
    D = jnp.concatenate([D, E1[:, :, -1:], E2[:, :, -1:]], axis=2)
    R = D.reshape(B, N_HEADS * (N_RELATIONS + 2))
    h = jax.nn.relu(jnp.dot(R, p['wh'], precision=hp) + p['bh'])
    y = jnp.dot(h, p['wy'], precision=hp) + p['by']
    return y, jnp.argmax(y, axis=1)


if __name__ == "__main__":
    B, T, H, W, Y_DIM = 2, 8, 16, 16, 4
    key = jax.random.PRNGKey(0)
    kx, kp = jax.random.split(key)
    x = jax.random.normal(kx, (B, T, H, W), jnp.float32)
    params = init_params(kp, T, H * W, Y_DIM)

    y_lin, y_pred = jax.jit(predinet_pallas)(x, params)
    jax.block_until_ready((y_lin, y_pred))

    y_ref, _ = predinet_reference(x, params)
    np.testing.assert_allclose(np.asarray(y_lin), np.asarray(y_ref),
                               rtol=5e-2, atol=5e-2)

    print("KERNEL_OK")
</pallas_src>

<mosaic_0001>
module attributes {stable_mosaic.version = 11 : i64} {
  func.func @predinet_kernel(%arg0: i32, %arg1: memref<16x256xf32, #tpu.memory_space<vmem>>, %arg2: memref<256x128xf32, #tpu.memory_space<vmem>>, %arg3: memref<1x128xf32, #tpu.memory_space<vmem>>, %arg4: memref<128x128xf32, #tpu.memory_space<vmem>>, %arg5: memref<1x128xf32, #tpu.memory_space<vmem>>, %arg6: memref<1x128xf32, #tpu.memory_space<vmem>>, %arg7: memref<1x128xf32, #tpu.memory_space<vmem>>, %arg8: memref<16x8xf32, #tpu.memory_space<vmem>>, %arg9: memref<8x128x1024xbf16, #tpu.memory_space<vmem>>, %arg10: memref<1x1024xf32, #tpu.memory_space<vmem>>, %arg11: memref<128x1024xf32, #tpu.memory_space<vmem>>, %arg12: memref<16x1024xf32, #tpu.memory_space<vmem>>, %arg13: memref<1024x64xf32, #tpu.memory_space<vmem>>, %arg14: memref<64x128xf32, #tpu.memory_space<vmem>>, %arg15: memref<16x128xf32, #tpu.memory_space<vmem>>, %arg16: memref<1x136x128xf32, #tpu.memory_space<vmem>>) attributes {dimension_semantics = [#tpu.dimension_semantics<parallel>], iteration_bounds = array<i64: 1>, scalar_prefetch = 0 : i64, scratch_operands = 0 : i64, tpu.core_type = #tpu.core_type<tc>, window_params = [{transform_indices = @transform_0, window_bounds = array<i64: 16, 256>}, {pipeline_mode = #tpu.pipeline_mode<synchronous>, transform_indices = @transform_1, window_bounds = array<i64: 256, 128>}, {pipeline_mode = #tpu.pipeline_mode<synchronous>, transform_indices = @transform_2, window_bounds = array<i64: 1, 128>}, {pipeline_mode = #tpu.pipeline_mode<synchronous>, transform_indices = @transform_3, window_bounds = array<i64: 128, 128>}, {pipeline_mode = #tpu.pipeline_mode<synchronous>, transform_indices = @transform_4, window_bounds = array<i64: 1, 128>}, {pipeline_mode = #tpu.pipeline_mode<synchronous>, transform_indices = @transform_5, window_bounds = array<i64: 1, 128>}, {pipeline_mode = #tpu.pipeline_mode<synchronous>, transform_indices = @transform_6, window_bounds = array<i64: 1, 128>}, {pipeline_mode = #tpu.pipeline_mode<synchronous>, transform_indices = @transform_7, window_bounds = array<i64: 16, 8>}, {pipeline_mode = #tpu.pipeline_mode<synchronous>, transform_indices = @transform_8, window_bounds = array<i64: 8, 128, 1024>}, {pipeline_mode = #tpu.pipeline_mode<synchronous>, transform_indices = @transform_9, window_bounds = array<i64: 1, 1024>}, {pipeline_mode = #tpu.pipeline_mode<synchronous>, transform_indices = @transform_10, window_bounds = array<i64: 128, 1024>}, {pipeline_mode = #tpu.pipeline_mode<synchronous>, transform_indices = @transform_11, window_bounds = array<i64: 16, 1024>}, {pipeline_mode = #tpu.pipeline_mode<synchronous>, transform_indices = @transform_12, window_bounds = array<i64: 1024, 64>}, {pipeline_mode = #tpu.pipeline_mode<synchronous>, transform_indices = @transform_13, window_bounds = array<i64: 64, 128>}, {pipeline_mode = #tpu.pipeline_mode<synchronous>, transform_indices = @transform_14, window_bounds = array<i64: 16, 128>}, {transform_indices = @transform_15, window_bounds = array<i64: 1, 136, 128>}]} {
    %c0 = arith.constant 0 : index
    %c0_0 = arith.constant 0 : index
    %0 = vector.load %arg1[%c0, %c0_0] : memref<16x256xf32, #tpu.memory_space<vmem>>, vector<16x256xf32>
    %c0_1 = arith.constant 0 : index
    %c0_2 = arith.constant 0 : index
    %1 = vector.load %arg2[%c0_1, %c0_2] : memref<256x128xf32, #tpu.memory_space<vmem>>, vector<256x128xf32>
    %cst = arith.constant dense<0.000000e+00> : vector<16x128xf32>
    %2 = tpu.matmul %0, %1, %cst {dimension_numbers = #tpu.dot_dimension_numbers<[1], [0], [0], [1], [0, 0, 1, 1], [], []>, precision = #tpu.contract_precision<fp32>} : vector<16x256xf32>, vector<256x128xf32>, vector<16x128xf32> -> vector<16x128xf32>
    %c0_3 = arith.constant 0 : index
    %c0_4 = arith.constant 0 : index
    %3 = vector.load %arg3[%c0_3, %c0_4] : memref<1x128xf32, #tpu.memory_space<vmem>>, vector<1x128xf32>
    %4 = vector.broadcast %3 : vector<1x128xf32> to vector<16x128xf32>
    %5 = arith.addf %2, %4 : vector<16x128xf32>
    %cst_5 = arith.constant 0.000000e+00 : f32
    %6 = vector.broadcast %cst_5 : f32 to vector<16x128xf32>
    %7 = arith.maximumf %5, %6 : vector<16x128xf32>
    %c0_6 = arith.constant 0 : index
    %c0_7 = arith.constant 0 : index
    %8 = vector.load %arg4[%c0_6, %c0_7] : memref<128x128xf32, #tpu.memory_space<vmem>>, vector<128x128xf32>
    %cst_8 = arith.constant dense<0.000000e+00> : vector<16x128xf32>
    %9 = tpu.matmul %7, %8, %cst_8 {dimension_numbers = #tpu.dot_dimension_numbers<[1], [0], [0], [1], [0, 0, 1, 1], [], []>, precision = #tpu.contract_precision<fp32>} : vector<16x128xf32>, vector<128x128xf32>, vector<16x128xf32> -> vector<16x128xf32>
    %c0_9 = arith.constant 0 : index
    %c0_10 = arith.constant 0 : index
    %10 = vector.load %arg5[%c0_9, %c0_10] : memref<1x128xf32, #tpu.memory_space<vmem>>, vector<1x128xf32>
    %11 = vector.broadcast %10 : vector<1x128xf32> to vector<16x128xf32>
    %12 = arith.addf %9, %11 : vector<16x128xf32>
    %13 = vector.shape_cast %12 : vector<16x128xf32> to vector<2x8x128xf32>
    %cst_11 = arith.constant dense<0.000000e+00> : vector<2x128xf32>
    %14 = vector.multi_reduction <add>, %13, %cst_11 [1] : vector<2x8x128xf32> to vector<2x128xf32>
    %15 = vector.shape_cast %14 : vector<2x128xf32> to vector<2x1x128xf32>
    %cst_12 = arith.constant 8.000000e+00 : f32
    %16 = vector.broadcast %cst_12 : f32 to vector<2x1x128xf32>
    %17 = arith.divf %15, %16 : vector<2x1x128xf32>
    %18 = vector.broadcast %17 : vector<2x1x128xf32> to vector<2x8x128xf32>
    %19 = arith.subf %13, %18 : vector<2x8x128xf32>
    %20 = arith.mulf %19, %19 : vector<2x8x128xf32>
    %cst_13 = arith.constant dense<0.000000e+00> : vector<2x128xf32>
    %21 = vector.multi_reduction <add>, %20, %cst_13 [1] : vector<2x8x128xf32> to vector<2x128xf32>
    %22 = vector.shape_cast %21 : vector<2x128xf32> to vector<2x1x128xf32>
    %cst_14 = arith.constant 0.142857149 : f32
    %23 = vector.broadcast %cst_14 : f32 to vector<2x1x128xf32>
    %24 = arith.mulf %22, %23 : vector<2x1x128xf32>
    %cst_15 = arith.constant 9.99999993E-9 : f32
    %25 = vector.broadcast %cst_15 : f32 to vector<2x1x128xf32>
    %26 = arith.addf %24, %25 : vector<2x1x128xf32>
    %27 = math.rsqrt %26 : vector<2x1x128xf32>
    %28 = vector.broadcast %27 : vector<2x1x128xf32> to vector<2x8x128xf32>
    %29 = arith.mulf %19, %28 : vector<2x8x128xf32>
    %c0_16 = arith.constant 0 : index
    %c0_17 = arith.constant 0 : index
    %30 = vector.load %arg6[%c0_16, %c0_17] : memref<1x128xf32, #tpu.memory_space<vmem>>, vector<1x128xf32>
    %31 = vector.shape_cast %30 : vector<1x128xf32> to vector<1x1x128xf32>
    %32 = vector.broadcast %31 : vector<1x1x128xf32> to vector<2x8x128xf32>
    %33 = arith.mulf %29, %32 : vector<2x8x128xf32>
    %c0_18 = arith.constant 0 : index
    %c0_19 = arith.constant 0 : index
    %34 = vector.load %arg7[%c0_18, %c0_19] : memref<1x128xf32, #tpu.memory_space<vmem>>, vector<1x128xf32>
    %35 = vector.shape_cast %34 : vector<1x128xf32> to vector<1x1x128xf32>
    %36 = vector.broadcast %35 : vector<1x1x128xf32> to vector<2x8x128xf32>
    %37 = arith.addf %33, %36 : vector<2x8x128xf32>
    %38 = vector.shape_cast %37 : vector<2x8x128xf32> to vector<16x128xf32>
    %c0_20 = arith.constant 0 : index
    %c0_21 = arith.constant 0 : index
    %39 = vector.load %arg10[%c0_20, %c0_21] : memref<1x1024xf32, #tpu.memory_space<vmem>>, vector<1x1024xf32>
    %40 = vector.extract_strided_slice %37 {offsets = [0, 0, 0], sizes = [2, 1, 128], strides = [1, 1, 1]} : vector<2x8x128xf32> to vector<2x1x128xf32>
    %41 = vector.shape_cast %40 : vector<2x1x128xf32> to vector<2x128xf32>
    %42 = arith.truncf %41 : vector<2x128xf32> to vector<2x128xbf16>
    %c0_22 = arith.constant 0 : index
    %c0_23 = arith.constant 0 : index
    %c0_24 = arith.constant 0 : index
    %43 = vector.load %arg9[%c0_22, %c0_23, %c0_24] : memref<8x128x1024xbf16, #tpu.memory_space<vmem>>, vector<1x128x1024xbf16>
    %44 = vector.shape_cast %43 : vector<1x128x1024xbf16> to vector<128x1024xbf16>
    %cst_25 = arith.constant dense<0.000000e+00> : vector<2x1024xf32>
    %45 = tpu.matmul %42, %44, %cst_25 {dimension_numbers = #tpu.dot_dimension_numbers<[1], [0], [0], [1], [0, 0, 1, 1], [], []>} : vector<2x128xbf16>, vector<128x1024xbf16>, vector<2x1024xf32> -> vector<2x1024xf32>
    %46 = vector.broadcast %39 : vector<1x1024xf32> to vector<2x1024xf32>
    %47 = arith.addf %46, %45 : vector<2x1024xf32>
    %48 = vector.extract_strided_slice %37 {offsets = [0, 1, 0], sizes = [2, 1, 128], strides = [1, 1, 1]} : vector<2x8x128xf32> to vector<2x1x128xf32>
    %49 = vector.shape_cast %48 : vector<2x1x128xf32> to vector<2x128xf32>
    %50 = arith.truncf %49 : vector<2x128xf32> to vector<2x128xbf16>
    %c1 = arith.constant 1 : index
    %c0_26 = arith.constant 0 : index
    %c0_27 = arith.constant 0 : index
    %51 = vector.load %arg9[%c1, %c0_26, %c0_27] : memref<8x128x1024xbf16, #tpu.memory_space<vmem>>, vector<1x128x1024xbf16>
    %52 = vector.shape_cast %51 : vector<1x128x1024xbf16> to vector<128x1024xbf16>
    %cst_28 = arith.constant dense<0.000000e+00> : vector<2x1024xf32>
    %53 = tpu.matmul %50, %52, %cst_28 {dimension_numbers = #tpu.dot_dimension_numbers<[1], [0], [0], [1], [0, 0, 1, 1], [], []>} : vector<2x128xbf16>, vector<128x1024xbf16>, vector<2x1024xf32> -> vector<2x1024xf32>
    %54 = arith.addf %47, %53 : vector<2x1024xf32>
    %55 = vector.extract_strided_slice %37 {offsets = [0, 2, 0], sizes = [2, 1, 128], strides = [1, 1, 1]} : vector<2x8x128xf32> to vector<2x1x128xf32>
    %56 = vector.shape_cast %55 : vector<2x1x128xf32> to vector<2x128xf32>
    %57 = arith.truncf %56 : vector<2x128xf32> to vector<2x128xbf16>
    %c2 = arith.constant 2 : index
    %c0_29 = arith.constant 0 : index
    %c0_30 = arith.constant 0 : index
    %58 = vector.load %arg9[%c2, %c0_29, %c0_30] : memref<8x128x1024xbf16, #tpu.memory_space<vmem>>, vector<1x128x1024xbf16>
    %59 = vector.shape_cast %58 : vector<1x128x1024xbf16> to vector<128x1024xbf16>
    %cst_31 = arith.constant dense<0.000000e+00> : vector<2x1024xf32>
    %60 = tpu.matmul %57, %59, %cst_31 {dimension_numbers = #tpu.dot_dimension_numbers<[1], [0], [0], [1], [0, 0, 1, 1], [], []>} : vector<2x128xbf16>, vector<128x1024xbf16>, vector<2x1024xf32> -> vector<2x1024xf32>
    %61 = arith.addf %54, %60 : vector<2x1024xf32>
    %62 = vector.extract_strided_slice %37 {offsets = [0, 3, 0], sizes = [2, 1, 128], strides = [1, 1, 1]} : vector<2x8x128xf32> to vector<2x1x128xf32>
    %63 = vector.shape_cast %62 : vector<2x1x128xf32> to vector<2x128xf32>
    %64 = arith.truncf %63 : vector<2x128xf32> to vector<2x128xbf16>
    %c3 = arith.constant 3 : index
    %c0_32 = arith.constant 0 : index
    %c0_33 = arith.constant 0 : index
    %65 = vector.load %arg9[%c3, %c0_32, %c0_33] : memref<8x128x1024xbf16, #tpu.memory_space<vmem>>, vector<1x128x1024xbf16>
    %66 = vector.shape_cast %65 : vector<1x128x1024xbf16> to vector<128x1024xbf16>
    %cst_34 = arith.constant dense<0.000000e+00> : vector<2x1024xf32>
    %67 = tpu.matmul %64, %66, %cst_34 {dimension_numbers = #tpu.dot_dimension_numbers<[1], [0], [0], [1], [0, 0, 1, 1], [], []>} : vector<2x128xbf16>, vector<128x1024xbf16>, vector<2x1024xf32> -> vector<2x1024xf32>
    %68 = arith.addf %61, %67 : vector<2x1024xf32>
    %69 = vector.extract_strided_slice %37 {offsets = [0, 4, 0], sizes = [2, 1, 128], strides = [1, 1, 1]} : vector<2x8x128xf32> to vector<2x1x128xf32>
    %70 = vector.shape_cast %69 : vector<2x1x128xf32> to vector<2x128xf32>
    %71 = arith.truncf %70 : vector<2x128xf32> to vector<2x128xbf16>
    %c4 = arith.constant 4 : index
    %c0_35 = arith.constant 0 : index
    %c0_36 = arith.constant 0 : index
    %72 = vector.load %arg9[%c4, %c0_35, %c0_36] : memref<8x128x1024xbf16, #tpu.memory_space<vmem>>, vector<1x128x1024xbf16>
    %73 = vector.shape_cast %72 : vector<1x128x1024xbf16> to vector<128x1024xbf16>
    %cst_37 = arith.constant dense<0.000000e+00> : vector<2x1024xf32>
    %74 = tpu.matmul %71, %73, %cst_37 {dimension_numbers = #tpu.dot_dimension_numbers<[1], [0], [0], [1], [0, 0, 1, 1], [], []>} : vector<2x128xbf16>, vector<128x1024xbf16>, vector<2x1024xf32> -> vector<2x1024xf32>
    %75 = arith.addf %68, %74 : vector<2x1024xf32>
    %76 = vector.extract_strided_slice %37 {offsets = [0, 5, 0], sizes = [2, 1, 128], strides = [1, 1, 1]} : vector<2x8x128xf32> to vector<2x1x128xf32>
    %77 = vector.shape_cast %76 : vector<2x1x128xf32> to vector<2x128xf32>
    %78 = arith.truncf %77 : vector<2x128xf32> to vector<2x128xbf16>
    %c5 = arith.constant 5 : index
    %c0_38 = arith.constant 0 : index
    %c0_39 = arith.constant 0 : index
    %79 = vector.load %arg9[%c5, %c0_38, %c0_39] : memref<8x128x1024xbf16, #tpu.memory_space<vmem>>, vector<1x128x1024xbf16>
    %80 = vector.shape_cast %79 : vector<1x128x1024xbf16> to vector<128x1024xbf16>
    %cst_40 = arith.constant dense<0.000000e+00> : vector<2x1024xf32>
    %81 = tpu.matmul %78, %80, %cst_40 {dimension_numbers = #tpu.dot_dimension_numbers<[1], [0], [0], [1], [0, 0, 1, 1], [], []>} : vector<2x128xbf16>, vector<128x1024xbf16>, vector<2x1024xf32> -> vector<2x1024xf32>
    %82 = arith.addf %75, %81 : vector<2x1024xf32>
    %83 = vector.extract_strided_slice %37 {offsets = [0, 6, 0], sizes = [2, 1, 128], strides = [1, 1, 1]} : vector<2x8x128xf32> to vector<2x1x128xf32>
    %84 = vector.shape_cast %83 : vector<2x1x128xf32> to vector<2x128xf32>
    %85 = arith.truncf %84 : vector<2x128xf32> to vector<2x128xbf16>
    %c6 = arith.constant 6 : index
    %c0_41 = arith.constant 0 : index
    %c0_42 = arith.constant 0 : index
    %86 = vector.load %arg9[%c6, %c0_41, %c0_42] : memref<8x128x1024xbf16, #tpu.memory_space<vmem>>, vector<1x128x1024xbf16>
    %87 = vector.shape_cast %86 : vector<1x128x1024xbf16> to vector<128x1024xbf16>
    %cst_43 = arith.constant dense<0.000000e+00> : vector<2x1024xf32>
    %88 = tpu.matmul %85, %87, %cst_43 {dimension_numbers = #tpu.dot_dimension_numbers<[1], [0], [0], [1], [0, 0, 1, 1], [], []>} : vector<2x128xbf16>, vector<128x1024xbf16>, vector<2x1024xf32> -> vector<2x1024xf32>
    %89 = arith.addf %82, %88 : vector<2x1024xf32>
    %90 = vector.extract_strided_slice %37 {offsets = [0, 7, 0], sizes = [2, 1, 128], strides = [1, 1, 1]} : vector<2x8x128xf32> to vector<2x1x128xf32>
    %91 = vector.shape_cast %90 : vector<2x1x128xf32> to vector<2x128xf32>
    %92 = arith.truncf %91 : vector<2x128xf32> to vector<2x128xbf16>
    %c7 = arith.constant 7 : index
    %c0_44 = arith.constant 0 : index
    %c0_45 = arith.constant 0 : index
    %93 = vector.load %arg9[%c7, %c0_44, %c0_45] : memref<8x128x1024xbf16, #tpu.memory_space<vmem>>, vector<1x128x1024xbf16>
    %94 = vector.shape_cast %93 : vector<1x128x1024xbf16> to vector<128x1024xbf16>
    %cst_46 = arith.constant dense<0.000000e+00> : vector<2x1024xf32>
    %95 = tpu.matmul %92, %94, %cst_46 {dimension_numbers = #tpu.dot_dimension_numbers<[1], [0], [0], [1], [0, 0, 1, 1], [], []>} : vector<2x128xbf16>, vector<128x1024xbf16>, vector<2x1024xf32> -> vector<2x1024xf32>
    %96 = arith.addf %89, %95 : vector<2x1024xf32>
    %c0_47 = arith.constant 0 : index
    %c0_48 = arith.constant 0 : index
    %97 = vector.load %arg11[%c0_47, %c0_48] : memref<128x1024xf32, #tpu.memory_space<vmem>>, vector<128x1024xf32>
    %cst_49 = arith.constant dense<0.000000e+00> : vector<16x1024xf32>
    %98 = tpu.matmul %38, %97, %cst_49 {dimension_numbers = #tpu.dot_dimension_numbers<[1], [0], [0], [1], [0, 0, 1, 1], [], []>, precision = #tpu.contract_precision<fp32>} : vector<16x128xf32>, vector<128x1024xf32>, vector<16x1024xf32> -> vector<16x1024xf32>
    %c0_50 = arith.constant 0 : index
    %c0_51 = arith.constant 0 : index
    %99 = vector.load %arg12[%c0_50, %c0_51] : memref<16x1024xf32, #tpu.memory_space<vmem>>, vector<16x1024xf32>
    %100 = arith.addf %98, %99 : vector<16x1024xf32>
    %101 = vector.shape_cast %100 : vector<16x1024xf32> to vector<2x8x1024xf32>
    %102 = vector.shape_cast %96 : vector<2x1024xf32> to vector<2x1x1024xf32>
    %103 = vector.broadcast %102 : vector<2x1x1024xf32> to vector<2x8x1024xf32>
    %104 = arith.mulf %101, %103 : vector<2x8x1024xf32>
    %105 = vector.shape_cast %104 : vector<2x8x1024xf32> to vector<16x1024xf32>
    %c0_52 = arith.constant 0 : index
    %c0_53 = arith.constant 0 : index
    %106 = vector.load %arg13[%c0_52, %c0_53] : memref<1024x64xf32, #tpu.memory_space<vmem>>, vector<1024x64xf32>
    %cst_54 = arith.constant dense<0.000000e+00> : vector<16x64xf32>
    %107 = tpu.matmul %105, %106, %cst_54 {dimension_numbers = #tpu.dot_dimension_numbers<[1], [0], [0], [1], [0, 0, 1, 1], [], []>} : vector<16x1024xf32>, vector<1024x64xf32>, vector<16x64xf32> -> vector<16x64xf32>
    %108 = vector.shape_cast %107 : vector<16x64xf32> to vector<2x8x64xf32>
    %cst_55 = arith.constant dense<0xFF800000> : vector<2x64xf32>
    %109 = vector.multi_reduction <maximumf>, %108, %cst_55 [1] : vector<2x8x64xf32> to vector<2x64xf32>
    %110 = vector.shape_cast %109 : vector<2x64xf32> to vector<2x1x64xf32>
    %111 = vector.broadcast %110 : vector<2x1x64xf32> to vector<2x8x64xf32>
    %112 = arith.subf %108, %111 : vector<2x8x64xf32>
    %113 = math.exp %112 : vector<2x8x64xf32>
    %cst_56 = arith.constant dense<0.000000e+00> : vector<2x64xf32>
    %114 = vector.multi_reduction <add>, %113, %cst_56 [1] : vector<2x8x64xf32> to vector<2x64xf32>
    %115 = vector.shape_cast %114 : vector<2x64xf32> to vector<2x1x64xf32>
    %116 = tpu.reciprocal %115 {approx = true} : vector<2x1x64xf32> -> vector<2x1x64xf32>
    %117 = vector.broadcast %116 : vector<2x1x64xf32> to vector<2x8x64xf32>
    %118 = arith.mulf %113, %117 : vector<2x8x64xf32>
    %119 = vector.shape_cast %118 : vector<2x8x64xf32> to vector<16x64xf32>
    %c0_57 = arith.constant 0 : index
    %c0_58 = arith.constant 0 : index
    %120 = vector.load %arg14[%c0_57, %c0_58] : memref<64x128xf32, #tpu.memory_space<vmem>>, vector<64x128xf32>
    %cst_59 = arith.constant dense<0.000000e+00> : vector<16x128xf32>
    %121 = tpu.matmul %119, %120, %cst_59 {dimension_numbers = #tpu.dot_dimension_numbers<[1], [0], [0], [1], [0, 0, 1, 1], [], []>} : vector<16x64xf32>, vector<64x128xf32>, vector<16x128xf32> -> vector<16x128xf32>
    %c0_60 = arith.constant 0 : index
    %c0_61 = arith.constant 0 : index
    %122 = vector.load %arg15[%c0_60, %c0_61] : memref<16x128xf32, #tpu.memory_space<vmem>>, vector<16x128xf32>
    %123 = arith.mulf %121, %122 : vector<16x128xf32>
    %c0_62 = arith.constant 0 : index
    %c0_63 = arith.constant 0 : index
    %124 = vector.load %arg8[%c0_62, %c0_63] : memref<16x8xf32, #tpu.memory_space<vmem>>, vector<16x8xf32>
    %125 = tpu.concatenate %38, %124 in 1 : vector<16x128xf32>, vector<16x8xf32> -> vector<16x136xf32>
    %cst_64 = arith.constant dense<0.000000e+00> : vector<136x128xf32>
    %126 = tpu.matmul %125, %123, %cst_64 {dimension_numbers = #tpu.dot_dimension_numbers<[0], [0], [1], [1], [0, 1, 1, 1], [], []>, precision = #tpu.contract_precision<fp32>} : vector<16x136xf32>, vector<16x128xf32>, vector<136x128xf32> -> vector<136x128xf32>
    %c0_65 = arith.constant 0 : index
    %c0_66 = arith.constant 0 : index
    %c0_67 = arith.constant 0 : index
    %127 = vector.load %arg16[%c0_65, %c0_66, %c0_67] : memref<1x136x128xf32, #tpu.memory_space<vmem>>, vector<1x136x128xf32>
    %128 = vector.shape_cast %127 : vector<1x136x128xf32> to vector<136x128xf32>
    %129 = vector.shape_cast %126 : vector<136x128xf32> to vector<1x136x128xf32>
    tpu.vector_store %arg16[%c0_65, %c0_66, %c0_67], %129 {strides = array<i32>} : memref<1x136x128xf32, #tpu.memory_space<vmem>>, vector<1x136x128xf32>,
    return
  }
  func.func @transform_0(%arg0: i32) -> (i32, i32) {
    %c0_i32 = arith.constant 0 : i32
    %c0_i32_0 = arith.constant 0 : i32
    return %arg0, %c0_i32 : i32, i32
  }
  func.func @transform_1(%arg0: i32) -> (i32, i32) {
    %c0_i32 = arith.constant 0 : i32
    %c0_i32_0 = arith.constant 0 : i32
    %c0_i32_1 = arith.constant 0 : i32
    return %c0_i32, %c0_i32_0 : i32, i32
  }
  func.func @transform_2(%arg0: i32) -> (i32, i32) {
    %c0_i32 = arith.constant 0 : i32
    %c0_i32_0 = arith.constant 0 : i32
    %c0_i32_1 = arith.constant 0 : i32
    return %c0_i32, %c0_i32_0 : i32, i32
  }
  func.func @transform_3(%arg0: i32) -> (i32, i32) {
    %c0_i32 = arith.constant 0 : i32
    %c0_i32_0 = arith.constant 0 : i32
    %c0_i32_1 = arith.constant 0 : i32
    return %c0_i32, %c0_i32_0 : i32, i32
  }
  func.func @transform_4(%arg0: i32) -> (i32, i32) {
    %c0_i32 = arith.constant 0 : i32
    %c0_i32_0 = arith.constant 0 : i32
    %c0_i32_1 = arith.constant 0 : i32
    return %c0_i32, %c0_i32_0 : i32, i32
  }
  func.func @transform_5(%arg0: i32) -> (i32, i32) {
    %c0_i32 = arith.constant 0 : i32
    %c0_i32_0 = arith.constant 0 : i32
    %c0_i32_1 = arith.constant 0 : i32
    return %c0_i32, %c0_i32_0 : i32, i32
  }
  func.func @transform_6(%arg0: i32) -> (i32, i32) {
    %c0_i32 = arith.constant 0 : i32
    %c0_i32_0 = arith.constant 0 : i32
    %c0_i32_1 = arith.constant 0 : i32
    return %c0_i32, %c0_i32_0 : i32, i32
  }
  func.func @transform_7(%arg0: i32) -> (i32, i32) {
    %c0_i32 = arith.constant 0 : i32
    %c0_i32_0 = arith.constant 0 : i32
    %c0_i32_1 = arith.constant 0 : i32
    return %c0_i32, %c0_i32_0 : i32, i32
  }
  func.func @transform_8(%arg0: i32) -> (i32, i32, i32) {
    %c0_i32 = arith.constant 0 : i32
    %c0_i32_0 = arith.constant 0 : i32
    %c0_i32_1 = arith.constant 0 : i32
    %c0_i32_2 = arith.constant 0 : i32
    return %c0_i32, %c0_i32_0, %c0_i32_1 : i32, i32, i32
  }
  func.func @transform_9(%arg0: i32) -> (i32, i32) {
    %c0_i32 = arith.constant 0 : i32
    %c0_i32_0 = arith.constant 0 : i32
    %c0_i32_1 = arith.constant 0 : i32
    return %c0_i32, %c0_i32_0 : i32, i32
  }
  func.func @transform_10(%arg0: i32) -> (i32, i32) {
    %c0_i32 = arith.constant 0 : i32
    %c0_i32_0 = arith.constant 0 : i32
    %c0_i32_1 = arith.constant 0 : i32
    return %c0_i32, %c0_i32_0 : i32, i32
  }
  func.func @transform_11(%arg0: i32) -> (i32, i32) {
    %c0_i32 = arith.constant 0 : i32
    %c0_i32_0 = arith.constant 0 : i32
    %c0_i32_1 = arith.constant 0 : i32
    return %c0_i32, %c0_i32_0 : i32, i32
  }
  func.func @transform_12(%arg0: i32) -> (i32, i32) {
    %c0_i32 = arith.constant 0 : i32
    %c0_i32_0 = arith.constant 0 : i32
    %c0_i32_1 = arith.constant 0 : i32
    return %c0_i32, %c0_i32_0 : i32, i32
  }
  func.func @transform_13(%arg0: i32) -> (i32, i32) {
    %c0_i32 = arith.constant 0 : i32
    %c0_i32_0 = arith.constant 0 : i32
    %c0_i32_1 = arith.constant 0 : i32
    return %c0_i32, %c0_i32_0 : i32, i32
  }
  func.func @transform_14(%arg0: i32) -> (i32, i32) {
    %c0_i32 = arith.constant 0 : i32
    %c0_i32_0 = arith.constant 0 : i32
    %c0_i32_1 = arith.constant 0 : i32
    return %c0_i32, %c0_i32_0 : i32, i32
  }
  func.func @transform_15(%arg0: i32) -> (i32, i32, i32) {
    %c0_i32 = arith.constant 0 : i32
    %c0_i32_0 = arith.constant 0 : i32
    %c0_i32_1 = arith.constant 0 : i32
    return %arg0, %c0_i32, %c0_i32_0 : i32, i32, i32
  }
}

</mosaic_0001>

<llo_original>
// kernel: predinet_pallas.1
$region0: #{predinet_pallas.1}
  #allocation0 [shape = 'u32[]', space=smem, size = 0x4, offset = 0x4, fixed_abs, tag = 'smem constant byte address 0x4 - core index']
  #allocation1 [shape = 'u32[144,128]{1,0:T(1,128)}', space=vmem, size = 0x12000, scoped, tag = 'internal scratch']
  %s0 = inlined_call_operand.vmem [shape: f32[16,256], index: 0, kind: input, shape index: {}]
  %s1 = inlined_call_operand.vmem [shape: f32[256,128], index: 1, kind: input, shape index: {}]
  %s2 = inlined_call_operand.vmem [shape: f32[1,128], index: 2, kind: input, shape index: {}]
  %s3 = inlined_call_operand.vmem [shape: f32[128,128], index: 3, kind: input, shape index: {}]
  %s4 = inlined_call_operand.vmem [shape: f32[1,128], index: 4, kind: input, shape index: {}]
  %s5 = inlined_call_operand.vmem [shape: f32[1,128], index: 5, kind: input, shape index: {}]
  %s6 = inlined_call_operand.vmem [shape: f32[1,128], index: 6, kind: input, shape index: {}]
  %s7 = inlined_call_operand.vmem [shape: f32[16,8], index: 7, kind: input, shape index: {}]
  %s8 = inlined_call_operand.vmem [shape: bf16[8,128,1024], index: 8, kind: input, shape index: {}]
  %s9 = inlined_call_operand.vmem [shape: f32[1,1024], index: 9, kind: input, shape index: {}]
  %s10 = inlined_call_operand.vmem [shape: f32[128,1024], index: 10, kind: input, shape index: {}]
  %s11 = inlined_call_operand.vmem [shape: f32[16,1024], index: 11, kind: input, shape index: {}]
  %s12 = inlined_call_operand.vmem [shape: f32[1024,64], index: 12, kind: input, shape index: {}]
  %s13 = inlined_call_operand.vmem [shape: f32[64,128], index: 13, kind: input, shape index: {}]
  %s14 = inlined_call_operand.vmem [shape: f32[16,128], index: 14, kind: input, shape index: {}]
  %s15 = inlined_call_operand.vmem [shape: f32[1,136,128], index: 15, kind: output, shape index: {}]
  %s16 = sld [smem:[#allocation0]]
  $region70: #{predinet_pallas.1} parent=0
    _
  %s18 = ssub.s32 1, %s16
  %s19 = scalar_select 0, %s18, %s16
  // Predicated region
  $region2: #{predinet_pallas.1} parent=0 // pred_check
    _
  $region3: #{predinet_pallas.1} parent=0 // pred_check_branch
    %21 = sbr.rel (0) target = $region5
  $region4: #{predinet_pallas.1} parent=0 // pred_region
    _
  $region5: #{predinet_pallas.1} parent=0 // pred_fallthru
    _
  // Predicated region
  $region6: #{predinet_pallas.1} parent=0 // pred_check
    _
  $region7: #{predinet_pallas.1} parent=0 // pred_check_branch
    %23 = sbr.rel (0) target = $region9
  $region8: #{predinet_pallas.1} parent=0 // pred_region
    _
  $region9: #{predinet_pallas.1} parent=0 // pred_fallthru
    _
  // Predicated region
  $region10: #{predinet_pallas.1} parent=0 // pred_check
    _
  $region11: #{predinet_pallas.1} parent=0 // pred_check_branch
    %25 = sbr.rel (0) target = $region13
  $region12: #{predinet_pallas.1} parent=0 // pred_region
    _
  $region13: #{predinet_pallas.1} parent=0 // pred_fallthru
    _
  // Predicated region
  $region14: #{predinet_pallas.1} parent=0 // pred_check
    _
  $region15: #{predinet_pallas.1} parent=0 // pred_check_branch
    %27 = sbr.rel (0) target = $region17
  $region16: #{predinet_pallas.1} parent=0 // pred_region
    _
  $region17: #{predinet_pallas.1} parent=0 // pred_fallthru
    _
  // Predicated region
  $region18: #{predinet_pallas.1} parent=0 // pred_check
    _
  $region19: #{predinet_pallas.1} parent=0 // pred_check_branch
    %29 = sbr.rel (0) target = $region21
  $region20: #{predinet_pallas.1} parent=0 // pred_region
    _
  $region21: #{predinet_pallas.1} parent=0 // pred_fallthru
    _
  // Predicated region
  $region22: #{predinet_pallas.1} parent=0 // pred_check
    _
  $region23: #{predinet_pallas.1} parent=0 // pred_check_branch
    %31 = sbr.rel (0) target = $region25
  $region24: #{predinet_pallas.1} parent=0 // pred_region
    _
  $region25: #{predinet_pallas.1} parent=0 // pred_fallthru
    _
  // Predicated region
  $region26: #{predinet_pallas.1} parent=0 // pred_check
    _
  $region27: #{predinet_pallas.1} parent=0 // pred_check_branch
    %33 = sbr.rel (0) target = $region29
  $region28: #{predinet_pallas.1} parent=0 // pred_region
    _
  $region29: #{predinet_pallas.1} parent=0 // pred_fallthru
    _
  // Predicated region
  $region30: #{predinet_pallas.1} parent=0 // pred_check
    _
  $region31: #{predinet_pallas.1} parent=0 // pred_check_branch
    %35 = sbr.rel (0) target = $region33
  $region32: #{predinet_pallas.1} parent=0 // pred_region
    _
  $region33: #{predinet_pallas.1} parent=0 // pred_fallthru
    _
  // Predicated region
  $region34: #{predinet_pallas.1} parent=0 // pred_check
    _
  $region35: #{predinet_pallas.1} parent=0 // pred_check_branch
    %37 = sbr.rel (0) target = $region37
  $region36: #{predinet_pallas.1} parent=0 // pred_region
    _
  $region37: #{predinet_pallas.1} parent=0 // pred_fallthru
    _
  // Predicated region
  $region38: #{predinet_pallas.1} parent=0 // pred_check
    _
  $region39: #{predinet_pallas.1} parent=0 // pred_check_branch
    %39 = sbr.rel (0) target = $region41
  $region40: #{predinet_pallas.1} parent=0 // pred_region
    _
  $region41: #{predinet_pallas.1} parent=0 // pred_fallthru
    _
  // Predicated region
  $region42: #{predinet_pallas.1} parent=0 // pred_check
    _
  $region43: #{predinet_pallas.1} parent=0 // pred_check_branch
    %41 = sbr.rel (0) target = $region45
  $region44: #{predinet_pallas.1} parent=0 // pred_region
    _
  $region45: #{predinet_pallas.1} parent=0 // pred_fallthru
    _
  // Predicated region
  $region46: #{predinet_pallas.1} parent=0 // pred_check
    _
  $region47: #{predinet_pallas.1} parent=0 // pred_check_branch
    %43 = sbr.rel (0) target = $region49
  $region48: #{predinet_pallas.1} parent=0 // pred_region
    _
  $region49: #{predinet_pallas.1} parent=0 // pred_fallthru
    _
  // Predicated region
  $region50: #{predinet_pallas.1} parent=0 // pred_check
    _
  $region51: #{predinet_pallas.1} parent=0 // pred_check_branch
    %45 = sbr.rel (0) target = $region53
  $region52: #{predinet_pallas.1} parent=0 // pred_region
    _
  $region53: #{predinet_pallas.1} parent=0 // pred_fallthru
    _
  // Predicated region
  $region54: #{predinet_pallas.1} parent=0 // pred_check
    _
  $region55: #{predinet_pallas.1} parent=0 // pred_check_branch
    %47 = sbr.rel (0) target = $region57
  $region56: #{predinet_pallas.1} parent=0 // pred_region
    _
  $region57: #{predinet_pallas.1} parent=0 // pred_fallthru
    _
  // Predicated region
  $region58: #{predinet_pallas.1} parent=0 // pred_check
    _
  $region59: #{predinet_pallas.1} parent=0 // pred_check_branch
    %49 = sbr.rel (0) target = $region61
  $region60: #{predinet_pallas.1} parent=0 // pred_region
    _
  $region61: #{predinet_pallas.1} parent=0 // pred_fallthru
    _
  %v51 = vld [vmem:[%s0] sm:$0xff]
  %v52 = vld [vmem:[%s0 + $0x8] sm:$0xff]
  %v53 = vld [vmem:[%s0 + $0x10] sm:$0xff]
  %v54 = vld [vmem:[%s0 + $0x18] sm:$0xff]
  %v55 = vld [vmem:[%s1] sm:$0xff]
  %v56 = vld [vmem:[%s1 + $0x8] sm:$0xff]
  %v57 = vld [vmem:[%s1 + $0x10] sm:$0xff]
  %v58 = vld [vmem:[%s1 + $0x18] sm:$0xff]
  %v59 = vld [vmem:[%s1 + $0x20] sm:$0xff]
  %v60 = vld [vmem:[%s1 + $0x28] sm:$0xff]
  %v61 = vld [vmem:[%s1 + $0x30] sm:$0xff]
  %v62 = vld [vmem:[%s1 + $0x38] sm:$0xff]
  %v63 = vld [vmem:[%s1 + $0x40] sm:$0xff]
  %v64 = vld [vmem:[%s1 + $0x48] sm:$0xff]
  %v65 = vld [vmem:[%s1 + $0x50] sm:$0xff]
  %v66 = vld [vmem:[%s1 + $0x58] sm:$0xff]
  %v67 = vld [vmem:[%s1 + $0x60] sm:$0xff]
  %v68 = vld [vmem:[%s1 + $0x68] sm:$0xff]
  %v69 = vld [vmem:[%s1 + $0x70] sm:$0xff]
  %v70 = vld [vmem:[%s1 + $0x78] sm:$0xff]
  %v71 = vld [vmem:[%s1 + $0x80] sm:$0xff]
  %v72 = vld [vmem:[%s1 + $0x88] sm:$0xff]
  %v73 = vld [vmem:[%s1 + $0x90] sm:$0xff]
  %v74 = vld [vmem:[%s1 + $0x98] sm:$0xff]
  %v75 = vld [vmem:[%s1 + $0xa0] sm:$0xff]
  %v76 = vld [vmem:[%s1 + $0xa8] sm:$0xff]
  %v77 = vld [vmem:[%s1 + $0xb0] sm:$0xff]
  %v78 = vld [vmem:[%s1 + $0xb8] sm:$0xff]
  %v79 = vld [vmem:[%s1 + $0xc0] sm:$0xff]
  %v80 = vld [vmem:[%s1 + $0xc8] sm:$0xff]
  %v81 = vld [vmem:[%s1 + $0xd0] sm:$0xff]
  %v82 = vld [vmem:[%s1 + $0xd8] sm:$0xff]
  %v83 = vld [vmem:[%s1 + $0xe0] sm:$0xff]
  %v84 = vld [vmem:[%s1 + $0xe8] sm:$0xff]
  %v85 = vld [vmem:[%s1 + $0xf0] sm:$0xff]
  %v86 = vld [vmem:[%s1 + $0xf8] sm:$0xff]
  %v87 = vld [vmem:[%s2] sm:$0x1]
  %v89 = vlaneseq
  %v90 = vshrl.u32 %v89, 7
  %v91 = vsub.s32 0, %v90
  %v92 = vrot.slane %v87, %v91
  %94 = vmatprep.subr.mxu0 0.0
  %v95 = vand.u32 %v55, 4294901760
  %96 = vmatpush1.msra.mxu0 %v95
  %97 = vmatprep.subr.mxu0 0.0
  %v98 = vand.u32 %v56, 4294901760
  %99 = vmatpush1.msra.mxu0 %v98
  %100 = vmatprep.subr.mxu0 0.0
  %v101 = vand.u32 %v57, 4294901760
  %102 = vmatpush1.msra.mxu0 %v101
  %103 = vmatprep.subr.mxu0 0.0
  %v104 = vand.u32 %v58, 4294901760
  %105 = vmatpush1.msra.mxu0 %v104
  %106 = vmatprep.subr.mxu0 0.0
  %v107 = vand.u32 %v59, 4294901760
  %108 = vmatpush1.msra.mxu0 %v107
  %109 = vmatprep.subr.mxu0 0.0
  %v110 = vand.u32 %v60, 4294901760
  %111 = vmatpush1.msra.mxu0 %v110
  %112 = vmatprep.subr.mxu0 0.0
  %v113 = vand.u32 %v61, 4294901760
  %114 = vmatpush1.msra.mxu0 %v113
  %115 = vmatprep.subr.mxu0 0.0
  %v116 = vand.u32 %v62, 4294901760
  %117 = vmatpush1.msra.mxu0 %v116
  %118 = vmatprep.subr.mxu0 0.0
  %v119 = vand.u32 %v63, 4294901760
  %120 = vmatpush1.msra.mxu0 %v119
  %121 = vmatprep.subr.mxu0 0.0
  %v122 = vand.u32 %v64, 4294901760
  %123 = vmatpush1.msra.mxu0 %v122
  %124 = vmatprep.subr.mxu0 0.0
  %v125 = vand.u32 %v65, 4294901760
  %126 = vmatpush1.msra.mxu0 %v125
  %127 = vmatprep.subr.mxu0 0.0
  %v128 = vand.u32 %v66, 4294901760
  %129 = vmatpush1.msra.mxu0 %v128
  %130 = vmatprep.subr.mxu0 0.0
  %v131 = vand.u32 %v67, 4294901760
  %132 = vmatpush1.msra.mxu0 %v131
  %133 = vmatprep.subr.mxu0 0.0
  %v134 = vand.u32 %v68, 4294901760
  %135 = vmatpush1.msra.mxu0 %v134
  %136 = vmatprep.subr.mxu0 0.0
  %v137 = vand.u32 %v69, 4294901760
  %138 = vmatpush1.msra.mxu0 %v137
  %139 = vmatprep.subr.mxu0 0.0
  %v140 = vand.u32 %v70, 4294901760
  %141 = vmatpush1.msra.mxu0 %v140
  %142 = vmatprep.subr.mxu0 0.0
  %v143 = vand.u32 %v71, 4294901760
  %144 = vmatpush1.msra.mxu0 %v143
  %145 = vmatprep.subr.mxu0 0.0
  %v146 = vand.u32 %v72, 4294901760
  %147 = vmatpush1.msra.mxu0 %v146
  %148 = vmatprep.subr.mxu0 0.0
  %v149 = vand.u32 %v73, 4294901760
  %150 = vmatpush1.msra.mxu0 %v149
  %151 = vmatprep.subr.mxu0 0.0
  %v152 = vand.u32 %v74, 4294901760
  %153 = vmatpush1.msra.mxu0 %v152
  %154 = vmatprep.subr.mxu0 0.0
  %v155 = vand.u32 %v75, 4294901760
  %156 = vmatpush1.msra.mxu0 %v155
  %157 = vmatprep.subr.mxu0 0.0
  %v158 = vand.u32 %v76, 4294901760
  %159 = vmatpush1.msra.mxu0 %v158
  %160 = vmatprep.subr.mxu0 0.0
  %v161 = vand.u32 %v77, 4294901760
  %162 = vmatpush1.msra.mxu0 %v161
  %163 = vmatprep.subr.mxu0 0.0
  %v164 = vand.u32 %v78, 4294901760
  %165 = vmatpush1.msra.mxu0 %v164
  %166 = vmatprep.subr.mxu0 0.0
  %v167 = vand.u32 %v79, 4294901760
  %168 = vmatpush1.msra.mxu0 %v167
  %169 = vmatprep.subr.mxu0 0.0
  %v170 = vand.u32 %v80, 4294901760
  %171 = vmatpush1.msra.mxu0 %v170
  %172 = vmatprep.subr.mxu0 0.0
  %v173 = vand.u32 %v81, 4294901760
  %174 = vmatpush1.msra.mxu0 %v173
  %175 = vmatprep.subr.mxu0 0.0
  %v176 = vand.u32 %v82, 4294901760
  %177 = vmatpush1.msra.mxu0 %v176
  %178 = vmatprep.subr.mxu0 0.0
  %v179 = vand.u32 %v83, 4294901760
  %180 = vmatpush1.msra.mxu0 %v179
  %181 = vmatprep.subr.mxu0 0.0
  %v182 = vand.u32 %v84, 4294901760
  %183 = vmatpush1.msra.mxu0 %v182
  %184 = vmatprep.subr.mxu0 0.0
  %v185 = vand.u32 %v85, 4294901760
  %186 = vmatpush1.msra.mxu0 %v185
  %187 = vmatprep.subr.mxu0 0.0
  %v188 = vand.u32 %v86, 4294901760
  %189 = vmatpush1.msra.mxu0 %v188
  %v190 = vand.u32 %v52, 4294901760
  %v191 = vsub.f32 %v52, %v190
  %v192 = vand.u32 %v191, 4294901760
  %v193 = vsub.f32 %v191, %v192
  %v194 = vand.u32 %v193, 4294901760
  %195 = vmatprep.mubr.f32.mxu0 %v194
  %v196 = vand.u32 %v51, 4294901760
  %v197 = vsub.f32 %v51, %v196
  %v198 = vand.u32 %v197, 4294901760
  %v199 = vsub.f32 %v197, %v198
  %v200 = vand.u32 %v199, 4294901760
  %201 = vmatmul.mubr.f32.gmra.mrb[0].mxu0 %v200
  %v202 = vpop.f32.mrb[0].mxu0
  %v203 = vadd.f32 %v92, %v202
  %v204 = vpop.f32.mrb[0].mxu0
  %v205 = vand.u32 %v54, 4294901760
  %v206 = vsub.f32 %v54, %v205
  %v207 = vand.u32 %v206, 4294901760
  %v208 = vsub.f32 %v206, %v207
  %v209 = vand.u32 %v208, 4294901760
  %210 = vmatprep.mubr.f32.mxu0 %v209
  %v211 = vand.u32 %v53, 4294901760
  %v212 = vsub.f32 %v53, %v211
  %v213 = vand.u32 %v212, 4294901760
  %v214 = vsub.f32 %v212, %v213
  %v215 = vand.u32 %v214, 4294901760
  %216 = vmatmul.mubr.f32.gmra.mrb[0].mxu0 %v215
  %v217 = vpop.f32.mrb[0].mxu0
  %v218 = vadd.f32 %v92, %v217
  %v219 = vpop.f32.mrb[0].mxu0
  %220 = vdwg.mxu0
  %221 = vmatprep.subr.mxu0 0.0
  %v222 = vand.u32 %v55, 4294901760
  %v223 = vsub.f32 %v55, %v222
  %v224 = vand.u32 %v223, 4294901760
  %v225 = vsub.f32 %v223, %v224
  %v226 = vand.u32 %v225, 4294901760
  %227 = vmatpush1.msra.mxu0 %v226
  %228 = vmatprep.subr.mxu0 0.0
  %v229 = vand.u32 %v56, 4294901760
  %v230 = vsub.f32 %v56, %v229
  %v231 = vand.u32 %v230, 4294901760
  %v232 = vsub.f32 %v230, %v231
  %v233 = vand.u32 %v232, 4294901760
  %234 = vmatpush1.msra.mxu0 %v233
  %235 = vmatprep.subr.mxu0 0.0
  %v236 = vand.u32 %v57, 4294901760
  %v237 = vsub.f32 %v57, %v236
  %v238 = vand.u32 %v237, 4294901760
  %v239 = vsub.f32 %v237, %v238
  %v240 = vand.u32 %v239, 4294901760
  %241 = vmatpush1.msra.mxu0 %v240
  %242 = vmatprep.subr.mxu0 0.0
  %v243 = vand.u32 %v58, 4294901760
  %v244 = vsub.f32 %v58, %v243
  %v245 = vand.u32 %v244, 4294901760
  %v246 = vsub.f32 %v244, %v245
  %v247 = vand.u32 %v246, 4294901760
  %248 = vmatpush1.msra.mxu0 %v247
  %249 = vmatprep.subr.mxu0 0.0
  %v250 = vand.u32 %v59, 4294901760
  %v251 = vsub.f32 %v59, %v250
  %v252 = vand.u32 %v251, 4294901760
  %v253 = vsub.f32 %v251, %v252
  %v254 = vand.u32 %v253, 4294901760
  %255 = vmatpush1.msra.mxu0 %v254
  %256 = vmatprep.subr.mxu0 0.0
  %v257 = vand.u32 %v60, 4294901760
  %v258 = vsub.f32 %v60, %v257
  %v259 = vand.u32 %v258, 4294901760
  %v260 = vsub.f32 %v258, %v259
  %v261 = vand.u32 %v260, 4294901760
  %262 = vmatpush1.msra.mxu0 %v261
  %263 = vmatprep.subr.mxu0 0.0
  %v264 = vand.u32 %v61, 4294901760
  %v265 = vsub.f32 %v61, %v264
  %v266 = vand.u32 %v265, 4294901760
  %v267 = vsub.f32 %v265, %v266
  %v268 = vand.u32 %v267, 4294901760
  %269 = vmatpush1.msra.mxu0 %v268
  %270 = vmatprep.subr.mxu0 0.0
  %v271 = vand.u32 %v62, 4294901760
  %v272 = vsub.f32 %v62, %v271
  %v273 = vand.u32 %v272, 4294901760
  %v274 = vsub.f32 %v272, %v273
  %v275 = vand.u32 %v274, 4294901760
  %276 = vmatpush1.msra.mxu0 %v275
  %277 = vmatprep.subr.mxu0 0.0
  %v278 = vand.u32 %v63, 4294901760
  %v279 = vsub.f32 %v63, %v278
  %v280 = vand.u32 %v279, 4294901760
  %v281 = vsub.f32 %v279, %v280
  %v282 = vand.u32 %v281, 4294901760
  %283 = vmatpush1.msra.mxu0 %v282
  %284 = vmatprep.subr.mxu0 0.0
  %v285 = vand.u32 %v64, 4294901760
  %v286 = vsub.f32 %v64, %v285
  %v287 = vand.u32 %v286, 4294901760
  %v288 = vsub.f32 %v286, %v287
  %v289 = vand.u32 %v288, 4294901760
  %290 = vmatpush1.msra.mxu0 %v289
  %291 = vmatprep.subr.mxu0 0.0
  %v292 = vand.u32 %v65, 4294901760
  %v293 = vsub.f32 %v65, %v292
  %v294 = vand.u32 %v293, 4294901760
  %v295 = vsub.f32 %v293, %v294
  %v296 = vand.u32 %v295, 4294901760
  %297 = vmatpush1.msra.mxu0 %v296
  %298 = vmatprep.subr.mxu0 0.0
  %v299 = vand.u32 %v66, 4294901760
  %v300 = vsub.f32 %v66, %v299
  %v301 = vand.u32 %v300, 4294901760
  %v302 = vsub.f32 %v300, %v301
  %v303 = vand.u32 %v302, 4294901760
  %304 = vmatpush1.msra.mxu0 %v303
  %305 = vmatprep.subr.mxu0 0.0
  %v306 = vand.u32 %v67, 4294901760
  %v307 = vsub.f32 %v67, %v306
  %v308 = vand.u32 %v307, 4294901760
  %v309 = vsub.f32 %v307, %v308
  %v310 = vand.u32 %v309, 4294901760
  %311 = vmatpush1.msra.mxu0 %v310
  %312 = vmatprep.subr.mxu0 0.0
  %v313 = vand.u32 %v68, 4294901760
  %v314 = vsub.f32 %v68, %v313
  %v315 = vand.u32 %v314, 4294901760
  %v316 = vsub.f32 %v314, %v315
  %v317 = vand.u32 %v316, 4294901760
  %318 = vmatpush1.msra.mxu0 %v317
  %319 = vmatprep.subr.mxu0 0.0
  %v320 = vand.u32 %v69, 4294901760
  %v321 = vsub.f32 %v69, %v320
  %v322 = vand.u32 %v321, 4294901760
  %v323 = vsub.f32 %v321, %v322
  %v324 = vand.u32 %v323, 4294901760
  %325 = vmatpush1.msra.mxu0 %v324
  %326 = vmatprep.subr.mxu0 0.0
  %v327 = vand.u32 %v70, 4294901760
  %v328 = vsub.f32 %v70, %v327
  %v329 = vand.u32 %v328, 4294901760
  %v330 = vsub.f32 %v328, %v329
  %v331 = vand.u32 %v330, 4294901760
  %332 = vmatpush1.msra.mxu0 %v331
  %333 = vmatprep.subr.mxu0 0.0
  %v334 = vand.u32 %v71, 4294901760
  %v335 = vsub.f32 %v71, %v334
  %v336 = vand.u32 %v335, 4294901760
  %v337 = vsub.f32 %v335, %v336
  %v338 = vand.u32 %v337, 4294901760
  %339 = vmatpush1.msra.mxu0 %v338
  %340 = vmatprep.subr.mxu0 0.0
  %v341 = vand.u32 %v72, 4294901760
  %v342 = vsub.f32 %v72, %v341
  %v343 = vand.u32 %v342, 4294901760
  %v344 = vsub.f32 %v342, %v343
  %v345 = vand.u32 %v344, 4294901760
  %346 = vmatpush1.msra.mxu0 %v345
  %347 = vmatprep.subr.mxu0 0.0
  %v348 = vand.u32 %v73, 4294901760
  %v349 = vsub.f32 %v73, %v348
  %v350 = vand.u32 %v349, 4294901760
  %v351 = vsub.f32 %v349, %v350
  %v352 = vand.u32 %v351, 4294901760
  %353 = vmatpush1.msra.mxu0 %v352
  %354 = vmatprep.subr.mxu0 0.0
  %v355 = vand.u32 %v74, 4294901760
  %v356 = vsub.f32 %v74, %v355
  %v357 = vand.u32 %v356, 4294901760
  %v358 = vsub.f32 %v356, %v357
  %v359 = vand.u32 %v358, 4294901760
  %360 = vmatpush1.msra.mxu0 %v359
  %361 = vmatprep.subr.mxu0 0.0
  %v362 = vand.u32 %v75, 4294901760
  %v363 = vsub.f32 %v75, %v362
  %v364 = vand.u32 %v363, 4294901760
  %v365 = vsub.f32 %v363, %v364
  %v366 = vand.u32 %v365, 4294901760
  %367 = vmatpush1.msra.mxu0 %v366
  %368 = vmatprep.subr.mxu0 0.0
  %v369 = vand.u32 %v76, 4294901760
  %v370 = vsub.f32 %v76, %v369
  %v371 = vand.u32 %v370, 4294901760
  %v372 = vsub.f32 %v370, %v371
  %v373 = vand.u32 %v372, 4294901760
  %374 = vmatpush1.msra.mxu0 %v373
  %375 = vmatprep.subr.mxu0 0.0
  %v376 = vand.u32 %v77, 4294901760
  %v377 = vsub.f32 %v77, %v376
  %v378 = vand.u32 %v377, 4294901760
  %v379 = vsub.f32 %v377, %v378
  %v380 = vand.u32 %v379, 4294901760
  %381 = vmatpush1.msra.mxu0 %v380
  %382 = vmatprep.subr.mxu0 0.0
  %v383 = vand.u32 %v78, 4294901760
  %v384 = vsub.f32 %v78, %v383
  %v385 = vand.u32 %v384, 4294901760
  %v386 = vsub.f32 %v384, %v385
  %v387 = vand.u32 %v386, 4294901760
  %388 = vmatpush1.msra.mxu0 %v387
  %389 = vmatprep.subr.mxu0 0.0
  %v390 = vand.u32 %v79, 4294901760
  %v391 = vsub.f32 %v79, %v390
  %v392 = vand.u32 %v391, 4294901760
  %v393 = vsub.f32 %v391, %v392
  %v394 = vand.u32 %v393, 4294901760
  %395 = vmatpush1.msra.mxu0 %v394
  %396 = vmatprep.subr.mxu0 0.0
  %v397 = vand.u32 %v80, 4294901760
  %v398 = vsub.f32 %v80, %v397
  %v399 = vand.u32 %v398, 4294901760
  %v400 = vsub.f32 %v398, %v399
  %v401 = vand.u32 %v400, 4294901760
  %402 = vmatpush1.msra.mxu0 %v401
  %403 = vmatprep.subr.mxu0 0.0
  %v404 = vand.u32 %v81, 4294901760
  %v405 = vsub.f32 %v81, %v404
  %v406 = vand.u32 %v405, 4294901760
  %v407 = vsub.f32 %v405, %v406
  %v408 = vand.u32 %v407, 4294901760
  %409 = vmatpush1.msra.mxu0 %v408
  %410 = vmatprep.subr.mxu0 0.0
  %v411 = vand.u32 %v82, 4294901760
  %v412 = vsub.f32 %v82, %v411
  %v413 = vand.u32 %v412, 4294901760
  %v414 = vsub.f32 %v412, %v413
  %v415 = vand.u32 %v414, 4294901760
  %416 = vmatpush1.msra.mxu0 %v415
  %417 = vmatprep.subr.mxu0 0.0
  %v418 = vand.u32 %v83, 4294901760
  %v419 = vsub.f32 %v83, %v418
  %v420 = vand.u32 %v419, 4294901760
  %v421 = vsub.f32 %v419, %v420
  %v422 = vand.u32 %v421, 4294901760
  %423 = vmatpush1.msra.mxu0 %v422
  %424 = vmatprep.subr.mxu0 0.0
  %v425 = vand.u32 %v84, 4294901760
  %v426 = vsub.f32 %v84, %v425
  %v427 = vand.u32 %v426, 4294901760
  %v428 = vsub.f32 %v426, %v427
  %v429 = vand.u32 %v428, 4294901760
  %430 = vmatpush1.msra.mxu0 %v429
  %431 = vmatprep.subr.mxu0 0.0
  %v432 = vand.u32 %v85, 4294901760
  %v433 = vsub.f32 %v85, %v432
  %v434 = vand.u32 %v433, 4294901760
  %v435 = vsub.f32 %v433, %v434
  %v436 = vand.u32 %v435, 4294901760
  %437 = vmatpush1.msra.mxu0 %v436
  %438 = vmatprep.subr.mxu0 0.0
  %v439 = vand.u32 %v86, 4294901760
  %v440 = vsub.f32 %v86, %v439
  %v441 = vand.u32 %v440, 4294901760
  %v442 = vsub.f32 %v440, %v441
  %v443 = vand.u32 %v442, 4294901760
  %444 = vmatpush1.msra.mxu0 %v443
  %v445 = vand.u32 %v52, 4294901760
  %446 = vmatprep.mubr.f32.mxu0 %v445
  %v447 = vand.u32 %v51, 4294901760
  %448 = vmatmul.mubr.f32.gmra.mrb[0].mxu0 %v447
  %v449 = vpop.f32.mrb[0].mxu0
  %v450 = vadd.f32 %v203, %v449
  %v451 = vpop.f32.mrb[0].mxu0
  %v452 = vand.u32 %v54, 4294901760
  %453 = vmatprep.mubr.f32.mxu0 %v452
  %v454 = vand.u32 %v53, 4294901760
  %455 = vmatmul.mubr.f32.gmra.mrb[0].mxu0 %v454
  %v456 = vpop.f32.mrb[0].mxu0
  %v457 = vadd.f32 %v218, %v456
  %v458 = vpop.f32.mrb[0].mxu0
  %459 = vdwg.mxu0
  %460 = vmatprep.subr.mxu0 0.0
  %v461 = vand.u32 %v55, 4294901760
  %v462 = vsub.f32 %v55, %v461
  %463 = vmatpush1.msra.mxu0 %v462
  %464 = vmatprep.subr.mxu0 0.0
  %v465 = vand.u32 %v56, 4294901760
  %v466 = vsub.f32 %v56, %v465
  %467 = vmatpush1.msra.mxu0 %v466
  %468 = vmatprep.subr.mxu0 0.0
  %v469 = vand.u32 %v57, 4294901760
  %v470 = vsub.f32 %v57, %v469
  %471 = vmatpush1.msra.mxu0 %v470
  %472 = vmatprep.subr.mxu0 0.0
  %v473 = vand.u32 %v58, 4294901760
  %v474 = vsub.f32 %v58, %v473
  %475 = vmatpush1.msra.mxu0 %v474
  %476 = vmatprep.subr.mxu0 0.0
  %v477 = vand.u32 %v59, 4294901760
  %v478 = vsub.f32 %v59, %v477
  %479 = vmatpush1.msra.mxu0 %v478
  %480 = vmatprep.subr.mxu0 0.0
  %v481 = vand.u32 %v60, 4294901760
  %v482 = vsub.f32 %v60, %v481
  %483 = vmatpush1.msra.mxu0 %v482
  %484 = vmatprep.subr.mxu0 0.0
  %v485 = vand.u32 %v61, 4294901760
  %v486 = vsub.f32 %v61, %v485
  %487 = vmatpush1.msra.mxu0 %v486
  %488 = vmatprep.subr.mxu0 0.0
  %v489 = vand.u32 %v62, 4294901760
  %v490 = vsub.f32 %v62, %v489
  %491 = vmatpush1.msra.mxu0 %v490
  %492 = vmatprep.subr.mxu0 0.0
  %v493 = vand.u32 %v63, 4294901760
  %v494 = vsub.f32 %v63, %v493
  %495 = vmatpush1.msra.mxu0 %v494
  %496 = vmatprep.subr.mxu0 0.0
  %v497 = vand.u32 %v64, 4294901760
  %v498 = vsub.f32 %v64, %v497
  %499 = vmatpush1.msra.mxu0 %v498
  %500 = vmatprep.subr.mxu0 0.0
  %v501 = vand.u32 %v65, 4294901760
  %v502 = vsub.f32 %v65, %v501
  %503 = vmatpush1.msra.mxu0 %v502
  %504 = vmatprep.subr.mxu0 0.0
  %v505 = vand.u32 %v66, 4294901760
  %v506 = vsub.f32 %v66, %v505
  %507 = vmatpush1.msra.mxu0 %v506
  %508 = vmatprep.subr.mxu0 0.0
  %v509 = vand.u32 %v67, 4294901760
  %v510 = vsub.f32 %v67, %v509
  %511 = vmatpush1.msra.mxu0 %v510
  %512 = vmatprep.subr.mxu0 0.0
  %v513 = vand.u32 %v68, 4294901760
  %v514 = vsub.f32 %v68, %v513
  %515 = vmatpush1.msra.mxu0 %v514
  %516 = vmatprep.subr.mxu0 0.0
  %v517 = vand.u32 %v69, 4294901760
  %v518 = vsub.f32 %v69, %v517
  %519 = vmatpush1.msra.mxu0 %v518
  %520 = vmatprep.subr.mxu0 0.0
  %v521 = vand.u32 %v70, 4294901760
  %v522 = vsub.f32 %v70, %v521
  %523 = vmatpush1.msra.mxu0 %v522
  %524 = vmatprep.subr.mxu0 0.0
  %v525 = vand.u32 %v71, 4294901760
  %v526 = vsub.f32 %v71, %v525
  %527 = vmatpush1.msra.mxu0 %v526
  %528 = vmatprep.subr.mxu0 0.0
  %v529 = vand.u32 %v72, 4294901760
  %v530 = vsub.f32 %v72, %v529
  %531 = vmatpush1.msra.mxu0 %v530
  %532 = vmatprep.subr.mxu0 0.0
  %v533 = vand.u32 %v73, 4294901760
  %v534 = vsub.f32 %v73, %v533
  %535 = vmatpush1.msra.mxu0 %v534
  %536 = vmatprep.subr.mxu0 0.0
  %v537 = vand.u32 %v74, 4294901760
  %v538 = vsub.f32 %v74, %v537
  %539 = vmatpush1.msra.mxu0 %v538
  %540 = vmatprep.subr.mxu0 0.0
  %v541 = vand.u32 %v75, 4294901760
  %v542 = vsub.f32 %v75, %v541
  %543 = vmatpush1.msra.mxu0 %v542
  %544 = vmatprep.subr.mxu0 0.0
  %v545 = vand.u32 %v76, 4294901760
  %v546 = vsub.f32 %v76, %v545
  %547 = vmatpush1.msra.mxu0 %v546
  %548 = vmatprep.subr.mxu0 0.0
  %v549 = vand.u32 %v77, 4294901760
  %v550 = vsub.f32 %v77, %v549
  %551 = vmatpush1.msra.mxu0 %v550
  %552 = vmatprep.subr.mxu0 0.0
  %v553 = vand.u32 %v78, 4294901760
  %v554 = vsub.f32 %v78, %v553
  %555 = vmatpush1.msra.mxu0 %v554
  %556 = vmatprep.subr.mxu0 0.0
  %v557 = vand.u32 %v79, 4294901760
  %v558 = vsub.f32 %v79, %v557
  %559 = vmatpush1.msra.mxu0 %v558
  %560 = vmatprep.subr.mxu0 0.0
  %v561 = vand.u32 %v80, 4294901760
  %v562 = vsub.f32 %v80, %v561
  %563 = vmatpush1.msra.mxu0 %v562
  %564 = vmatprep.subr.mxu0 0.0
  %v565 = vand.u32 %v81, 4294901760
  %v566 = vsub.f32 %v81, %v565
  %567 = vmatpush1.msra.mxu0 %v566
  %568 = vmatprep.subr.mxu0 0.0
  %v569 = vand.u32 %v82, 4294901760
  %v570 = vsub.f32 %v82, %v569
  %571 = vmatpush1.msra.mxu0 %v570
  %572 = vmatprep.subr.mxu0 0.0
  %v573 = vand.u32 %v83, 4294901760
  %v574 = vsub.f32 %v83, %v573
  %575 = vmatpush1.msra.mxu0 %v574
  %576 = vmatprep.subr.mxu0 0.0
  %v577 = vand.u32 %v84, 4294901760
  %v578 = vsub.f32 %v84, %v577
  %579 = vmatpush1.msra.mxu0 %v578
  %580 = vmatprep.subr.mxu0 0.0
  %v581 = vand.u32 %v85, 4294901760
  %v582 = vsub.f32 %v85, %v581
  %583 = vmatpush1.msra.mxu0 %v582
  %584 = vmatprep.subr.mxu0 0.0
  %v585 = vand.u32 %v86, 4294901760
  %v586 = vsub.f32 %v86, %v585
  %587 = vmatpush1.msra.mxu0 %v586
  %v588 = vand.u32 %v52, 4294901760
  %v589 = vsub.f32 %v52, %v588
  %590 = vmatprep.mubr.f32.mxu0 %v589
  %v591 = vand.u32 %v51, 4294901760
  %v592 = vsub.f32 %v51, %v591
  %593 = vmatmul.mubr.f32.gmra.mrb[0].mxu0 %v592
  %v594 = vpop.f32.mrb[0].mxu0
  %v595 = vadd.f32 %v450, %v594
  %v596 = vpop.f32.mrb[0].mxu0
  %v597 = vand.u32 %v54, 4294901760
  %v598 = vsub.f32 %v54, %v597
  %599 = vmatprep.mubr.f32.mxu0 %v598
  %v600 = vand.u32 %v53, 4294901760
  %v601 = vsub.f32 %v53, %v600
  %602 = vmatmul.mubr.f32.gmra.mrb[0].mxu0 %v601
  %v603 = vpop.f32.mrb[0].mxu0
  %v604 = vadd.f32 %v457, %v603
  %v605 = vpop.f32.mrb[0].mxu0
  %606 = vdwg.mxu0
  %607 = vmatprep.subr.mxu0 0.0
  %v608 = vand.u32 %v55, 4294901760
  %609 = vmatpush1.msra.mxu0 %v608
  %610 = vmatprep.subr.mxu0 0.0
  %v611 = vand.u32 %v56, 4294901760
  %612 = vmatpush1.msra.mxu0 %v611
  %613 = vmatprep.subr.mxu0 0.0
  %v614 = vand.u32 %v57, 4294901760
  %615 = vmatpush1.msra.mxu0 %v614
  %616 = vmatprep.subr.mxu0 0.0
  %v617 = vand.u32 %v58, 4294901760
  %618 = vmatpush1.msra.mxu0 %v617
  %619 = vmatprep.subr.mxu0 0.0
  %v620 = vand.u32 %v59, 4294901760
  %621 = vmatpush1.msra.mxu0 %v620
  %622 = vmatprep.subr.mxu0 0.0
  %v623 = vand.u32 %v60, 4294901760
  %624 = vmatpush1.msra.mxu0 %v623
  %625 = vmatprep.subr.mxu0 0.0
  %v626 = vand.u32 %v61, 4294901760
  %627 = vmatpush1.msra.mxu0 %v626
  %628 = vmatprep.subr.mxu0 0.0
  %v629 = vand.u32 %v62, 4294901760
  %630 = vmatpush1.msra.mxu0 %v629
  %631 = vmatprep.subr.mxu0 0.0
  %v632 = vand.u32 %v63, 4294901760
  %633 = vmatpush1.msra.mxu0 %v632
  %634 = vmatprep.subr.mxu0 0.0
  %v635 = vand.u32 %v64, 4294901760
  %636 = vmatpush1.msra.mxu0 %v635
  %637 = vmatprep.subr.mxu0 0.0
  %v638 = vand.u32 %v65, 4294901760
  %639 = vmatpush1.msra.mxu0 %v638
  %640 = vmatprep.subr.mxu0 0.0
  %v641 = vand.u32 %v66, 4294901760
  %642 = vmatpush1.msra.mxu0 %v641
  %643 = vmatprep.subr.mxu0 0.0
  %v644 = vand.u32 %v67, 4294901760
  %645 = vmatpush1.msra.mxu0 %v644
  %646 = vmatprep.subr.mxu0 0.0
  %v647 = vand.u32 %v68, 4294901760
  %648 = vmatpush1.msra.mxu0 %v647
  %649 = vmatprep.subr.mxu0 0.0
  %v650 = vand.u32 %v69, 4294901760
  %651 = vmatpush1.msra.mxu0 %v650
  %652 = vmatprep.subr.mxu0 0.0
  %v653 = vand.u32 %v70, 4294901760
  %654 = vmatpush1.msra.mxu0 %v653
  %655 = vmatprep.subr.mxu0 0.0
  %v656 = vand.u32 %v71, 4294901760
  %657 = vmatpush1.msra.mxu0 %v656
  %658 = vmatprep.subr.mxu0 0.0
  %v659 = vand.u32 %v72, 4294901760
  %660 = vmatpush1.msra.mxu0 %v659
  %661 = vmatprep.subr.mxu0 0.0
  %v662 = vand.u32 %v73, 4294901760
  %663 = vmatpush1.msra.mxu0 %v662
  %664 = vmatprep.subr.mxu0 0.0
  %v665 = vand.u32 %v74, 4294901760
  %666 = vmatpush1.msra.mxu0 %v665
  %667 = vmatprep.subr.mxu0 0.0
  %v668 = vand.u32 %v75, 4294901760
  %669 = vmatpush1.msra.mxu0 %v668
  %670 = vmatprep.subr.mxu0 0.0
  %v671 = vand.u32 %v76, 4294901760
  %672 = vmatpush1.msra.mxu0 %v671
  %673 = vmatprep.subr.mxu0 0.0
  %v674 = vand.u32 %v77, 4294901760
  %675 = vmatpush1.msra.mxu0 %v674
  %676 = vmatprep.subr.mxu0 0.0
  %v677 = vand.u32 %v78, 4294901760
  %678 = vmatpush1.msra.mxu0 %v677
  %679 = vmatprep.subr.mxu0 0.0
  %v680 = vand.u32 %v79, 4294901760
  %681 = vmatpush1.msra.mxu0 %v680
  %682 = vmatprep.subr.mxu0 0.0
  %v683 = vand.u32 %v80, 4294901760
  %684 = vmatpush1.msra.mxu0 %v683
  %685 = vmatprep.subr.mxu0 0.0
  %v686 = vand.u32 %v81, 4294901760
  %687 = vmatpush1.msra.mxu0 %v686
  %688 = vmatprep.subr.mxu0 0.0
  %v689 = vand.u32 %v82, 4294901760
  %690 = vmatpush1.msra.mxu0 %v689
  %691 = vmatprep.subr.mxu0 0.0
  %v692 = vand.u32 %v83, 4294901760
  %693 = vmatpush1.msra.mxu0 %v692
  %694 = vmatprep.subr.mxu0 0.0
  %v695 = vand.u32 %v84, 4294901760
  %696 = vmatpush1.msra.mxu0 %v695
  %697 = vmatprep.subr.mxu0 0.0
  %v698 = vand.u32 %v85, 4294901760
  %699 = vmatpush1.msra.mxu0 %v698
  %700 = vmatprep.subr.mxu0 0.0
  %v701 = vand.u32 %v86, 4294901760
  %702 = vmatpush1.msra.mxu0 %v701
  %v703 = vand.u32 %v52, 4294901760
  %v704 = vsub.f32 %v52, %v703
  %v705 = vand.u32 %v704, 4294901760
  %706 = vmatprep.mubr.f32.mxu0 %v705
  %v707 = vand.u32 %v51, 4294901760
  %v708 = vsub.f32 %v51, %v707
  %v709 = vand.u32 %v708, 4294901760
  %710 = vmatmul.mubr.f32.gmra.mrb[0].mxu0 %v709
  %v711 = vpop.f32.mrb[0].mxu0
  %v712 = vadd.f32 %v595, %v711
  %v713 = vpop.f32.mrb[0].mxu0
  %v714 = vand.u32 %v54, 4294901760
  %v715 = vsub.f32 %v54, %v714
  %v716 = vand.u32 %v715, 4294901760
  %717 = vmatprep.mubr.f32.mxu0 %v716
  %v718 = vand.u32 %v53, 4294901760
  %v719 = vsub.f32 %v53, %v718
  %v720 = vand.u32 %v719, 4294901760
  %721 = vmatmul.mubr.f32.gmra.mrb[0].mxu0 %v720
  %v722 = vpop.f32.mrb[0].mxu0
  %v723 = vadd.f32 %v604, %v722
  %v724 = vpop.f32.mrb[0].mxu0
  %725 = vdwg.mxu0
  %726 = vmatprep.subr.mxu0 0.0
  %v727 = vand.u32 %v55, 4294901760
  %v728 = vsub.f32 %v55, %v727
  %v729 = vand.u32 %v728, 4294901760
  %730 = vmatpush1.msra.mxu0 %v729
  %731 = vmatprep.subr.mxu0 0.0
  %v732 = vand.u32 %v56, 4294901760
  %v733 = vsub.f32 %v56, %v732
  %v734 = vand.u32 %v733, 4294901760
  %735 = vmatpush1.msra.mxu0 %v734
  %736 = vmatprep.subr.mxu0 0.0
  %v737 = vand.u32 %v57, 4294901760
  %v738 = vsub.f32 %v57, %v737
  %v739 = vand.u32 %v738, 4294901760
  %740 = vmatpush1.msra.mxu0 %v739
  %741 = vmatprep.subr.mxu0 0.0
  %v742 = vand.u32 %v58, 4294901760
  %v743 = vsub.f32 %v58, %v742
  %v744 = vand.u32 %v743, 4294901760
  %745 = vmatpush1.msra.mxu0 %v744
  %746 = vmatprep.subr.mxu0 0.0
  %v747 = vand.u32 %v59, 4294901760
  %v748 = vsub.f32 %v59, %v747
  %v749 = vand.u32 %v748, 4294901760
  %750 = vmatpush1.msra.mxu0 %v749
  %751 = vmatprep.subr.mxu0 0.0
  %v752 = vand.u32 %v60, 4294901760
  %v753 = vsub.f32 %v60, %v752
  %v754 = vand.u32 %v753, 4294901760
  %755 = vmatpush1.msra.mxu0 %v754
  %756 = vmatprep.subr.mxu0 0.0
  %v757 = vand.u32 %v61, 4294901760
  %v758 = vsub.f32 %v61, %v757
  %v759 = vand.u32 %v758, 4294901760
  %760 = vmatpush1.msra.mxu0 %v759
  %761 = vmatprep.subr.mxu0 0.0
  %v762 = vand.u32 %v62, 4294901760
  %v763 = vsub.f32 %v62, %v762
  %v764 = vand.u32 %v763, 4294901760
  %765 = vmatpush1.msra.mxu0 %v764
  %766 = vmatprep.subr.mxu0 0.0
  %v767 = vand.u32 %v63, 4294901760
  %v768 = vsub.f32 %v63, %v767
  %v769 = vand.u32 %v768, 4294901760
  %770 = vmatpush1.msra.mxu0 %v769
  %771 = vmatprep.subr.mxu0 0.0
  %v772 = vand.u32 %v64, 4294901760
  %v773 = vsub.f32 %v64, %v772
  %v774 = vand.u32 %v773, 4294901760
  %775 = vmatpush1.msra.mxu0 %v774
  %776 = vmatprep.subr.mxu0 0.0
  %v777 = vand.u32 %v65, 4294901760
  %v778 = vsub.f32 %v65, %v777
  %v779 = vand.u32 %v778, 4294901760
  %780 = vmatpush1.msra.mxu0 %v779
  %781 = vmatprep.subr.mxu0 0.0
  %v782 = vand.u32 %v66, 4294901760
  %v783 = vsub.f32 %v66, %v782
  %v784 = vand.u32 %v783, 4294901760
  %785 = vmatpush1.msra.mxu0 %v784
  %786 = vmatprep.subr.mxu0 0.0
  %v787 = vand.u32 %v67, 4294901760
  %v788 = vsub.f32 %v67, %v787
  %v789 = vand.u32 %v788, 4294901760
  %790 = vmatpush1.msra.mxu0 %v789
  %791 = vmatprep.subr.mxu0 0.0
  %v792 = vand.u32 %v68, 4294901760
  %v793 = vsub.f32 %v68, %v792
  %v794 = vand.u32 %v793, 4294901760
  %795 = vmatpush1.msra.mxu0 %v794
  %796 = vmatprep.subr.mxu0 0.0
  %v797 = vand.u32 %v69, 4294901760
  %v798 = vsub.f32 %v69, %v797
  %v799 = vand.u32 %v798, 4294901760
  %800 = vmatpush1.msra.mxu0 %v799
  %801 = vmatprep.subr.mxu0 0.0
  %v802 = vand.u32 %v70, 4294901760
  %v803 = vsub.f32 %v70, %v802
  %v804 = vand.u32 %v803, 4294901760
  %805 = vmatpush1.msra.mxu0 %v804
  %806 = vmatprep.subr.mxu0 0.0
  %v807 = vand.u32 %v71, 4294901760
  %v808 = vsub.f32 %v71, %v807
  %v809 = vand.u32 %v808, 4294901760
  %810 = vmatpush1.msra.mxu0 %v809
  %811 = vmatprep.subr.mxu0 0.0
  %v812 = vand.u32 %v72, 4294901760
  %v813 = vsub.f32 %v72, %v812
  %v814 = vand.u32 %v813, 4294901760
  %815 = vmatpush1.msra.mxu0 %v814
  %816 = vmatprep.subr.mxu0 0.0
  %v817 = vand.u32 %v73, 4294901760
  %v818 = vsub.f32 %v73, %v817
  %v819 = vand.u32 %v818, 4294901760
  %820 = vmatpush1.msra.mxu0 %v819
  %821 = vmatprep.subr.mxu0 0.0
  %v822 = vand.u32 %v74, 4294901760
  %v823 = vsub.f32 %v74, %v822
  %v824 = vand.u32 %v823, 4294901760
  %825 = vmatpush1.msra.mxu0 %v824
  %826 = vmatprep.subr.mxu0 0.0
  %v827 = vand.u32 %v75, 4294901760
  %v828 = vsub.f32 %v75, %v827
  %v829 = vand.u32 %v828, 4294901760
  %830 = vmatpush1.msra.mxu0 %v829
  %831 = vmatprep.subr.mxu0 0.0
  %v832 = vand.u32 %v76, 4294901760
  %v833 = vsub.f32 %v76, %v832
  %v834 = vand.u32 %v833, 4294901760
  %835 = vmatpush1.msra.mxu0 %v834
  %836 = vmatprep.subr.mxu0 0.0
  %v837 = vand.u32 %v77, 4294901760
  %v838 = vsub.f32 %v77, %v837
  %v839 = vand.u32 %v838, 4294901760
  %840 = vmatpush1.msra.mxu0 %v839
  %841 = vmatprep.subr.mxu0 0.0
  %v842 = vand.u32 %v78, 4294901760
  %v843 = vsub.f32 %v78, %v842
  %v844 = vand.u32 %v843, 4294901760
  %845 = vmatpush1.msra.mxu0 %v844
  %846 = vmatprep.subr.mxu0 0.0
  %v847 = vand.u32 %v79, 4294901760
  %v848 = vsub.f32 %v79, %v847
  %v849 = vand.u32 %v848, 4294901760
  %850 = vmatpush1.msra.mxu0 %v849
  %851 = vmatprep.subr.mxu0 0.0
  %v852 = vand.u32 %v80, 4294901760
  %v853 = vsub.f32 %v80, %v852
  %v854 = vand.u32 %v853, 4294901760
  %855 = vmatpush1.msra.mxu0 %v854
  %856 = vmatprep.subr.mxu0 0.0
  %v857 = vand.u32 %v81, 4294901760
  %v858 = vsub.f32 %v81, %v857
  %v859 = vand.u32 %v858, 4294901760
  %860 = vmatpush1.msra.mxu0 %v859
  %861 = vmatprep.subr.mxu0 0.0
  %v862 = vand.u32 %v82, 4294901760
  %v863 = vsub.f32 %v82, %v862
  %v864 = vand.u32 %v863, 4294901760
  %865 = vmatpush1.msra.mxu0 %v864
  %866 = vmatprep.subr.mxu0 0.0
  %v867 = vand.u32 %v83, 4294901760
  %v868 = vsub.f32 %v83, %v867
  %v869 = vand.u32 %v868, 4294901760
  %870 = vmatpush1.msra.mxu0 %v869
  %871 = vmatprep.subr.mxu0 0.0
  %v872 = vand.u32 %v84, 4294901760
  %v873 = vsub.f32 %v84, %v872
  %v874 = vand.u32 %v873, 4294901760
  %875 = vmatpush1.msra.mxu0 %v874
  %876 = vmatprep.subr.mxu0 0.0
  %v877 = vand.u32 %v85, 4294901760
  %v878 = vsub.f32 %v85, %v877
  %v879 = vand.u32 %v878, 4294901760
  %880 = vmatpush1.msra.mxu0 %v879
  %881 = vmatprep.subr.mxu0 0.0
  %v882 = vand.u32 %v86, 4294901760
  %v883 = vsub.f32 %v86, %v882
  %v884 = vand.u32 %v883, 4294901760
  %885 = vmatpush1.msra.mxu0 %v884
  %v886 = vand.u32 %v52, 4294901760
  %887 = vmatprep.mubr.f32.mxu0 %v886
  %v888 = vand.u32 %v51, 4294901760
  %889 = vmatmul.mubr.f32.gmra.mrb[0].mxu0 %v888
  %v890 = vpop.f32.mrb[0].mxu0
  %v891 = vadd.f32 %v712, %v890
  %v892 = vpop.f32.mrb[0].mxu0
  %v893 = vand.u32 %v54, 4294901760
  %894 = vmatprep.mubr.f32.mxu0 %v893
  %v895 = vand.u32 %v53, 4294901760
  %896 = vmatmul.mubr.f32.gmra.mrb[0].mxu0 %v895
  %v897 = vpop.f32.mrb[0].mxu0
  %v898 = vadd.f32 %v723, %v897
  %v899 = vpop.f32.mrb[0].mxu0
  %900 = vdwg.mxu0
  %901 = vmatprep.subr.mxu0 0.0
  %v902 = vand.u32 %v55, 4294901760
  %903 = vmatpush1.msra.mxu0 %v902
  %904 = vmatprep.subr.mxu0 0.0
  %v905 = vand.u32 %v56, 4294901760
  %906 = vmatpush1.msra.mxu0 %v905
  %907 = vmatprep.subr.mxu0 0.0
  %v908 = vand.u32 %v57, 4294901760
  %909 = vmatpush1.msra.mxu0 %v908
  %910 = vmatprep.subr.mxu0 0.0
  %v911 = vand.u32 %v58, 4294901760
  %912 = vmatpush1.msra.mxu0 %v911
  %913 = vmatprep.subr.mxu0 0.0
  %v914 = vand.u32 %v59, 4294901760
  %915 = vmatpush1.msra.mxu0 %v914
  %916 = vmatprep.subr.mxu0 0.0
  %v917 = vand.u32 %v60, 4294901760
  %918 = vmatpush1.msra.mxu0 %v917
  %919 = vmatprep.subr.mxu0 0.0
  %v920 = vand.u32 %v61, 4294901760
  %921 = vmatpush1.msra.mxu0 %v920
  %922 = vmatprep.subr.mxu0 0.0
  %v923 = vand.u32 %v62, 4294901760
  %924 = vmatpush1.msra.mxu0 %v923
  %925 = vmatprep.subr.mxu0 0.0
  %v926 = vand.u32 %v63, 4294901760
  %927 = vmatpush1.msra.mxu0 %v926
  %928 = vmatprep.subr.mxu0 0.0
  %v929 = vand.u32 %v64, 4294901760
  %930 = vmatpush1.msra.mxu0 %v929
  %931 = vmatprep.subr.mxu0 0.0
  %v932 = vand.u32 %v65, 4294901760
  %933 = vmatpush1.msra.mxu0 %v932
  %934 = vmatprep.subr.mxu0 0.0
  %v935 = vand.u32 %v66, 4294901760
  %936 = vmatpush1.msra.mxu0 %v935
  %937 = vmatprep.subr.mxu0 0.0
  %v938 = vand.u32 %v67, 4294901760
  %939 = vmatpush1.msra.mxu0 %v938
  %940 = vmatprep.subr.mxu0 0.0
  %v941 = vand.u32 %v68, 4294901760
  %942 = vmatpush1.msra.mxu0 %v941
  %943 = vmatprep.subr.mxu0 0.0
  %v944 = vand.u32 %v69, 4294901760
  %945 = vmatpush1.msra.mxu0 %v944
  %946 = vmatprep.subr.mxu0 0.0
  %v947 = vand.u32 %v70, 4294901760
  %948 = vmatpush1.msra.mxu0 %v947
  %949 = vmatprep.subr.mxu0 0.0
  %v950 = vand.u32 %v71, 4294901760
  %951 = vmatpush1.msra.mxu0 %v950
  %952 = vmatprep.subr.mxu0 0.0
  %v953 = vand.u32 %v72, 4294901760
  %954 = vmatpush1.msra.mxu0 %v953
  %955 = vmatprep.subr.mxu0 0.0
  %v956 = vand.u32 %v73, 4294901760
  %957 = vmatpush1.msra.mxu0 %v956
  %958 = vmatprep.subr.mxu0 0.0
  %v959 = vand.u32 %v74, 4294901760
  %960 = vmatpush1.msra.mxu0 %v959
  %961 = vmatprep.subr.mxu0 0.0
  %v962 = vand.u32 %v75, 4294901760
  %963 = vmatpush1.msra.mxu0 %v962
  %964 = vmatprep.subr.mxu0 0.0
  %v965 = vand.u32 %v76, 4294901760
  %966 = vmatpush1.msra.mxu0 %v965
  %967 = vmatprep.subr.mxu0 0.0
  %v968 = vand.u32 %v77, 4294901760
  %969 = vmatpush1.msra.mxu0 %v968
  %970 = vmatprep.subr.mxu0 0.0
  %v971 = vand.u32 %v78, 4294901760
  %972 = vmatpush1.msra.mxu0 %v971
  %973 = vmatprep.subr.mxu0 0.0
  %v974 = vand.u32 %v79, 4294901760
  %975 = vmatpush1.msra.mxu0 %v974
  %976 = vmatprep.subr.mxu0 0.0
  %v977 = vand.u32 %v80, 4294901760
  %978 = vmatpush1.msra.mxu0 %v977
  %979 = vmatprep.subr.mxu0 0.0
  %v980 = vand.u32 %v81, 4294901760
  %981 = vmatpush1.msra.mxu0 %v980
  %982 = vmatprep.subr.mxu0 0.0
  %v983 = vand.u32 %v82, 4294901760
  %984 = vmatpush1.msra.mxu0 %v983
  %985 = vmatprep.subr.mxu0 0.0
  %v986 = vand.u32 %v83, 4294901760
  %987 = vmatpush1.msra.mxu0 %v986
  %988 = vmatprep.subr.mxu0 0.0
  %v989 = vand.u32 %v84, 4294901760
  %990 = vmatpush1.msra.mxu0 %v989
  %991 = vmatprep.subr.mxu0 0.0
  %v992 = vand.u32 %v85, 4294901760
  %993 = vmatpush1.msra.mxu0 %v992
  %994 = vmatprep.subr.mxu0 0.0
  %v995 = vand.u32 %v86, 4294901760
  %996 = vmatpush1.msra.mxu0 %v995
  %v997 = vand.u32 %v52, 4294901760
  %998 = vmatprep.mubr.f32.mxu0 %v997
  %v999 = vand.u32 %v51, 4294901760
  %1000 = vmatmul.mubr.f32.gmra.mrb[0].mxu0 %v999
  %v1001 = vpop.f32.mrb[0].mxu0
  %v1002 = vadd.f32 %v891, %v1001
  %v1003 = vpop.f32.mrb[0].mxu0
  %v1004 = vand.u32 %v54, 4294901760
  %1005 = vmatprep.mubr.f32.mxu0 %v1004
  %v1006 = vand.u32 %v53, 4294901760
  %1007 = vmatmul.mubr.f32.gmra.mrb[0].mxu0 %v1006
  %v1008 = vpop.f32.mrb[0].mxu0
  %v1009 = vadd.f32 %v898, %v1008
  %v1010 = vpop.f32.mrb[0].mxu0
  %1011 = vdwg.mxu0
  %v1012 = vmax.f32 %v1002, 0.0
  %v1013 = vmax.f32 %v1009, 0.0
  %v1014 = vld [vmem:[%s3] sm:$0xff]
  %v1015 = vld [vmem:[%s3 + $0x8] sm:$0xff]
  %v1016 = vld [vmem:[%s3 + $0x10] sm:$0xff]
  %v1017 = vld [vmem:[%s3 + $0x18] sm:$0xff]
  %v1018 = vld [vmem:[%s3 + $0x20] sm:$0xff]
  %v1019 = vld [vmem:[%s3 + $0x28] sm:$0xff]
  %v1020 = vld [vmem:[%s3 + $0x30] sm:$0xff]
  %v1021 = vld [vmem:[%s3 + $0x38] sm:$0xff]
  %v1022 = vld [vmem:[%s3 + $0x40] sm:$0xff]
  %v1023 = vld [vmem:[%s3 + $0x48] sm:$0xff]
  %v1024 = vld [vmem:[%s3 + $0x50] sm:$0xff]
  %v1025 = vld [vmem:[%s3 + $0x58] sm:$0xff]
  %v1026 = vld [vmem:[%s3 + $0x60] sm:$0xff]
  %v1027 = vld [vmem:[%s3 + $0x68] sm:$0xff]
  %v1028 = vld [vmem:[%s3 + $0x70] sm:$0xff]
  %v1029 = vld [vmem:[%s3 + $0x78] sm:$0xff]
  %v1030 = vld [vmem:[%s4] sm:$0x1]
  %v1032 = vlaneseq
  %v1033 = vshrl.u32 %v1032, 7
  %v1034 = vsub.s32 0, %v1033
  %v1035 = vrot.slane %v1030, %v1034
  %1037 = vmatprep.subr.mxu0 0.0
  %v1038 = vand.u32 %v1014, 4294901760
  %1039 = vmatpush1.msra.mxu0 %v1038
  %1040 = vmatprep.subr.mxu0 0.0
  %v1041 = vand.u32 %v1015, 4294901760
  %1042 = vmatpush1.msra.mxu0 %v1041
  %1043 = vmatprep.subr.mxu0 0.0
  %v1044 = vand.u32 %v1016, 4294901760
  %1045 = vmatpush1.msra.mxu0 %v1044
  %1046 = vmatprep.subr.mxu0 0.0
  %v1047 = vand.u32 %v1017, 4294901760
  %1048 = vmatpush1.msra.mxu0 %v1047
  %1049 = vmatprep.subr.mxu0 0.0
  %v1050 = vand.u32 %v1018, 4294901760
  %1051 = vmatpush1.msra.mxu0 %v1050
  %1052 = vmatprep.subr.mxu0 0.0
  %v1053 = vand.u32 %v1019, 4294901760
  %1054 = vmatpush1.msra.mxu0 %v1053
  %1055 = vmatprep.subr.mxu0 0.0
  %v1056 = vand.u32 %v1020, 4294901760
  %1057 = vmatpush1.msra.mxu0 %v1056
  %1058 = vmatprep.subr.mxu0 0.0
  %v1059 = vand.u32 %v1021, 4294901760
  %1060 = vmatpush1.msra.mxu0 %v1059
  %1061 = vmatprep.subr.mxu0 0.0
  %v1062 = vand.u32 %v1022, 4294901760
  %1063 = vmatpush1.msra.mxu0 %v1062
  %1064 = vmatprep.subr.mxu0 0.0
  %v1065 = vand.u32 %v1023, 4294901760
  %1066 = vmatpush1.msra.mxu0 %v1065
  %1067 = vmatprep.subr.mxu0 0.0
  %v1068 = vand.u32 %v1024, 4294901760
  %1069 = vmatpush1.msra.mxu0 %v1068
  %1070 = vmatprep.subr.mxu0 0.0
  %v1071 = vand.u32 %v1025, 4294901760
  %1072 = vmatpush1.msra.mxu0 %v1071
  %1073 = vmatprep.subr.mxu0 0.0
  %v1074 = vand.u32 %v1026, 4294901760
  %1075 = vmatpush1.msra.mxu0 %v1074
  %1076 = vmatprep.subr.mxu0 0.0
  %v1077 = vand.u32 %v1027, 4294901760
  %1078 = vmatpush1.msra.mxu0 %v1077
  %1079 = vmatprep.subr.mxu0 0.0
  %v1080 = vand.u32 %v1028, 4294901760
  %1081 = vmatpush1.msra.mxu0 %v1080
  %1082 = vmatprep.subr.mxu0 0.0
  %v1083 = vand.u32 %v1029, 4294901760
  %1084 = vmatpush1.msra.mxu0 %v1083
  %1085 = vmatprep.subr.mxu0 0.0
  %1086 = vmatpush1.msra.mxu0 0.0
  %1087 = vmatprep.subr.mxu0 0.0
  %1088 = vmatpush1.msra.mxu0 0.0
  %1089 = vmatprep.subr.mxu0 0.0
  %1090 = vmatpush1.msra.mxu0 0.0
  %1091 = vmatprep.subr.mxu0 0.0
  %1092 = vmatpush1.msra.mxu0 0.0
  %1093 = vmatprep.subr.mxu0 0.0
  %1094 = vmatpush1.msra.mxu0 0.0
  %1095 = vmatprep.subr.mxu0 0.0
  %1096 = vmatpush1.msra.mxu0 0.0
  %1097 = vmatprep.subr.mxu0 0.0
  %1098 = vmatpush1.msra.mxu0 0.0
  %1099 = vmatprep.subr.mxu0 0.0
  %1100 = vmatpush1.msra.mxu0 0.0
  %1101 = vmatprep.subr.mxu0 0.0
  %1102 = vmatpush1.msra.mxu0 0.0
  %1103 = vmatprep.subr.mxu0 0.0
  %1104 = vmatpush1.msra.mxu0 0.0
  %1105 = vmatprep.subr.mxu0 0.0
  %1106 = vmatpush1.msra.mxu0 0.0
  %1107 = vmatprep.subr.mxu0 0.0
  %1108 = vmatpush1.msra.mxu0 0.0
  %1109 = vmatprep.subr.mxu0 0.0
  %1110 = vmatpush1.msra.mxu0 0.0
  %1111 = vmatprep.subr.mxu0 0.0
  %1112 = vmatpush1.msra.mxu0 0.0
  %1113 = vmatprep.subr.mxu0 0.0
  %1114 = vmatpush1.msra.mxu0 0.0
  %1115 = vmatprep.subr.mxu0 0.0
  %1116 = vmatpush1.msra.mxu0 0.0
  %1117 = vmatprep.mubr.f32.mxu0 0.0
  %v1118 = vand.u32 %v1012, 4294901760
  %v1119 = vsub.f32 %v1012, %v1118
  %v1120 = vand.u32 %v1119, 4294901760
  %v1121 = vsub.f32 %v1119, %v1120
  %v1122 = vand.u32 %v1121, 4294901760
  %1123 = vmatmul.mubr.f32.gmra.mrb[0].mxu0 %v1122
  %v1124 = vpop.f32.mrb[0].mxu0
  %v1125 = vadd.f32 %v1035, %v1124
  %v1126 = vpop.f32.mrb[0].mxu0
  %1127 = vmatprep.mubr.f32.mxu0 0.0
  %v1128 = vand.u32 %v1013, 4294901760
  %v1129 = vsub.f32 %v1013, %v1128
  %v1130 = vand.u32 %v1129, 4294901760
  %v1131 = vsub.f32 %v1129, %v1130
  %v1132 = vand.u32 %v1131, 4294901760
  %1133 = vmatmul.mubr.f32.gmra.mrb[0].mxu0 %v1132
  %v1134 = vpop.f32.mrb[0].mxu0
  %v1135 = vadd.f32 %v1035, %v1134
  %v1136 = vpop.f32.mrb[0].mxu0
  %1137 = vdwg.mxu0
  %1138 = vmatprep.subr.mxu0 0.0
  %v1139 = vand.u32 %v1014, 4294901760
  %v1140 = vsub.f32 %v1014, %v1139
  %v1141 = vand.u32 %v1140, 4294901760
  %v1142 = vsub.f32 %v1140, %v1141
  %v1143 = vand.u32 %v1142, 4294901760
  %1144 = vmatpush1.msra.mxu0 %v1143
  %1145 = vmatprep.subr.mxu0 0.0
  %v1146 = vand.u32 %v1015, 4294901760
  %v1147 = vsub.f32 %v1015, %v1146
  %v1148 = vand.u32 %v1147, 4294901760
  %v1149 = vsub.f32 %v1147, %v1148
  %v1150 = vand.u32 %v1149, 4294901760
  %1151 = vmatpush1.msra.mxu0 %v1150
  %1152 = vmatprep.subr.mxu0 0.0
  %v1153 = vand.u32 %v1016, 4294901760
  %v1154 = vsub.f32 %v1016, %v1153
  %v1155 = vand.u32 %v1154, 4294901760
  %v1156 = vsub.f32 %v1154, %v1155
  %v1157 = vand.u32 %v1156, 4294901760
  %1158 = vmatpush1.msra.mxu0 %v1157
  %1159 = vmatprep.subr.mxu0 0.0
  %v1160 = vand.u32 %v1017, 4294901760
  %v1161 = vsub.f32 %v1017, %v1160
  %v1162 = vand.u32 %v1161, 4294901760
  %v1163 = vsub.f32 %v1161, %v1162
  %v1164 = vand.u32 %v1163, 4294901760
  %1165 = vmatpush1.msra.mxu0 %v1164
  %1166 = vmatprep.subr.mxu0 0.0
  %v1167 = vand.u32 %v1018, 4294901760
  %v1168 = vsub.f32 %v1018, %v1167
  %v1169 = vand.u32 %v1168, 4294901760
  %v1170 = vsub.f32 %v1168, %v1169
  %v1171 = vand.u32 %v1170, 4294901760
  %1172 = vmatpush1.msra.mxu0 %v1171
  %1173 = vmatprep.subr.mxu0 0.0
  %v1174 = vand.u32 %v1019, 4294901760
  %v1175 = vsub.f32 %v1019, %v1174
  %v1176 = vand.u32 %v1175, 4294901760
  %v1177 = vsub.f32 %v1175, %v1176
  %v1178 = vand.u32 %v1177, 4294901760
  %1179 = vmatpush1.msra.mxu0 %v1178
  %1180 = vmatprep.subr.mxu0 0.0
  %v1181 = vand.u32 %v1020, 4294901760
  %v1182 = vsub.f32 %v1020, %v1181
  %v1183 = vand.u32 %v1182, 4294901760
  %v1184 = vsub.f32 %v1182, %v1183
  %v1185 = vand.u32 %v1184, 4294901760
  %1186 = vmatpush1.msra.mxu0 %v1185
  %1187 = vmatprep.subr.mxu0 0.0
  %v1188 = vand.u32 %v1021, 4294901760
  %v1189 = vsub.f32 %v1021, %v1188
  %v1190 = vand.u32 %v1189, 4294901760
  %v1191 = vsub.f32 %v1189, %v1190
  %v1192 = vand.u32 %v1191, 4294901760
  %1193 = vmatpush1.msra.mxu0 %v1192
  %1194 = vmatprep.subr.mxu0 0.0
  %v1195 = vand.u32 %v1022, 4294901760
  %v1196 = vsub.f32 %v1022, %v1195
  %v1197 = vand.u32 %v1196, 4294901760
  %v1198 = vsub.f32 %v1196, %v1197
  %v1199 = vand.u32 %v1198, 4294901760
  %1200 = vmatpush1.msra.mxu0 %v1199
  %1201 = vmatprep.subr.mxu0 0.0
  %v1202 = vand.u32 %v1023, 4294901760
  %v1203 = vsub.f32 %v1023, %v1202
  %v1204 = vand.u32 %v1203, 4294901760
  %v1205 = vsub.f32 %v1203, %v1204
  %v1206 = vand.u32 %v1205, 4294901760
  %1207 = vmatpush1.msra.mxu0 %v1206
  %1208 = vmatprep.subr.mxu0 0.0
  %v1209 = vand.u32 %v1024, 4294901760
  %v1210 = vsub.f32 %v1024, %v1209
  %v1211 = vand.u32 %v1210, 4294901760
  %v1212 = vsub.f32 %v1210, %v1211
  %v1213 = vand.u32 %v1212, 4294901760
  %1214 = vmatpush1.msra.mxu0 %v1213
  %1215 = vmatprep.subr.mxu0 0.0
  %v1216 = vand.u32 %v1025, 4294901760
  %v1217 = vsub.f32 %v1025, %v1216
  %v1218 = vand.u32 %v1217, 4294901760
  %v1219 = vsub.f32 %v1217, %v1218
  %v1220 = vand.u32 %v1219, 4294901760
  %1221 = vmatpush1.msra.mxu0 %v1220
  %1222 = vmatprep.subr.mxu0 0.0
  %v1223 = vand.u32 %v1026, 4294901760
  %v1224 = vsub.f32 %v1026, %v1223
  %v1225 = vand.u32 %v1224, 4294901760
  %v1226 = vsub.f32 %v1224, %v1225
  %v1227 = vand.u32 %v1226, 4294901760
  %1228 = vmatpush1.msra.mxu0 %v1227
  %1229 = vmatprep.subr.mxu0 0.0
  %v1230 = vand.u32 %v1027, 4294901760
  %v1231 = vsub.f32 %v1027, %v1230
  %v1232 = vand.u32 %v1231, 4294901760
  %v1233 = vsub.f32 %v1231, %v1232
  %v1234 = vand.u32 %v1233, 4294901760
  %1235 = vmatpush1.msra.mxu0 %v1234
  %1236 = vmatprep.subr.mxu0 0.0
  %v1237 = vand.u32 %v1028, 4294901760
  %v1238 = vsub.f32 %v1028, %v1237
  %v1239 = vand.u32 %v1238, 4294901760
  %v1240 = vsub.f32 %v1238, %v1239
  %v1241 = vand.u32 %v1240, 4294901760
  %1242 = vmatpush1.msra.mxu0 %v1241
  %1243 = vmatprep.subr.mxu0 0.0
  %v1244 = vand.u32 %v1029, 4294901760
  %v1245 = vsub.f32 %v1029, %v1244
  %v1246 = vand.u32 %v1245, 4294901760
  %v1247 = vsub.f32 %v1245, %v1246
  %v1248 = vand.u32 %v1247, 4294901760
  %1249 = vmatpush1.msra.mxu0 %v1248
  %1250 = vmatprep.subr.mxu0 0.0
  %1251 = vmatpush1.msra.mxu0 0.0
  %1252 = vmatprep.subr.mxu0 0.0
  %1253 = vmatpush1.msra.mxu0 0.0
  %1254 = vmatprep.subr.mxu0 0.0
  %1255 = vmatpush1.msra.mxu0 0.0
  %1256 = vmatprep.subr.mxu0 0.0
  %1257 = vmatpush1.msra.mxu0 0.0
  %1258 = vmatprep.subr.mxu0 0.0
  %1259 = vmatpush1.msra.mxu0 0.0
  %1260 = vmatprep.subr.mxu0 0.0
  %1261 = vmatpush1.msra.mxu0 0.0
  %1262 = vmatprep.subr.mxu0 0.0
  %1263 = vmatpush1.msra.mxu0 0.0
  %1264 = vmatprep.subr.mxu0 0.0
  %1265 = vmatpush1.msra.mxu0 0.0
  %1266 = vmatprep.subr.mxu0 0.0
  %1267 = vmatpush1.msra.mxu0 0.0
  %1268 = vmatprep.subr.mxu0 0.0
  %1269 = vmatpush1.msra.mxu0 0.0
  %1270 = vmatprep.subr.mxu0 0.0
  %1271 = vmatpush1.msra.mxu0 0.0
  %1272 = vmatprep.subr.mxu0 0.0
  %1273 = vmatpush1.msra.mxu0 0.0
  %1274 = vmatprep.subr.mxu0 0.0
  %1275 = vmatpush1.msra.mxu0 0.0
  %1276 = vmatprep.subr.mxu0 0.0
  %1277 = vmatpush1.msra.mxu0 0.0
  %1278 = vmatprep.subr.mxu0 0.0
  %1279 = vmatpush1.msra.mxu0 0.0
  %1280 = vmatprep.subr.mxu0 0.0
  %1281 = vmatpush1.msra.mxu0 0.0
  %1282 = vmatprep.mubr.f32.mxu0 0.0
  %v1283 = vand.u32 %v1012, 4294901760
  %1284 = vmatmul.mubr.f32.gmra.mrb[0].mxu0 %v1283
  %v1285 = vpop.f32.mrb[0].mxu0
  %v1286 = vadd.f32 %v1125, %v1285
  %v1287 = vpop.f32.mrb[0].mxu0
  %1288 = vmatprep.mubr.f32.mxu0 0.0
  %v1289 = vand.u32 %v1013, 4294901760
  %1290 = vmatmul.mubr.f32.gmra.mrb[0].mxu0 %v1289
  %v1291 = vpop.f32.mrb[0].mxu0
  %v1292 = vadd.f32 %v1135, %v1291
  %v1293 = vpop.f32.mrb[0].mxu0
  %1294 = vdwg.mxu0
  %1295 = vmatprep.subr.mxu0 0.0
  %v1296 = vand.u32 %v1014, 4294901760
  %v1297 = vsub.f32 %v1014, %v1296
  %1298 = vmatpush1.msra.mxu0 %v1297
  %1299 = vmatprep.subr.mxu0 0.0
  %v1300 = vand.u32 %v1015, 4294901760
  %v1301 = vsub.f32 %v1015, %v1300
  %1302 = vmatpush1.msra.mxu0 %v1301
  %1303 = vmatprep.subr.mxu0 0.0
  %v1304 = vand.u32 %v1016, 4294901760
  %v1305 = vsub.f32 %v1016, %v1304
  %1306 = vmatpush1.msra.mxu0 %v1305
  %1307 = vmatprep.subr.mxu0 0.0
  %v1308 = vand.u32 %v1017, 4294901760
  %v1309 = vsub.f32 %v1017, %v1308
  %1310 = vmatpush1.msra.mxu0 %v1309
  %1311 = vmatprep.subr.mxu0 0.0
  %v1312 = vand.u32 %v1018, 4294901760
  %v1313 = vsub.f32 %v1018, %v1312
  %1314 = vmatpush1.msra.mxu0 %v1313
  %1315 = vmatprep.subr.mxu0 0.0
  %v1316 = vand.u32 %v1019, 4294901760
  %v1317 = vsub.f32 %v1019, %v1316
  %1318 = vmatpush1.msra.mxu0 %v1317
  %1319 = vmatprep.subr.mxu0 0.0
  %v1320 = vand.u32 %v1020, 4294901760
  %v1321 = vsub.f32 %v1020, %v1320
  %1322 = vmatpush1.msra.mxu0 %v1321
  %1323 = vmatprep.subr.mxu0 0.0
  %v1324 = vand.u32 %v1021, 4294901760
  %v1325 = vsub.f32 %v1021, %v1324
  %1326 = vmatpush1.msra.mxu0 %v1325
  %1327 = vmatprep.subr.mxu0 0.0
  %v1328 = vand.u32 %v1022, 4294901760
  %v1329 = vsub.f32 %v1022, %v1328
  %1330 = vmatpush1.msra.mxu0 %v1329
  %1331 = vmatprep.subr.mxu0 0.0
  %v1332 = vand.u32 %v1023, 4294901760
  %v1333 = vsub.f32 %v1023, %v1332
  %1334 = vmatpush1.msra.mxu0 %v1333
  %1335 = vmatprep.subr.mxu0 0.0
  %v1336 = vand.u32 %v1024, 4294901760
  %v1337 = vsub.f32 %v1024, %v1336
  %1338 = vmatpush1.msra.mxu0 %v1337
  %1339 = vmatprep.subr.mxu0 0.0
  %v1340 = vand.u32 %v1025, 4294901760
  %v1341 = vsub.f32 %v1025, %v1340
  %1342 = vmatpush1.msra.mxu0 %v1341
  %1343 = vmatprep.subr.mxu0 0.0
  %v1344 = vand.u32 %v1026, 4294901760
  %v1345 = vsub.f32 %v1026, %v1344
  %1346 = vmatpush1.msra.mxu0 %v1345
  %1347 = vmatprep.subr.mxu0 0.0
  %v1348 = vand.u32 %v1027, 4294901760
  %v1349 = vsub.f32 %v1027, %v1348
  %1350 = vmatpush1.msra.mxu0 %v1349
  %1351 = vmatprep.subr.mxu0 0.0
  %v1352 = vand.u32 %v1028, 4294901760
  %v1353 = vsub.f32 %v1028, %v1352
  %1354 = vmatpush1.msra.mxu0 %v1353
  %1355 = vmatprep.subr.mxu0 0.0
  %v1356 = vand.u32 %v1029, 4294901760
  %v1357 = vsub.f32 %v1029, %v1356
  %1358 = vmatpush1.msra.mxu0 %v1357
  %1359 = vmatprep.subr.mxu0 0.0
  %1360 = vmatpush1.msra.mxu0 0.0
  %1361 = vmatprep.subr.mxu0 0.0
  %1362 = vmatpush1.msra.mxu0 0.0
  %1363 = vmatprep.subr.mxu0 0.0
  %1364 = vmatpush1.msra.mxu0 0.0
  %1365 = vmatprep.subr.mxu0 0.0
  %1366 = vmatpush1.msra.mxu0 0.0
  %1367 = vmatprep.subr.mxu0 0.0
  %1368 = vmatpush1.msra.mxu0 0.0
  %1369 = vmatprep.subr.mxu0 0.0
  %1370 = vmatpush1.msra.mxu0 0.0
  %1371 = vmatprep.subr.mxu0 0.0
  %1372 = vmatpush1.msra.mxu0 0.0
  %1373 = vmatprep.subr.mxu0 0.0
  %1374 = vmatpush1.msra.mxu0 0.0
  %1375 = vmatprep.subr.mxu0 0.0
  %1376 = vmatpush1.msra.mxu0 0.0
  %1377 = vmatprep.subr.mxu0 0.0
  %1378 = vmatpush1.msra.mxu0 0.0
  %1379 = vmatprep.subr.mxu0 0.0
  %1380 = vmatpush1.msra.mxu0 0.0
  %1381 = vmatprep.subr.mxu0 0.0
  %1382 = vmatpush1.msra.mxu0 0.0
  %1383 = vmatprep.subr.mxu0 0.0
  %1384 = vmatpush1.msra.mxu0 0.0
  %1385 = vmatprep.subr.mxu0 0.0
  %1386 = vmatpush1.msra.mxu0 0.0
  %1387 = vmatprep.subr.mxu0 0.0
  %1388 = vmatpush1.msra.mxu0 0.0
  %1389 = vmatprep.subr.mxu0 0.0
  %1390 = vmatpush1.msra.mxu0 0.0
  %1391 = vmatprep.mubr.f32.mxu0 0.0
  %v1392 = vand.u32 %v1012, 4294901760
  %v1393 = vsub.f32 %v1012, %v1392
  %1394 = vmatmul.mubr.f32.gmra.mrb[0].mxu0 %v1393
  %v1395 = vpop.f32.mrb[0].mxu0
  %v1396 = vadd.f32 %v1286, %v1395
  %v1397 = vpop.f32.mrb[0].mxu0
  %1398 = vmatprep.mubr.f32.mxu0 0.0
  %v1399 = vand.u32 %v1013, 4294901760
  %v1400 = vsub.f32 %v1013, %v1399
  %1401 = vmatmul.mubr.f32.gmra.mrb[0].mxu0 %v1400
  %v1402 = vpop.f32.mrb[0].mxu0
  %v1403 = vadd.f32 %v1292, %v1402
  %v1404 = vpop.f32.mrb[0].mxu0
  %1405 = vdwg.mxu0
  %1406 = vmatprep.subr.mxu0 0.0
  %v1407 = vand.u32 %v1014, 4294901760
  %1408 = vmatpush1.msra.mxu0 %v1407
  %1409 = vmatprep.subr.mxu0 0.0
  %v1410 = vand.u32 %v1015, 4294901760
  %1411 = vmatpush1.msra.mxu0 %v1410
  %1412 = vmatprep.subr.mxu0 0.0
  %v1413 = vand.u32 %v1016, 4294901760
  %1414 = vmatpush1.msra.mxu0 %v1413
  %1415 = vmatprep.subr.mxu0 0.0
  %v1416 = vand.u32 %v1017, 4294901760
  %1417 = vmatpush1.msra.mxu0 %v1416
  %1418 = vmatprep.subr.mxu0 0.0
  %v1419 = vand.u32 %v1018, 4294901760
  %1420 = vmatpush1.msra.mxu0 %v1419
  %1421 = vmatprep.subr.mxu0 0.0
  %v1422 = vand.u32 %v1019, 4294901760
  %1423 = vmatpush1.msra.mxu0 %v1422
  %1424 = vmatprep.subr.mxu0 0.0
  %v1425 = vand.u32 %v1020, 4294901760
  %1426 = vmatpush1.msra.mxu0 %v1425
  %1427 = vmatprep.subr.mxu0 0.0
  %v1428 = vand.u32 %v1021, 4294901760
  %1429 = vmatpush1.msra.mxu0 %v1428
  %1430 = vmatprep.subr.mxu0 0.0
  %v1431 = vand.u32 %v1022, 4294901760
  %1432 = vmatpush1.msra.mxu0 %v1431
  %1433 = vmatprep.subr.mxu0 0.0
  %v1434 = vand.u32 %v1023, 4294901760
  %1435 = vmatpush1.msra.mxu0 %v1434
  %1436 = vmatprep.subr.mxu0 0.0
  %v1437 = vand.u32 %v1024, 4294901760
  %1438 = vmatpush1.msra.mxu0 %v1437
  %1439 = vmatprep.subr.mxu0 0.0
  %v1440 = vand.u32 %v1025, 4294901760
  %1441 = vmatpush1.msra.mxu0 %v1440
  %1442 = vmatprep.subr.mxu0 0.0
  %v1443 = vand.u32 %v1026, 4294901760
  %1444 = vmatpush1.msra.mxu0 %v1443
  %1445 = vmatprep.subr.mxu0 0.0
  %v1446 = vand.u32 %v1027, 4294901760
  %1447 = vmatpush1.msra.mxu0 %v1446
  %1448 = vmatprep.subr.mxu0 0.0
  %v1449 = vand.u32 %v1028, 4294901760
  %1450 = vmatpush1.msra.mxu0 %v1449
  %1451 = vmatprep.subr.mxu0 0.0
  %v1452 = vand.u32 %v1029, 4294901760
  %1453 = vmatpush1.msra.mxu0 %v1452
  %1454 = vmatprep.subr.mxu0 0.0
  %1455 = vmatpush1.msra.mxu0 0.0
  %1456 = vmatprep.subr.mxu0 0.0
  %1457 = vmatpush1.msra.mxu0 0.0
  %1458 = vmatprep.subr.mxu0 0.0
  %1459 = vmatpush1.msra.mxu0 0.0
  %1460 = vmatprep.subr.mxu0 0.0
  %1461 = vmatpush1.msra.mxu0 0.0
  %1462 = vmatprep.subr.mxu0 0.0
  %1463 = vmatpush1.msra.mxu0 0.0
  %1464 = vmatprep.subr.mxu0 0.0
  %1465 = vmatpush1.msra.mxu0 0.0
  %1466 = vmatprep.subr.mxu0 0.0
  %1467 = vmatpush1.msra.mxu0 0.0
  %1468 = vmatprep.subr.mxu0 0.0
  %1469 = vmatpush1.msra.mxu0 0.0
  %1470 = vmatprep.subr.mxu0 0.0
  %1471 = vmatpush1.msra.mxu0 0.0
  %1472 = vmatprep.subr.mxu0 0.0
  %1473 = vmatpush1.msra.mxu0 0.0
  %1474 = vmatprep.subr.mxu0 0.0
  %1475 = vmatpush1.msra.mxu0 0.0
  %1476 = vmatprep.subr.mxu0 0.0
  %1477 = vmatpush1.msra.mxu0 0.0
  %1478 = vmatprep.subr.mxu0 0.0
  %1479 = vmatpush1.msra.mxu0 0.0
  %1480 = vmatprep.subr.mxu0 0.0
  %1481 = vmatpush1.msra.mxu0 0.0
  %1482 = vmatprep.subr.mxu0 0.0
  %1483 = vmatpush1.msra.mxu0 0.0
  %1484 = vmatprep.subr.mxu0 0.0
  %1485 = vmatpush1.msra.mxu0 0.0
  %1486 = vmatprep.mubr.f32.mxu0 0.0
  %v1487 = vand.u32 %v1012, 4294901760
  %v1488 = vsub.f32 %v1012, %v1487
  %v1489 = vand.u32 %v1488, 4294901760
  %1490 = vmatmul.mubr.f32.gmra.mrb[0].mxu0 %v1489
  %v1491 = vpop.f32.mrb[0].mxu0
  %v1492 = vadd.f32 %v1396, %v1491
  %v1493 = vpop.f32.mrb[0].mxu0
  %1494 = vmatprep.mubr.f32.mxu0 0.0
  %v1495 = vand.u32 %v1013, 4294901760
  %v1496 = vsub.f32 %v1013, %v1495
  %v1497 = vand.u32 %v1496, 4294901760
  %1498 = vmatmul.mubr.f32.gmra.mrb[0].mxu0 %v1497
  %v1499 = vpop.f32.mrb[0].mxu0
  %v1500 = vadd.f32 %v1403, %v1499
  %v1501 = vpop.f32.mrb[0].mxu0
  %1502 = vdwg.mxu0
  %1503 = vmatprep.subr.mxu0 0.0
  %v1504 = vand.u32 %v1014, 4294901760
  %v1505 = vsub.f32 %v1014, %v1504
  %v1506 = vand.u32 %v1505, 4294901760
  %1507 = vmatpush1.msra.mxu0 %v1506
  %1508 = vmatprep.subr.mxu0 0.0
  %v1509 = vand.u32 %v1015, 4294901760
  %v1510 = vsub.f32 %v1015, %v1509
  %v1511 = vand.u32 %v1510, 4294901760
  %1512 = vmatpush1.msra.mxu0 %v1511
  %1513 = vmatprep.subr.mxu0 0.0
  %v1514 = vand.u32 %v1016, 4294901760
  %v1515 = vsub.f32 %v1016, %v1514
  %v1516 = vand.u32 %v1515, 4294901760
  %1517 = vmatpush1.msra.mxu0 %v1516
  %1518 = vmatprep.subr.mxu0 0.0
  %v1519 = vand.u32 %v1017, 4294901760
  %v1520 = vsub.f32 %v1017, %v1519
  %v1521 = vand.u32 %v1520, 4294901760
  %1522 = vmatpush1.msra.mxu0 %v1521
  %1523 = vmatprep.subr.mxu0 0.0
  %v1524 = vand.u32 %v1018, 4294901760
  %v1525 = vsub.f32 %v1018, %v1524
  %v1526 = vand.u32 %v1525, 4294901760
  %1527 = vmatpush1.msra.mxu0 %v1526
  %1528 = vmatprep.subr.mxu0 0.0
  %v1529 = vand.u32 %v1019, 4294901760
  %v1530 = vsub.f32 %v1019, %v1529
  %v1531 = vand.u32 %v1530, 4294901760
  %1532 = vmatpush1.msra.mxu0 %v1531
  %1533 = vmatprep.subr.mxu0 0.0
  %v1534 = vand.u32 %v1020, 4294901760
  %v1535 = vsub.f32 %v1020, %v1534
  %v1536 = vand.u32 %v1535, 4294901760
  %1537 = vmatpush1.msra.mxu0 %v1536
  %1538 = vmatprep.subr.mxu0 0.0
  %v1539 = vand.u32 %v1021, 4294901760
  %v1540 = vsub.f32 %v1021, %v1539
  %v1541 = vand.u32 %v1540, 4294901760
  %1542 = vmatpush1.msra.mxu0 %v1541
  %1543 = vmatprep.subr.mxu0 0.0
  %v1544 = vand.u32 %v1022, 4294901760
  %v1545 = vsub.f32 %v1022, %v1544
  %v1546 = vand.u32 %v1545, 4294901760
  %1547 = vmatpush1.msra.mxu0 %v1546
  %1548 = vmatprep.subr.mxu0 0.0
  %v1549 = vand.u32 %v1023, 4294901760
  %v1550 = vsub.f32 %v1023, %v1549
  %v1551 = vand.u32 %v1550, 4294901760
  %1552 = vmatpush1.msra.mxu0 %v1551
  %1553 = vmatprep.subr.mxu0 0.0
  %v1554 = vand.u32 %v1024, 4294901760
  %v1555 = vsub.f32 %v1024, %v1554
  %v1556 = vand.u32 %v1555, 4294901760
  %1557 = vmatpush1.msra.mxu0 %v1556
  %1558 = vmatprep.subr.mxu0 0.0
  %v1559 = vand.u32 %v1025, 4294901760
  %v1560 = vsub.f32 %v1025, %v1559
  %v1561 = vand.u32 %v1560, 4294901760
  %1562 = vmatpush1.msra.mxu0 %v1561
  %1563 = vmatprep.subr.mxu0 0.0
  %v1564 = vand.u32 %v1026, 4294901760
  %v1565 = vsub.f32 %v1026, %v1564
  %v1566 = vand.u32 %v1565, 4294901760
  %1567 = vmatpush1.msra.mxu0 %v1566
  %1568 = vmatprep.subr.mxu0 0.0
  %v1569 = vand.u32 %v1027, 4294901760
  %v1570 = vsub.f32 %v1027, %v1569
  %v1571 = vand.u32 %v1570, 4294901760
  %1572 = vmatpush1.msra.mxu0 %v1571
  %1573 = vmatprep.subr.mxu0 0.0
  %v1574 = vand.u32 %v1028, 4294901760
  %v1575 = vsub.f32 %v1028, %v1574
  %v1576 = vand.u32 %v1575, 4294901760
  %1577 = vmatpush1.msra.mxu0 %v1576
  %1578 = vmatprep.subr.mxu0 0.0
  %v1579 = vand.u32 %v1029, 4294901760
  %v1580 = vsub.f32 %v1029, %v1579
  %v1581 = vand.u32 %v1580, 4294901760
  %1582 = vmatpush1.msra.mxu0 %v1581
  %1583 = vmatprep.subr.mxu0 0.0
  %1584 = vmatpush1.msra.mxu0 0.0
  %1585 = vmatprep.subr.mxu0 0.0
  %1586 = vmatpush1.msra.mxu0 0.0
  %1587 = vmatprep.subr.mxu0 0.0
  %1588 = vmatpush1.msra.mxu0 0.0
  %1589 = vmatprep.subr.mxu0 0.0
  %1590 = vmatpush1.msra.mxu0 0.0
  %1591 = vmatprep.subr.mxu0 0.0
  %1592 = vmatpush1.msra.mxu0 0.0
  %1593 = vmatprep.subr.mxu0 0.0
  %1594 = vmatpush1.msra.mxu0 0.0
  %1595 = vmatprep.subr.mxu0 0.0
  %1596 = vmatpush1.msra.mxu0 0.0
  %1597 = vmatprep.subr.mxu0 0.0
  %1598 = vmatpush1.msra.mxu0 0.0
  %1599 = vmatprep.subr.mxu0 0.0
  %1600 = vmatpush1.msra.mxu0 0.0
  %1601 = vmatprep.subr.mxu0 0.0
  %1602 = vmatpush1.msra.mxu0 0.0
  %1603 = vmatprep.subr.mxu0 0.0
  %1604 = vmatpush1.msra.mxu0 0.0
  %1605 = vmatprep.subr.mxu0 0.0
  %1606 = vmatpush1.msra.mxu0 0.0
  %1607 = vmatprep.subr.mxu0 0.0
  %1608 = vmatpush1.msra.mxu0 0.0
  %1609 = vmatprep.subr.mxu0 0.0
  %1610 = vmatpush1.msra.mxu0 0.0
  %1611 = vmatprep.subr.mxu0 0.0
  %1612 = vmatpush1.msra.mxu0 0.0
  %1613 = vmatprep.subr.mxu0 0.0
  %1614 = vmatpush1.msra.mxu0 0.0
  %1615 = vmatprep.mubr.f32.mxu0 0.0
  %v1616 = vand.u32 %v1012, 4294901760
  %1617 = vmatmul.mubr.f32.gmra.mrb[0].mxu0 %v1616
  %v1618 = vpop.f32.mrb[0].mxu0
  %v1619 = vadd.f32 %v1492, %v1618
  %v1620 = vpop.f32.mrb[0].mxu0
  %1621 = vmatprep.mubr.f32.mxu0 0.0
  %v1622 = vand.u32 %v1013, 4294901760
  %1623 = vmatmul.mubr.f32.gmra.mrb[0].mxu0 %v1622
  %v1624 = vpop.f32.mrb[0].mxu0
  %v1625 = vadd.f32 %v1500, %v1624
  %v1626 = vpop.f32.mrb[0].mxu0
  %1627 = vdwg.mxu0
  %1628 = vmatprep.subr.mxu0 0.0
  %v1629 = vand.u32 %v1014, 4294901760
  %1630 = vmatpush1.msra.mxu0 %v1629
  %1631 = vmatprep.subr.mxu0 0.0
  %v1632 = vand.u32 %v1015, 4294901760
  %1633 = vmatpush1.msra.mxu0 %v1632
  %1634 = vmatprep.subr.mxu0 0.0
  %v1635 = vand.u32 %v1016, 4294901760
  %1636 = vmatpush1.msra.mxu0 %v1635
  %1637 = vmatprep.subr.mxu0 0.0
  %v1638 = vand.u32 %v1017, 4294901760
  %1639 = vmatpush1.msra.mxu0 %v1638
  %1640 = vmatprep.subr.mxu0 0.0
  %v1641 = vand.u32 %v1018, 4294901760
  %1642 = vmatpush1.msra.mxu0 %v1641
  %1643 = vmatprep.subr.mxu0 0.0
  %v1644 = vand.u32 %v1019, 4294901760
  %1645 = vmatpush1.msra.mxu0 %v1644
  %1646 = vmatprep.subr.mxu0 0.0
  %v1647 = vand.u32 %v1020, 4294901760
  %1648 = vmatpush1.msra.mxu0 %v1647
  %1649 = vmatprep.subr.mxu0 0.0
  %v1650 = vand.u32 %v1021, 4294901760
  %1651 = vmatpush1.msra.mxu0 %v1650
  %1652 = vmatprep.subr.mxu0 0.0
  %v1653 = vand.u32 %v1022, 4294901760
  %1654 = vmatpush1.msra.mxu0 %v1653
  %1655 = vmatprep.subr.mxu0 0.0
  %v1656 = vand.u32 %v1023, 4294901760
  %1657 = vmatpush1.msra.mxu0 %v1656
  %1658 = vmatprep.subr.mxu0 0.0
  %v1659 = vand.u32 %v1024, 4294901760
  %1660 = vmatpush1.msra.mxu0 %v1659
  %1661 = vmatprep.subr.mxu0 0.0
  %v1662 = vand.u32 %v1025, 4294901760
  %1663 = vmatpush1.msra.mxu0 %v1662
  %1664 = vmatprep.subr.mxu0 0.0
  %v1665 = vand.u32 %v1026, 4294901760
  %1666 = vmatpush1.msra.mxu0 %v1665
  %1667 = vmatprep.subr.mxu0 0.0
  %v1668 = vand.u32 %v1027, 4294901760
  %1669 = vmatpush1.msra.mxu0 %v1668
  %1670 = vmatprep.subr.mxu0 0.0
  %v1671 = vand.u32 %v1028, 4294901760
  %1672 = vmatpush1.msra.mxu0 %v1671
  %1673 = vmatprep.subr.mxu0 0.0
  %v1674 = vand.u32 %v1029, 4294901760
  %1675 = vmatpush1.msra.mxu0 %v1674
  %1676 = vmatprep.subr.mxu0 0.0
  %1677 = vmatpush1.msra.mxu0 0.0
  %1678 = vmatprep.subr.mxu0 0.0
  %1679 = vmatpush1.msra.mxu0 0.0
  %1680 = vmatprep.subr.mxu0 0.0
  %1681 = vmatpush1.msra.mxu0 0.0
  %1682 = vmatprep.subr.mxu0 0.0
  %1683 = vmatpush1.msra.mxu0 0.0
  %1684 = vmatprep.subr.mxu0 0.0
  %1685 = vmatpush1.msra.mxu0 0.0
  %1686 = vmatprep.subr.mxu0 0.0
  %1687 = vmatpush1.msra.mxu0 0.0
  %1688 = vmatprep.subr.mxu0 0.0
  %1689 = vmatpush1.msra.mxu0 0.0
  %1690 = vmatprep.subr.mxu0 0.0
  %1691 = vmatpush1.msra.mxu0 0.0
  %1692 = vmatprep.subr.mxu0 0.0
  %1693 = vmatpush1.msra.mxu0 0.0
  %1694 = vmatprep.subr.mxu0 0.0
  %1695 = vmatpush1.msra.mxu0 0.0
  %1696 = vmatprep.subr.mxu0 0.0
  %1697 = vmatpush1.msra.mxu0 0.0
  %1698 = vmatprep.subr.mxu0 0.0
  %1699 = vmatpush1.msra.mxu0 0.0
  %1700 = vmatprep.subr.mxu0 0.0
  %1701 = vmatpush1.msra.mxu0 0.0
  %1702 = vmatprep.subr.mxu0 0.0
  %1703 = vmatpush1.msra.mxu0 0.0
  %1704 = vmatprep.subr.mxu0 0.0
  %1705 = vmatpush1.msra.mxu0 0.0
  %1706 = vmatprep.subr.mxu0 0.0
  %1707 = vmatpush1.msra.mxu0 0.0
  %1708 = vmatprep.mubr.f32.mxu0 0.0
  %v1709 = vand.u32 %v1012, 4294901760
  %1710 = vmatmul.mubr.f32.gmra.mrb[0].mxu0 %v1709
  %v1711 = vpop.f32.mrb[0].mxu0
  %v1712 = vadd.f32 %v1619, %v1711
  %v1713 = vpop.f32.mrb[0].mxu0
  %1714 = vmatprep.mubr.f32.mxu0 0.0
  %v1715 = vand.u32 %v1013, 4294901760
  %1716 = vmatmul.mubr.f32.gmra.mrb[0].mxu0 %v1715
  %v1717 = vpop.f32.mrb[0].mxu0
  %v1718 = vadd.f32 %v1625, %v1717
  %v1719 = vpop.f32.mrb[0].mxu0
  %1720 = vdwg.mxu0
  %v1721 = vrot.slane %v1712, 4
  %v1722 = vadd.f32 %v1712, %v1721
  %v1723 = vrot.slane %v1722, 2
  %v1724 = vadd.f32 %v1722, %v1723
  %v1725 = vrot.slane %v1724, 1
  %v1726 = vadd.f32 %v1724, %v1725
  %v1727 = vrot.slane %v1718, 4
  %v1728 = vadd.f32 %v1718, %v1727
  %v1729 = vrot.slane %v1728, 2
  %v1730 = vadd.f32 %v1728, %v1729
  %v1731 = vrot.slane %v1730, 1
  %v1732 = vadd.f32 %v1730, %v1731
  %v1733 = vrcp.pop 8.0
  %v1734 = vmul.f32 %v1726, %v1733
  %v1735 = vmul.f32 %v1732, %v1733
  %v1736 = vsub.f32 %v1712, %v1734
  %v1737 = vsub.f32 %v1718, %v1735
  %v1738 = vmul.f32 %v1736, %v1736
  %v1739 = vmul.f32 %v1737, %v1737
  %v1740 = vrot.slane %v1738, 4
  %v1741 = vadd.f32 %v1738, %v1740
  %v1742 = vrot.slane %v1741, 2
  %v1743 = vadd.f32 %v1741, %v1742
  %v1744 = vrot.slane %v1743, 1
  %v1745 = vadd.f32 %v1743, %v1744
  %v1746 = vrot.slane %v1739, 4
  %v1747 = vadd.f32 %v1739, %v1746
  %v1748 = vrot.slane %v1747, 2
  %v1749 = vadd.f32 %v1747, %v1748
  %v1750 = vrot.slane %v1749, 1
  %v1751 = vadd.f32 %v1749, %v1750
  %v1752 = vmul.f32 %v1745, 0.14285715
  %v1753 = vmul.f32 %v1751, 0.14285715
  %v1754 = vadd.f32 %v1752, 1e-08
  %v1755 = vadd.f32 %v1753, 1e-08
  %v1756 = vrsqrt.pop %v1754
  %v1757 = vrsqrt.pop %v1755
  %v1758 = vmul.f32 %v1736, %v1756
  %v1759 = vmul.f32 %v1737, %v1757
  %v1760 = vld [vmem:[%s5] sm:$0x1]
  %v1762 = vlaneseq
  %v1763 = vshrl.u32 %v1762, 7
  %v1764 = vsub.s32 0, %v1763
  %v1765 = vrot.slane %v1760, %v1764
  %v1767 = vmul.f32 %v1758, %v1765
  %v1768 = vmul.f32 %v1759, %v1765
  %v1769 = vld [vmem:[%s6] sm:$0x1]
  %v1771 = vlaneseq
  %v1772 = vshrl.u32 %v1771, 7
  %v1773 = vsub.s32 0, %v1772
  %v1774 = vrot.slane %v1769, %v1773
  %v1776 = vadd.f32 %v1767, %v1774
  %v1777 = vadd.f32 %v1768, %v1774
  %v1778 = vld [vmem:[%s9] sm:$0xff]
  %v1779 = vpack.c.bf16 %v1776, %v1776
  %v1780 = vpack.c.bf16 %v1777, %v1777
  %v1781 = vld [vmem:[%s8] sm:$0xff]
  %v1782 = vld [vmem:[%s8 + $0x8] sm:$0xff]
  %v1783 = vld [vmem:[%s8 + $0x10] sm:$0xff]
  %v1784 = vld [vmem:[%s8 + $0x18] sm:$0xff]
  %v1785 = vld [vmem:[%s8 + $0x20] sm:$0xff]
  %v1786 = vld [vmem:[%s8 + $0x28] sm:$0xff]
  %v1787 = vld [vmem:[%s8 + $0x30] sm:$0xff]
  %v1788 = vld [vmem:[%s8 + $0x38] sm:$0xff]
  %v1789 = vld [vmem:[%s8 + $0x40] sm:$0xff]
  %v1790 = vld [vmem:[%s8 + $0x48] sm:$0xff]
  %v1791 = vld [vmem:[%s8 + $0x50] sm:$0xff]
  %v1792 = vld [vmem:[%s8 + $0x58] sm:$0xff]
  %v1793 = vld [vmem:[%s8 + $0x60] sm:$0xff]
  %v1794 = vld [vmem:[%s8 + $0x68] sm:$0xff]
  %v1795 = vld [vmem:[%s8 + $0x70] sm:$0xff]
  %v1796 = vld [vmem:[%s8 + $0x78] sm:$0xff]
  %v1797 = vld [vmem:[%s8 + $0x80] sm:$0xff]
  %v1798 = vld [vmem:[%s8 + $0x88] sm:$0xff]
  %v1799 = vld [vmem:[%s8 + $0x90] sm:$0xff]
  %v1800 = vld [vmem:[%s8 + $0x98] sm:$0xff]
  %v1801 = vld [vmem:[%s8 + $0xa0] sm:$0xff]
  %v1802 = vld [vmem:[%s8 + $0xa8] sm:$0xff]
  %v1803 = vld [vmem:[%s8 + $0xb0] sm:$0xff]
  %v1804 = vld [vmem:[%s8 + $0xb8] sm:$0xff]
  %v1805 = vld [vmem:[%s8 + $0xc0] sm:$0xff]
  %v1806 = vld [vmem:[%s8 + $0xc8] sm:$0xff]
  %v1807 = vld [vmem:[%s8 + $0xd0] sm:$0xff]
  %v1808 = vld [vmem:[%s8 + $0xd8] sm:$0xff]
  %v1809 = vld [vmem:[%s8 + $0xe0] sm:$0xff]
  %v1810 = vld [vmem:[%s8 + $0xe8] sm:$0xff]
  %v1811 = vld [vmem:[%s8 + $0xf0] sm:$0xff]
  %v1812 = vld [vmem:[%s8 + $0xf8] sm:$0xff]
  %v1813 = vld [vmem:[%s8 + $0x100] sm:$0xff]
  %v1814 = vld [vmem:[%s8 + $0x108] sm:$0xff]
  %v1815 = vld [vmem:[%s8 + $0x110] sm:$0xff]
  %v1816 = vld [vmem:[%s8 + $0x118] sm:$0xff]
  %v1817 = vld [vmem:[%s8 + $0x120] sm:$0xff]
  %v1818 = vld [vmem:[%s8 + $0x128] sm:$0xff]
  %v1819 = vld [vmem:[%s8 + $0x130] sm:$0xff]
  %v1820 = vld [vmem:[%s8 + $0x138] sm:$0xff]
  %v1821 = vld [vmem:[%s8 + $0x140] sm:$0xff]
  %v1822 = vld [vmem:[%s8 + $0x148] sm:$0xff]
  %v1823 = vld [vmem:[%s8 + $0x150] sm:$0xff]
  %v1824 = vld [vmem:[%s8 + $0x158] sm:$0xff]
  %v1825 = vld [vmem:[%s8 + $0x160] sm:$0xff]
  %v1826 = vld [vmem:[%s8 + $0x168] sm:$0xff]
  %v1827 = vld [vmem:[%s8 + $0x170] sm:$0xff]
  %v1828 = vld [vmem:[%s8 + $0x178] sm:$0xff]
  %v1829 = vld [vmem:[%s8 + $0x180] sm:$0xff]
  %v1830 = vld [vmem:[%s8 + $0x188] sm:$0xff]
  %v1831 = vld [vmem:[%s8 + $0x190] sm:$0xff]
  %v1832 = vld [vmem:[%s8 + $0x198] sm:$0xff]
  %v1833 = vld [vmem:[%s8 + $0x1a0] sm:$0xff]
  %v1834 = vld [vmem:[%s8 + $0x1a8] sm:$0xff]
  %v1835 = vld [vmem:[%s8 + $0x1b0] sm:$0xff]
  %v1836 = vld [vmem:[%s8 + $0x1b8] sm:$0xff]
  %v1837 = vld [vmem:[%s8 + $0x1c0] sm:$0xff]
  %v1838 = vld [vmem:[%s8 + $0x1c8] sm:$0xff]
  %v1839 = vld [vmem:[%s8 + $0x1d0] sm:$0xff]
  %v1840 = vld [vmem:[%s8 + $0x1d8] sm:$0xff]
  %v1841 = vld [vmem:[%s8 + $0x1e0] sm:$0xff]
  %v1842 = vld [vmem:[%s8 + $0x1e8] sm:$0xff]
  %v1843 = vld [vmem:[%s8 + $0x1f0] sm:$0xff]
  %v1844 = vld [vmem:[%s8 + $0x1f8] sm:$0xff]
  %v1847 = vunpack.c.l.b16 %v1779
  %v1848 = vunpack.c.l.b16 %v1780
  %v1849 = vrot.slane %v1848, 7
  %vm1850 = vcmask 1041409
  %v1851 = vsel %vm1850, %v1849, %v1847
  %v1852 = vpack.c.b16 %v1851, %v1851
  %v1918 = vunpack.c.l.b16 %v1781
  %v1919 = vunpack.c.h.b16 %v1781
  %v1920 = vunpack.c.l.b16 %v1782
  %v1921 = vunpack.c.h.b16 %v1782
  %v1922 = vunpack.c.l.b16 %v1783
  %v1923 = vunpack.c.h.b16 %v1783
  %v1924 = vunpack.c.l.b16 %v1784
  %v1925 = vunpack.c.h.b16 %v1784
  %v1926 = vunpack.c.l.b16 %v1785
  %v1927 = vunpack.c.h.b16 %v1785
  %v1928 = vunpack.c.l.b16 %v1786
  %v1929 = vunpack.c.h.b16 %v1786
  %v1930 = vunpack.c.l.b16 %v1787
  %v1931 = vunpack.c.h.b16 %v1787
  %v1932 = vunpack.c.l.b16 %v1788
  %v1933 = vunpack.c.h.b16 %v1788
  %v1934 = vunpack.c.l.b16 %v1789
  %v1935 = vunpack.c.h.b16 %v1789
  %v1936 = vunpack.c.l.b16 %v1790
  %v1937 = vunpack.c.h.b16 %v1790
  %v1938 = vunpack.c.l.b16 %v1791
  %v1939 = vunpack.c.h.b16 %v1791
  %v1940 = vunpack.c.l.b16 %v1792
  %v1941 = vunpack.c.h.b16 %v1792
  %v1942 = vunpack.c.l.b16 %v1793
  %v1943 = vunpack.c.h.b16 %v1793
  %v1944 = vunpack.c.l.b16 %v1794
  %v1945 = vunpack.c.h.b16 %v1794
  %v1946 = vunpack.c.l.b16 %v1795
  %v1947 = vunpack.c.h.b16 %v1795
  %v1948 = vunpack.c.l.b16 %v1796
  %v1949 = vunpack.c.h.b16 %v1796
  %v1950 = vunpack.c.l.b16 %v1797
  %v1951 = vunpack.c.h.b16 %v1797
  %v1952 = vunpack.c.l.b16 %v1798
  %v1953 = vunpack.c.h.b16 %v1798
  %v1954 = vunpack.c.l.b16 %v1799
  %v1955 = vunpack.c.h.b16 %v1799
  %v1956 = vunpack.c.l.b16 %v1800
  %v1957 = vunpack.c.h.b16 %v1800
  %v1958 = vunpack.c.l.b16 %v1801
  %v1959 = vunpack.c.h.b16 %v1801
  %v1960 = vunpack.c.l.b16 %v1802
  %v1961 = vunpack.c.h.b16 %v1802
  %v1962 = vunpack.c.l.b16 %v1803
  %v1963 = vunpack.c.h.b16 %v1803
  %v1964 = vunpack.c.l.b16 %v1804
  %v1965 = vunpack.c.h.b16 %v1804
  %v1966 = vunpack.c.l.b16 %v1805
  %v1967 = vunpack.c.h.b16 %v1805
  %v1968 = vunpack.c.l.b16 %v1806
  %v1969 = vunpack.c.h.b16 %v1806
  %v1970 = vunpack.c.l.b16 %v1807
  %v1971 = vunpack.c.h.b16 %v1807
  %v1972 = vunpack.c.l.b16 %v1808
  %v1973 = vunpack.c.h.b16 %v1808
  %v1974 = vunpack.c.l.b16 %v1809
  %v1975 = vunpack.c.h.b16 %v1809
  %v1976 = vunpack.c.l.b16 %v1810
  %v1977 = vunpack.c.h.b16 %v1810
  %v1978 = vunpack.c.l.b16 %v1811
  %v1979 = vunpack.c.h.b16 %v1811
  %v1980 = vunpack.c.l.b16 %v1812
  %v1981 = vunpack.c.h.b16 %v1812
  %v1982 = vunpack.c.l.b16 %v1813
  %v1983 = vunpack.c.h.b16 %v1813
  %v1984 = vunpack.c.l.b16 %v1814
  %v1985 = vunpack.c.h.b16 %v1814
  %v1986 = vunpack.c.l.b16 %v1815
  %v1987 = vunpack.c.h.b16 %v1815
  %v1988 = vunpack.c.l.b16 %v1816
  %v1989 = vunpack.c.h.b16 %v1816
  %v1990 = vunpack.c.l.b16 %v1817
  %v1991 = vunpack.c.h.b16 %v1817
  %v1992 = vunpack.c.l.b16 %v1818
  %v1993 = vunpack.c.h.b16 %v1818
  %v1994 = vunpack.c.l.b16 %v1819
  %v1995 = vunpack.c.h.b16 %v1819
  %v1996 = vunpack.c.l.b16 %v1820
  %v1997 = vunpack.c.h.b16 %v1820
  %v1998 = vunpack.c.l.b16 %v1821
  %v1999 = vunpack.c.h.b16 %v1821
  %v2000 = vunpack.c.l.b16 %v1822
  %v2001 = vunpack.c.h.b16 %v1822
  %v2002 = vunpack.c.l.b16 %v1823
  %v2003 = vunpack.c.h.b16 %v1823
  %v2004 = vunpack.c.l.b16 %v1824
  %v2005 = vunpack.c.h.b16 %v1824
  %v2006 = vunpack.c.l.b16 %v1825
  %v2007 = vunpack.c.h.b16 %v1825
  %v2008 = vunpack.c.l.b16 %v1826
  %v2009 = vunpack.c.h.b16 %v1826
  %v2010 = vunpack.c.l.b16 %v1827
  %v2011 = vunpack.c.h.b16 %v1827
  %v2012 = vunpack.c.l.b16 %v1828
  %v2013 = vunpack.c.h.b16 %v1828
  %v2014 = vunpack.c.l.b16 %v1829
  %v2015 = vunpack.c.h.b16 %v1829
  %v2016 = vunpack.c.l.b16 %v1830
  %v2017 = vunpack.c.h.b16 %v1830
  %v2018 = vunpack.c.l.b16 %v1831
  %v2019 = vunpack.c.h.b16 %v1831
  %v2020 = vunpack.c.l.b16 %v1832
  %v2021 = vunpack.c.h.b16 %v1832
  %v2022 = vunpack.c.l.b16 %v1833
  %v2023 = vunpack.c.h.b16 %v1833
  %v2024 = vunpack.c.l.b16 %v1834
  %v2025 = vunpack.c.h.b16 %v1834
  %v2026 = vunpack.c.l.b16 %v1835
  %v2027 = vunpack.c.h.b16 %v1835
  %v2028 = vunpack.c.l.b16 %v1836
  %v2029 = vunpack.c.h.b16 %v1836
  %v2030 = vunpack.c.l.b16 %v1837
  %v2031 = vunpack.c.h.b16 %v1837
  %v2032 = vunpack.c.l.b16 %v1838
  %v2033 = vunpack.c.h.b16 %v1838
  %v2034 = vunpack.c.l.b16 %v1839
  %v2035 = vunpack.c.h.b16 %v1839
  %v2036 = vunpack.c.l.b16 %v1840
  %v2037 = vunpack.c.h.b16 %v1840
  %v2038 = vunpack.c.l.b16 %v1841
  %v2039 = vunpack.c.h.b16 %v1841
  %v2040 = vunpack.c.l.b16 %v1842
  %v2041 = vunpack.c.h.b16 %v1842
  %v2042 = vunpack.c.l.b16 %v1843
  %v2043 = vunpack.c.h.b16 %v1843
  %v2044 = vunpack.c.l.b16 %v1844
  %v2045 = vunpack.c.h.b16 %v1844
  %v2046 = vpack.c.b16 %v1926, %v1918
  %v2047 = vpack.c.b16 %v1927, %v1919
  %v2048 = vpack.c.b16 %v1928, %v1920
  %v2049 = vpack.c.b16 %v1929, %v1921
  %v2050 = vpack.c.b16 %v1930, %v1922
  %v2051 = vpack.c.b16 %v1931, %v1923
  %v2052 = vpack.c.b16 %v1932, %v1924
  %v2053 = vpack.c.b16 %v1933, %v1925
  %v2054 = vpack.c.b16 %v1942, %v1934
  %v2055 = vpack.c.b16 %v1943, %v1935
  %v2056 = vpack.c.b16 %v1944, %v1936
  %v2057 = vpack.c.b16 %v1945, %v1937
  %v2058 = vpack.c.b16 %v1946, %v1938
  %v2059 = vpack.c.b16 %v1947, %v1939
  %v2060 = vpack.c.b16 %v1948, %v1940
  %v2061 = vpack.c.b16 %v1949, %v1941
  %v2062 = vpack.c.b16 %v1958, %v1950
  %v2063 = vpack.c.b16 %v1959, %v1951
  %v2064 = vpack.c.b16 %v1960, %v1952
  %v2065 = vpack.c.b16 %v1961, %v1953
  %v2066 = vpack.c.b16 %v1962, %v1954
  %v2067 = vpack.c.b16 %v1963, %v1955
  %v2068 = vpack.c.b16 %v1964, %v1956
  %v2069 = vpack.c.b16 %v1965, %v1957
  %v2070 = vpack.c.b16 %v1974, %v1966
  %v2071 = vpack.c.b16 %v1975, %v1967
  %v2072 = vpack.c.b16 %v1976, %v1968
  %v2073 = vpack.c.b16 %v1977, %v1969
  %v2074 = vpack.c.b16 %v1978, %v1970
  %v2075 = vpack.c.b16 %v1979, %v1971
  %v2076 = vpack.c.b16 %v1980, %v1972
  %v2077 = vpack.c.b16 %v1981, %v1973
  %v2078 = vpack.c.b16 %v1990, %v1982
  %v2079 = vpack.c.b16 %v1991, %v1983
  %v2080 = vpack.c.b16 %v1992, %v1984
  %v2081 = vpack.c.b16 %v1993, %v1985
  %v2082 = vpack.c.b16 %v1994, %v1986
  %v2083 = vpack.c.b16 %v1995, %v1987
  %v2084 = vpack.c.b16 %v1996, %v1988
  %v2085 = vpack.c.b16 %v1997, %v1989
  %v2086 = vpack.c.b16 %v2006, %v1998
  %v2087 = vpack.c.b16 %v2007, %v1999
  %v2088 = vpack.c.b16 %v2008, %v2000
  %v2089 = vpack.c.b16 %v2009, %v2001
  %v2090 = vpack.c.b16 %v2010, %v2002
  %v2091 = vpack.c.b16 %v2011, %v2003
  %v2092 = vpack.c.b16 %v2012, %v2004
  %v2093 = vpack.c.b16 %v2013, %v2005
  %v2094 = vpack.c.b16 %v2022, %v2014
  %v2095 = vpack.c.b16 %v2023, %v2015
  %v2096 = vpack.c.b16 %v2024, %v2016
  %v2097 = vpack.c.b16 %v2025, %v2017
  %v2098 = vpack.c.b16 %v2026, %v2018
  %v2099 = vpack.c.b16 %v2027, %v2019
  %v2100 = vpack.c.b16 %v2028, %v2020
  %v2101 = vpack.c.b16 %v2029, %v2021
  %v2102 = vpack.c.b16 %v2038, %v2030
  %v2103 = vpack.c.b16 %v2039, %v2031
  %v2104 = vpack.c.b16 %v2040, %v2032
  %v2105 = vpack.c.b16 %v2041, %v2033
  %v2106 = vpack.c.b16 %v2042, %v2034
  %v2107 = vpack.c.b16 %v2043, %v2035
  %v2108 = vpack.c.b16 %v2044, %v2036
  %v2109 = vpack.c.b16 %v2045, %v2037
  %2174 = vmatprep.subr.bf16.mxu0 %v2047
  %2175 = vmatpush1.bf16.msra.mxu0 %v2046
  %2176 = vmatprep.subr.bf16.mxu0 %v2055
  %2177 = vmatpush1.bf16.msra.mxu0 %v2054
  %2178 = vmatprep.subr.bf16.mxu0 %v2063
  %2179 = vmatpush1.bf16.msra.mxu0 %v2062
  %2180 = vmatprep.subr.bf16.mxu0 %v2071
  %2181 = vmatpush1.bf16.msra.mxu0 %v2070
  %2182 = vmatprep.subr.bf16.mxu0 %v2079
  %2183 = vmatpush1.bf16.msra.mxu0 %v2078
  %2184 = vmatprep.subr.bf16.mxu0 %v2087
  %2185 = vmatpush1.bf16.msra.mxu0 %v2086
  %2186 = vmatprep.subr.bf16.mxu0 %v2095
  %2187 = vmatpush1.bf16.msra.mxu0 %v2094
  %2188 = vmatprep.subr.bf16.mxu0 %v2103
  %2189 = vmatpush1.bf16.msra.mxu0 %v2102
  %2190 = vmatprep.subr.bf16.mxu0 0
  %2191 = vmatpush1.bf16.msra.mxu0 0
  %2192 = vmatprep.subr.bf16.mxu0 0
  %2193 = vmatpush1.bf16.msra.mxu0 0
  %2194 = vmatprep.subr.bf16.mxu0 0
  %2195 = vmatpush1.bf16.msra.mxu0 0
  %2196 = vmatprep.subr.bf16.mxu0 0
  %2197 = vmatpush1.bf16.msra.mxu0 0
  %2198 = vmatprep.subr.bf16.mxu0 0
  %2199 = vmatpush1.bf16.msra.mxu0 0
  %2200 = vmatprep.subr.bf16.mxu0 0
  %2201 = vmatpush1.bf16.msra.mxu0 0
  %2202 = vmatprep.subr.bf16.mxu0 0
  %2203 = vmatpush1.bf16.msra.mxu0 0
  %2204 = vmatprep.subr.bf16.mxu0 0
  %2205 = vmatpush1.bf16.msra.mxu0 0
  %2206 = vmatprep.mubr.bf16.mxu0 0
  %2207 = vmatmul.mubr.bf16.gmra.mrb[0].mxu0 %v1852
  %v2208 = vpop.f32.mrb[0].mxu0
  %v2209 = vadd.f32 0.0, %v2208
  %v2210 = vpop.f32.mrb[0].mxu0
  %v2211 = vadd.f32 0.0, %v2210
  %v2212 = vpop.f32.mrb[0].mxu0
  %v2213 = vpop.f32.mrb[0].mxu0
  %2214 = vdwg.mxu0
  %2215 = vmatprep.subr.bf16.mxu0 %v2049
  %2216 = vmatpush1.bf16.msra.mxu0 %v2048
  %2217 = vmatprep.subr.bf16.mxu0 %v2057
  %2218 = vmatpush1.bf16.msra.mxu0 %v2056
  %2219 = vmatprep.subr.bf16.mxu0 %v2065
  %2220 = vmatpush1.bf16.msra.mxu0 %v2064
  %2221 = vmatprep.subr.bf16.mxu0 %v2073
  %2222 = vmatpush1.bf16.msra.mxu0 %v2072
  %2223 = vmatprep.subr.bf16.mxu0 %v2081
  %2224 = vmatpush1.bf16.msra.mxu0 %v2080
  %2225 = vmatprep.subr.bf16.mxu0 %v2089
  %2226 = vmatpush1.bf16.msra.mxu0 %v2088
  %2227 = vmatprep.subr.bf16.mxu0 %v2097
  %2228 = vmatpush1.bf16.msra.mxu0 %v2096
  %2229 = vmatprep.subr.bf16.mxu0 %v2105
  %2230 = vmatpush1.bf16.msra.mxu0 %v2104
  %2231 = vmatprep.subr.bf16.mxu0 0
  %2232 = vmatpush1.bf16.msra.mxu0 0
  %2233 = vmatprep.subr.bf16.mxu0 0
  %2234 = vmatpush1.bf16.msra.mxu0 0
  %2235 = vmatprep.subr.bf16.mxu0 0
  %2236 = vmatpush1.bf16.msra.mxu0 0
  %2237 = vmatprep.subr.bf16.mxu0 0
  %2238 = vmatpush1.bf16.msra.mxu0 0
  %2239 = vmatprep.subr.bf16.mxu0 0
  %2240 = vmatpush1.bf16.msra.mxu0 0
  %2241 = vmatprep.subr.bf16.mxu0 0
  %2242 = vmatpush1.bf16.msra.mxu0 0
  %2243 = vmatprep.subr.bf16.mxu0 0
  %2244 = vmatpush1.bf16.msra.mxu0 0
  %2245 = vmatprep.subr.bf16.mxu0 0
  %2246 = vmatpush1.bf16.msra.mxu0 0
  %2247 = vmatprep.mubr.bf16.mxu0 0
  %2248 = vmatmul.mubr.bf16.gmra.mrb[0].mxu0 %v1852
  %v2249 = vpop.f32.mrb[0].mxu0
  %v2250 = vadd.f32 0.0, %v2249
  %v2251 = vpop.f32.mrb[0].mxu0
  %v2252 = vadd.f32 0.0, %v2251
  %v2253 = vpop.f32.mrb[0].mxu0
  %v2254 = vpop.f32.mrb[0].mxu0
  %2255 = vdwg.mxu0
  %2256 = vmatprep.subr.bf16.mxu0 %v2051
  %2257 = vmatpush1.bf16.msra.mxu0 %v2050
  %2258 = vmatprep.subr.bf16.mxu0 %v2059
  %2259 = vmatpush1.bf16.msra.mxu0 %v2058
  %2260 = vmatprep.subr.bf16.mxu0 %v2067
  %2261 = vmatpush1.bf16.msra.mxu0 %v2066
  %2262 = vmatprep.subr.bf16.mxu0 %v2075
  %2263 = vmatpush1.bf16.msra.mxu0 %v2074
  %2264 = vmatprep.subr.bf16.mxu0 %v2083
  %2265 = vmatpush1.bf16.msra.mxu0 %v2082
  %2266 = vmatprep.subr.bf16.mxu0 %v2091
  %2267 = vmatpush1.bf16.msra.mxu0 %v2090
  %2268 = vmatprep.subr.bf16.mxu0 %v2099
  %2269 = vmatpush1.bf16.msra.mxu0 %v2098
  %2270 = vmatprep.subr.bf16.mxu0 %v2107
  %2271 = vmatpush1.bf16.msra.mxu0 %v2106
  %2272 = vmatprep.subr.bf16.mxu0 0
  %2273 = vmatpush1.bf16.msra.mxu0 0
  %2274 = vmatprep.subr.bf16.mxu0 0
  %2275 = vmatpush1.bf16.msra.mxu0 0
  %2276 = vmatprep.subr.bf16.mxu0 0
  %2277 = vmatpush1.bf16.msra.mxu0 0
  %2278 = vmatprep.subr.bf16.mxu0 0
  %2279 = vmatpush1.bf16.msra.mxu0 0
  %2280 = vmatprep.subr.bf16.mxu0 0
  %2281 = vmatpush1.bf16.msra.mxu0 0
  %2282 = vmatprep.subr.bf16.mxu0 0
  %2283 = vmatpush1.bf16.msra.mxu0 0
  %2284 = vmatprep.subr.bf16.mxu0 0
  %2285 = vmatpush1.bf16.msra.mxu0 0
  %2286 = vmatprep.subr.bf16.mxu0 0
  %2287 = vmatpush1.bf16.msra.mxu0 0
  %2288 = vmatprep.mubr.bf16.mxu0 0
  %2289 = vmatmul.mubr.bf16.gmra.mrb[0].mxu0 %v1852
  %v2290 = vpop.f32.mrb[0].mxu0
  %v2291 = vadd.f32 0.0, %v2290
  %v2292 = vpop.f32.mrb[0].mxu0
  %v2293 = vadd.f32 0.0, %v2292
  %v2294 = vpop.f32.mrb[0].mxu0
  %v2295 = vpop.f32.mrb[0].mxu0
  %2296 = vdwg.mxu0
  %2297 = vmatprep.subr.bf16.mxu0 %v2053
  %2298 = vmatpush1.bf16.msra.mxu0 %v2052
  %2299 = vmatprep.subr.bf16.mxu0 %v2061
  %2300 = vmatpush1.bf16.msra.mxu0 %v2060
  %2301 = vmatprep.subr.bf16.mxu0 %v2069
  %2302 = vmatpush1.bf16.msra.mxu0 %v2068
  %2303 = vmatprep.subr.bf16.mxu0 %v2077
  %2304 = vmatpush1.bf16.msra.mxu0 %v2076
  %2305 = vmatprep.subr.bf16.mxu0 %v2085
  %2306 = vmatpush1.bf16.msra.mxu0 %v2084
  %2307 = vmatprep.subr.bf16.mxu0 %v2093
  %2308 = vmatpush1.bf16.msra.mxu0 %v2092
  %2309 = vmatprep.subr.bf16.mxu0 %v2101
  %2310 = vmatpush1.bf16.msra.mxu0 %v2100
  %2311 = vmatprep.subr.bf16.mxu0 %v2109
  %2312 = vmatpush1.bf16.msra.mxu0 %v2108
  %2313 = vmatprep.subr.bf16.mxu0 0
  %2314 = vmatpush1.bf16.msra.mxu0 0
  %2315 = vmatprep.subr.bf16.mxu0 0
  %2316 = vmatpush1.bf16.msra.mxu0 0
  %2317 = vmatprep.subr.bf16.mxu0 0
  %2318 = vmatpush1.bf16.msra.mxu0 0
  %2319 = vmatprep.subr.bf16.mxu0 0
  %2320 = vmatpush1.bf16.msra.mxu0 0
  %2321 = vmatprep.subr.bf16.mxu0 0
  %2322 = vmatpush1.bf16.msra.mxu0 0
  %2323 = vmatprep.subr.bf16.mxu0 0
  %2324 = vmatpush1.bf16.msra.mxu0 0
  %2325 = vmatprep.subr.bf16.mxu0 0
  %2326 = vmatpush1.bf16.msra.mxu0 0
  %2327 = vmatprep.subr.bf16.mxu0 0
  %2328 = vmatpush1.bf16.msra.mxu0 0
  %2329 = vmatprep.mubr.bf16.mxu0 0
  %2330 = vmatmul.mubr.bf16.gmra.mrb[0].mxu0 %v1852
  %v2331 = vpop.f32.mrb[0].mxu0
  %v2332 = vadd.f32 0.0, %v2331
  %v2333 = vpop.f32.mrb[0].mxu0
  %v2334 = vadd.f32 0.0, %v2333
  %v2335 = vpop.f32.mrb[0].mxu0
  %v2336 = vpop.f32.mrb[0].mxu0
  %2337 = vdwg.mxu0
  %v2339 = vlaneseq
  %v2340 = vshrl.u32 %v2339, 7
  %v2341 = vsub.s32 0, %v2340
  %v2342 = vrot.slane %v1778, %v2341
  %v2343 = vlaneseq
  %v2344 = vshrl.u32 %v2343, 7
  %v2345 = vsub.s32 1, %v2344
  %v2346 = vrot.slane %v1778, %v2345
  %v2347 = vlaneseq
  %v2348 = vshrl.u32 %v2347, 7
  %v2349 = vsub.s32 2, %v2348
  %v2350 = vrot.slane %v1778, %v2349
  %v2351 = vlaneseq
  %v2352 = vshrl.u32 %v2351, 7
  %v2353 = vsub.s32 3, %v2352
  %v2354 = vrot.slane %v1778, %v2353
  %v2355 = vlaneseq
  %v2356 = vshrl.u32 %v2355, 7
  %v2357 = vsub.s32 4, %v2356
  %v2358 = vrot.slane %v1778, %v2357
  %v2359 = vlaneseq
  %v2360 = vshrl.u32 %v2359, 7
  %v2361 = vsub.s32 5, %v2360
  %v2362 = vrot.slane %v1778, %v2361
  %v2363 = vlaneseq
  %v2364 = vshrl.u32 %v2363, 7
  %v2365 = vsub.s32 6, %v2364
  %v2366 = vrot.slane %v1778, %v2365
  %v2367 = vlaneseq
  %v2368 = vshrl.u32 %v2367, 7
  %v2369 = vsub.s32 7, %v2368
  %v2370 = vrot.slane %v1778, %v2369
  %v2379 = vadd.f32 %v2342, %v2209
  %v2380 = vadd.f32 %v2346, %v2211
  %v2381 = vadd.f32 %v2350, %v2250
  %v2382 = vadd.f32 %v2354, %v2252
  %v2383 = vadd.f32 %v2358, %v2291
  %v2384 = vadd.f32 %v2362, %v2293
  %v2385 = vadd.f32 %v2366, %v2332
  %v2386 = vadd.f32 %v2370, %v2334
  %s2387 = scalar_lea.vmem %s8, 512
  %v2388 = vld [vmem:[%s2387] sm:$0xff]
  %v2389 = vld [vmem:[%s2387 + $0x8] sm:$0xff]
  %v2390 = vld [vmem:[%s2387 + $0x10] sm:$0xff]
  %v2391 = vld [vmem:[%s2387 + $0x18] sm:$0xff]
  %v2392 = vld [vmem:[%s2387 + $0x20] sm:$0xff]
  %v2393 = vld [vmem:[%s2387 + $0x28] sm:$0xff]
  %v2394 = vld [vmem:[%s2387 + $0x30] sm:$0xff]
  %v2395 = vld [vmem:[%s2387 + $0x38] sm:$0xff]
  %v2396 = vld [vmem:[%s2387 + $0x40] sm:$0xff]
  %v2397 = vld [vmem:[%s2387 + $0x48] sm:$0xff]
  %v2398 = vld [vmem:[%s2387 + $0x50] sm:$0xff]
  %v2399 = vld [vmem:[%s2387 + $0x58] sm:$0xff]
  %v2400 = vld [vmem:[%s2387 + $0x60] sm:$0xff]
  %v2401 = vld [vmem:[%s2387 + $0x68] sm:$0xff]
  %v2402 = vld [vmem:[%s2387 + $0x70] sm:$0xff]
  %v2403 = vld [vmem:[%s2387 + $0x78] sm:$0xff]
  %v2404 = vld [vmem:[%s2387 + $0x80] sm:$0xff]
  %v2405 = vld [vmem:[%s2387 + $0x88] sm:$0xff]
  %v2406 = vld [vmem:[%s2387 + $0x90] sm:$0xff]
  %v2407 = vld [vmem:[%s2387 + $0x98] sm:$0xff]
  %v2408 = vld [vmem:[%s2387 + $0xa0] sm:$0xff]
  %v2409 = vld [vmem:[%s2387 + $0xa8] sm:$0xff]
  %v2410 = vld [vmem:[%s2387 + $0xb0] sm:$0xff]
  %v2411 = vld [vmem:[%s2387 + $0xb8] sm:$0xff]
  %v2412 = vld [vmem:[%s2387 + $0xc0] sm:$0xff]
  %v2413 = vld [vmem:[%s2387 + $0xc8] sm:$0xff]
  %v2414 = vld [vmem:[%s2387 + $0xd0] sm:$0xff]
  %v2415 = vld [vmem:[%s2387 + $0xd8] sm:$0xff]
  %v2416 = vld [vmem:[%s2387 + $0xe0] sm:$0xff]
  %v2417 = vld [vmem:[%s2387 + $0xe8] sm:$0xff]
  %v2418 = vld [vmem:[%s2387 + $0xf0] sm:$0xff]
  %v2419 = vld [vmem:[%s2387 + $0xf8] sm:$0xff]
  %v2420 = vld [vmem:[%s2387 + $0x100] sm:$0xff]
  %v2421 = vld [vmem:[%s2387 + $0x108] sm:$0xff]
  %v2422 = vld [vmem:[%s2387 + $0x110] sm:$0xff]
  %v2423 = vld [vmem:[%s2387 + $0x118] sm:$0xff]
  %v2424 = vld [vmem:[%s2387 + $0x120] sm:$0xff]
  %v2425 = vld [vmem:[%s2387 + $0x128] sm:$0xff]
  %v2426 = vld [vmem:[%s2387 + $0x130] sm:$0xff]
  %v2427 = vld [vmem:[%s2387 + $0x138] sm:$0xff]
  %v2428 = vld [vmem:[%s2387 + $0x140] sm:$0xff]
  %v2429 = vld [vmem:[%s2387 + $0x148] sm:$0xff]
  %v2430 = vld [vmem:[%s2387 + $0x150] sm:$0xff]
  %v2431 = vld [vmem:[%s2387 + $0x158] sm:$0xff]
  %v2432 = vld [vmem:[%s2387 + $0x160] sm:$0xff]
  %v2433 = vld [vmem:[%s2387 + $0x168] sm:$0xff]
  %v2434 = vld [vmem:[%s2387 + $0x170] sm:$0xff]
  %v2435 = vld [vmem:[%s2387 + $0x178] sm:$0xff]
  %v2436 = vld [vmem:[%s2387 + $0x180] sm:$0xff]
  %v2437 = vld [vmem:[%s2387 + $0x188] sm:$0xff]
  %v2438 = vld [vmem:[%s2387 + $0x190] sm:$0xff]
  %v2439 = vld [vmem:[%s2387 + $0x198] sm:$0xff]
  %v2440 = vld [vmem:[%s2387 + $0x1a0] sm:$0xff]
  %v2441 = vld [vmem:[%s2387 + $0x1a8] sm:$0xff]
  %v2442 = vld [vmem:[%s2387 + $0x1b0] sm:$0xff]
  %v2443 = vld [vmem:[%s2387 + $0x1b8] sm:$0xff]
  %v2444 = vld [vmem:[%s2387 + $0x1c0] sm:$0xff]
  %v2445 = vld [vmem:[%s2387 + $0x1c8] sm:$0xff]
  %v2446 = vld [vmem:[%s2387 + $0x1d0] sm:$0xff]
  %v2447 = vld [vmem:[%s2387 + $0x1d8] sm:$0xff]
  %v2448 = vld [vmem:[%s2387 + $0x1e0] sm:$0xff]
  %v2449 = vld [vmem:[%s2387 + $0x1e8] sm:$0xff]
  %v2450 = vld [vmem:[%s2387 + $0x1f0] sm:$0xff]
  %v2451 = vld [vmem:[%s2387 + $0x1f8] sm:$0xff]
  %v2452 = vrot.slane %v1847, 1
  %v2453 = vsel %vm1850, %v1848, %v2452
  %v2454 = vpack.c.b16 %v2453, %v2453
  %v2520 = vunpack.c.l.b16 %v2388
  %v2521 = vunpack.c.h.b16 %v2388
  %v2522 = vunpack.c.l.b16 %v2389
  %v2523 = vunpack.c.h.b16 %v2389
  %v2524 = vunpack.c.l.b16 %v2390
  %v2525 = vunpack.c.h.b16 %v2390
  %v2526 = vunpack.c.l.b16 %v2391
  %v2527 = vunpack.c.h.b16 %v2391
  %v2528 = vunpack.c.l.b16 %v2392
  %v2529 = vunpack.c.h.b16 %v2392
  %v2530 = vunpack.c.l.b16 %v2393
  %v2531 = vunpack.c.h.b16 %v2393
  %v2532 = vunpack.c.l.b16 %v2394
  %v2533 = vunpack.c.h.b16 %v2394
  %v2534 = vunpack.c.l.b16 %v2395
  %v2535 = vunpack.c.h.b16 %v2395
  %v2536 = vunpack.c.l.b16 %v2396
  %v2537 = vunpack.c.h.b16 %v2396
  %v2538 = vunpack.c.l.b16 %v2397
  %v2539 = vunpack.c.h.b16 %v2397
  %v2540 = vunpack.c.l.b16 %v2398
  %v2541 = vunpack.c.h.b16 %v2398
  %v2542 = vunpack.c.l.b16 %v2399
  %v2543 = vunpack.c.h.b16 %v2399
  %v2544 = vunpack.c.l.b16 %v2400
  %v2545 = vunpack.c.h.b16 %v2400
  %v2546 = vunpack.c.l.b16 %v2401
  %v2547 = vunpack.c.h.b16 %v2401
  %v2548 = vunpack.c.l.b16 %v2402
  %v2549 = vunpack.c.h.b16 %v2402
  %v2550 = vunpack.c.l.b16 %v2403
  %v2551 = vunpack.c.h.b16 %v2403
  %v2552 = vunpack.c.l.b16 %v2404
  %v2553 = vunpack.c.h.b16 %v2404
  %v2554 = vunpack.c.l.b16 %v2405
  %v2555 = vunpack.c.h.b16 %v2405
  %v2556 = vunpack.c.l.b16 %v2406
  %v2557 = vunpack.c.h.b16 %v2406
  %v2558 = vunpack.c.l.b16 %v2407
  %v2559 = vunpack.c.h.b16 %v2407
  %v2560 = vunpack.c.l.b16 %v2408
  %v2561 = vunpack.c.h.b16 %v2408
  %v2562 = vunpack.c.l.b16 %v2409
  %v2563 = vunpack.c.h.b16 %v2409
  %v2564 = vunpack.c.l.b16 %v2410
  %v2565 = vunpack.c.h.b16 %v2410
  %v2566 = vunpack.c.l.b16 %v2411
  %v2567 = vunpack.c.h.b16 %v2411
  %v2568 = vunpack.c.l.b16 %v2412
  %v2569 = vunpack.c.h.b16 %v2412
  %v2570 = vunpack.c.l.b16 %v2413
  %v2571 = vunpack.c.h.b16 %v2413
  %v2572 = vunpack.c.l.b16 %v2414
  %v2573 = vunpack.c.h.b16 %v2414
  %v2574 = vunpack.c.l.b16 %v2415
  %v2575 = vunpack.c.h.b16 %v2415
  %v2576 = vunpack.c.l.b16 %v2416
  %v2577 = vunpack.c.h.b16 %v2416
  %v2578 = vunpack.c.l.b16 %v2417
  %v2579 = vunpack.c.h.b16 %v2417
  %v2580 = vunpack.c.l.b16 %v2418
  %v2581 = vunpack.c.h.b16 %v2418
  %v2582 = vunpack.c.l.b16 %v2419
  %v2583 = vunpack.c.h.b16 %v2419
  %v2584 = vunpack.c.l.b16 %v2420
  %v2585 = vunpack.c.h.b16 %v2420
  %v2586 = vunpack.c.l.b16 %v2421
  %v2587 = vunpack.c.h.b16 %v2421
  %v2588 = vunpack.c.l.b16 %v2422
  %v2589 = vunpack.c.h.b16 %v2422
  %v2590 = vunpack.c.l.b16 %v2423
  %v2591 = vunpack.c.h.b16 %v2423
  %v2592 = vunpack.c.l.b16 %v2424
  %v2593 = vunpack.c.h.b16 %v2424
  %v2594 = vunpack.c.l.b16 %v2425
  %v2595 = vunpack.c.h.b16 %v2425
  %v2596 = vunpack.c.l.b16 %v2426
  %v2597 = vunpack.c.h.b16 %v2426
  %v2598 = vunpack.c.l.b16 %v2427
  %v2599 = vunpack.c.h.b16 %v2427
  %v2600 = vunpack.c.l.b16 %v2428
  %v2601 = vunpack.c.h.b16 %v2428
  %v2602 = vunpack.c.l.b16 %v2429
  %v2603 = vunpack.c.h.b16 %v2429
  %v2604 = vunpack.c.l.b16 %v2430
  %v2605 = vunpack.c.h.b16 %v2430
  %v2606 = vunpack.c.l.b16 %v2431
  %v2607 = vunpack.c.h.b16 %v2431
  %v2608 = vunpack.c.l.b16 %v2432
  %v2609 = vunpack.c.h.b16 %v2432
  %v2610 = vunpack.c.l.b16 %v2433
  %v2611 = vunpack.c.h.b16 %v2433
  %v2612 = vunpack.c.l.b16 %v2434
  %v2613 = vunpack.c.h.b16 %v2434
  %v2614 = vunpack.c.l.b16 %v2435
  %v2615 = vunpack.c.h.b16 %v2435
  %v2616 = vunpack.c.l.b16 %v2436
  %v2617 = vunpack.c.h.b16 %v2436
  %v2618 = vunpack.c.l.b16 %v2437
  %v2619 = vunpack.c.h.b16 %v2437
  %v2620 = vunpack.c.l.b16 %v2438
  %v2621 = vunpack.c.h.b16 %v2438
  %v2622 = vunpack.c.l.b16 %v2439
  %v2623 = vunpack.c.h.b16 %v2439
  %v2624 = vunpack.c.l.b16 %v2440
  %v2625 = vunpack.c.h.b16 %v2440
  %v2626 = vunpack.c.l.b16 %v2441
  %v2627 = vunpack.c.h.b16 %v2441
  %v2628 = vunpack.c.l.b16 %v2442
  %v2629 = vunpack.c.h.b16 %v2442
  %v2630 = vunpack.c.l.b16 %v2443
  %v2631 = vunpack.c.h.b16 %v2443
  %v2632 = vunpack.c.l.b16 %v2444
  %v2633 = vunpack.c.h.b16 %v2444
  %v2634 = vunpack.c.l.b16 %v2445
  %v2635 = vunpack.c.h.b16 %v2445
  %v2636 = vunpack.c.l.b16 %v2446
  %v2637 = vunpack.c.h.b16 %v2446
  %v2638 = vunpack.c.l.b16 %v2447
  %v2639 = vunpack.c.h.b16 %v2447
  %v2640 = vunpack.c.l.b16 %v2448
  %v2641 = vunpack.c.h.b16 %v2448
  %v2642 = vunpack.c.l.b16 %v2449
  %v2643 = vunpack.c.h.b16 %v2449
  %v2644 = vunpack.c.l.b16 %v2450
  %v2645 = vunpack.c.h.b16 %v2450
  %v2646 = vunpack.c.l.b16 %v2451
  %v2647 = vunpack.c.h.b16 %v2451
  %v2648 = vpack.c.b16 %v2528, %v2520
  %v2649 = vpack.c.b16 %v2529, %v2521
  %v2650 = vpack.c.b16 %v2530, %v2522
  %v2651 = vpack.c.b16 %v2531, %v2523
  %v2652 = vpack.c.b16 %v2532, %v2524
  %v2653 = vpack.c.b16 %v2533, %v2525
  %v2654 = vpack.c.b16 %v2534, %v2526
  %v2655 = vpack.c.b16 %v2535, %v2527
  %v2656 = vpack.c.b16 %v2544, %v2536
  %v2657 = vpack.c.b16 %v2545, %v2537
  %v2658 = vpack.c.b16 %v2546, %v2538
  %v2659 = vpack.c.b16 %v2547, %v2539
  %v2660 = vpack.c.b16 %v2548, %v2540
  %v2661 = vpack.c.b16 %v2549, %v2541
  %v2662 = vpack.c.b16 %v2550, %v2542
  %v2663 = vpack.c.b16 %v2551, %v2543
  %v2664 = vpack.c.b16 %v2560, %v2552
  %v2665 = vpack.c.b16 %v2561, %v2553
  %v2666 = vpack.c.b16 %v2562, %v2554
  %v2667 = vpack.c.b16 %v2563, %v2555
  %v2668 = vpack.c.b16 %v2564, %v2556
  %v2669 = vpack.c.b16 %v2565, %v2557
  %v2670 = vpack.c.b16 %v2566, %v2558
  %v2671 = vpack.c.b16 %v2567, %v2559
  %v2672 = vpack.c.b16 %v2576, %v2568
  %v2673 = vpack.c.b16 %v2577, %v2569
  %v2674 = vpack.c.b16 %v2578, %v2570
  %v2675 = vpack.c.b16 %v2579, %v2571
  %v2676 = vpack.c.b16 %v2580, %v2572
  %v2677 = vpack.c.b16 %v2581, %v2573
  %v2678 = vpack.c.b16 %v2582, %v2574
  %v2679 = vpack.c.b16 %v2583, %v2575
  %v2680 = vpack.c.b16 %v2592, %v2584
  %v2681 = vpack.c.b16 %v2593, %v2585
  %v2682 = vpack.c.b16 %v2594, %v2586
  %v2683 = vpack.c.b16 %v2595, %v2587
  %v2684 = vpack.c.b16 %v2596, %v2588
  %v2685 = vpack.c.b16 %v2597, %v2589
  %v2686 = vpack.c.b16 %v2598, %v2590
  %v2687 = vpack.c.b16 %v2599, %v2591
  %v2688 = vpack.c.b16 %v2608, %v2600
  %v2689 = vpack.c.b16 %v2609, %v2601
  %v2690 = vpack.c.b16 %v2610, %v2602
  %v2691 = vpack.c.b16 %v2611, %v2603
  %v2692 = vpack.c.b16 %v2612, %v2604
  %v2693 = vpack.c.b16 %v2613, %v2605
  %v2694 = vpack.c.b16 %v2614, %v2606
  %v2695 = vpack.c.b16 %v2615, %v2607
  %v2696 = vpack.c.b16 %v2624, %v2616
  %v2697 = vpack.c.b16 %v2625, %v2617
  %v2698 = vpack.c.b16 %v2626, %v2618
  %v2699 = vpack.c.b16 %v2627, %v2619
  %v2700 = vpack.c.b16 %v2628, %v2620
  %v2701 = vpack.c.b16 %v2629, %v2621
  %v2702 = vpack.c.b16 %v2630, %v2622
  %v2703 = vpack.c.b16 %v2631, %v2623
  %v2704 = vpack.c.b16 %v2640, %v2632
  %v2705 = vpack.c.b16 %v2641, %v2633
  %v2706 = vpack.c.b16 %v2642, %v2634
  %v2707 = vpack.c.b16 %v2643, %v2635
  %v2708 = vpack.c.b16 %v2644, %v2636
  %v2709 = vpack.c.b16 %v2645, %v2637
  %v2710 = vpack.c.b16 %v2646, %v2638
  %v2711 = vpack.c.b16 %v2647, %v2639
  %2776 = vmatprep.subr.bf16.mxu0 %v2649
  %2777 = vmatpush1.bf16.msra.mxu0 %v2648
  %2778 = vmatprep.subr.bf16.mxu0 %v2657
  %2779 = vmatpush1.bf16.msra.mxu0 %v2656
  %2780 = vmatprep.subr.bf16.mxu0 %v2665
  %2781 = vmatpush1.bf16.msra.mxu0 %v2664
  %2782 = vmatprep.subr.bf16.mxu0 %v2673
  %2783 = vmatpush1.bf16.msra.mxu0 %v2672
  %2784 = vmatprep.subr.bf16.mxu0 %v2681
  %2785 = vmatpush1.bf16.msra.mxu0 %v2680
  %2786 = vmatprep.subr.bf16.mxu0 %v2689
  %2787 = vmatpush1.bf16.msra.mxu0 %v2688
  %2788 = vmatprep.subr.bf16.mxu0 %v2697
  %2789 = vmatpush1.bf16.msra.mxu0 %v2696
  %2790 = vmatprep.subr.bf16.mxu0 %v2705
  %2791 = vmatpush1.bf16.msra.mxu0 %v2704
  %2792 = vmatprep.subr.bf16.mxu0 0
  %2793 = vmatpush1.bf16.msra.mxu0 0
  %2794 = vmatprep.subr.bf16.mxu0 0
  %2795 = vmatpush1.bf16.msra.mxu0 0
  %2796 = vmatprep.subr.bf16.mxu0 0
  %2797 = vmatpush1.bf16.msra.mxu0 0
  %2798 = vmatprep.subr.bf16.mxu0 0
  %2799 = vmatpush1.bf16.msra.mxu0 0
  %2800 = vmatprep.subr.bf16.mxu0 0
  %2801 = vmatpush1.bf16.msra.mxu0 0
  %2802 = vmatprep.subr.bf16.mxu0 0
  %2803 = vmatpush1.bf16.msra.mxu0 0
  %2804 = vmatprep.subr.bf16.mxu0 0
  %2805 = vmatpush1.bf16.msra.mxu0 0
  %2806 = vmatprep.subr.bf16.mxu0 0
  %2807 = vmatpush1.bf16.msra.mxu0 0
  %2808 = vmatprep.mubr.bf16.mxu0 0
  %2809 = vmatmul.mubr.bf16.gmra.mrb[0].mxu0 %v2454
  %v2810 = vpop.f32.mrb[0].mxu0
  %v2811 = vadd.f32 0.0, %v2810
  %v2812 = vpop.f32.mrb[0].mxu0
  %v2813 = vadd.f32 0.0, %v2812
  %v2814 = vpop.f32.mrb[0].mxu0
  %v2815 = vpop.f32.mrb[0].mxu0
  %2816 = vdwg.mxu0
  %2817 = vmatprep.subr.bf16.mxu0 %v2651
  %2818 = vmatpush1.bf16.msra.mxu0 %v2650
  %2819 = vmatprep.subr.bf16.mxu0 %v2659
  %2820 = vmatpush1.bf16.msra.mxu0 %v2658
  %2821 = vmatprep.subr.bf16.mxu0 %v2667
  %2822 = vmatpush1.bf16.msra.mxu0 %v2666
  %2823 = vmatprep.subr.bf16.mxu0 %v2675
  %2824 = vmatpush1.bf16.msra.mxu0 %v2674
  %2825 = vmatprep.subr.bf16.mxu0 %v2683
  %2826 = vmatpush1.bf16.msra.mxu0 %v2682
  %2827 = vmatprep.subr.bf16.mxu0 %v2691
  %2828 = vmatpush1.bf16.msra.mxu0 %v2690
  %2829 = vmatprep.subr.bf16.mxu0 %v2699
  %2830 = vmatpush1.bf16.msra.mxu0 %v2698
  %2831 = vmatprep.subr.bf16.mxu0 %v2707
  %2832 = vmatpush1.bf16.msra.mxu0 %v2706
  %2833 = vmatprep.subr.bf16.mxu0 0
  %2834 = vmatpush1.bf16.msra.mxu0 0
  %2835 = vmatprep.subr.bf16.mxu0 0
  %2836 = vmatpush1.bf16.msra.mxu0 0
  %2837 = vmatprep.subr.bf16.mxu0 0
  %2838 = vmatpush1.bf16.msra.mxu0 0
  %2839 = vmatprep.subr.bf16.mxu0 0
  %2840 = vmatpush1.bf16.msra.mxu0 0
  %2841 = vmatprep.subr.bf16.mxu0 0
  %2842 = vmatpush1.bf16.msra.mxu0 0
  %2843 = vmatprep.subr.bf16.mxu0 0
  %2844 = vmatpush1.bf16.msra.mxu0 0
  %2845 = vmatprep.subr.bf16.mxu0 0
  %2846 = vmatpush1.bf16.msra.mxu0 0
  %2847 = vmatprep.subr.bf16.mxu0 0
  %2848 = vmatpush1.bf16.msra.mxu0 0
  %2849 = vmatprep.mubr.bf16.mxu0 0
  %2850 = vmatmul.mubr.bf16.gmra.mrb[0].mxu0 %v2454
  %v2851 = vpop.f32.mrb[0].mxu0
  %v2852 = vadd.f32 0.0, %v2851
  %v2853 = vpop.f32.mrb[0].mxu0
  %v2854 = vadd.f32 0.0, %v2853
  %v2855 = vpop.f32.mrb[0].mxu0
  %v2856 = vpop.f32.mrb[0].mxu0
  %2857 = vdwg.mxu0
  %2858 = vmatprep.subr.bf16.mxu0 %v2653
  %2859 = vmatpush1.bf16.msra.mxu0 %v2652
  %2860 = vmatprep.subr.bf16.mxu0 %v2661
  %2861 = vmatpush1.bf16.msra.mxu0 %v2660
  %2862 = vmatprep.subr.bf16.mxu0 %v2669
  %2863 = vmatpush1.bf16.msra.mxu0 %v2668
  %2864 = vmatprep.subr.bf16.mxu0 %v2677
  %2865 = vmatpush1.bf16.msra.mxu0 %v2676
  %2866 = vmatprep.subr.bf16.mxu0 %v2685
  %2867 = vmatpush1.bf16.msra.mxu0 %v2684
  %2868 = vmatprep.subr.bf16.mxu0 %v2693
  %2869 = vmatpush1.bf16.msra.mxu0 %v2692
  %2870 = vmatprep.subr.bf16.mxu0 %v2701
  %2871 = vmatpush1.bf16.msra.mxu0 %v2700
  %2872 = vmatprep.subr.bf16.mxu0 %v2709
  %2873 = vmatpush1.bf16.msra.mxu0 %v2708
  %2874 = vmatprep.subr.bf16.mxu0 0
  %2875 = vmatpush1.bf16.msra.mxu0 0
  %2876 = vmatprep.subr.bf16.mxu0 0
  %2877 = vmatpush1.bf16.msra.mxu0 0
  %2878 = vmatprep.subr.bf16.mxu0 0
  %2879 = vmatpush1.bf16.msra.mxu0 0
  %2880 = vmatprep.subr.bf16.mxu0 0
  %2881 = vmatpush1.bf16.msra.mxu0 0
  %2882 = vmatprep.subr.bf16.mxu0 0
  %2883 = vmatpush1.bf16.msra.mxu0 0
  %2884 = vmatprep.subr.bf16.mxu0 0
  %2885 = vmatpush1.bf16.msra.mxu0 0
  %2886 = vmatprep.subr.bf16.mxu0 0
  %2887 = vmatpush1.bf16.msra.mxu0 0
  %2888 = vmatprep.subr.bf16.mxu0 0
  %2889 = vmatpush1.bf16.msra.mxu0 0
  %2890 = vmatprep.mubr.bf16.mxu0 0
  %2891 = vmatmul.mubr.bf16.gmra.mrb[0].mxu0 %v2454
  %v2892 = vpop.f32.mrb[0].mxu0
  %v2893 = vadd.f32 0.0, %v2892
  %v2894 = vpop.f32.mrb[0].mxu0
  %v2895 = vadd.f32 0.0, %v2894
  %v2896 = vpop.f32.mrb[0].mxu0
  %v2897 = vpop.f32.mrb[0].mxu0
  %2898 = vdwg.mxu0
  %2899 = vmatprep.subr.bf16.mxu0 %v2655
  %2900 = vmatpush1.bf16.msra.mxu0 %v2654
  %2901 = vmatprep.subr.bf16.mxu0 %v2663
  %2902 = vmatpush1.bf16.msra.mxu0 %v2662
  %2903 = vmatprep.subr.bf16.mxu0 %v2671
  %2904 = vmatpush1.bf16.msra.mxu0 %v2670
  %2905 = vmatprep.subr.bf16.mxu0 %v2679
  %2906 = vmatpush1.bf16.msra.mxu0 %v2678
  %2907 = vmatprep.subr.bf16.mxu0 %v2687
  %2908 = vmatpush1.bf16.msra.mxu0 %v2686
  %2909 = vmatprep.subr.bf16.mxu0 %v2695
  %2910 = vmatpush1.bf16.msra.mxu0 %v2694
  %2911 = vmatprep.subr.bf16.mxu0 %v2703
  %2912 = vmatpush1.bf16.msra.mxu0 %v2702
  %2913 = vmatprep.subr.bf16.mxu0 %v2711
  %2914 = vmatpush1.bf16.msra.mxu0 %v2710
  %2915 = vmatprep.subr.bf16.mxu0 0
  %2916 = vmatpush1.bf16.msra.mxu0 0
  %2917 = vmatprep.subr.bf16.mxu0 0
  %2918 = vmatpush1.bf16.msra.mxu0 0
  %2919 = vmatprep.subr.bf16.mxu0 0
  %2920 = vmatpush1.bf16.msra.mxu0 0
  %2921 = vmatprep.subr.bf16.mxu0 0
  %2922 = vmatpush1.bf16.msra.mxu0 0
  %2923 = vmatprep.subr.bf16.mxu0 0
  %2924 = vmatpush1.bf16.msra.mxu0 0
  %2925 = vmatprep.subr.bf16.mxu0 0
  %2926 = vmatpush1.bf16.msra.mxu0 0
  %2927 = vmatprep.subr.bf16.mxu0 0
  %2928 = vmatpush1.bf16.msra.mxu0 0
  %2929 = vmatprep.subr.bf16.mxu0 0
  %2930 = vmatpush1.bf16.msra.mxu0 0
  %2931 = vmatprep.mubr.bf16.mxu0 0
  %2932 = vmatmul.mubr.bf16.gmra.mrb[0].mxu0 %v2454
  %v2933 = vpop.f32.mrb[0].mxu0
  %v2934 = vadd.f32 0.0, %v2933
  %v2935 = vpop.f32.mrb[0].mxu0
  %v2936 = vadd.f32 0.0, %v2935
  %v2937 = vpop.f32.mrb[0].mxu0
  %v2938 = vpop.f32.mrb[0].mxu0
  %2939 = vdwg.mxu0
  %v2940 = vadd.f32 %v2379, %v2811
  %v2941 = vadd.f32 %v2380, %v2813
  %v2942 = vadd.f32 %v2381, %v2852
  %v2943 = vadd.f32 %v2382, %v2854
  %v2944 = vadd.f32 %v2383, %v2893
  %v2945 = vadd.f32 %v2384, %v2895
  %v2946 = vadd.f32 %v2385, %v2934
  %v2947 = vadd.f32 %v2386, %v2936
  %s2948 = scalar_lea.vmem %s8, 1024
  %v2949 = vld [vmem:[%s2948] sm:$0xff]
  %v2950 = vld [vmem:[%s2948 + $0x8] sm:$0xff]
  %v2951 = vld [vmem:[%s2948 + $0x10] sm:$0xff]
  %v2952 = vld [vmem:[%s2948 + $0x18] sm:$0xff]
  %v2953 = vld [vmem:[%s2948 + $0x20] sm:$0xff]
  %v2954 = vld [vmem:[%s2948 + $0x28] sm:$0xff]
  %v2955 = vld [vmem:[%s2948 + $0x30] sm:$0xff]
  %v2956 = vld [vmem:[%s2948 + $0x38] sm:$0xff]
  %v2957 = vld [vmem:[%s2948 + $0x40] sm:$0xff]
  %v2958 = vld [vmem:[%s2948 + $0x48] sm:$0xff]
  %v2959 = vld [vmem:[%s2948 + $0x50] sm:$0xff]
  %v2960 = vld [vmem:[%s2948 + $0x58] sm:$0xff]
  %v2961 = vld [vmem:[%s2948 + $0x60] sm:$0xff]
  %v2962 = vld [vmem:[%s2948 + $0x68] sm:$0xff]
  %v2963 = vld [vmem:[%s2948 + $0x70] sm:$0xff]
  %v2964 = vld [vmem:[%s2948 + $0x78] sm:$0xff]
  %v2965 = vld [vmem:[%s2948 + $0x80] sm:$0xff]
  %v2966 = vld [vmem:[%s2948 + $0x88] sm:$0xff]
  %v2967 = vld [vmem:[%s2948 + $0x90] sm:$0xff]
  %v2968 = vld [vmem:[%s2948 + $0x98] sm:$0xff]
  %v2969 = vld [vmem:[%s2948 + $0xa0] sm:$0xff]
  %v2970 = vld [vmem:[%s2948 + $0xa8] sm:$0xff]
  %v2971 = vld [vmem:[%s2948 + $0xb0] sm:$0xff]
  %v2972 = vld [vmem:[%s2948 + $0xb8] sm:$0xff]
  %v2973 = vld [vmem:[%s2948 + $0xc0] sm:$0xff]
  %v2974 = vld [vmem:[%s2948 + $0xc8] sm:$0xff]
  %v2975 = vld [vmem:[%s2948 + $0xd0] sm:$0xff]
  %v2976 = vld [vmem:[%s2948 + $0xd8] sm:$0xff]
  %v2977 = vld [vmem:[%s2948 + $0xe0] sm:$0xff]
  %v2978 = vld [vmem:[%s2948 + $0xe8] sm:$0xff]
  %v2979 = vld [vmem:[%s2948 + $0xf0] sm:$0xff]
  %v2980 = vld [vmem:[%s2948 + $0xf8] sm:$0xff]
  %v2981 = vld [vmem:[%s2948 + $0x100] sm:$0xff]
  %v2982 = vld [vmem:[%s2948 + $0x108] sm:$0xff]
  %v2983 = vld [vmem:[%s2948 + $0x110] sm:$0xff]
  %v2984 = vld [vmem:[%s2948 + $0x118] sm:$0xff]
  %v2985 = vld [vmem:[%s2948 + $0x120] sm:$0xff]
  %v2986 = vld [vmem:[%s2948 + $0x128] sm:$0xff]
  %v2987 = vld [vmem:[%s2948 + $0x130] sm:$0xff]
  %v2988 = vld [vmem:[%s2948 + $0x138] sm:$0xff]
  %v2989 = vld [vmem:[%s2948 + $0x140] sm:$0xff]
  %v2990 = vld [vmem:[%s2948 + $0x148] sm:$0xff]
  %v2991 = vld [vmem:[%s2948 + $0x150] sm:$0xff]
  %v2992 = vld [vmem:[%s2948 + $0x158] sm:$0xff]
  %v2993 = vld [vmem:[%s2948 + $0x160] sm:$0xff]
  %v2994 = vld [vmem:[%s2948 + $0x168] sm:$0xff]
  %v2995 = vld [vmem:[%s2948 + $0x170] sm:$0xff]
  %v2996 = vld [vmem:[%s2948 + $0x178] sm:$0xff]
  %v2997 = vld [vmem:[%s2948 + $0x180] sm:$0xff]
  %v2998 = vld [vmem:[%s2948 + $0x188] sm:$0xff]
  %v2999 = vld [vmem:[%s2948 + $0x190] sm:$0xff]
  %v3000 = vld [vmem:[%s2948 + $0x198] sm:$0xff]
  %v3001 = vld [vmem:[%s2948 + $0x1a0] sm:$0xff]
  %v3002 = vld [vmem:[%s2948 + $0x1a8] sm:$0xff]
  %v3003 = vld [vmem:[%s2948 + $0x1b0] sm:$0xff]
  %v3004 = vld [vmem:[%s2948 + $0x1b8] sm:$0xff]
  %v3005 = vld [vmem:[%s2948 + $0x1c0] sm:$0xff]
  %v3006 = vld [vmem:[%s2948 + $0x1c8] sm:$0xff]
  %v3007 = vld [vmem:[%s2948 + $0x1d0] sm:$0xff]
  %v3008 = vld [vmem:[%s2948 + $0x1d8] sm:$0xff]
  %v3009 = vld [vmem:[%s2948 + $0x1e0] sm:$0xff]
  %v3010 = vld [vmem:[%s2948 + $0x1e8] sm:$0xff]
  %v3011 = vld [vmem:[%s2948 + $0x1f0] sm:$0xff]
  %v3012 = vld [vmem:[%s2948 + $0x1f8] sm:$0xff]
  %v3013 = vrot.slane %v1847, 2
  %v3014 = vrot.slane %v1848, 1
  %v3015 = vsel %vm1850, %v3014, %v3013
  %v3016 = vpack.c.b16 %v3015, %v3015
  %v3082 = vunpack.c.l.b16 %v2949
  %v3083 = vunpack.c.h.b16 %v2949
  %v3084 = vunpack.c.l.b16 %v2950
  %v3085 = vunpack.c.h.b16 %v2950
  %v3086 = vunpack.c.l.b16 %v2951
  %v3087 = vunpack.c.h.b16 %v2951
  %v3088 = vunpack.c.l.b16 %v2952
  %v3089 = vunpack.c.h.b16 %v2952
  %v3090 = vunpack.c.l.b16 %v2953
  %v3091 = vunpack.c.h.b16 %v2953
  %v3092 = vunpack.c.l.b16 %v2954
  %v3093 = vunpack.c.h.b16 %v2954
  %v3094 = vunpack.c.l.b16 %v2955
  %v3095 = vunpack.c.h.b16 %v2955
  %v3096 = vunpack.c.l.b16 %v2956
  %v3097 = vunpack.c.h.b16 %v2956
  %v3098 = vunpack.c.l.b16 %v2957
  %v3099 = vunpack.c.h.b16 %v2957
  %v3100 = vunpack.c.l.b16 %v2958
  %v3101 = vunpack.c.h.b16 %v2958
  %v3102 = vunpack.c.l.b16 %v2959
  %v3103 = vunpack.c.h.b16 %v2959
  %v3104 = vunpack.c.l.b16 %v2960
  %v3105 = vunpack.c.h.b16 %v2960
  %v3106 = vunpack.c.l.b16 %v2961
  %v3107 = vunpack.c.h.b16 %v2961
  %v3108 = vunpack.c.l.b16 %v2962
  %v3109 = vunpack.c.h.b16 %v2962
  %v3110 = vunpack.c.l.b16 %v2963
  %v3111 = vunpack.c.h.b16 %v2963
  %v3112 = vunpack.c.l.b16 %v2964
  %v3113 = vunpack.c.h.b16 %v2964
  %v3114 = vunpack.c.l.b16 %v2965
  %v3115 = vunpack.c.h.b16 %v2965
  %v3116 = vunpack.c.l.b16 %v2966
  %v3117 = vunpack.c.h.b16 %v2966
  %v3118 = vunpack.c.l.b16 %v2967
  %v3119 = vunpack.c.h.b16 %v2967
  %v3120 = vunpack.c.l.b16 %v2968
  %v3121 = vunpack.c.h.b16 %v2968
  %v3122 = vunpack.c.l.b16 %v2969
  %v3123 = vunpack.c.h.b16 %v2969
  %v3124 = vunpack.c.l.b16 %v2970
  %v3125 = vunpack.c.h.b16 %v2970
  %v3126 = vunpack.c.l.b16 %v2971
  %v3127 = vunpack.c.h.b16 %v2971
  %v3128 = vunpack.c.l.b16 %v2972
  %v3129 = vunpack.c.h.b16 %v2972
  %v3130 = vunpack.c.l.b16 %v2973
  %v3131 = vunpack.c.h.b16 %v2973
  %v3132 = vunpack.c.l.b16 %v2974
  %v3133 = vunpack.c.h.b16 %v2974
  %v3134 = vunpack.c.l.b16 %v2975
  %v3135 = vunpack.c.h.b16 %v2975
  %v3136 = vunpack.c.l.b16 %v2976
  %v3137 = vunpack.c.h.b16 %v2976
  %v3138 = vunpack.c.l.b16 %v2977
  %v3139 = vunpack.c.h.b16 %v2977
  %v3140 = vunpack.c.l.b16 %v2978
  %v3141 = vunpack.c.h.b16 %v2978
  %v3142 = vunpack.c.l.b16 %v2979
  %v3143 = vunpack.c.h.b16 %v2979
  %v3144 = vunpack.c.l.b16 %v2980
  %v3145 = vunpack.c.h.b16 %v2980
  %v3146 = vunpack.c.l.b16 %v2981
  %v3147 = vunpack.c.h.b16 %v2981
  %v3148 = vunpack.c.l.b16 %v2982
  %v3149 = vunpack.c.h.b16 %v2982
  %v3150 = vunpack.c.l.b16 %v2983
  %v3151 = vunpack.c.h.b16 %v2983
  %v3152 = vunpack.c.l.b16 %v2984
  %v3153 = vunpack.c.h.b16 %v2984
  %v3154 = vunpack.c.l.b16 %v2985
  %v3155 = vunpack.c.h.b16 %v2985
  %v3156 = vunpack.c.l.b16 %v2986
  %v3157 = vunpack.c.h.b16 %v2986
  %v3158 = vunpack.c.l.b16 %v2987
  %v3159 = vunpack.c.h.b16 %v2987
  %v3160 = vunpack.c.l.b16 %v2988
  %v3161 = vunpack.c.h.b16 %v2988
  %v3162 = vunpack.c.l.b16 %v2989
  %v3163 = vunpack.c.h.b16 %v2989
  %v3164 = vunpack.c.l.b16 %v2990
  %v3165 = vunpack.c.h.b16 %v2990
  %v3166 = vunpack.c.l.b16 %v2991
  %v3167 = vunpack.c.h.b16 %v2991
  %v3168 = vunpack.c.l.b16 %v2992
  %v3169 = vunpack.c.h.b16 %v2992
  %v3170 = vunpack.c.l.b16 %v2993
  %v3171 = vunpack.c.h.b16 %v2993
  %v3172 = vunpack.c.l.b16 %v2994
  %v3173 = vunpack.c.h.b16 %v2994
  %v3174 = vunpack.c.l.b16 %v2995
  %v3175 = vunpack.c.h.b16 %v2995
  %v3176 = vunpack.c.l.b16 %v2996
  %v3177 = vunpack.c.h.b16 %v2996
  %v3178 = vunpack.c.l.b16 %v2997
  %v3179 = vunpack.c.h.b16 %v2997
  %v3180 = vunpack.c.l.b16 %v2998
  %v3181 = vunpack.c.h.b16 %v2998
  %v3182 = vunpack.c.l.b16 %v2999
  %v3183 = vunpack.c.h.b16 %v2999
  %v3184 = vunpack.c.l.b16 %v3000
  %v3185 = vunpack.c.h.b16 %v3000
  %v3186 = vunpack.c.l.b16 %v3001
  %v3187 = vunpack.c.h.b16 %v3001
  %v3188 = vunpack.c.l.b16 %v3002
  %v3189 = vunpack.c.h.b16 %v3002
  %v3190 = vunpack.c.l.b16 %v3003
  %v3191 = vunpack.c.h.b16 %v3003
  %v3192 = vunpack.c.l.b16 %v3004
  %v3193 = vunpack.c.h.b16 %v3004
  %v3194 = vunpack.c.l.b16 %v3005
  %v3195 = vunpack.c.h.b16 %v3005
  %v3196 = vunpack.c.l.b16 %v3006
  %v3197 = vunpack.c.h.b16 %v3006
  %v3198 = vunpack.c.l.b16 %v3007
  %v3199 = vunpack.c.h.b16 %v3007
  %v3200 = vunpack.c.l.b16 %v3008
  %v3201 = vunpack.c.h.b16 %v3008
  %v3202 = vunpack.c.l.b16 %v3009
  %v3203 = vunpack.c.h.b16 %v3009
  %v3204 = vunpack.c.l.b16 %v3010
  %v3205 = vunpack.c.h.b16 %v3010
  %v3206 = vunpack.c.l.b16 %v3011
  %v3207 = vunpack.c.h.b16 %v3011
  %v3208 = vunpack.c.l.b16 %v3012
  %v3209 = vunpack.c.h.b16 %v3012
  %v3210 = vpack.c.b16 %v3090, %v3082
  %v3211 = vpack.c.b16 %v3091, %v3083
  %v3212 = vpack.c.b16 %v3092, %v3084
  %v3213 = vpack.c.b16 %v3093, %v3085
  %v3214 = vpack.c.b16 %v3094, %v3086
  %v3215 = vpack.c.b16 %v3095, %v3087
  %v3216 = vpack.c.b16 %v3096, %v3088
  %v3217 = vpack.c.b16 %v3097, %v3089
  %v3218 = vpack.c.b16 %v3106, %v3098
  %v3219 = vpack.c.b16 %v3107, %v3099
  %v3220 = vpack.c.b16 %v3108, %v3100
  %v3221 = vpack.c.b16 %v3109, %v3101
  %v3222 = vpack.c.b16 %v3110, %v3102
  %v3223 = vpack.c.b16 %v3111, %v3103
  %v3224 = vpack.c.b16 %v3112, %v3104
  %v3225 = vpack.c.b16 %v3113, %v3105
  %v3226 = vpack.c.b16 %v3122, %v3114
  %v3227 = vpack.c.b16 %v3123, %v3115
  %v3228 = vpack.c.b16 %v3124, %v3116
  %v3229 = vpack.c.b16 %v3125, %v3117
  %v3230 = vpack.c.b16 %v3126, %v3118
  %v3231 = vpack.c.b16 %v3127, %v3119
  %v3232 = vpack.c.b16 %v3128, %v3120
  %v3233 = vpack.c.b16 %v3129, %v3121
  %v3234 = vpack.c.b16 %v3138, %v3130
  %v3235 = vpack.c.b16 %v3139, %v3131
  %v3236 = vpack.c.b16 %v3140, %v3132
  %v3237 = vpack.c.b16 %v3141, %v3133
  %v3238 = vpack.c.b16 %v3142, %v3134
  %v3239 = vpack.c.b16 %v3143, %v3135
  %v3240 = vpack.c.b16 %v3144, %v3136
  %v3241 = vpack.c.b16 %v3145, %v3137
  %v3242 = vpack.c.b16 %v3154, %v3146
  %v3243 = vpack.c.b16 %v3155, %v3147
  %v3244 = vpack.c.b16 %v3156, %v3148
  %v3245 = vpack.c.b16 %v3157, %v3149
  %v3246 = vpack.c.b16 %v3158, %v3150
  %v3247 = vpack.c.b16 %v3159, %v3151
  %v3248 = vpack.c.b16 %v3160, %v3152
  %v3249 = vpack.c.b16 %v3161, %v3153
  %v3250 = vpack.c.b16 %v3170, %v3162
  %v3251 = vpack.c.b16 %v3171, %v3163
  %v3252 = vpack.c.b16 %v3172, %v3164
  %v3253 = vpack.c.b16 %v3173, %v3165
  %v3254 = vpack.c.b16 %v3174, %v3166
  %v3255 = vpack.c.b16 %v3175, %v3167
  %v3256 = vpack.c.b16 %v3176, %v3168
  %v3257 = vpack.c.b16 %v3177, %v3169
  %v3258 = vpack.c.b16 %v3186, %v3178
  %v3259 = vpack.c.b16 %v3187, %v3179
  %v3260 = vpack.c.b16 %v3188, %v3180
  %v3261 = vpack.c.b16 %v3189, %v3181
  %v3262 = vpack.c.b16 %v3190, %v3182
  %v3263 = vpack.c.b16 %v3191, %v3183
  %v3264 = vpack.c.b16 %v3192, %v3184
  %v3265 = vpack.c.b16 %v3193, %v3185
  %v3266 = vpack.c.b16 %v3202, %v3194
  %v3267 = vpack.c.b16 %v3203, %v3195
  %v3268 = vpack.c.b16 %v3204, %v3196
  %v3269 = vpack.c.b16 %v3205, %v3197
  %v3270 = vpack.c.b16 %v3206, %v3198
  %v3271 = vpack.c.b16 %v3207, %v3199
  %v3272 = vpack.c.b16 %v3208, %v3200
  %v3273 = vpack.c.b16 %v3209, %v3201
  %3338 = vmatprep.subr.bf16.mxu0 %v3211
  %3339 = vmatpush1.bf16.msra.mxu0 %v3210
  %3340 = vmatprep.subr.bf16.mxu0 %v3219
  %3341 = vmatpush1.bf16.msra.mxu0 %v3218
  %3342 = vmatprep.subr.bf16.mxu0 %v3227
  %3343 = vmatpush1.bf16.msra.mxu0 %v3226
  %3344 = vmatprep.subr.bf16.mxu0 %v3235
  %3345 = vmatpush1.bf16.msra.mxu0 %v3234
  %3346 = vmatprep.subr.bf16.mxu0 %v3243
  %3347 = vmatpush1.bf16.msra.mxu0 %v3242
  %3348 = vmatprep.subr.bf16.mxu0 %v3251
  %3349 = vmatpush1.bf16.msra.mxu0 %v3250
  %3350 = vmatprep.subr.bf16.mxu0 %v3259
  %3351 = vmatpush1.bf16.msra.mxu0 %v3258
  %3352 = vmatprep.subr.bf16.mxu0 %v3267
  %3353 = vmatpush1.bf16.msra.mxu0 %v3266
  %3354 = vmatprep.subr.bf16.mxu0 0
  %3355 = vmatpush1.bf16.msra.mxu0 0
  %3356 = vmatprep.subr.bf16.mxu0 0
  %3357 = vmatpush1.bf16.msra.mxu0 0
  %3358 = vmatprep.subr.bf16.mxu0 0
  %3359 = vmatpush1.bf16.msra.mxu0 0
  %3360 = vmatprep.subr.bf16.mxu0 0
  %3361 = vmatpush1.bf16.msra.mxu0 0
  %3362 = vmatprep.subr.bf16.mxu0 0
  %3363 = vmatpush1.bf16.msra.mxu0 0
  %3364 = vmatprep.subr.bf16.mxu0 0
  %3365 = vmatpush1.bf16.msra.mxu0 0
  %3366 = vmatprep.subr.bf16.mxu0 0
  %3367 = vmatpush1.bf16.msra.mxu0 0
  %3368 = vmatprep.subr.bf16.mxu0 0
  %3369 = vmatpush1.bf16.msra.mxu0 0
  %3370 = vmatprep.mubr.bf16.mxu0 0
  %3371 = vmatmul.mubr.bf16.gmra.mrb[0].mxu0 %v3016
  %v3372 = vpop.f32.mrb[0].mxu0
  %v3373 = vadd.f32 0.0, %v3372
  %v3374 = vpop.f32.mrb[0].mxu0
  %v3375 = vadd.f32 0.0, %v3374
  %v3376 = vpop.f32.mrb[0].mxu0
  %v3377 = vpop.f32.mrb[0].mxu0
  %3378 = vdwg.mxu0
  %3379 = vmatprep.subr.bf16.mxu0 %v3213
  %3380 = vmatpush1.bf16.msra.mxu0 %v3212
  %3381 = vmatprep.subr.bf16.mxu0 %v3221
  %3382 = vmatpush1.bf16.msra.mxu0 %v3220
  %3383 = vmatprep.subr.bf16.mxu0 %v3229
  %3384 = vmatpush1.bf16.msra.mxu0 %v3228
  %3385 = vmatprep.subr.bf16.mxu0 %v3237
  %3386 = vmatpush1.bf16.msra.mxu0 %v3236
  %3387 = vmatprep.subr.bf16.mxu0 %v3245
  %3388 = vmatpush1.bf16.msra.mxu0 %v3244
  %3389 = vmatprep.subr.bf16.mxu0 %v3253
  %3390 = vmatpush1.bf16.msra.mxu0 %v3252
  %3391 = vmatprep.subr.bf16.mxu0 %v3261
  %3392 = vmatpush1.bf16.msra.mxu0 %v3260
  %3393 = vmatprep.subr.bf16.mxu0 %v3269
  %3394 = vmatpush1.bf16.msra.mxu0 %v3268
  %3395 = vmatprep.subr.bf16.mxu0 0
  %3396 = vmatpush1.bf16.msra.mxu0 0
  %3397 = vmatprep.subr.bf16.mxu0 0
  %3398 = vmatpush1.bf16.msra.mxu0 0
  %3399 = vmatprep.subr.bf16.mxu0 0
  %3400 = vmatpush1.bf16.msra.mxu0 0
  %3401 = vmatprep.subr.bf16.mxu0 0
  %3402 = vmatpush1.bf16.msra.mxu0 0
  %3403 = vmatprep.subr.bf16.mxu0 0
  %3404 = vmatpush1.bf16.msra.mxu0 0
  %3405 = vmatprep.subr.bf16.mxu0 0
  %3406 = vmatpush1.bf16.msra.mxu0 0
  %3407 = vmatprep.subr.bf16.mxu0 0
  %3408 = vmatpush1.bf16.msra.mxu0 0
  %3409 = vmatprep.subr.bf16.mxu0 0
  %3410 = vmatpush1.bf16.msra.mxu0 0
  %3411 = vmatprep.mubr.bf16.mxu0 0
  %3412 = vmatmul.mubr.bf16.gmra.mrb[0].mxu0 %v3016
  %v3413 = vpop.f32.mrb[0].mxu0
  %v3414 = vadd.f32 0.0, %v3413
  %v3415 = vpop.f32.mrb[0].mxu0
  %v3416 = vadd.f32 0.0, %v3415
  %v3417 = vpop.f32.mrb[0].mxu0
  %v3418 = vpop.f32.mrb[0].mxu0
  %3419 = vdwg.mxu0
  %3420 = vmatprep.subr.bf16.mxu0 %v3215
  %3421 = vmatpush1.bf16.msra.mxu0 %v3214
  %3422 = vmatprep.subr.bf16.mxu0 %v3223
  %3423 = vmatpush1.bf16.msra.mxu0 %v3222
  %3424 = vmatprep.subr.bf16.mxu0 %v3231
  %3425 = vmatpush1.bf16.msra.mxu0 %v3230
  %3426 = vmatprep.subr.bf16.mxu0 %v3239
  %3427 = vmatpush1.bf16.msra.mxu0 %v3238
  %3428 = vmatprep.subr.bf16.mxu0 %v3247
  %3429 = vmatpush1.bf16.msra.mxu0 %v3246
  %3430 = vmatprep.subr.bf16.mxu0 %v3255
  %3431 = vmatpush1.bf16.msra.mxu0 %v3254
  %3432 = vmatprep.subr.bf16.mxu0 %v3263
  %3433 = vmatpush1.bf16.msra.mxu0 %v3262
  %3434 = vmatprep.subr.bf16.mxu0 %v3271
  %3435 = vmatpush1.bf16.msra.mxu0 %v3270
  %3436 = vmatprep.subr.bf16.mxu0 0
  %3437 = vmatpush1.bf16.msra.mxu0 0
  %3438 = vmatprep.subr.bf16.mxu0 0
  %3439 = vmatpush1.bf16.msra.mxu0 0
  %3440 = vmatprep.subr.bf16.mxu0 0
  %3441 = vmatpush1.bf16.msra.mxu0 0
  %3442 = vmatprep.subr.bf16.mxu0 0
  %3443 = vmatpush1.bf16.msra.mxu0 0
  %3444 = vmatprep.subr.bf16.mxu0 0
  %3445 = vmatpush1.bf16.msra.mxu0 0
  %3446 = vmatprep.subr.bf16.mxu0 0
  %3447 = vmatpush1.bf16.msra.mxu0 0
  %3448 = vmatprep.subr.bf16.mxu0 0
  %3449 = vmatpush1.bf16.msra.mxu0 0
  %3450 = vmatprep.subr.bf16.mxu0 0
  %3451 = vmatpush1.bf16.msra.mxu0 0
  %3452 = vmatprep.mubr.bf16.mxu0 0
  %3453 = vmatmul.mubr.bf16.gmra.mrb[0].mxu0 %v3016
  %v3454 = vpop.f32.mrb[0].mxu0
  %v3455 = vadd.f32 0.0, %v3454
  %v3456 = vpop.f32.mrb[0].mxu0
  %v3457 = vadd.f32 0.0, %v3456
  %v3458 = vpop.f32.mrb[0].mxu0
  %v3459 = vpop.f32.mrb[0].mxu0
  %3460 = vdwg.mxu0
  %3461 = vmatprep.subr.bf16.mxu0 %v3217
  %3462 = vmatpush1.bf16.msra.mxu0 %v3216
  %3463 = vmatprep.subr.bf16.mxu0 %v3225
  %3464 = vmatpush1.bf16.msra.mxu0 %v3224
  %3465 = vmatprep.subr.bf16.mxu0 %v3233
  %3466 = vmatpush1.bf16.msra.mxu0 %v3232
  %3467 = vmatprep.subr.bf16.mxu0 %v3241
  %3468 = vmatpush1.bf16.msra.mxu0 %v3240
  %3469 = vmatprep.subr.bf16.mxu0 %v3249
  %3470 = vmatpush1.bf16.msra.mxu0 %v3248
  %3471 = vmatprep.subr.bf16.mxu0 %v3257
  %3472 = vmatpush1.bf16.msra.mxu0 %v3256
  %3473 = vmatprep.subr.bf16.mxu0 %v3265
  %3474 = vmatpush1.bf16.msra.mxu0 %v3264
  %3475 = vmatprep.subr.bf16.mxu0 %v3273
  %3476 = vmatpush1.bf16.msra.mxu0 %v3272
  %3477 = vmatprep.subr.bf16.mxu0 0
  %3478 = vmatpush1.bf16.msra.mxu0 0
  %3479 = vmatprep.subr.bf16.mxu0 0
  %3480 = vmatpush1.bf16.msra.mxu0 0
  %3481 = vmatprep.subr.bf16.mxu0 0
  %3482 = vmatpush1.bf16.msra.mxu0 0
  %3483 = vmatprep.subr.bf16.mxu0 0
  %3484 = vmatpush1.bf16.msra.mxu0 0
  %3485 = vmatprep.subr.bf16.mxu0 0
  %3486 = vmatpush1.bf16.msra.mxu0 0
  %3487 = vmatprep.subr.bf16.mxu0 0
  %3488 = vmatpush1.bf16.msra.mxu0 0
  %3489 = vmatprep.subr.bf16.mxu0 0
  %3490 = vmatpush1.bf16.msra.mxu0 0
  %3491 = vmatprep.subr.bf16.mxu0 0
  %3492 = vmatpush1.bf16.msra.mxu0 0
  %3493 = vmatprep.mubr.bf16.mxu0 0
  %3494 = vmatmul.mubr.bf16.gmra.mrb[0].mxu0 %v3016
  %v3495 = vpop.f32.mrb[0].mxu0
  %v3496 = vadd.f32 0.0, %v3495
  %v3497 = vpop.f32.mrb[0].mxu0
  %v3498 = vadd.f32 0.0, %v3497
  %v3499 = vpop.f32.mrb[0].mxu0
  %v3500 = vpop.f32.mrb[0].mxu0
  %3501 = vdwg.mxu0
  %v3502 = vadd.f32 %v2940, %v3373
  %v3503 = vadd.f32 %v2941, %v3375
  %v3504 = vadd.f32 %v2942, %v3414
  %v3505 = vadd.f32 %v2943, %v3416
  %v3506 = vadd.f32 %v2944, %v3455
  %v3507 = vadd.f32 %v2945, %v3457
  %v3508 = vadd.f32 %v2946, %v3496
  %v3509 = vadd.f32 %v2947, %v3498
  %s3510 = scalar_lea.vmem %s8, 1536
  %v3511 = vld [vmem:[%s3510] sm:$0xff]
  %v3512 = vld [vmem:[%s3510 + $0x8] sm:$0xff]
  %v3513 = vld [vmem:[%s3510 + $0x10] sm:$0xff]
  %v3514 = vld [vmem:[%s3510 + $0x18] sm:$0xff]
  %v3515 = vld [vmem:[%s3510 + $0x20] sm:$0xff]
  %v3516 = vld [vmem:[%s3510 + $0x28] sm:$0xff]
  %v3517 = vld [vmem:[%s3510 + $0x30] sm:$0xff]
  %v3518 = vld [vmem:[%s3510 + $0x38] sm:$0xff]
  %v3519 = vld [vmem:[%s3510 + $0x40] sm:$0xff]
  %v3520 = vld [vmem:[%s3510 + $0x48] sm:$0xff]
  %v3521 = vld [vmem:[%s3510 + $0x50] sm:$0xff]
  %v3522 = vld [vmem:[%s3510 + $0x58] sm:$0xff]
  %v3523 = vld [vmem:[%s3510 + $0x60] sm:$0xff]
  %v3524 = vld [vmem:[%s3510 + $0x68] sm:$0xff]
  %v3525 = vld [vmem:[%s3510 + $0x70] sm:$0xff]
  %v3526 = vld [vmem:[%s3510 + $0x78] sm:$0xff]
  %v3527 = vld [vmem:[%s3510 + $0x80] sm:$0xff]
  %v3528 = vld [vmem:[%s3510 + $0x88] sm:$0xff]
  %v3529 = vld [vmem:[%s3510 + $0x90] sm:$0xff]
  %v3530 = vld [vmem:[%s3510 + $0x98] sm:$0xff]
  %v3531 = vld [vmem:[%s3510 + $0xa0] sm:$0xff]
  %v3532 = vld [vmem:[%s3510 + $0xa8] sm:$0xff]
  %v3533 = vld [vmem:[%s3510 + $0xb0] sm:$0xff]
  %v3534 = vld [vmem:[%s3510 + $0xb8] sm:$0xff]
  %v3535 = vld [vmem:[%s3510 + $0xc0] sm:$0xff]
  %v3536 = vld [vmem:[%s3510 + $0xc8] sm:$0xff]
  %v3537 = vld [vmem:[%s3510 + $0xd0] sm:$0xff]
  %v3538 = vld [vmem:[%s3510 + $0xd8] sm:$0xff]
  %v3539 = vld [vmem:[%s3510 + $0xe0] sm:$0xff]
  %v3540 = vld [vmem:[%s3510 + $0xe8] sm:$0xff]
  %v3541 = vld [vmem:[%s3510 + $0xf0] sm:$0xff]
  %v3542 = vld [vmem:[%s3510 + $0xf8] sm:$0xff]
  %v3543 = vld [vmem:[%s3510 + $0x100] sm:$0xff]
  %v3544 = vld [vmem:[%s3510 + $0x108] sm:$0xff]
  %v3545 = vld [vmem:[%s3510 + $0x110] sm:$0xff]
  %v3546 = vld [vmem:[%s3510 + $0x118] sm:$0xff]
  %v3547 = vld [vmem:[%s3510 + $0x120] sm:$0xff]
  %v3548 = vld [vmem:[%s3510 + $0x128] sm:$0xff]
  %v3549 = vld [vmem:[%s3510 + $0x130] sm:$0xff]
  %v3550 = vld [vmem:[%s3510 + $0x138] sm:$0xff]
  %v3551 = vld [vmem:[%s3510 + $0x140] sm:$0xff]
  %v3552 = vld [vmem:[%s3510 + $0x148] sm:$0xff]
  %v3553 = vld [vmem:[%s3510 + $0x150] sm:$0xff]
  %v3554 = vld [vmem:[%s3510 + $0x158] sm:$0xff]
  %v3555 = vld [vmem:[%s3510 + $0x160] sm:$0xff]
  %v3556 = vld [vmem:[%s3510 + $0x168] sm:$0xff]
  %v3557 = vld [vmem:[%s3510 + $0x170] sm:$0xff]
  %v3558 = vld [vmem:[%s3510 + $0x178] sm:$0xff]
  %v3559 = vld [vmem:[%s3510 + $0x180] sm:$0xff]
  %v3560 = vld [vmem:[%s3510 + $0x188] sm:$0xff]
  %v3561 = vld [vmem:[%s3510 + $0x190] sm:$0xff]
  %v3562 = vld [vmem:[%s3510 + $0x198] sm:$0xff]
  %v3563 = vld [vmem:[%s3510 + $0x1a0] sm:$0xff]
  %v3564 = vld [vmem:[%s3510 + $0x1a8] sm:$0xff]
  %v3565 = vld [vmem:[%s3510 + $0x1b0] sm:$0xff]
  %v3566 = vld [vmem:[%s3510 + $0x1b8] sm:$0xff]
  %v3567 = vld [vmem:[%s3510 + $0x1c0] sm:$0xff]
  %v3568 = vld [vmem:[%s3510 + $0x1c8] sm:$0xff]
  %v3569 = vld [vmem:[%s3510 + $0x1d0] sm:$0xff]
  %v3570 = vld [vmem:[%s3510 + $0x1d8] sm:$0xff]
  %v3571 = vld [vmem:[%s3510 + $0x1e0] sm:$0xff]
  %v3572 = vld [vmem:[%s3510 + $0x1e8] sm:$0xff]
  %v3573 = vld [vmem:[%s3510 + $0x1f0] sm:$0xff]
  %v3574 = vld [vmem:[%s3510 + $0x1f8] sm:$0xff]
  %v3575 = vrot.slane %v1847, 3
  %v3576 = vrot.slane %v1848, 2
  %v3577 = vsel %vm1850, %v3576, %v3575
  %v3578 = vpack.c.b16 %v3577, %v3577
  %v3644 = vunpack.c.l.b16 %v3511
  %v3645 = vunpack.c.h.b16 %v3511
  %v3646 = vunpack.c.l.b16 %v3512
  %v3647 = vunpack.c.h.b16 %v3512
  %v3648 = vunpack.c.l.b16 %v3513
  %v3649 = vunpack.c.h.b16 %v3513
  %v3650 = vunpack.c.l.b16 %v3514
  %v3651 = vunpack.c.h.b16 %v3514
  %v3652 = vunpack.c.l.b16 %v3515
  %v3653 = vunpack.c.h.b16 %v3515
  %v3654 = vunpack.c.l.b16 %v3516
  %v3655 = vunpack.c.h.b16 %v3516
  %v3656 = vunpack.c.l.b16 %v3517
  %v3657 = vunpack.c.h.b16 %v3517
  %v3658 = vunpack.c.l.b16 %v3518
  %v3659 = vunpack.c.h.b16 %v3518
  %v3660 = vunpack.c.l.b16 %v3519
  %v3661 = vunpack.c.h.b16 %v3519
  %v3662 = vunpack.c.l.b16 %v3520
  %v3663 = vunpack.c.h.b16 %v3520
  %v3664 = vunpack.c.l.b16 %v3521
  %v3665 = vunpack.c.h.b16 %v3521
  %v3666 = vunpack.c.l.b16 %v3522
  %v3667 = vunpack.c.h.b16 %v3522
  %v3668 = vunpack.c.l.b16 %v3523
  %v3669 = vunpack.c.h.b16 %v3523
  %v3670 = vunpack.c.l.b16 %v3524
  %v3671 = vunpack.c.h.b16 %v3524
  %v3672 = vunpack.c.l.b16 %v3525
  %v3673 = vunpack.c.h.b16 %v3525
  %v3674 = vunpack.c.l.b16 %v3526
  %v3675 = vunpack.c.h.b16 %v3526
  %v3676 = vunpack.c.l.b16 %v3527
  %v3677 = vunpack.c.h.b16 %v3527
  %v3678 = vunpack.c.l.b16 %v3528
  %v3679 = vunpack.c.h.b16 %v3528
  %v3680 = vunpack.c.l.b16 %v3529
  %v3681 = vunpack.c.h.b16 %v3529
  %v3682 = vunpack.c.l.b16 %v3530
  %v3683 = vunpack.c.h.b16 %v3530
  %v3684 = vunpack.c.l.b16 %v3531
  %v3685 = vunpack.c.h.b16 %v3531
  %v3686 = vunpack.c.l.b16 %v3532
  %v3687 = vunpack.c.h.b16 %v3532
  %v3688 = vunpack.c.l.b16 %v3533
  %v3689 = vunpack.c.h.b16 %v3533
  %v3690 = vunpack.c.l.b16 %v3534
  %v3691 = vunpack.c.h.b16 %v3534
  %v3692 = vunpack.c.l.b16 %v3535
  %v3693 = vunpack.c.h.b16 %v3535
  %v3694 = vunpack.c.l.b16 %v3536
  %v3695 = vunpack.c.h.b16 %v3536
  %v3696 = vunpack.c.l.b16 %v3537
  %v3697 = vunpack.c.h.b16 %v3537
  %v3698 = vunpack.c.l.b16 %v3538
  %v3699 = vunpack.c.h.b16 %v3538
  %v3700 = vunpack.c.l.b16 %v3539
  %v3701 = vunpack.c.h.b16 %v3539
  %v3702 = vunpack.c.l.b16 %v3540
  %v3703 = vunpack.c.h.b16 %v3540
  %v3704 = vunpack.c.l.b16 %v3541
  %v3705 = vunpack.c.h.b16 %v3541
  %v3706 = vunpack.c.l.b16 %v3542
  %v3707 = vunpack.c.h.b16 %v3542
  %v3708 = vunpack.c.l.b16 %v3543
  %v3709 = vunpack.c.h.b16 %v3543
  %v3710 = vunpack.c.l.b16 %v3544
  %v3711 = vunpack.c.h.b16 %v3544
  %v3712 = vunpack.c.l.b16 %v3545
  %v3713 = vunpack.c.h.b16 %v3545
  %v3714 = vunpack.c.l.b16 %v3546
  %v3715 = vunpack.c.h.b16 %v3546
  %v3716 = vunpack.c.l.b16 %v3547
  %v3717 = vunpack.c.h.b16 %v3547
  %v3718 = vunpack.c.l.b16 %v3548
  %v3719 = vunpack.c.h.b16 %v3548
  %v3720 = vunpack.c.l.b16 %v3549
  %v3721 = vunpack.c.h.b16 %v3549
  %v3722 = vunpack.c.l.b16 %v3550
  %v3723 = vunpack.c.h.b16 %v3550
  %v3724 = vunpack.c.l.b16 %v3551
  %v3725 = vunpack.c.h.b16 %v3551
  %v3726 = vunpack.c.l.b16 %v3552
  %v3727 = vunpack.c.h.b16 %v3552
  %v3728 = vunpack.c.l.b16 %v3553
  %v3729 = vunpack.c.h.b16 %v3553
  %v3730 = vunpack.c.l.b16 %v3554
  %v3731 = vunpack.c.h.b16 %v3554
  %v3732 = vunpack.c.l.b16 %v3555
  %v3733 = vunpack.c.h.b16 %v3555
  %v3734 = vunpack.c.l.b16 %v3556
  %v3735 = vunpack.c.h.b16 %v3556
  %v3736 = vunpack.c.l.b16 %v3557
  %v3737 = vunpack.c.h.b16 %v3557
  %v3738 = vunpack.c.l.b16 %v3558
  %v3739 = vunpack.c.h.b16 %v3558
  %v3740 = vunpack.c.l.b16 %v3559
  %v3741 = vunpack.c.h.b16 %v3559
  %v3742 = vunpack.c.l.b16 %v3560
  %v3743 = vunpack.c.h.b16 %v3560
  %v3744 = vunpack.c.l.b16 %v3561
  %v3745 = vunpack.c.h.b16 %v3561
  %v3746 = vunpack.c.l.b16 %v3562
  %v3747 = vunpack.c.h.b16 %v3562
  %v3748 = vunpack.c.l.b16 %v3563
  %v3749 = vunpack.c.h.b16 %v3563
  %v3750 = vunpack.c.l.b16 %v3564
  %v3751 = vunpack.c.h.b16 %v3564
  %v3752 = vunpack.c.l.b16 %v3565
  %v3753 = vunpack.c.h.b16 %v3565
  %v3754 = vunpack.c.l.b16 %v3566
  %v3755 = vunpack.c.h.b16 %v3566
  %v3756 = vunpack.c.l.b16 %v3567
  %v3757 = vunpack.c.h.b16 %v3567
  %v3758 = vunpack.c.l.b16 %v3568
  %v3759 = vunpack.c.h.b16 %v3568
  %v3760 = vunpack.c.l.b16 %v3569
  %v3761 = vunpack.c.h.b16 %v3569
  %v3762 = vunpack.c.l.b16 %v3570
  %v3763 = vunpack.c.h.b16 %v3570
  %v3764 = vunpack.c.l.b16 %v3571
  %v3765 = vunpack.c.h.b16 %v3571
  %v3766 = vunpack.c.l.b16 %v3572
  %v3767 = vunpack.c.h.b16 %v3572
  %v3768 = vunpack.c.l.b16 %v3573
  %v3769 = vunpack.c.h.b16 %v3573
  %v3770 = vunpack.c.l.b16 %v3574
  %v3771 = vunpack.c.h.b16 %v3574
  %v3772 = vpack.c.b16 %v3652, %v3644
  %v3773 = vpack.c.b16 %v3653, %v3645
  %v3774 = vpack.c.b16 %v3654, %v3646
  %v3775 = vpack.c.b16 %v3655, %v3647
  %v3776 = vpack.c.b16 %v3656, %v3648
  %v3777 = vpack.c.b16 %v3657, %v3649
  %v3778 = vpack.c.b16 %v3658, %v3650
  %v3779 = vpack.c.b16 %v3659, %v3651
  %v3780 = vpack.c.b16 %v3668, %v3660
  %v3781 = vpack.c.b16 %v3669, %v3661
  %v3782 = vpack.c.b16 %v3670, %v3662
  %v3783 = vpack.c.b16 %v3671, %v3663
  %v3784 = vpack.c.b16 %v3672, %v3664
  %v3785 = vpack.c.b16 %v3673, %v3665
  %v3786 = vpack.c.b16 %v3674, %v3666
  %v3787 = vpack.c.b16 %v3675, %v3667
  %v3788 = vpack.c.b16 %v3684, %v3676
  %v3789 = vpack.c.b16 %v3685, %v3677
  %v3790 = vpack.c.b16 %v3686, %v3678
  %v3791 = vpack.c.b16 %v3687, %v3679
  %v3792 = vpack.c.b16 %v3688, %v3680
  %v3793 = vpack.c.b16 %v3689, %v3681
  %v3794 = vpack.c.b16 %v3690, %v3682
  %v3795 = vpack.c.b16 %v3691, %v3683
  %v3796 = vpack.c.b16 %v3700, %v3692
  %v3797 = vpack.c.b16 %v3701, %v3693
  %v3798 = vpack.c.b16 %v3702, %v3694
  %v3799 = vpack.c.b16 %v3703, %v3695
  %v3800 = vpack.c.b16 %v3704, %v3696
  %v3801 = vpack.c.b16 %v3705, %v3697
  %v3802 = vpack.c.b16 %v3706, %v3698
  %v3803 = vpack.c.b16 %v3707, %v3699
  %v3804 = vpack.c.b16 %v3716, %v3708
  %v3805 = vpack.c.b16 %v3717, %v3709
  %v3806 = vpack.c.b16 %v3718, %v3710
  %v3807 = vpack.c.b16 %v3719, %v3711
  %v3808 = vpack.c.b16 %v3720, %v3712
  %v3809 = vpack.c.b16 %v3721, %v3713
  %v3810 = vpack.c.b16 %v3722, %v3714
  %v3811 = vpack.c.b16 %v3723, %v3715
  %v3812 = vpack.c.b16 %v3732, %v3724
  %v3813 = vpack.c.b16 %v3733, %v3725
  %v3814 = vpack.c.b16 %v3734, %v3726
  %v3815 = vpack.c.b16 %v3735, %v3727
  %v3816 = vpack.c.b16 %v3736, %v3728
  %v3817 = vpack.c.b16 %v3737, %v3729
  %v3818 = vpack.c.b16 %v3738, %v3730
  %v3819 = vpack.c.b16 %v3739, %v3731
  %v3820 = vpack.c.b16 %v3748, %v3740
  %v3821 = vpack.c.b16 %v3749, %v3741
  %v3822 = vpack.c.b16 %v3750, %v3742
  %v3823 = vpack.c.b16 %v3751, %v3743
  %v3824 = vpack.c.b16 %v3752, %v3744
  %v3825 = vpack.c.b16 %v3753, %v3745
  %v3826 = vpack.c.b16 %v3754, %v3746
  %v3827 = vpack.c.b16 %v3755, %v3747
  %v3828 = vpack.c.b16 %v3764, %v3756
  %v3829 = vpack.c.b16 %v3765, %v3757
  %v3830 = vpack.c.b16 %v3766, %v3758
  %v3831 = vpack.c.b16 %v3767, %v3759
  %v3832 = vpack.c.b16 %v3768, %v3760
  %v3833 = vpack.c.b16 %v3769, %v3761
  %v3834 = vpack.c.b16 %v3770, %v3762
  %v3835 = vpack.c.b16 %v3771, %v3763
  %3900 = vmatprep.subr.bf16.mxu0 %v3773
  %3901 = vmatpush1.bf16.msra.mxu0 %v3772
  %3902 = vmatprep.subr.bf16.mxu0 %v3781
  %3903 = vmatpush1.bf16.msra.mxu0 %v3780
  %3904 = vmatprep.subr.bf16.mxu0 %v3789
  %3905 = vmatpush1.bf16.msra.mxu0 %v3788
  %3906 = vmatprep.subr.bf16.mxu0 %v3797
  %3907 = vmatpush1.bf16.msra.mxu0 %v3796
  %3908 = vmatprep.subr.bf16.mxu0 %v3805
  %3909 = vmatpush1.bf16.msra.mxu0 %v3804
  %3910 = vmatprep.subr.bf16.mxu0 %v3813
  %3911 = vmatpush1.bf16.msra.mxu0 %v3812
  %3912 = vmatprep.subr.bf16.mxu0 %v3821
  %3913 = vmatpush1.bf16.msra.mxu0 %v3820
  %3914 = vmatprep.subr.bf16.mxu0 %v3829
  %3915 = vmatpush1.bf16.msra.mxu0 %v3828
  %3916 = vmatprep.subr.bf16.mxu0 0
  %3917 = vmatpush1.bf16.msra.mxu0 0
  %3918 = vmatprep.subr.bf16.mxu0 0
  %3919 = vmatpush1.bf16.msra.mxu0 0
  %3920 = vmatprep.subr.bf16.mxu0 0
  %3921 = vmatpush1.bf16.msra.mxu0 0
  %3922 = vmatprep.subr.bf16.mxu0 0
  %3923 = vmatpush1.bf16.msra.mxu0 0
  %3924 = vmatprep.subr.bf16.mxu0 0
  %3925 = vmatpush1.bf16.msra.mxu0 0
  %3926 = vmatprep.subr.bf16.mxu0 0
  %3927 = vmatpush1.bf16.msra.mxu0 0
  %3928 = vmatprep.subr.bf16.mxu0 0
  %3929 = vmatpush1.bf16.msra.mxu0 0
  %3930 = vmatprep.subr.bf16.mxu0 0
  %3931 = vmatpush1.bf16.msra.mxu0 0
  %3932 = vmatprep.mubr.bf16.mxu0 0
  %3933 = vmatmul.mubr.bf16.gmra.mrb[0].mxu0 %v3578
  %v3934 = vpop.f32.mrb[0].mxu0
  %v3935 = vadd.f32 0.0, %v3934
  %v3936 = vpop.f32.mrb[0].mxu0
  %v3937 = vadd.f32 0.0, %v3936
  %v3938 = vpop.f32.mrb[0].mxu0
  %v3939 = vpop.f32.mrb[0].mxu0
  %3940 = vdwg.mxu0
  %3941 = vmatprep.subr.bf16.mxu0 %v3775
  %3942 = vmatpush1.bf16.msra.mxu0 %v3774
  %3943 = vmatprep.subr.bf16.mxu0 %v3783
  %3944 = vmatpush1.bf16.msra.mxu0 %v3782
  %3945 = vmatprep.subr.bf16.mxu0 %v3791
  %3946 = vmatpush1.bf16.msra.mxu0 %v3790
  %3947 = vmatprep.subr.bf16.mxu0 %v3799
  %3948 = vmatpush1.bf16.msra.mxu0 %v3798
  %3949 = vmatprep.subr.bf16.mxu0 %v3807
  %3950 = vmatpush1.bf16.msra.mxu0 %v3806
  %3951 = vmatprep.subr.bf16.mxu0 %v3815
  %3952 = vmatpush1.bf16.msra.mxu0 %v3814
  %3953 = vmatprep.subr.bf16.mxu0 %v3823
  %3954 = vmatpush1.bf16.msra.mxu0 %v3822
  %3955 = vmatprep.subr.bf16.mxu0 %v3831
  %3956 = vmatpush1.bf16.msra.mxu0 %v3830
  %3957 = vmatprep.subr.bf16.mxu0 0
  %3958 = vmatpush1.bf16.msra.mxu0 0
  %3959 = vmatprep.subr.bf16.mxu0 0
  %3960 = vmatpush1.bf16.msra.mxu0 0
  %3961 = vmatprep.subr.bf16.mxu0 0
  %3962 = vmatpush1.bf16.msra.mxu0 0
  %3963 = vmatprep.subr.bf16.mxu0 0
  %3964 = vmatpush1.bf16.msra.mxu0 0
  %3965 = vmatprep.subr.bf16.mxu0 0
  %3966 = vmatpush1.bf16.msra.mxu0 0
  %3967 = vmatprep.subr.bf16.mxu0 0
  %3968 = vmatpush1.bf16.msra.mxu0 0
  %3969 = vmatprep.subr.bf16.mxu0 0
  %3970 = vmatpush1.bf16.msra.mxu0 0
  %3971 = vmatprep.subr.bf16.mxu0 0
  %3972 = vmatpush1.bf16.msra.mxu0 0
  %3973 = vmatprep.mubr.bf16.mxu0 0
  %3974 = vmatmul.mubr.bf16.gmra.mrb[0].mxu0 %v3578
  %v3975 = vpop.f32.mrb[0].mxu0
  %v3976 = vadd.f32 0.0, %v3975
  %v3977 = vpop.f32.mrb[0].mxu0
  %v3978 = vadd.f32 0.0, %v3977
  %v3979 = vpop.f32.mrb[0].mxu0
  %v3980 = vpop.f32.mrb[0].mxu0
  %3981 = vdwg.mxu0
  %3982 = vmatprep.subr.bf16.mxu0 %v3777
  %3983 = vmatpush1.bf16.msra.mxu0 %v3776
  %3984 = vmatprep.subr.bf16.mxu0 %v3785
  %3985 = vmatpush1.bf16.msra.mxu0 %v3784
  %3986 = vmatprep.subr.bf16.mxu0 %v3793
  %3987 = vmatpush1.bf16.msra.mxu0 %v3792
  %3988 = vmatprep.subr.bf16.mxu0 %v3801
  %3989 = vmatpush1.bf16.msra.mxu0 %v3800
  %3990 = vmatprep.subr.bf16.mxu0 %v3809
  %3991 = vmatpush1.bf16.msra.mxu0 %v3808
  %3992 = vmatprep.subr.bf16.mxu0 %v3817
  %3993 = vmatpush1.bf16.msra.mxu0 %v3816
  %3994 = vmatprep.subr.bf16.mxu0 %v3825
  %3995 = vmatpush1.bf16.msra.mxu0 %v3824
  %3996 = vmatprep.subr.bf16.mxu0 %v3833
  %3997 = vmatpush1.bf16.msra.mxu0 %v3832
  %3998 = vmatprep.subr.bf16.mxu0 0
  %3999 = vmatpush1.bf16.msra.mxu0 0
  %4000 = vmatprep.subr.bf16.mxu0 0
  %4001 = vmatpush1.bf16.msra.mxu0 0
  %4002 = vmatprep.subr.bf16.mxu0 0
  %4003 = vmatpush1.bf16.msra.mxu0 0
  %4004 = vmatprep.subr.bf16.mxu0 0
  %4005 = vmatpush1.bf16.msra.mxu0 0
  %4006 = vmatprep.subr.bf16.mxu0 0
  %4007 = vmatpush1.bf16.msra.mxu0 0
  %4008 = vmatprep.subr.bf16.mxu0 0
  %4009 = vmatpush1.bf16.msra.mxu0 0
  %4010 = vmatprep.subr.bf16.mxu0 0
  %4011 = vmatpush1.bf16.msra.mxu0 0
  %4012 = vmatprep.subr.bf16.mxu0 0
  %4013 = vmatpush1.bf16.msra.mxu0 0
  %4014 = vmatprep.mubr.bf16.mxu0 0
  %4015 = vmatmul.mubr.bf16.gmra.mrb[0].mxu0 %v3578
  %v4016 = vpop.f32.mrb[0].mxu0
  %v4017 = vadd.f32 0.0, %v4016
  %v4018 = vpop.f32.mrb[0].mxu0
  %v4019 = vadd.f32 0.0, %v4018
  %v4020 = vpop.f32.mrb[0].mxu0
  %v4021 = vpop.f32.mrb[0].mxu0
  %4022 = vdwg.mxu0
  %4023 = vmatprep.subr.bf16.mxu0 %v3779
  %4024 = vmatpush1.bf16.msra.mxu0 %v3778
  %4025 = vmatprep.subr.bf16.mxu0 %v3787
  %4026 = vmatpush1.bf16.msra.mxu0 %v3786
  %4027 = vmatprep.subr.bf16.mxu0 %v3795
  %4028 = vmatpush1.bf16.msra.mxu0 %v3794
  %4029 = vmatprep.subr.bf16.mxu0 %v3803
  %4030 = vmatpush1.bf16.msra.mxu0 %v3802
  %4031 = vmatprep.subr.bf16.mxu0 %v3811
  %4032 = vmatpush1.bf16.msra.mxu0 %v3810
  %4033 = vmatprep.subr.bf16.mxu0 %v3819
  %4034 = vmatpush1.bf16.msra.mxu0 %v3818
  %4035 = vmatprep.subr.bf16.mxu0 %v3827
  %4036 = vmatpush1.bf16.msra.mxu0 %v3826
  %4037 = vmatprep.subr.bf16.mxu0 %v3835
  %4038 = vmatpush1.bf16.msra.mxu0 %v3834
  %4039 = vmatprep.subr.bf16.mxu0 0
  %4040 = vmatpush1.bf16.msra.mxu0 0
  %4041 = vmatprep.subr.bf16.mxu0 0
  %4042 = vmatpush1.bf16.msra.mxu0 0
  %4043 = vmatprep.subr.bf16.mxu0 0
  %4044 = vmatpush1.bf16.msra.mxu0 0
  %4045 = vmatprep.subr.bf16.mxu0 0
  %4046 = vmatpush1.bf16.msra.mxu0 0
  %4047 = vmatprep.subr.bf16.mxu0 0
  %4048 = vmatpush1.bf16.msra.mxu0 0
  %4049 = vmatprep.subr.bf16.mxu0 0
  %4050 = vmatpush1.bf16.msra.mxu0 0
  %4051 = vmatprep.subr.bf16.mxu0 0
  %4052 = vmatpush1.bf16.msra.mxu0 0
  %4053 = vmatprep.subr.bf16.mxu0 0
  %4054 = vmatpush1.bf16.msra.mxu0 0
  %4055 = vmatprep.mubr.bf16.mxu0 0
  %4056 = vmatmul.mubr.bf16.gmra.mrb[0].mxu0 %v3578
  %v4057 = vpop.f32.mrb[0].mxu0
  %v4058 = vadd.f32 0.0, %v4057
  %v4059 = vpop.f32.mrb[0].mxu0
  %v4060 = vadd.f32 0.0, %v4059
  %v4061 = vpop.f32.mrb[0].mxu0
  %v4062 = vpop.f32.mrb[0].mxu0
  %4063 = vdwg.mxu0
  %v4064 = vadd.f32 %v3502, %v3935
  %v4065 = vadd.f32 %v3503, %v3937
  %v4066 = vadd.f32 %v3504, %v3976
  %v4067 = vadd.f32 %v3505, %v3978
  %v4068 = vadd.f32 %v3506, %v4017
  %v4069 = vadd.f32 %v3507, %v4019
  %v4070 = vadd.f32 %v3508, %v4058
  %v4071 = vadd.f32 %v3509, %v4060
  %s4072 = scalar_lea.vmem %s8, 2048
  %v4073 = vld [vmem:[%s4072] sm:$0xff]
  %v4074 = vld [vmem:[%s4072 + $0x8] sm:$0xff]
  %v4075 = vld [vmem:[%s4072 + $0x10] sm:$0xff]
  %v4076 = vld [vmem:[%s4072 + $0x18] sm:$0xff]
  %v4077 = vld [vmem:[%s4072 + $0x20] sm:$0xff]
  %v4078 = vld [vmem:[%s4072 + $0x28] sm:$0xff]
  %v4079 = vld [vmem:[%s4072 + $0x30] sm:$0xff]
  %v4080 = vld [vmem:[%s4072 + $0x38] sm:$0xff]
  %v4081 = vld [vmem:[%s4072 + $0x40] sm:$0xff]
  %v4082 = vld [vmem:[%s4072 + $0x48] sm:$0xff]
  %v4083 = vld [vmem:[%s4072 + $0x50] sm:$0xff]
  %v4084 = vld [vmem:[%s4072 + $0x58] sm:$0xff]
  %v4085 = vld [vmem:[%s4072 + $0x60] sm:$0xff]
  %v4086 = vld [vmem:[%s4072 + $0x68] sm:$0xff]
  %v4087 = vld [vmem:[%s4072 + $0x70] sm:$0xff]
  %v4088 = vld [vmem:[%s4072 + $0x78] sm:$0xff]
  %v4089 = vld [vmem:[%s4072 + $0x80] sm:$0xff]
  %v4090 = vld [vmem:[%s4072 + $0x88] sm:$0xff]
  %v4091 = vld [vmem:[%s4072 + $0x90] sm:$0xff]
  %v4092 = vld [vmem:[%s4072 + $0x98] sm:$0xff]
  %v4093 = vld [vmem:[%s4072 + $0xa0] sm:$0xff]
  %v4094 = vld [vmem:[%s4072 + $0xa8] sm:$0xff]
  %v4095 = vld [vmem:[%s4072 + $0xb0] sm:$0xff]
  %v4096 = vld [vmem:[%s4072 + $0xb8] sm:$0xff]
  %v4097 = vld [vmem:[%s4072 + $0xc0] sm:$0xff]
  %v4098 = vld [vmem:[%s4072 + $0xc8] sm:$0xff]
  %v4099 = vld [vmem:[%s4072 + $0xd0] sm:$0xff]
  %v4100 = vld [vmem:[%s4072 + $0xd8] sm:$0xff]
  %v4101 = vld [vmem:[%s4072 + $0xe0] sm:$0xff]
  %v4102 = vld [vmem:[%s4072 + $0xe8] sm:$0xff]
  %v4103 = vld [vmem:[%s4072 + $0xf0] sm:$0xff]
  %v4104 = vld [vmem:[%s4072 + $0xf8] sm:$0xff]
  %v4105 = vld [vmem:[%s4072 + $0x100] sm:$0xff]
  %v4106 = vld [vmem:[%s4072 + $0x108] sm:$0xff]
  %v4107 = vld [vmem:[%s4072 + $0x110] sm:$0xff]
  %v4108 = vld [vmem:[%s4072 + $0x118] sm:$0xff]
  %v4109 = vld [vmem:[%s4072 + $0x120] sm:$0xff]
  %v4110 = vld [vmem:[%s4072 + $0x128] sm:$0xff]
  %v4111 = vld [vmem:[%s4072 + $0x130] sm:$0xff]
  %v4112 = vld [vmem:[%s4072 + $0x138] sm:$0xff]
  %v4113 = vld [vmem:[%s4072 + $0x140] sm:$0xff]
  %v4114 = vld [vmem:[%s4072 + $0x148] sm:$0xff]
  %v4115 = vld [vmem:[%s4072 + $0x150] sm:$0xff]
  %v4116 = vld [vmem:[%s4072 + $0x158] sm:$0xff]
  %v4117 = vld [vmem:[%s4072 + $0x160] sm:$0xff]
  %v4118 = vld [vmem:[%s4072 + $0x168] sm:$0xff]
  %v4119 = vld [vmem:[%s4072 + $0x170] sm:$0xff]
  %v4120 = vld [vmem:[%s4072 + $0x178] sm:$0xff]
  %v4121 = vld [vmem:[%s4072 + $0x180] sm:$0xff]
  %v4122 = vld [vmem:[%s4072 + $0x188] sm:$0xff]
  %v4123 = vld [vmem:[%s4072 + $0x190] sm:$0xff]
  %v4124 = vld [vmem:[%s4072 + $0x198] sm:$0xff]
  %v4125 = vld [vmem:[%s4072 + $0x1a0] sm:$0xff]
  %v4126 = vld [vmem:[%s4072 + $0x1a8] sm:$0xff]
  %v4127 = vld [vmem:[%s4072 + $0x1b0] sm:$0xff]
  %v4128 = vld [vmem:[%s4072 + $0x1b8] sm:$0xff]
  %v4129 = vld [vmem:[%s4072 + $0x1c0] sm:$0xff]
  %v4130 = vld [vmem:[%s4072 + $0x1c8] sm:$0xff]
  %v4131 = vld [vmem:[%s4072 + $0x1d0] sm:$0xff]
  %v4132 = vld [vmem:[%s4072 + $0x1d8] sm:$0xff]
  %v4133 = vld [vmem:[%s4072 + $0x1e0] sm:$0xff]
  %v4134 = vld [vmem:[%s4072 + $0x1e8] sm:$0xff]
  %v4135 = vld [vmem:[%s4072 + $0x1f0] sm:$0xff]
  %v4136 = vld [vmem:[%s4072 + $0x1f8] sm:$0xff]
  %v4137 = vrot.slane %v1847, 4
  %v4138 = vrot.slane %v1848, 3
  %v4139 = vsel %vm1850, %v4138, %v4137
  %v4140 = vpack.c.b16 %v4139, %v4139
  %v4206 = vunpack.c.l.b16 %v4073
  %v4207 = vunpack.c.h.b16 %v4073
  %v4208 = vunpack.c.l.b16 %v4074
  %v4209 = vunpack.c.h.b16 %v4074
  %v4210 = vunpack.c.l.b16 %v4075
  %v4211 = vunpack.c.h.b16 %v4075
  %v4212 = vunpack.c.l.b16 %v4076
  %v4213 = vunpack.c.h.b16 %v4076
  %v4214 = vunpack.c.l.b16 %v4077
  %v4215 = vunpack.c.h.b16 %v4077
  %v4216 = vunpack.c.l.b16 %v4078
  %v4217 = vunpack.c.h.b16 %v4078
  %v4218 = vunpack.c.l.b16 %v4079
  %v4219 = vunpack.c.h.b16 %v4079
  %v4220 = vunpack.c.l.b16 %v4080
  %v4221 = vunpack.c.h.b16 %v4080
  %v4222 = vunpack.c.l.b16 %v4081
  %v4223 = vunpack.c.h.b16 %v4081
  %v4224 = vunpack.c.l.b16 %v4082
  %v4225 = vunpack.c.h.b16 %v4082
  %v4226 = vunpack.c.l.b16 %v4083
  %v4227 = vunpack.c.h.b16 %v4083
  %v4228 = vunpack.c.l.b16 %v4084
  %v4229 = vunpack.c.h.b16 %v4084
  %v4230 = vunpack.c.l.b16 %v4085
  %v4231 = vunpack.c.h.b16 %v4085
  %v4232 = vunpack.c.l.b16 %v4086
  %v4233 = vunpack.c.h.b16 %v4086
  %v4234 = vunpack.c.l.b16 %v4087
  %v4235 = vunpack.c.h.b16 %v4087
  %v4236 = vunpack.c.l.b16 %v4088
  %v4237 = vunpack.c.h.b16 %v4088
  %v4238 = vunpack.c.l.b16 %v4089
  %v4239 = vunpack.c.h.b16 %v4089
  %v4240 = vunpack.c.l.b16 %v4090
  %v4241 = vunpack.c.h.b16 %v4090
  %v4242 = vunpack.c.l.b16 %v4091
  %v4243 = vunpack.c.h.b16 %v4091
  %v4244 = vunpack.c.l.b16 %v4092
  %v4245 = vunpack.c.h.b16 %v4092
  %v4246 = vunpack.c.l.b16 %v4093
  %v4247 = vunpack.c.h.b16 %v4093
  %v4248 = vunpack.c.l.b16 %v4094
  %v4249 = vunpack.c.h.b16 %v4094
  %v4250 = vunpack.c.l.b16 %v4095
  %v4251 = vunpack.c.h.b16 %v4095
  %v4252 = vunpack.c.l.b16 %v4096
  %v4253 = vunpack.c.h.b16 %v4096
  %v4254 = vunpack.c.l.b16 %v4097
  %v4255 = vunpack.c.h.b16 %v4097
  %v4256 = vunpack.c.l.b16 %v4098
  %v4257 = vunpack.c.h.b16 %v4098
  %v4258 = vunpack.c.l.b16 %v4099
  %v4259 = vunpack.c.h.b16 %v4099
  %v4260 = vunpack.c.l.b16 %v4100
  %v4261 = vunpack.c.h.b16 %v4100
  %v4262 = vunpack.c.l.b16 %v4101
  %v4263 = vunpack.c.h.b16 %v4101
  %v4264 = vunpack.c.l.b16 %v4102
  %v4265 = vunpack.c.h.b16 %v4102
  %v4266 = vunpack.c.l.b16 %v4103
  %v4267 = vunpack.c.h.b16 %v4103
  %v4268 = vunpack.c.l.b16 %v4104
  %v4269 = vunpack.c.h.b16 %v4104
  %v4270 = vunpack.c.l.b16 %v4105
  %v4271 = vunpack.c.h.b16 %v4105
  %v4272 = vunpack.c.l.b16 %v4106
  %v4273 = vunpack.c.h.b16 %v4106
  %v4274 = vunpack.c.l.b16 %v4107
  %v4275 = vunpack.c.h.b16 %v4107
  %v4276 = vunpack.c.l.b16 %v4108
  %v4277 = vunpack.c.h.b16 %v4108
  %v4278 = vunpack.c.l.b16 %v4109
  %v4279 = vunpack.c.h.b16 %v4109
  %v4280 = vunpack.c.l.b16 %v4110
  %v4281 = vunpack.c.h.b16 %v4110
  %v4282 = vunpack.c.l.b16 %v4111
  %v4283 = vunpack.c.h.b16 %v4111
  %v4284 = vunpack.c.l.b16 %v4112
  %v4285 = vunpack.c.h.b16 %v4112
  %v4286 = vunpack.c.l.b16 %v4113
  %v4287 = vunpack.c.h.b16 %v4113
  %v4288 = vunpack.c.l.b16 %v4114
  %v4289 = vunpack.c.h.b16 %v4114
  %v4290 = vunpack.c.l.b16 %v4115
  %v4291 = vunpack.c.h.b16 %v4115
  %v4292 = vunpack.c.l.b16 %v4116
  %v4293 = vunpack.c.h.b16 %v4116
  %v4294 = vunpack.c.l.b16 %v4117
  %v4295 = vunpack.c.h.b16 %v4117
  %v4296 = vunpack.c.l.b16 %v4118
  %v4297 = vunpack.c.h.b16 %v4118
  %v4298 = vunpack.c.l.b16 %v4119
  %v4299 = vunpack.c.h.b16 %v4119
  %v4300 = vunpack.c.l.b16 %v4120
  %v4301 = vunpack.c.h.b16 %v4120
  %v4302 = vunpack.c.l.b16 %v4121
  %v4303 = vunpack.c.h.b16 %v4121
  %v4304 = vunpack.c.l.b16 %v4122
  %v4305 = vunpack.c.h.b16 %v4122
  %v4306 = vunpack.c.l.b16 %v4123
  %v4307 = vunpack.c.h.b16 %v4123
  %v4308 = vunpack.c.l.b16 %v4124
  %v4309 = vunpack.c.h.b16 %v4124
  %v4310 = vunpack.c.l.b16 %v4125
  %v4311 = vunpack.c.h.b16 %v4125
  %v4312 = vunpack.c.l.b16 %v4126
  %v4313 = vunpack.c.h.b16 %v4126
  %v4314 = vunpack.c.l.b16 %v4127
  %v4315 = vunpack.c.h.b16 %v4127
  %v4316 = vunpack.c.l.b16 %v4128
  %v4317 = vunpack.c.h.b16 %v4128
  %v4318 = vunpack.c.l.b16 %v4129
  %v4319 = vunpack.c.h.b16 %v4129
  %v4320 = vunpack.c.l.b16 %v4130
  %v4321 = vunpack.c.h.b16 %v4130
  %v4322 = vunpack.c.l.b16 %v4131
  %v4323 = vunpack.c.h.b16 %v4131
  %v4324 = vunpack.c.l.b16 %v4132
  %v4325 = vunpack.c.h.b16 %v4132
  %v4326 = vunpack.c.l.b16 %v4133
  %v4327 = vunpack.c.h.b16 %v4133
  %v4328 = vunpack.c.l.b16 %v4134
  %v4329 = vunpack.c.h.b16 %v4134
  %v4330 = vunpack.c.l.b16 %v4135
  %v4331 = vunpack.c.h.b16 %v4135
  %v4332 = vunpack.c.l.b16 %v4136
  %v4333 = vunpack.c.h.b16 %v4136
  %v4334 = vpack.c.b16 %v4214, %v4206
  %v4335 = vpack.c.b16 %v4215, %v4207
  %v4336 = vpack.c.b16 %v4216, %v4208
  %v4337 = vpack.c.b16 %v4217, %v4209
  %v4338 = vpack.c.b16 %v4218, %v4210
  %v4339 = vpack.c.b16 %v4219, %v4211
  %v4340 = vpack.c.b16 %v4220, %v4212
  %v4341 = vpack.c.b16 %v4221, %v4213
  %v4342 = vpack.c.b16 %v4230, %v4222
  %v4343 = vpack.c.b16 %v4231, %v4223
  %v4344 = vpack.c.b16 %v4232, %v4224
  %v4345 = vpack.c.b16 %v4233, %v4225
  %v4346 = vpack.c.b16 %v4234, %v4226
  %v4347 = vpack.c.b16 %v4235, %v4227
  %v4348 = vpack.c.b16 %v4236, %v4228
  %v4349 = vpack.c.b16 %v4237, %v4229
  %v4350 = vpack.c.b16 %v4246, %v4238
  %v4351 = vpack.c.b16 %v4247, %v4239
  %v4352 = vpack.c.b16 %v4248, %v4240
  %v4353 = vpack.c.b16 %v4249, %v4241
  %v4354 = vpack.c.b16 %v4250, %v4242
  %v4355 = vpack.c.b16 %v4251, %v4243
  %v4356 = vpack.c.b16 %v4252, %v4244
  %v4357 = vpack.c.b16 %v4253, %v4245
  %v4358 = vpack.c.b16 %v4262, %v4254
  %v4359 = vpack.c.b16 %v4263, %v4255
  %v4360 = vpack.c.b16 %v4264, %v4256
  %v4361 = vpack.c.b16 %v4265, %v4257
  %v4362 = vpack.c.b16 %v4266, %v4258
  %v4363 = vpack.c.b16 %v4267, %v4259
  %v4364 = vpack.c.b16 %v4268, %v4260
  %v4365 = vpack.c.b16 %v4269, %v4261
  %v4366 = vpack.c.b16 %v4278, %v4270
  %v4367 = vpack.c.b16 %v4279, %v4271
  %v4368 = vpack.c.b16 %v4280, %v4272
  %v4369 = vpack.c.b16 %v4281, %v4273
  %v4370 = vpack.c.b16 %v4282, %v4274
  %v4371 = vpack.c.b16 %v4283, %v4275
  %v4372 = vpack.c.b16 %v4284, %v4276
  %v4373 = vpack.c.b16 %v4285, %v4277
  %v4374 = vpack.c.b16 %v4294, %v4286
  %v4375 = vpack.c.b16 %v4295, %v4287
  %v4376 = vpack.c.b16 %v4296, %v4288
  %v4377 = vpack.c.b16 %v4297, %v4289
  %v4378 = vpack.c.b16 %v4298, %v4290
  %v4379 = vpack.c.b16 %v4299, %v4291
  %v4380 = vpack.c.b16 %v4300, %v4292
  %v4381 = vpack.c.b16 %v4301, %v4293
  %v4382 = vpack.c.b16 %v4310, %v4302
  %v4383 = vpack.c.b16 %v4311, %v4303
  %v4384 = vpack.c.b16 %v4312, %v4304
  %v4385 = vpack.c.b16 %v4313, %v4305
  %v4386 = vpack.c.b16 %v4314, %v4306
  %v4387 = vpack.c.b16 %v4315, %v4307
  %v4388 = vpack.c.b16 %v4316, %v4308
  %v4389 = vpack.c.b16 %v4317, %v4309
  %v4390 = vpack.c.b16 %v4326, %v4318
  %v4391 = vpack.c.b16 %v4327, %v4319
  %v4392 = vpack.c.b16 %v4328, %v4320
  %v4393 = vpack.c.b16 %v4329, %v4321
  %v4394 = vpack.c.b16 %v4330, %v4322
  %v4395 = vpack.c.b16 %v4331, %v4323
  %v4396 = vpack.c.b16 %v4332, %v4324
  %v4397 = vpack.c.b16 %v4333, %v4325
  %4462 = vmatprep.subr.bf16.mxu0 %v4335
  %4463 = vmatpush1.bf16.msra.mxu0 %v4334
  %4464 = vmatprep.subr.bf16.mxu0 %v4343
  %4465 = vmatpush1.bf16.msra.mxu0 %v4342
  %4466 = vmatprep.subr.bf16.mxu0 %v4351
  %4467 = vmatpush1.bf16.msra.mxu0 %v4350
  %4468 = vmatprep.subr.bf16.mxu0 %v4359
  %4469 = vmatpush1.bf16.msra.mxu0 %v4358
  %4470 = vmatprep.subr.bf16.mxu0 %v4367
  %4471 = vmatpush1.bf16.msra.mxu0 %v4366
  %4472 = vmatprep.subr.bf16.mxu0 %v4375
  %4473 = vmatpush1.bf16.msra.mxu0 %v4374
  %4474 = vmatprep.subr.bf16.mxu0 %v4383
  %4475 = vmatpush1.bf16.msra.mxu0 %v4382
  %4476 = vmatprep.subr.bf16.mxu0 %v4391
  %4477 = vmatpush1.bf16.msra.mxu0 %v4390
  %4478 = vmatprep.subr.bf16.mxu0 0
  %4479 = vmatpush1.bf16.msra.mxu0 0
  %4480 = vmatprep.subr.bf16.mxu0 0
  %4481 = vmatpush1.bf16.msra.mxu0 0
  %4482 = vmatprep.subr.bf16.mxu0 0
  %4483 = vmatpush1.bf16.msra.mxu0 0
  %4484 = vmatprep.subr.bf16.mxu0 0
  %4485 = vmatpush1.bf16.msra.mxu0 0
  %4486 = vmatprep.subr.bf16.mxu0 0
  %4487 = vmatpush1.bf16.msra.mxu0 0
  %4488 = vmatprep.subr.bf16.mxu0 0
  %4489 = vmatpush1.bf16.msra.mxu0 0
  %4490 = vmatprep.subr.bf16.mxu0 0
  %4491 = vmatpush1.bf16.msra.mxu0 0
  %4492 = vmatprep.subr.bf16.mxu0 0
  %4493 = vmatpush1.bf16.msra.mxu0 0
  %4494 = vmatprep.mubr.bf16.mxu0 0
  %4495 = vmatmul.mubr.bf16.gmra.mrb[0].mxu0 %v4140
  %v4496 = vpop.f32.mrb[0].mxu0
  %v4497 = vadd.f32 0.0, %v4496
  %v4498 = vpop.f32.mrb[0].mxu0
  %v4499 = vadd.f32 0.0, %v4498
  %v4500 = vpop.f32.mrb[0].mxu0
  %v4501 = vpop.f32.mrb[0].mxu0
  %4502 = vdwg.mxu0
  %4503 = vmatprep.subr.bf16.mxu0 %v4337
  %4504 = vmatpush1.bf16.msra.mxu0 %v4336
  %4505 = vmatprep.subr.bf16.mxu0 %v4345
  %4506 = vmatpush1.bf16.msra.mxu0 %v4344
  %4507 = vmatprep.subr.bf16.mxu0 %v4353
  %4508 = vmatpush1.bf16.msra.mxu0 %v4352
  %4509 = vmatprep.subr.bf16.mxu0 %v4361
  %4510 = vmatpush1.bf16.msra.mxu0 %v4360
  %4511 = vmatprep.subr.bf16.mxu0 %v4369
  %4512 = vmatpush1.bf16.msra.mxu0 %v4368
  %4513 = vmatprep.subr.bf16.mxu0 %v4377
  %4514 = vmatpush1.bf16.msra.mxu0 %v4376
  %4515 = vmatprep.subr.bf16.mxu0 %v4385
  %4516 = vmatpush1.bf16.msra.mxu0 %v4384
  %4517 = vmatprep.subr.bf16.mxu0 %v4393
  %4518 = vmatpush1.bf16.msra.mxu0 %v4392
  %4519 = vmatprep.subr.bf16.mxu0 0
  %4520 = vmatpush1.bf16.msra.mxu0 0
  %4521 = vmatprep.subr.bf16.mxu0 0
  %4522 = vmatpush1.bf16.msra.mxu0 0
  %4523 = vmatprep.subr.bf16.mxu0 0
  %4524 = vmatpush1.bf16.msra.mxu0 0
  %4525 = vmatprep.subr.bf16.mxu0 0
  %4526 = vmatpush1.bf16.msra.mxu0 0
  %4527 = vmatprep.subr.bf16.mxu0 0
  %4528 = vmatpush1.bf16.msra.mxu0 0
  %4529 = vmatprep.subr.bf16.mxu0 0
  %4530 = vmatpush1.bf16.msra.mxu0 0
  %4531 = vmatprep.subr.bf16.mxu0 0
  %4532 = vmatpush1.bf16.msra.mxu0 0
  %4533 = vmatprep.subr.bf16.mxu0 0
  %4534 = vmatpush1.bf16.msra.mxu0 0
  %4535 = vmatprep.mubr.bf16.mxu0 0
  %4536 = vmatmul.mubr.bf16.gmra.mrb[0].mxu0 %v4140
  %v4537 = vpop.f32.mrb[0].mxu0
  %v4538 = vadd.f32 0.0, %v4537
  %v4539 = vpop.f32.mrb[0].mxu0
  %v4540 = vadd.f32 0.0, %v4539
  %v4541 = vpop.f32.mrb[0].mxu0
  %v4542 = vpop.f32.mrb[0].mxu0
  %4543 = vdwg.mxu0
  %4544 = vmatprep.subr.bf16.mxu0 %v4339
  %4545 = vmatpush1.bf16.msra.mxu0 %v4338
  %4546 = vmatprep.subr.bf16.mxu0 %v4347
  %4547 = vmatpush1.bf16.msra.mxu0 %v4346
  %4548 = vmatprep.subr.bf16.mxu0 %v4355
  %4549 = vmatpush1.bf16.msra.mxu0 %v4354
  %4550 = vmatprep.subr.bf16.mxu0 %v4363
  %4551 = vmatpush1.bf16.msra.mxu0 %v4362
  %4552 = vmatprep.subr.bf16.mxu0 %v4371
  %4553 = vmatpush1.bf16.msra.mxu0 %v4370
  %4554 = vmatprep.subr.bf16.mxu0 %v4379
  %4555 = vmatpush1.bf16.msra.mxu0 %v4378
  %4556 = vmatprep.subr.bf16.mxu0 %v4387
  %4557 = vmatpush1.bf16.msra.mxu0 %v4386
  %4558 = vmatprep.subr.bf16.mxu0 %v4395
  %4559 = vmatpush1.bf16.msra.mxu0 %v4394
  %4560 = vmatprep.subr.bf16.mxu0 0
  %4561 = vmatpush1.bf16.msra.mxu0 0
  %4562 = vmatprep.subr.bf16.mxu0 0
  %4563 = vmatpush1.bf16.msra.mxu0 0
  %4564 = vmatprep.subr.bf16.mxu0 0
  %4565 = vmatpush1.bf16.msra.mxu0 0
  %4566 = vmatprep.subr.bf16.mxu0 0
  %4567 = vmatpush1.bf16.msra.mxu0 0
  %4568 = vmatprep.subr.bf16.mxu0 0
  %4569 = vmatpush1.bf16.msra.mxu0 0
  %4570 = vmatprep.subr.bf16.mxu0 0
  %4571 = vmatpush1.bf16.msra.mxu0 0
  %4572 = vmatprep.subr.bf16.mxu0 0
  %4573 = vmatpush1.bf16.msra.mxu0 0
  %4574 = vmatprep.subr.bf16.mxu0 0
  %4575 = vmatpush1.bf16.msra.mxu0 0
  %4576 = vmatprep.mubr.bf16.mxu0 0
  %4577 = vmatmul.mubr.bf16.gmra.mrb[0].mxu0 %v4140
  %v4578 = vpop.f32.mrb[0].mxu0
  %v4579 = vadd.f32 0.0, %v4578
  %v4580 = vpop.f32.mrb[0].mxu0
  %v4581 = vadd.f32 0.0, %v4580
  %v4582 = vpop.f32.mrb[0].mxu0
  %v4583 = vpop.f32.mrb[0].mxu0
  %4584 = vdwg.mxu0
  %4585 = vmatprep.subr.bf16.mxu0 %v4341
  %4586 = vmatpush1.bf16.msra.mxu0 %v4340
  %4587 = vmatprep.subr.bf16.mxu0 %v4349
  %4588 = vmatpush1.bf16.msra.mxu0 %v4348
  %4589 = vmatprep.subr.bf16.mxu0 %v4357
  %4590 = vmatpush1.bf16.msra.mxu0 %v4356
  %4591 = vmatprep.subr.bf16.mxu0 %v4365
  %4592 = vmatpush1.bf16.msra.mxu0 %v4364
  %4593 = vmatprep.subr.bf16.mxu0 %v4373
  %4594 = vmatpush1.bf16.msra.mxu0 %v4372
  %4595 = vmatprep.subr.bf16.mxu0 %v4381
  %4596 = vmatpush1.bf16.msra.mxu0 %v4380
  %4597 = vmatprep.subr.bf16.mxu0 %v4389
  %4598 = vmatpush1.bf16.msra.mxu0 %v4388
  %4599 = vmatprep.subr.bf16.mxu0 %v4397
  %4600 = vmatpush1.bf16.msra.mxu0 %v4396
  %4601 = vmatprep.subr.bf16.mxu0 0
  %4602 = vmatpush1.bf16.msra.mxu0 0
  %4603 = vmatprep.subr.bf16.mxu0 0
  %4604 = vmatpush1.bf16.msra.mxu0 0
  %4605 = vmatprep.subr.bf16.mxu0 0
  %4606 = vmatpush1.bf16.msra.mxu0 0
  %4607 = vmatprep.subr.bf16.mxu0 0
  %4608 = vmatpush1.bf16.msra.mxu0 0
  %4609 = vmatprep.subr.bf16.mxu0 0
  %4610 = vmatpush1.bf16.msra.mxu0 0
  %4611 = vmatprep.subr.bf16.mxu0 0
  %4612 = vmatpush1.bf16.msra.mxu0 0
  %4613 = vmatprep.subr.bf16.mxu0 0
  %4614 = vmatpush1.bf16.msra.mxu0 0
  %4615 = vmatprep.subr.bf16.mxu0 0
  %4616 = vmatpush1.bf16.msra.mxu0 0
  %4617 = vmatprep.mubr.bf16.mxu0 0
  %4618 = vmatmul.mubr.bf16.gmra.mrb[0].mxu0 %v4140
  %v4619 = vpop.f32.mrb[0].mxu0
  %v4620 = vadd.f32 0.0, %v4619
  %v4621 = vpop.f32.mrb[0].mxu0
  %v4622 = vadd.f32 0.0, %v4621
  %v4623 = vpop.f32.mrb[0].mxu0
  %v4624 = vpop.f32.mrb[0].mxu0
  %4625 = vdwg.mxu0
  %v4626 = vadd.f32 %v4064, %v4497
  %v4627 = vadd.f32 %v4065, %v4499
  %v4628 = vadd.f32 %v4066, %v4538
  %v4629 = vadd.f32 %v4067, %v4540
  %v4630 = vadd.f32 %v4068, %v4579
  %v4631 = vadd.f32 %v4069, %v4581
  %v4632 = vadd.f32 %v4070, %v4620
  %v4633 = vadd.f32 %v4071, %v4622
  %s4634 = scalar_lea.vmem %s8, 2560
  %v4635 = vld [vmem:[%s4634] sm:$0xff]
  %v4636 = vld [vmem:[%s4634 + $0x8] sm:$0xff]
  %v4637 = vld [vmem:[%s4634 + $0x10] sm:$0xff]
  %v4638 = vld [vmem:[%s4634 + $0x18] sm:$0xff]
  %v4639 = vld [vmem:[%s4634 + $0x20] sm:$0xff]
  %v4640 = vld [vmem:[%s4634 + $0x28] sm:$0xff]
  %v4641 = vld [vmem:[%s4634 + $0x30] sm:$0xff]
  %v4642 = vld [vmem:[%s4634 + $0x38] sm:$0xff]
  %v4643 = vld [vmem:[%s4634 + $0x40] sm:$0xff]
  %v4644 = vld [vmem:[%s4634 + $0x48] sm:$0xff]
  %v4645 = vld [vmem:[%s4634 + $0x50] sm:$0xff]
  %v4646 = vld [vmem:[%s4634 + $0x58] sm:$0xff]
  %v4647 = vld [vmem:[%s4634 + $0x60] sm:$0xff]
  %v4648 = vld [vmem:[%s4634 + $0x68] sm:$0xff]
  %v4649 = vld [vmem:[%s4634 + $0x70] sm:$0xff]
  %v4650 = vld [vmem:[%s4634 + $0x78] sm:$0xff]
  %v4651 = vld [vmem:[%s4634 + $0x80] sm:$0xff]
  %v4652 = vld [vmem:[%s4634 + $0x88] sm:$0xff]
  %v4653 = vld [vmem:[%s4634 + $0x90] sm:$0xff]
  %v4654 = vld [vmem:[%s4634 + $0x98] sm:$0xff]
  %v4655 = vld [vmem:[%s4634 + $0xa0] sm:$0xff]
  %v4656 = vld [vmem:[%s4634 + $0xa8] sm:$0xff]
  %v4657 = vld [vmem:[%s4634 + $0xb0] sm:$0xff]
  %v4658 = vld [vmem:[%s4634 + $0xb8] sm:$0xff]
  %v4659 = vld [vmem:[%s4634 + $0xc0] sm:$0xff]
  %v4660 = vld [vmem:[%s4634 + $0xc8] sm:$0xff]
  %v4661 = vld [vmem:[%s4634 + $0xd0] sm:$0xff]
  %v4662 = vld [vmem:[%s4634 + $0xd8] sm:$0xff]
  %v4663 = vld [vmem:[%s4634 + $0xe0] sm:$0xff]
  %v4664 = vld [vmem:[%s4634 + $0xe8] sm:$0xff]
  %v4665 = vld [vmem:[%s4634 + $0xf0] sm:$0xff]
  %v4666 = vld [vmem:[%s4634 + $0xf8] sm:$0xff]
  %v4667 = vld [vmem:[%s4634 + $0x100] sm:$0xff]
  %v4668 = vld [vmem:[%s4634 + $0x108] sm:$0xff]
  %v4669 = vld [vmem:[%s4634 + $0x110] sm:$0xff]
  %v4670 = vld [vmem:[%s4634 + $0x118] sm:$0xff]
  %v4671 = vld [vmem:[%s4634 + $0x120] sm:$0xff]
  %v4672 = vld [vmem:[%s4634 + $0x128] sm:$0xff]
  %v4673 = vld [vmem:[%s4634 + $0x130] sm:$0xff]
  %v4674 = vld [vmem:[%s4634 + $0x138] sm:$0xff]
  %v4675 = vld [vmem:[%s4634 + $0x140] sm:$0xff]
  %v4676 = vld [vmem:[%s4634 + $0x148] sm:$0xff]
  %v4677 = vld [vmem:[%s4634 + $0x150] sm:$0xff]
  %v4678 = vld [vmem:[%s4634 + $0x158] sm:$0xff]
  %v4679 = vld [vmem:[%s4634 + $0x160] sm:$0xff]
  %v4680 = vld [vmem:[%s4634 + $0x168] sm:$0xff]
  %v4681 = vld [vmem:[%s4634 + $0x170] sm:$0xff]
  %v4682 = vld [vmem:[%s4634 + $0x178] sm:$0xff]
  %v4683 = vld [vmem:[%s4634 + $0x180] sm:$0xff]
  %v4684 = vld [vmem:[%s4634 + $0x188] sm:$0xff]
  %v4685 = vld [vmem:[%s4634 + $0x190] sm:$0xff]
  %v4686 = vld [vmem:[%s4634 + $0x198] sm:$0xff]
  %v4687 = vld [vmem:[%s4634 + $0x1a0] sm:$0xff]
  %v4688 = vld [vmem:[%s4634 + $0x1a8] sm:$0xff]
  %v4689 = vld [vmem:[%s4634 + $0x1b0] sm:$0xff]
  %v4690 = vld [vmem:[%s4634 + $0x1b8] sm:$0xff]
  %v4691 = vld [vmem:[%s4634 + $0x1c0] sm:$0xff]
  %v4692 = vld [vmem:[%s4634 + $0x1c8] sm:$0xff]
  %v4693 = vld [vmem:[%s4634 + $0x1d0] sm:$0xff]
  %v4694 = vld [vmem:[%s4634 + $0x1d8] sm:$0xff]
  %v4695 = vld [vmem:[%s4634 + $0x1e0] sm:$0xff]
  %v4696 = vld [vmem:[%s4634 + $0x1e8] sm:$0xff]
  %v4697 = vld [vmem:[%s4634 + $0x1f0] sm:$0xff]
  %v4698 = vld [vmem:[%s4634 + $0x1f8] sm:$0xff]
  %v4699 = vrot.slane %v1847, 5
  %v4700 = vrot.slane %v1848, 4
  %v4701 = vsel %vm1850, %v4700, %v4699
  %v4702 = vpack.c.b16 %v4701, %v4701
  %v4768 = vunpack.c.l.b16 %v4635
  %v4769 = vunpack.c.h.b16 %v4635
  %v4770 = vunpack.c.l.b16 %v4636
  %v4771 = vunpack.c.h.b16 %v4636
  %v4772 = vunpack.c.l.b16 %v4637
  %v4773 = vunpack.c.h.b16 %v4637
  %v4774 = vunpack.c.l.b16 %v4638
  %v4775 = vunpack.c.h.b16 %v4638
  %v4776 = vunpack.c.l.b16 %v4639
  %v4777 = vunpack.c.h.b16 %v4639
  %v4778 = vunpack.c.l.b16 %v4640
  %v4779 = vunpack.c.h.b16 %v4640
  %v4780 = vunpack.c.l.b16 %v4641
  %v4781 = vunpack.c.h.b16 %v4641
  %v4782 = vunpack.c.l.b16 %v4642
  %v4783 = vunpack.c.h.b16 %v4642
  %v4784 = vunpack.c.l.b16 %v4643
  %v4785 = vunpack.c.h.b16 %v4643
  %v4786 = vunpack.c.l.b16 %v4644
  %v4787 = vunpack.c.h.b16 %v4644
  %v4788 = vunpack.c.l.b16 %v4645
  %v4789 = vunpack.c.h.b16 %v4645
  %v4790 = vunpack.c.l.b16 %v4646
  %v4791 = vunpack.c.h.b16 %v4646
  %v4792 = vunpack.c.l.b16 %v4647
  %v4793 = vunpack.c.h.b16 %v4647
  %v4794 = vunpack.c.l.b16 %v4648
  %v4795 = vunpack.c.h.b16 %v4648
  %v4796 = vunpack.c.l.b16 %v4649
  %v4797 = vunpack.c.h.b16 %v4649
  %v4798 = vunpack.c.l.b16 %v4650
  %v4799 = vunpack.c.h.b16 %v4650
  %v4800 = vunpack.c.l.b16 %v4651
  %v4801 = vunpack.c.h.b16 %v4651
  %v4802 = vunpack.c.l.b16 %v4652
  %v4803 = vunpack.c.h.b16 %v4652
  %v4804 = vunpack.c.l.b16 %v4653
  %v4805 = vunpack.c.h.b16 %v4653
  %v4806 = vunpack.c.l.b16 %v4654
  %v4807 = vunpack.c.h.b16 %v4654
  %v4808 = vunpack.c.l.b16 %v4655
  %v4809 = vunpack.c.h.b16 %v4655
  %v4810 = vunpack.c.l.b16 %v4656
  %v4811 = vunpack.c.h.b16 %v4656
  %v4812 = vunpack.c.l.b16 %v4657
  %v4813 = vunpack.c.h.b16 %v4657
  %v4814 = vunpack.c.l.b16 %v4658
  %v4815 = vunpack.c.h.b16 %v4658
  %v4816 = vunpack.c.l.b16 %v4659
  %v4817 = vunpack.c.h.b16 %v4659
  %v4818 = vunpack.c.l.b16 %v4660
  %v4819 = vunpack.c.h.b16 %v4660
  %v4820 = vunpack.c.l.b16 %v4661
  %v4821 = vunpack.c.h.b16 %v4661
  %v4822 = vunpack.c.l.b16 %v4662
  %v4823 = vunpack.c.h.b16 %v4662
  %v4824 = vunpack.c.l.b16 %v4663
  %v4825 = vunpack.c.h.b16 %v4663
  %v4826 = vunpack.c.l.b16 %v4664
  %v4827 = vunpack.c.h.b16 %v4664
  %v4828 = vunpack.c.l.b16 %v4665
  %v4829 = vunpack.c.h.b16 %v4665
  %v4830 = vunpack.c.l.b16 %v4666
  %v4831 = vunpack.c.h.b16 %v4666
  %v4832 = vunpack.c.l.b16 %v4667
  %v4833 = vunpack.c.h.b16 %v4667
  %v4834 = vunpack.c.l.b16 %v4668
  %v4835 = vunpack.c.h.b16 %v4668
  %v4836 = vunpack.c.l.b16 %v4669
  %v4837 = vunpack.c.h.b16 %v4669
  %v4838 = vunpack.c.l.b16 %v4670
  %v4839 = vunpack.c.h.b16 %v4670
  %v4840 = vunpack.c.l.b16 %v4671
  %v4841 = vunpack.c.h.b16 %v4671
  %v4842 = vunpack.c.l.b16 %v4672
  %v4843 = vunpack.c.h.b16 %v4672
  %v4844 = vunpack.c.l.b16 %v4673
  %v4845 = vunpack.c.h.b16 %v4673
  %v4846 = vunpack.c.l.b16 %v4674
  %v4847 = vunpack.c.h.b16 %v4674
  %v4848 = vunpack.c.l.b16 %v4675
  %v4849 = vunpack.c.h.b16 %v4675
  %v4850 = vunpack.c.l.b16 %v4676
  %v4851 = vunpack.c.h.b16 %v4676
  %v4852 = vunpack.c.l.b16 %v4677
  %v4853 = vunpack.c.h.b16 %v4677
  %v4854 = vunpack.c.l.b16 %v4678
  %v4855 = vunpack.c.h.b16 %v4678
  %v4856 = vunpack.c.l.b16 %v4679
  %v4857 = vunpack.c.h.b16 %v4679
  %v4858 = vunpack.c.l.b16 %v4680
  %v4859 = vunpack.c.h.b16 %v4680
  %v4860 = vunpack.c.l.b16 %v4681
  %v4861 = vunpack.c.h.b16 %v4681
  %v4862 = vunpack.c.l.b16 %v4682
  %v4863 = vunpack.c.h.b16 %v4682
  %v4864 = vunpack.c.l.b16 %v4683
  %v4865 = vunpack.c.h.b16 %v4683
  %v4866 = vunpack.c.l.b16 %v4684
  %v4867 = vunpack.c.h.b16 %v4684
  %v4868 = vunpack.c.l.b16 %v4685
  %v4869 = vunpack.c.h.b16 %v4685
  %v4870 = vunpack.c.l.b16 %v4686
  %v4871 = vunpack.c.h.b16 %v4686
  %v4872 = vunpack.c.l.b16 %v4687
  %v4873 = vunpack.c.h.b16 %v4687
  %v4874 = vunpack.c.l.b16 %v4688
  %v4875 = vunpack.c.h.b16 %v4688
  %v4876 = vunpack.c.l.b16 %v4689
  %v4877 = vunpack.c.h.b16 %v4689
  %v4878 = vunpack.c.l.b16 %v4690
  %v4879 = vunpack.c.h.b16 %v4690
  %v4880 = vunpack.c.l.b16 %v4691
  %v4881 = vunpack.c.h.b16 %v4691
  %v4882 = vunpack.c.l.b16 %v4692
  %v4883 = vunpack.c.h.b16 %v4692
  %v4884 = vunpack.c.l.b16 %v4693
  %v4885 = vunpack.c.h.b16 %v4693
  %v4886 = vunpack.c.l.b16 %v4694
  %v4887 = vunpack.c.h.b16 %v4694
  %v4888 = vunpack.c.l.b16 %v4695
  %v4889 = vunpack.c.h.b16 %v4695
  %v4890 = vunpack.c.l.b16 %v4696
  %v4891 = vunpack.c.h.b16 %v4696
  %v4892 = vunpack.c.l.b16 %v4697
  %v4893 = vunpack.c.h.b16 %v4697
  %v4894 = vunpack.c.l.b16 %v4698
  %v4895 = vunpack.c.h.b16 %v4698
  %v4896 = vpack.c.b16 %v4776, %v4768
  %v4897 = vpack.c.b16 %v4777, %v4769
  %v4898 = vpack.c.b16 %v4778, %v4770
  %v4899 = vpack.c.b16 %v4779, %v4771
  %v4900 = vpack.c.b16 %v4780, %v4772
  %v4901 = vpack.c.b16 %v4781, %v4773
  %v4902 = vpack.c.b16 %v4782, %v4774
  %v4903 = vpack.c.b16 %v4783, %v4775
  %v4904 = vpack.c.b16 %v4792, %v4784
  %v4905 = vpack.c.b16 %v4793, %v4785
  %v4906 = vpack.c.b16 %v4794, %v4786
  %v4907 = vpack.c.b16 %v4795, %v4787
  %v4908 = vpack.c.b16 %v4796, %v4788
  %v4909 = vpack.c.b16 %v4797, %v4789
  %v4910 = vpack.c.b16 %v4798, %v4790
  %v4911 = vpack.c.b16 %v4799, %v4791
  %v4912 = vpack.c.b16 %v4808, %v4800
  %v4913 = vpack.c.b16 %v4809, %v4801
  %v4914 = vpack.c.b16 %v4810, %v4802
  %v4915 = vpack.c.b16 %v4811, %v4803
  %v4916 = vpack.c.b16 %v4812, %v4804
  %v4917 = vpack.c.b16 %v4813, %v4805
  %v4918 = vpack.c.b16 %v4814, %v4806
  %v4919 = vpack.c.b16 %v4815, %v4807
  %v4920 = vpack.c.b16 %v4824, %v4816
  %v4921 = vpack.c.b16 %v4825, %v4817
  %v4922 = vpack.c.b16 %v4826, %v4818
  %v4923 = vpack.c.b16 %v4827, %v4819
  %v4924 = vpack.c.b16 %v4828, %v4820
  %v4925 = vpack.c.b16 %v4829, %v4821
  %v4926 = vpack.c.b16 %v4830, %v4822
  %v4927 = vpack.c.b16 %v4831, %v4823
  %v4928 = vpack.c.b16 %v4840, %v4832
  %v4929 = vpack.c.b16 %v4841, %v4833
  %v4930 = vpack.c.b16 %v4842, %v4834
  %v4931 = vpack.c.b16 %v4843, %v4835
  %v4932 = vpack.c.b16 %v4844, %v4836
  %v4933 = vpack.c.b16 %v4845, %v4837
  %v4934 = vpack.c.b16 %v4846, %v4838
  %v4935 = vpack.c.b16 %v4847, %v4839
  %v4936 = vpack.c.b16 %v4856, %v4848
  %v4937 = vpack.c.b16 %v4857, %v4849
  %v4938 = vpack.c.b16 %v4858, %v4850
  %v4939 = vpack.c.b16 %v4859, %v4851
  %v4940 = vpack.c.b16 %v4860, %v4852
  %v4941 = vpack.c.b16 %v4861, %v4853
  %v4942 = vpack.c.b16 %v4862, %v4854
  %v4943 = vpack.c.b16 %v4863, %v4855
  %v4944 = vpack.c.b16 %v4872, %v4864
  %v4945 = vpack.c.b16 %v4873, %v4865
  %v4946 = vpack.c.b16 %v4874, %v4866
  %v4947 = vpack.c.b16 %v4875, %v4867
  %v4948 = vpack.c.b16 %v4876, %v4868
  %v4949 = vpack.c.b16 %v4877, %v4869
  %v4950 = vpack.c.b16 %v4878, %v4870
  %v4951 = vpack.c.b16 %v4879, %v4871
  %v4952 = vpack.c.b16 %v4888, %v4880
  %v4953 = vpack.c.b16 %v4889, %v4881
  %v4954 = vpack.c.b16 %v4890, %v4882
  %v4955 = vpack.c.b16 %v4891, %v4883
  %v4956 = vpack.c.b16 %v4892, %v4884
  %v4957 = vpack.c.b16 %v4893, %v4885
  %v4958 = vpack.c.b16 %v4894, %v4886
  %v4959 = vpack.c.b16 %v4895, %v4887
  %5024 = vmatprep.subr.bf16.mxu0 %v4897
  %5025 = vmatpush1.bf16.msra.mxu0 %v4896
  %5026 = vmatprep.subr.bf16.mxu0 %v4905
  %5027 = vmatpush1.bf16.msra.mxu0 %v4904
  %5028 = vmatprep.subr.bf16.mxu0 %v4913
  %5029 = vmatpush1.bf16.msra.mxu0 %v4912
  %5030 = vmatprep.subr.bf16.mxu0 %v4921
  %5031 = vmatpush1.bf16.msra.mxu0 %v4920
  %5032 = vmatprep.subr.bf16.mxu0 %v4929
  %5033 = vmatpush1.bf16.msra.mxu0 %v4928
  %5034 = vmatprep.subr.bf16.mxu0 %v4937
  %5035 = vmatpush1.bf16.msra.mxu0 %v4936
  %5036 = vmatprep.subr.bf16.mxu0 %v4945
  %5037 = vmatpush1.bf16.msra.mxu0 %v4944
  %5038 = vmatprep.subr.bf16.mxu0 %v4953
  %5039 = vmatpush1.bf16.msra.mxu0 %v4952
  %5040 = vmatprep.subr.bf16.mxu0 0
  %5041 = vmatpush1.bf16.msra.mxu0 0
  %5042 = vmatprep.subr.bf16.mxu0 0
  %5043 = vmatpush1.bf16.msra.mxu0 0
  %5044 = vmatprep.subr.bf16.mxu0 0
  %5045 = vmatpush1.bf16.msra.mxu0 0
  %5046 = vmatprep.subr.bf16.mxu0 0
  %5047 = vmatpush1.bf16.msra.mxu0 0
  %5048 = vmatprep.subr.bf16.mxu0 0
  %5049 = vmatpush1.bf16.msra.mxu0 0
  %5050 = vmatprep.subr.bf16.mxu0 0
  %5051 = vmatpush1.bf16.msra.mxu0 0
  %5052 = vmatprep.subr.bf16.mxu0 0
  %5053 = vmatpush1.bf16.msra.mxu0 0
  %5054 = vmatprep.subr.bf16.mxu0 0
  %5055 = vmatpush1.bf16.msra.mxu0 0
  %5056 = vmatprep.mubr.bf16.mxu0 0
  %5057 = vmatmul.mubr.bf16.gmra.mrb[0].mxu0 %v4702
  %v5058 = vpop.f32.mrb[0].mxu0
  %v5059 = vadd.f32 0.0, %v5058
  %v5060 = vpop.f32.mrb[0].mxu0
  %v5061 = vadd.f32 0.0, %v5060
  %v5062 = vpop.f32.mrb[0].mxu0
  %v5063 = vpop.f32.mrb[0].mxu0
  %5064 = vdwg.mxu0
  %5065 = vmatprep.subr.bf16.mxu0 %v4899
  %5066 = vmatpush1.bf16.msra.mxu0 %v4898
  %5067 = vmatprep.subr.bf16.mxu0 %v4907
  %5068 = vmatpush1.bf16.msra.mxu0 %v4906
  %5069 = vmatprep.subr.bf16.mxu0 %v4915
  %5070 = vmatpush1.bf16.msra.mxu0 %v4914
  %5071 = vmatprep.subr.bf16.mxu0 %v4923
  %5072 = vmatpush1.bf16.msra.mxu0 %v4922
  %5073 = vmatprep.subr.bf16.mxu0 %v4931
  %5074 = vmatpush1.bf16.msra.mxu0 %v4930
  %5075 = vmatprep.subr.bf16.mxu0 %v4939
  %5076 = vmatpush1.bf16.msra.mxu0 %v4938
  %5077 = vmatprep.subr.bf16.mxu0 %v4947
  %5078 = vmatpush1.bf16.msra.mxu0 %v4946
  %5079 = vmatprep.subr.bf16.mxu0 %v4955
  %5080 = vmatpush1.bf16.msra.mxu0 %v4954
  %5081 = vmatprep.subr.bf16.mxu0 0
  %5082 = vmatpush1.bf16.msra.mxu0 0
  %5083 = vmatprep.subr.bf16.mxu0 0
  %5084 = vmatpush1.bf16.msra.mxu0 0
  %5085 = vmatprep.subr.bf16.mxu0 0
  %5086 = vmatpush1.bf16.msra.mxu0 0
  %5087 = vmatprep.subr.bf16.mxu0 0
  %5088 = vmatpush1.bf16.msra.mxu0 0
  %5089 = vmatprep.subr.bf16.mxu0 0
  %5090 = vmatpush1.bf16.msra.mxu0 0
  %5091 = vmatprep.subr.bf16.mxu0 0
  %5092 = vmatpush1.bf16.msra.mxu0 0
  %5093 = vmatprep.subr.bf16.mxu0 0
  %5094 = vmatpush1.bf16.msra.mxu0 0
  %5095 = vmatprep.subr.bf16.mxu0 0
  %5096 = vmatpush1.bf16.msra.mxu0 0
  %5097 = vmatprep.mubr.bf16.mxu0 0
  %5098 = vmatmul.mubr.bf16.gmra.mrb[0].mxu0 %v4702
  %v5099 = vpop.f32.mrb[0].mxu0
  %v5100 = vadd.f32 0.0, %v5099
  %v5101 = vpop.f32.mrb[0].mxu0
  %v5102 = vadd.f32 0.0, %v5101
  %v5103 = vpop.f32.mrb[0].mxu0
  %v5104 = vpop.f32.mrb[0].mxu0
  %5105 = vdwg.mxu0
  %5106 = vmatprep.subr.bf16.mxu0 %v4901
  %5107 = vmatpush1.bf16.msra.mxu0 %v4900
  %5108 = vmatprep.subr.bf16.mxu0 %v4909
  %5109 = vmatpush1.bf16.msra.mxu0 %v4908
  %5110 = vmatprep.subr.bf16.mxu0 %v4917
  %5111 = vmatpush1.bf16.msra.mxu0 %v4916
  %5112 = vmatprep.subr.bf16.mxu0 %v4925
  %5113 = vmatpush1.bf16.msra.mxu0 %v4924
  %5114 = vmatprep.subr.bf16.mxu0 %v4933
  %5115 = vmatpush1.bf16.msra.mxu0 %v4932
  %5116 = vmatprep.subr.bf16.mxu0 %v4941
  %5117 = vmatpush1.bf16.msra.mxu0 %v4940
  %5118 = vmatprep.subr.bf16.mxu0 %v4949
  %5119 = vmatpush1.bf16.msra.mxu0 %v4948
  %5120 = vmatprep.subr.bf16.mxu0 %v4957
  %5121 = vmatpush1.bf16.msra.mxu0 %v4956
  %5122 = vmatprep.subr.bf16.mxu0 0
  %5123 = vmatpush1.bf16.msra.mxu0 0
  %5124 = vmatprep.subr.bf16.mxu0 0
  %5125 = vmatpush1.bf16.msra.mxu0 0
  %5126 = vmatprep.subr.bf16.mxu0 0
  %5127 = vmatpush1.bf16.msra.mxu0 0
  %5128 = vmatprep.subr.bf16.mxu0 0
  %5129 = vmatpush1.bf16.msra.mxu0 0
  %5130 = vmatprep.subr.bf16.mxu0 0
  %5131 = vmatpush1.bf16.msra.mxu0 0
  %5132 = vmatprep.subr.bf16.mxu0 0
  %5133 = vmatpush1.bf16.msra.mxu0 0
  %5134 = vmatprep.subr.bf16.mxu0 0
  %5135 = vmatpush1.bf16.msra.mxu0 0
  %5136 = vmatprep.subr.bf16.mxu0 0
  %5137 = vmatpush1.bf16.msra.mxu0 0
  %5138 = vmatprep.mubr.bf16.mxu0 0
  %5139 = vmatmul.mubr.bf16.gmra.mrb[0].mxu0 %v4702
  %v5140 = vpop.f32.mrb[0].mxu0
  %v5141 = vadd.f32 0.0, %v5140
  %v5142 = vpop.f32.mrb[0].mxu0
  %v5143 = vadd.f32 0.0, %v5142
  %v5144 = vpop.f32.mrb[0].mxu0
  %v5145 = vpop.f32.mrb[0].mxu0
  %5146 = vdwg.mxu0
  %5147 = vmatprep.subr.bf16.mxu0 %v4903
  %5148 = vmatpush1.bf16.msra.mxu0 %v4902
  %5149 = vmatprep.subr.bf16.mxu0 %v4911
  %5150 = vmatpush1.bf16.msra.mxu0 %v4910
  %5151 = vmatprep.subr.bf16.mxu0 %v4919
  %5152 = vmatpush1.bf16.msra.mxu0 %v4918
  %5153 = vmatprep.subr.bf16.mxu0 %v4927
  %5154 = vmatpush1.bf16.msra.mxu0 %v4926
  %5155 = vmatprep.subr.bf16.mxu0 %v4935
  %5156 = vmatpush1.bf16.msra.mxu0 %v4934
  %5157 = vmatprep.subr.bf16.mxu0 %v4943
  %5158 = vmatpush1.bf16.msra.mxu0 %v4942
  %5159 = vmatprep.subr.bf16.mxu0 %v4951
  %5160 = vmatpush1.bf16.msra.mxu0 %v4950
  %5161 = vmatprep.subr.bf16.mxu0 %v4959
  %5162 = vmatpush1.bf16.msra.mxu0 %v4958
  %5163 = vmatprep.subr.bf16.mxu0 0
  %5164 = vmatpush1.bf16.msra.mxu0 0
  %5165 = vmatprep.subr.bf16.mxu0 0
  %5166 = vmatpush1.bf16.msra.mxu0 0
  %5167 = vmatprep.subr.bf16.mxu0 0
  %5168 = vmatpush1.bf16.msra.mxu0 0
  %5169 = vmatprep.subr.bf16.mxu0 0
  %5170 = vmatpush1.bf16.msra.mxu0 0
  %5171 = vmatprep.subr.bf16.mxu0 0
  %5172 = vmatpush1.bf16.msra.mxu0 0
  %5173 = vmatprep.subr.bf16.mxu0 0
  %5174 = vmatpush1.bf16.msra.mxu0 0
  %5175 = vmatprep.subr.bf16.mxu0 0
  %5176 = vmatpush1.bf16.msra.mxu0 0
  %5177 = vmatprep.subr.bf16.mxu0 0
  %5178 = vmatpush1.bf16.msra.mxu0 0
  %5179 = vmatprep.mubr.bf16.mxu0 0
  %5180 = vmatmul.mubr.bf16.gmra.mrb[0].mxu0 %v4702
  %v5181 = vpop.f32.mrb[0].mxu0
  %v5182 = vadd.f32 0.0, %v5181
  %v5183 = vpop.f32.mrb[0].mxu0
  %v5184 = vadd.f32 0.0, %v5183
  %v5185 = vpop.f32.mrb[0].mxu0
  %v5186 = vpop.f32.mrb[0].mxu0
  %5187 = vdwg.mxu0
  %v5188 = vadd.f32 %v4626, %v5059
  %v5189 = vadd.f32 %v4627, %v5061
  %v5190 = vadd.f32 %v4628, %v5100
  %v5191 = vadd.f32 %v4629, %v5102
  %v5192 = vadd.f32 %v4630, %v5141
  %v5193 = vadd.f32 %v4631, %v5143
  %v5194 = vadd.f32 %v4632, %v5182
  %v5195 = vadd.f32 %v4633, %v5184
  %s5196 = scalar_lea.vmem %s8, 3072
  %v5197 = vld [vmem:[%s5196] sm:$0xff]
  %v5198 = vld [vmem:[%s5196 + $0x8] sm:$0xff]
  %v5199 = vld [vmem:[%s5196 + $0x10] sm:$0xff]
  %v5200 = vld [vmem:[%s5196 + $0x18] sm:$0xff]
  %v5201 = vld [vmem:[%s5196 + $0x20] sm:$0xff]
  %v5202 = vld [vmem:[%s5196 + $0x28] sm:$0xff]
  %v5203 = vld [vmem:[%s5196 + $0x30] sm:$0xff]
  %v5204 = vld [vmem:[%s5196 + $0x38] sm:$0xff]
  %v5205 = vld [vmem:[%s5196 + $0x40] sm:$0xff]
  %v5206 = vld [vmem:[%s5196 + $0x48] sm:$0xff]
  %v5207 = vld [vmem:[%s5196 + $0x50] sm:$0xff]
  %v5208 = vld [vmem:[%s5196 + $0x58] sm:$0xff]
  %v5209 = vld [vmem:[%s5196 + $0x60] sm:$0xff]
  %v5210 = vld [vmem:[%s5196 + $0x68] sm:$0xff]
  %v5211 = vld [vmem:[%s5196 + $0x70] sm:$0xff]
  %v5212 = vld [vmem:[%s5196 + $0x78] sm:$0xff]
  %v5213 = vld [vmem:[%s5196 + $0x80] sm:$0xff]
  %v5214 = vld [vmem:[%s5196 + $0x88] sm:$0xff]
  %v5215 = vld [vmem:[%s5196 + $0x90] sm:$0xff]
  %v5216 = vld [vmem:[%s5196 + $0x98] sm:$0xff]
  %v5217 = vld [vmem:[%s5196 + $0xa0] sm:$0xff]
  %v5218 = vld [vmem:[%s5196 + $0xa8] sm:$0xff]
  %v5219 = vld [vmem:[%s5196 + $0xb0] sm:$0xff]
  %v5220 = vld [vmem:[%s5196 + $0xb8] sm:$0xff]
  %v5221 = vld [vmem:[%s5196 + $0xc0] sm:$0xff]
  %v5222 = vld [vmem:[%s5196 + $0xc8] sm:$0xff]
  %v5223 = vld [vmem:[%s5196 + $0xd0] sm:$0xff]
  %v5224 = vld [vmem:[%s5196 + $0xd8] sm:$0xff]
  %v5225 = vld [vmem:[%s5196 + $0xe0] sm:$0xff]
  %v5226 = vld [vmem:[%s5196 + $0xe8] sm:$0xff]
  %v5227 = vld [vmem:[%s5196 + $0xf0] sm:$0xff]
  %v5228 = vld [vmem:[%s5196 + $0xf8] sm:$0xff]
  %v5229 = vld [vmem:[%s5196 + $0x100] sm:$0xff]
  %v5230 = vld [vmem:[%s5196 + $0x108] sm:$0xff]
  %v5231 = vld [vmem:[%s5196 + $0x110] sm:$0xff]
  %v5232 = vld [vmem:[%s5196 + $0x118] sm:$0xff]
  %v5233 = vld [vmem:[%s5196 + $0x120] sm:$0xff]
  %v5234 = vld [vmem:[%s5196 + $0x128] sm:$0xff]
  %v5235 = vld [vmem:[%s5196 + $0x130] sm:$0xff]
  %v5236 = vld [vmem:[%s5196 + $0x138] sm:$0xff]
  %v5237 = vld [vmem:[%s5196 + $0x140] sm:$0xff]
  %v5238 = vld [vmem:[%s5196 + $0x148] sm:$0xff]
  %v5239 = vld [vmem:[%s5196 + $0x150] sm:$0xff]
  %v5240 = vld [vmem:[%s5196 + $0x158] sm:$0xff]
  %v5241 = vld [vmem:[%s5196 + $0x160] sm:$0xff]
  %v5242 = vld [vmem:[%s5196 + $0x168] sm:$0xff]
  %v5243 = vld [vmem:[%s5196 + $0x170] sm:$0xff]
  %v5244 = vld [vmem:[%s5196 + $0x178] sm:$0xff]
  %v5245 = vld [vmem:[%s5196 + $0x180] sm:$0xff]
  %v5246 = vld [vmem:[%s5196 + $0x188] sm:$0xff]
  %v5247 = vld [vmem:[%s5196 + $0x190] sm:$0xff]
  %v5248 = vld [vmem:[%s5196 + $0x198] sm:$0xff]
  %v5249 = vld [vmem:[%s5196 + $0x1a0] sm:$0xff]
  %v5250 = vld [vmem:[%s5196 + $0x1a8] sm:$0xff]
  %v5251 = vld [vmem:[%s5196 + $0x1b0] sm:$0xff]
  %v5252 = vld [vmem:[%s5196 + $0x1b8] sm:$0xff]
  %v5253 = vld [vmem:[%s5196 + $0x1c0] sm:$0xff]
  %v5254 = vld [vmem:[%s5196 + $0x1c8] sm:$0xff]
  %v5255 = vld [vmem:[%s5196 + $0x1d0] sm:$0xff]
  %v5256 = vld [vmem:[%s5196 + $0x1d8] sm:$0xff]
  %v5257 = vld [vmem:[%s5196 + $0x1e0] sm:$0xff]
  %v5258 = vld [vmem:[%s5196 + $0x1e8] sm:$0xff]
  %v5259 = vld [vmem:[%s5196 + $0x1f0] sm:$0xff]
  %v5260 = vld [vmem:[%s5196 + $0x1f8] sm:$0xff]
  %v5261 = vrot.slane %v1847, 6
  %v5262 = vrot.slane %v1848, 5
  %v5263 = vsel %vm1850, %v5262, %v5261
  %v5264 = vpack.c.b16 %v5263, %v5263
  %v5330 = vunpack.c.l.b16 %v5197
  %v5331 = vunpack.c.h.b16 %v5197
  %v5332 = vunpack.c.l.b16 %v5198
  %v5333 = vunpack.c.h.b16 %v5198
  %v5334 = vunpack.c.l.b16 %v5199
  %v5335 = vunpack.c.h.b16 %v5199
  %v5336 = vunpack.c.l.b16 %v5200
  %v5337 = vunpack.c.h.b16 %v5200
  %v5338 = vunpack.c.l.b16 %v5201
  %v5339 = vunpack.c.h.b16 %v5201
  %v5340 = vunpack.c.l.b16 %v5202
  %v5341 = vunpack.c.h.b16 %v5202
  %v5342 = vunpack.c.l.b16 %v5203
  %v5343 = vunpack.c.h.b16 %v5203
  %v5344 = vunpack.c.l.b16 %v5204
  %v5345 = vunpack.c.h.b16 %v5204
  %v5346 = vunpack.c.l.b16 %v5205
  %v5347 = vunpack.c.h.b16 %v5205
  %v5348 = vunpack.c.l.b16 %v5206
  %v5349 = vunpack.c.h.b16 %v5206
  %v5350 = vunpack.c.l.b16 %v5207
  %v5351 = vunpack.c.h.b16 %v5207
  %v5352 = vunpack.c.l.b16 %v5208
  %v5353 = vunpack.c.h.b16 %v5208
  %v5354 = vunpack.c.l.b16 %v5209
  %v5355 = vunpack.c.h.b16 %v5209
  %v5356 = vunpack.c.l.b16 %v5210
  %v5357 = vunpack.c.h.b16 %v5210
  %v5358 = vunpack.c.l.b16 %v5211
  %v5359 = vunpack.c.h.b16 %v5211
  %v5360 = vunpack.c.l.b16 %v5212
  %v5361 = vunpack.c.h.b16 %v5212
  %v5362 = vunpack.c.l.b16 %v5213
  %v5363 = vunpack.c.h.b16 %v5213
  %v5364 = vunpack.c.l.b16 %v5214
  %v5365 = vunpack.c.h.b16 %v5214
  %v5366 = vunpack.c.l.b16 %v5215
  %v5367 = vunpack.c.h.b16 %v5215
  %v5368 = vunpack.c.l.b16 %v5216
  %v5369 = vunpack.c.h.b16 %v5216
  %v5370 = vunpack.c.l.b16 %v5217
  %v5371 = vunpack.c.h.b16 %v5217
  %v5372 = vunpack.c.l.b16 %v5218
  %v5373 = vunpack.c.h.b16 %v5218
  %v5374 = vunpack.c.l.b16 %v5219
  %v5375 = vunpack.c.h.b16 %v5219
  %v5376 = vunpack.c.l.b16 %v5220
  %v5377 = vunpack.c.h.b16 %v5220
  %v5378 = vunpack.c.l.b16 %v5221
  %v5379 = vunpack.c.h.b16 %v5221
  %v5380 = vunpack.c.l.b16 %v5222
  %v5381 = vunpack.c.h.b16 %v5222
  %v5382 = vunpack.c.l.b16 %v5223
  %v5383 = vunpack.c.h.b16 %v5223
  %v5384 = vunpack.c.l.b16 %v5224
  %v5385 = vunpack.c.h.b16 %v5224
  %v5386 = vunpack.c.l.b16 %v5225
  %v5387 = vunpack.c.h.b16 %v5225
  %v5388 = vunpack.c.l.b16 %v5226
  %v5389 = vunpack.c.h.b16 %v5226
  %v5390 = vunpack.c.l.b16 %v5227
  %v5391 = vunpack.c.h.b16 %v5227
  %v5392 = vunpack.c.l.b16 %v5228
  %v5393 = vunpack.c.h.b16 %v5228
  %v5394 = vunpack.c.l.b16 %v5229
  %v5395 = vunpack.c.h.b16 %v5229
  %v5396 = vunpack.c.l.b16 %v5230
  %v5397 = vunpack.c.h.b16 %v5230
  %v5398 = vunpack.c.l.b16 %v5231
  %v5399 = vunpack.c.h.b16 %v5231
  %v5400 = vunpack.c.l.b16 %v5232
  %v5401 = vunpack.c.h.b16 %v5232
  %v5402 = vunpack.c.l.b16 %v5233
  %v5403 = vunpack.c.h.b16 %v5233
  %v5404 = vunpack.c.l.b16 %v5234
  %v5405 = vunpack.c.h.b16 %v5234
  %v5406 = vunpack.c.l.b16 %v5235
  %v5407 = vunpack.c.h.b16 %v5235
  %v5408 = vunpack.c.l.b16 %v5236
  %v5409 = vunpack.c.h.b16 %v5236
  %v5410 = vunpack.c.l.b16 %v5237
  %v5411 = vunpack.c.h.b16 %v5237
  %v5412 = vunpack.c.l.b16 %v5238
  %v5413 = vunpack.c.h.b16 %v5238
  %v5414 = vunpack.c.l.b16 %v5239
  %v5415 = vunpack.c.h.b16 %v5239
  %v5416 = vunpack.c.l.b16 %v5240
  %v5417 = vunpack.c.h.b16 %v5240
  %v5418 = vunpack.c.l.b16 %v5241
  %v5419 = vunpack.c.h.b16 %v5241
  %v5420 = vunpack.c.l.b16 %v5242
  %v5421 = vunpack.c.h.b16 %v5242
  %v5422 = vunpack.c.l.b16 %v5243
  %v5423 = vunpack.c.h.b16 %v5243
  %v5424 = vunpack.c.l.b16 %v5244
  %v5425 = vunpack.c.h.b16 %v5244
  %v5426 = vunpack.c.l.b16 %v5245
  %v5427 = vunpack.c.h.b16 %v5245
  %v5428 = vunpack.c.l.b16 %v5246
  %v5429 = vunpack.c.h.b16 %v5246
  %v5430 = vunpack.c.l.b16 %v5247
  %v5431 = vunpack.c.h.b16 %v5247
  %v5432 = vunpack.c.l.b16 %v5248
  %v5433 = vunpack.c.h.b16 %v5248
  %v5434 = vunpack.c.l.b16 %v5249
  %v5435 = vunpack.c.h.b16 %v5249
  %v5436 = vunpack.c.l.b16 %v5250
  %v5437 = vunpack.c.h.b16 %v5250
  %v5438 = vunpack.c.l.b16 %v5251
  %v5439 = vunpack.c.h.b16 %v5251
  %v5440 = vunpack.c.l.b16 %v5252
  %v5441 = vunpack.c.h.b16 %v5252
  %v5442 = vunpack.c.l.b16 %v5253
  %v5443 = vunpack.c.h.b16 %v5253
  %v5444 = vunpack.c.l.b16 %v5254
  %v5445 = vunpack.c.h.b16 %v5254
  %v5446 = vunpack.c.l.b16 %v5255
  %v5447 = vunpack.c.h.b16 %v5255
  %v5448 = vunpack.c.l.b16 %v5256
  %v5449 = vunpack.c.h.b16 %v5256
  %v5450 = vunpack.c.l.b16 %v5257
  %v5451 = vunpack.c.h.b16 %v5257
  %v5452 = vunpack.c.l.b16 %v5258
  %v5453 = vunpack.c.h.b16 %v5258
  %v5454 = vunpack.c.l.b16 %v5259
  %v5455 = vunpack.c.h.b16 %v5259
  %v5456 = vunpack.c.l.b16 %v5260
  %v5457 = vunpack.c.h.b16 %v5260
  %v5458 = vpack.c.b16 %v5338, %v5330
  %v5459 = vpack.c.b16 %v5339, %v5331
  %v5460 = vpack.c.b16 %v5340, %v5332
  %v5461 = vpack.c.b16 %v5341, %v5333
  %v5462 = vpack.c.b16 %v5342, %v5334
  %v5463 = vpack.c.b16 %v5343, %v5335
  %v5464 = vpack.c.b16 %v5344, %v5336
  %v5465 = vpack.c.b16 %v5345, %v5337
  %v5466 = vpack.c.b16 %v5354, %v5346
  %v5467 = vpack.c.b16 %v5355, %v5347
  %v5468 = vpack.c.b16 %v5356, %v5348
  %v5469 = vpack.c.b16 %v5357, %v5349
  %v5470 = vpack.c.b16 %v5358, %v5350
  %v5471 = vpack.c.b16 %v5359, %v5351
  %v5472 = vpack.c.b16 %v5360, %v5352
  %v5473 = vpack.c.b16 %v5361, %v5353
  %v5474 = vpack.c.b16 %v5370, %v5362
  %v5475 = vpack.c.b16 %v5371, %v5363
  %v5476 = vpack.c.b16 %v5372, %v5364
  %v5477 = vpack.c.b16 %v5373, %v5365
  %v5478 = vpack.c.b16 %v5374, %v5366
  %v5479 = vpack.c.b16 %v5375, %v5367
  %v5480 = vpack.c.b16 %v5376, %v5368
  %v5481 = vpack.c.b16 %v5377, %v5369
  %v5482 = vpack.c.b16 %v5386, %v5378
  %v5483 = vpack.c.b16 %v5387, %v5379
  %v5484 = vpack.c.b16 %v5388, %v5380
  %v5485 = vpack.c.b16 %v5389, %v5381
  %v5486 = vpack.c.b16 %v5390, %v5382
  %v5487 = vpack.c.b16 %v5391, %v5383
  %v5488 = vpack.c.b16 %v5392, %v5384
  %v5489 = vpack.c.b16 %v5393, %v5385
  %v5490 = vpack.c.b16 %v5402, %v5394
  %v5491 = vpack.c.b16 %v5403, %v5395
  %v5492 = vpack.c.b16 %v5404, %v5396
  %v5493 = vpack.c.b16 %v5405, %v5397
  %v5494 = vpack.c.b16 %v5406, %v5398
  %v5495 = vpack.c.b16 %v5407, %v5399
  %v5496 = vpack.c.b16 %v5408, %v5400
  %v5497 = vpack.c.b16 %v5409, %v5401
  %v5498 = vpack.c.b16 %v5418, %v5410
  %v5499 = vpack.c.b16 %v5419, %v5411
  %v5500 = vpack.c.b16 %v5420, %v5412
  %v5501 = vpack.c.b16 %v5421, %v5413
  %v5502 = vpack.c.b16 %v5422, %v5414
  %v5503 = vpack.c.b16 %v5423, %v5415
  %v5504 = vpack.c.b16 %v5424, %v5416
  %v5505 = vpack.c.b16 %v5425, %v5417
  %v5506 = vpack.c.b16 %v5434, %v5426
  %v5507 = vpack.c.b16 %v5435, %v5427
  %v5508 = vpack.c.b16 %v5436, %v5428
  %v5509 = vpack.c.b16 %v5437, %v5429
  %v5510 = vpack.c.b16 %v5438, %v5430
  %v5511 = vpack.c.b16 %v5439, %v5431
  %v5512 = vpack.c.b16 %v5440, %v5432
  %v5513 = vpack.c.b16 %v5441, %v5433
  %v5514 = vpack.c.b16 %v5450, %v5442
  %v5515 = vpack.c.b16 %v5451, %v5443
  %v5516 = vpack.c.b16 %v5452, %v5444
  %v5517 = vpack.c.b16 %v5453, %v5445
  %v5518 = vpack.c.b16 %v5454, %v5446
  %v5519 = vpack.c.b16 %v5455, %v5447
  %v5520 = vpack.c.b16 %v5456, %v5448
  %v5521 = vpack.c.b16 %v5457, %v5449
  %5586 = vmatprep.subr.bf16.mxu0 %v5459
  %5587 = vmatpush1.bf16.msra.mxu0 %v5458
  %5588 = vmatprep.subr.bf16.mxu0 %v5467
  %5589 = vmatpush1.bf16.msra.mxu0 %v5466
  %5590 = vmatprep.subr.bf16.mxu0 %v5475
  %5591 = vmatpush1.bf16.msra.mxu0 %v5474
  %5592 = vmatprep.subr.bf16.mxu0 %v5483
  %5593 = vmatpush1.bf16.msra.mxu0 %v5482
  %5594 = vmatprep.subr.bf16.mxu0 %v5491
  %5595 = vmatpush1.bf16.msra.mxu0 %v5490
  %5596 = vmatprep.subr.bf16.mxu0 %v5499
  %5597 = vmatpush1.bf16.msra.mxu0 %v5498
  %5598 = vmatprep.subr.bf16.mxu0 %v5507
  %5599 = vmatpush1.bf16.msra.mxu0 %v5506
  %5600 = vmatprep.subr.bf16.mxu0 %v5515
  %5601 = vmatpush1.bf16.msra.mxu0 %v5514
  %5602 = vmatprep.subr.bf16.mxu0 0
  %5603 = vmatpush1.bf16.msra.mxu0 0
  %5604 = vmatprep.subr.bf16.mxu0 0
  %5605 = vmatpush1.bf16.msra.mxu0 0
  %5606 = vmatprep.subr.bf16.mxu0 0
  %5607 = vmatpush1.bf16.msra.mxu0 0
  %5608 = vmatprep.subr.bf16.mxu0 0
  %5609 = vmatpush1.bf16.msra.mxu0 0
  %5610 = vmatprep.subr.bf16.mxu0 0
  %5611 = vmatpush1.bf16.msra.mxu0 0
  %5612 = vmatprep.subr.bf16.mxu0 0
  %5613 = vmatpush1.bf16.msra.mxu0 0
  %5614 = vmatprep.subr.bf16.mxu0 0
  %5615 = vmatpush1.bf16.msra.mxu0 0
  %5616 = vmatprep.subr.bf16.mxu0 0
  %5617 = vmatpush1.bf16.msra.mxu0 0
  %5618 = vmatprep.mubr.bf16.mxu0 0
  %5619 = vmatmul.mubr.bf16.gmra.mrb[0].mxu0 %v5264
  %v5620 = vpop.f32.mrb[0].mxu0
  %v5621 = vadd.f32 0.0, %v5620
  %v5622 = vpop.f32.mrb[0].mxu0
  %v5623 = vadd.f32 0.0, %v5622
  %v5624 = vpop.f32.mrb[0].mxu0
  %v5625 = vpop.f32.mrb[0].mxu0
  %5626 = vdwg.mxu0
  %5627 = vmatprep.subr.bf16.mxu0 %v5461
  %5628 = vmatpush1.bf16.msra.mxu0 %v5460
  %5629 = vmatprep.subr.bf16.mxu0 %v5469
  %5630 = vmatpush1.bf16.msra.mxu0 %v5468
  %5631 = vmatprep.subr.bf16.mxu0 %v5477
  %5632 = vmatpush1.bf16.msra.mxu0 %v5476
  %5633 = vmatprep.subr.bf16.mxu0 %v5485
  %5634 = vmatpush1.bf16.msra.mxu0 %v5484
  %5635 = vmatprep.subr.bf16.mxu0 %v5493
  %5636 = vmatpush1.bf16.msra.mxu0 %v5492
  %5637 = vmatprep.subr.bf16.mxu0 %v5501
  %5638 = vmatpush1.bf16.msra.mxu0 %v5500
  %5639 = vmatprep.subr.bf16.mxu0 %v5509
  %5640 = vmatpush1.bf16.msra.mxu0 %v5508
  %5641 = vmatprep.subr.bf16.mxu0 %v5517
  %5642 = vmatpush1.bf16.msra.mxu0 %v5516
  %5643 = vmatprep.subr.bf16.mxu0 0
  %5644 = vmatpush1.bf16.msra.mxu0 0
  %5645 = vmatprep.subr.bf16.mxu0 0
  %5646 = vmatpush1.bf16.msra.mxu0 0
  %5647 = vmatprep.subr.bf16.mxu0 0
  %5648 = vmatpush1.bf16.msra.mxu0 0
  %5649 = vmatprep.subr.bf16.mxu0 0
  %5650 = vmatpush1.bf16.msra.mxu0 0
  %5651 = vmatprep.subr.bf16.mxu0 0
  %5652 = vmatpush1.bf16.msra.mxu0 0
  %5653 = vmatprep.subr.bf16.mxu0 0
  %5654 = vmatpush1.bf16.msra.mxu0 0
  %5655 = vmatprep.subr.bf16.mxu0 0
  %5656 = vmatpush1.bf16.msra.mxu0 0
  %5657 = vmatprep.subr.bf16.mxu0 0
  %5658 = vmatpush1.bf16.msra.mxu0 0
  %5659 = vmatprep.mubr.bf16.mxu0 0
  %5660 = vmatmul.mubr.bf16.gmra.mrb[0].mxu0 %v5264
  %v5661 = vpop.f32.mrb[0].mxu0
  %v5662 = vadd.f32 0.0, %v5661
  %v5663 = vpop.f32.mrb[0].mxu0
  %v5664 = vadd.f32 0.0, %v5663
  %v5665 = vpop.f32.mrb[0].mxu0
  %v5666 = vpop.f32.mrb[0].mxu0
  %5667 = vdwg.mxu0
  %5668 = vmatprep.subr.bf16.mxu0 %v5463
  %5669 = vmatpush1.bf16.msra.mxu0 %v5462
  %5670 = vmatprep.subr.bf16.mxu0 %v5471
  %5671 = vmatpush1.bf16.msra.mxu0 %v5470
  %5672 = vmatprep.subr.bf16.mxu0 %v5479
  %5673 = vmatpush1.bf16.msra.mxu0 %v5478
  %5674 = vmatprep.subr.bf16.mxu0 %v5487
  %5675 = vmatpush1.bf16.msra.mxu0 %v5486
  %5676 = vmatprep.subr.bf16.mxu0 %v5495
  %5677 = vmatpush1.bf16.msra.mxu0 %v5494
  %5678 = vmatprep.subr.bf16.mxu0 %v5503
  %5679 = vmatpush1.bf16.msra.mxu0 %v5502
  %5680 = vmatprep.subr.bf16.mxu0 %v5511
  %5681 = vmatpush1.bf16.msra.mxu0 %v5510
  %5682 = vmatprep.subr.bf16.mxu0 %v5519
  %5683 = vmatpush1.bf16.msra.mxu0 %v5518
  %5684 = vmatprep.subr.bf16.mxu0 0
  %5685 = vmatpush1.bf16.msra.mxu0 0
  %5686 = vmatprep.subr.bf16.mxu0 0
  %5687 = vmatpush1.bf16.msra.mxu0 0
  %5688 = vmatprep.subr.bf16.mxu0 0
  %5689 = vmatpush1.bf16.msra.mxu0 0
  %5690 = vmatprep.subr.bf16.mxu0 0
  %5691 = vmatpush1.bf16.msra.mxu0 0
  %5692 = vmatprep.subr.bf16.mxu0 0
  %5693 = vmatpush1.bf16.msra.mxu0 0
  %5694 = vmatprep.subr.bf16.mxu0 0
  %5695 = vmatpush1.bf16.msra.mxu0 0
  %5696 = vmatprep.subr.bf16.mxu0 0
  %5697 = vmatpush1.bf16.msra.mxu0 0
  %5698 = vmatprep.subr.bf16.mxu0 0
  %5699 = vmatpush1.bf16.msra.mxu0 0
  %5700 = vmatprep.mubr.bf16.mxu0 0
  %5701 = vmatmul.mubr.bf16.gmra.mrb[0].mxu0 %v5264
  %v5702 = vpop.f32.mrb[0].mxu0
  %v5703 = vadd.f32 0.0, %v5702
  %v5704 = vpop.f32.mrb[0].mxu0
  %v5705 = vadd.f32 0.0, %v5704
  %v5706 = vpop.f32.mrb[0].mxu0
  %v5707 = vpop.f32.mrb[0].mxu0
  %5708 = vdwg.mxu0
  %5709 = vmatprep.subr.bf16.mxu0 %v5465
  %5710 = vmatpush1.bf16.msra.mxu0 %v5464
  %5711 = vmatprep.subr.bf16.mxu0 %v5473
  %5712 = vmatpush1.bf16.msra.mxu0 %v5472
  %5713 = vmatprep.subr.bf16.mxu0 %v5481
  %5714 = vmatpush1.bf16.msra.mxu0 %v5480
  %5715 = vmatprep.subr.bf16.mxu0 %v5489
  %5716 = vmatpush1.bf16.msra.mxu0 %v5488
  %5717 = vmatprep.subr.bf16.mxu0 %v5497
  %5718 = vmatpush1.bf16.msra.mxu0 %v5496
  %5719 = vmatprep.subr.bf16.mxu0 %v5505
  %5720 = vmatpush1.bf16.msra.mxu0 %v5504
  %5721 = vmatprep.subr.bf16.mxu0 %v5513
  %5722 = vmatpush1.bf16.msra.mxu0 %v5512
  %5723 = vmatprep.subr.bf16.mxu0 %v5521
  %5724 = vmatpush1.bf16.msra.mxu0 %v5520
  %5725 = vmatprep.subr.bf16.mxu0 0
  %5726 = vmatpush1.bf16.msra.mxu0 0
  %5727 = vmatprep.subr.bf16.mxu0 0
  %5728 = vmatpush1.bf16.msra.mxu0 0
  %5729 = vmatprep.subr.bf16.mxu0 0
  %5730 = vmatpush1.bf16.msra.mxu0 0
  %5731 = vmatprep.subr.bf16.mxu0 0
  %5732 = vmatpush1.bf16.msra.mxu0 0
  %5733 = vmatprep.subr.bf16.mxu0 0
  %5734 = vmatpush1.bf16.msra.mxu0 0
  %5735 = vmatprep.subr.bf16.mxu0 0
  %5736 = vmatpush1.bf16.msra.mxu0 0
  %5737 = vmatprep.subr.bf16.mxu0 0
  %5738 = vmatpush1.bf16.msra.mxu0 0
  %5739 = vmatprep.subr.bf16.mxu0 0
  %5740 = vmatpush1.bf16.msra.mxu0 0
  %5741 = vmatprep.mubr.bf16.mxu0 0
  %5742 = vmatmul.mubr.bf16.gmra.mrb[0].mxu0 %v5264
  %v5743 = vpop.f32.mrb[0].mxu0
  %v5744 = vadd.f32 0.0, %v5743
  %v5745 = vpop.f32.mrb[0].mxu0
  %v5746 = vadd.f32 0.0, %v5745
  %v5747 = vpop.f32.mrb[0].mxu0
  %v5748 = vpop.f32.mrb[0].mxu0
  %5749 = vdwg.mxu0
  %v5750 = vadd.f32 %v5188, %v5621
  %v5751 = vadd.f32 %v5189, %v5623
  %v5752 = vadd.f32 %v5190, %v5662
  %v5753 = vadd.f32 %v5191, %v5664
  %v5754 = vadd.f32 %v5192, %v5703
  %v5755 = vadd.f32 %v5193, %v5705
  %v5756 = vadd.f32 %v5194, %v5744
  %v5757 = vadd.f32 %v5195, %v5746
  %s5758 = scalar_lea.vmem %s8, 3584
  %v5759 = vld [vmem:[%s5758] sm:$0xff]
  %v5760 = vld [vmem:[%s5758 + $0x8] sm:$0xff]
  %v5761 = vld [vmem:[%s5758 + $0x10] sm:$0xff]
  %v5762 = vld [vmem:[%s5758 + $0x18] sm:$0xff]
  %v5763 = vld [vmem:[%s5758 + $0x20] sm:$0xff]
  %v5764 = vld [vmem:[%s5758 + $0x28] sm:$0xff]
  %v5765 = vld [vmem:[%s5758 + $0x30] sm:$0xff]
  %v5766 = vld [vmem:[%s5758 + $0x38] sm:$0xff]
  %v5767 = vld [vmem:[%s5758 + $0x40] sm:$0xff]
  %v5768 = vld [vmem:[%s5758 + $0x48] sm:$0xff]
  %v5769 = vld [vmem:[%s5758 + $0x50] sm:$0xff]
  %v5770 = vld [vmem:[%s5758 + $0x58] sm:$0xff]
  %v5771 = vld [vmem:[%s5758 + $0x60] sm:$0xff]
  %v5772 = vld [vmem:[%s5758 + $0x68] sm:$0xff]
  %v5773 = vld [vmem:[%s5758 + $0x70] sm:$0xff]
  %v5774 = vld [vmem:[%s5758 + $0x78] sm:$0xff]
  %v5775 = vld [vmem:[%s5758 + $0x80] sm:$0xff]
  %v5776 = vld [vmem:[%s5758 + $0x88] sm:$0xff]
  %v5777 = vld [vmem:[%s5758 + $0x90] sm:$0xff]
  %v5778 = vld [vmem:[%s5758 + $0x98] sm:$0xff]
  %v5779 = vld [vmem:[%s5758 + $0xa0] sm:$0xff]
  %v5780 = vld [vmem:[%s5758 + $0xa8] sm:$0xff]
  %v5781 = vld [vmem:[%s5758 + $0xb0] sm:$0xff]
  %v5782 = vld [vmem:[%s5758 + $0xb8] sm:$0xff]
  %v5783 = vld [vmem:[%s5758 + $0xc0] sm:$0xff]
  %v5784 = vld [vmem:[%s5758 + $0xc8] sm:$0xff]
  %v5785 = vld [vmem:[%s5758 + $0xd0] sm:$0xff]
  %v5786 = vld [vmem:[%s5758 + $0xd8] sm:$0xff]
  %v5787 = vld [vmem:[%s5758 + $0xe0] sm:$0xff]
  %v5788 = vld [vmem:[%s5758 + $0xe8] sm:$0xff]
  %v5789 = vld [vmem:[%s5758 + $0xf0] sm:$0xff]
  %v5790 = vld [vmem:[%s5758 + $0xf8] sm:$0xff]
  %v5791 = vld [vmem:[%s5758 + $0x100] sm:$0xff]
  %v5792 = vld [vmem:[%s5758 + $0x108] sm:$0xff]
  %v5793 = vld [vmem:[%s5758 + $0x110] sm:$0xff]
  %v5794 = vld [vmem:[%s5758 + $0x118] sm:$0xff]
  %v5795 = vld [vmem:[%s5758 + $0x120] sm:$0xff]
  %v5796 = vld [vmem:[%s5758 + $0x128] sm:$0xff]
  %v5797 = vld [vmem:[%s5758 + $0x130] sm:$0xff]
  %v5798 = vld [vmem:[%s5758 + $0x138] sm:$0xff]
  %v5799 = vld [vmem:[%s5758 + $0x140] sm:$0xff]
  %v5800 = vld [vmem:[%s5758 + $0x148] sm:$0xff]
  %v5801 = vld [vmem:[%s5758 + $0x150] sm:$0xff]
  %v5802 = vld [vmem:[%s5758 + $0x158] sm:$0xff]
  %v5803 = vld [vmem:[%s5758 + $0x160] sm:$0xff]
  %v5804 = vld [vmem:[%s5758 + $0x168] sm:$0xff]
  %v5805 = vld [vmem:[%s5758 + $0x170] sm:$0xff]
  %v5806 = vld [vmem:[%s5758 + $0x178] sm:$0xff]
  %v5807 = vld [vmem:[%s5758 + $0x180] sm:$0xff]
  %v5808 = vld [vmem:[%s5758 + $0x188] sm:$0xff]
  %v5809 = vld [vmem:[%s5758 + $0x190] sm:$0xff]
  %v5810 = vld [vmem:[%s5758 + $0x198] sm:$0xff]
  %v5811 = vld [vmem:[%s5758 + $0x1a0] sm:$0xff]
  %v5812 = vld [vmem:[%s5758 + $0x1a8] sm:$0xff]
  %v5813 = vld [vmem:[%s5758 + $0x1b0] sm:$0xff]
  %v5814 = vld [vmem:[%s5758 + $0x1b8] sm:$0xff]
  %v5815 = vld [vmem:[%s5758 + $0x1c0] sm:$0xff]
  %v5816 = vld [vmem:[%s5758 + $0x1c8] sm:$0xff]
  %v5817 = vld [vmem:[%s5758 + $0x1d0] sm:$0xff]
  %v5818 = vld [vmem:[%s5758 + $0x1d8] sm:$0xff]
  %v5819 = vld [vmem:[%s5758 + $0x1e0] sm:$0xff]
  %v5820 = vld [vmem:[%s5758 + $0x1e8] sm:$0xff]
  %v5821 = vld [vmem:[%s5758 + $0x1f0] sm:$0xff]
  %v5822 = vld [vmem:[%s5758 + $0x1f8] sm:$0xff]
  %v5823 = vrot.slane %v1847, 7
  %v5824 = vrot.slane %v1848, 6
  %v5825 = vsel %vm1850, %v5824, %v5823
  %v5826 = vpack.c.b16 %v5825, %v5825
  %v5892 = vunpack.c.l.b16 %v5759
  %v5893 = vunpack.c.h.b16 %v5759
  %v5894 = vunpack.c.l.b16 %v5760
  %v5895 = vunpack.c.h.b16 %v5760
  %v5896 = vunpack.c.l.b16 %v5761
  %v5897 = vunpack.c.h.b16 %v5761
  %v5898 = vunpack.c.l.b16 %v5762
  %v5899 = vunpack.c.h.b16 %v5762
  %v5900 = vunpack.c.l.b16 %v5763
  %v5901 = vunpack.c.h.b16 %v5763
  %v5902 = vunpack.c.l.b16 %v5764
  %v5903 = vunpack.c.h.b16 %v5764
  %v5904 = vunpack.c.l.b16 %v5765
  %v5905 = vunpack.c.h.b16 %v5765
  %v5906 = vunpack.c.l.b16 %v5766
  %v5907 = vunpack.c.h.b16 %v5766
  %v5908 = vunpack.c.l.b16 %v5767
  %v5909 = vunpack.c.h.b16 %v5767
  %v5910 = vunpack.c.l.b16 %v5768
  %v5911 = vunpack.c.h.b16 %v5768
  %v5912 = vunpack.c.l.b16 %v5769
  %v5913 = vunpack.c.h.b16 %v5769
  %v5914 = vunpack.c.l.b16 %v5770
  %v5915 = vunpack.c.h.b16 %v5770
  %v5916 = vunpack.c.l.b16 %v5771
  %v5917 = vunpack.c.h.b16 %v5771
  %v5918 = vunpack.c.l.b16 %v5772
  %v5919 = vunpack.c.h.b16 %v5772
  %v5920 = vunpack.c.l.b16 %v5773
  %v5921 = vunpack.c.h.b16 %v5773
  %v5922 = vunpack.c.l.b16 %v5774
  %v5923 = vunpack.c.h.b16 %v5774
  %v5924 = vunpack.c.l.b16 %v5775
  %v5925 = vunpack.c.h.b16 %v5775
  %v5926 = vunpack.c.l.b16 %v5776
  %v5927 = vunpack.c.h.b16 %v5776
  %v5928 = vunpack.c.l.b16 %v5777
  %v5929 = vunpack.c.h.b16 %v5777
  %v5930 = vunpack.c.l.b16 %v5778
  %v5931 = vunpack.c.h.b16 %v5778
  %v5932 = vunpack.c.l.b16 %v5779
  %v5933 = vunpack.c.h.b16 %v5779
  %v5934 = vunpack.c.l.b16 %v5780
  %v5935 = vunpack.c.h.b16 %v5780
  %v5936 = vunpack.c.l.b16 %v5781
  %v5937 = vunpack.c.h.b16 %v5781
  %v5938 = vunpack.c.l.b16 %v5782
  %v5939 = vunpack.c.h.b16 %v5782
  %v5940 = vunpack.c.l.b16 %v5783
  %v5941 = vunpack.c.h.b16 %v5783
  %v5942 = vunpack.c.l.b16 %v5784
  %v5943 = vunpack.c.h.b16 %v5784
  %v5944 = vunpack.c.l.b16 %v5785
  %v5945 = vunpack.c.h.b16 %v5785
  %v5946 = vunpack.c.l.b16 %v5786
  %v5947 = vunpack.c.h.b16 %v5786
  %v5948 = vunpack.c.l.b16 %v5787
  %v5949 = vunpack.c.h.b16 %v5787
  %v5950 = vunpack.c.l.b16 %v5788
  %v5951 = vunpack.c.h.b16 %v5788
  %v5952 = vunpack.c.l.b16 %v5789
  %v5953 = vunpack.c.h.b16 %v5789
  %v5954 = vunpack.c.l.b16 %v5790
  %v5955 = vunpack.c.h.b16 %v5790
  %v5956 = vunpack.c.l.b16 %v5791
  %v5957 = vunpack.c.h.b16 %v5791
  %v5958 = vunpack.c.l.b16 %v5792
  %v5959 = vunpack.c.h.b16 %v5792
  %v5960 = vunpack.c.l.b16 %v5793
  %v5961 = vunpack.c.h.b16 %v5793
  %v5962 = vunpack.c.l.b16 %v5794
  %v5963 = vunpack.c.h.b16 %v5794
  %v5964 = vunpack.c.l.b16 %v5795
  %v5965 = vunpack.c.h.b16 %v5795
  %v5966 = vunpack.c.l.b16 %v5796
  %v5967 = vunpack.c.h.b16 %v5796
  %v5968 = vunpack.c.l.b16 %v5797
  %v5969 = vunpack.c.h.b16 %v5797
  %v5970 = vunpack.c.l.b16 %v5798
  %v5971 = vunpack.c.h.b16 %v5798
  %v5972 = vunpack.c.l.b16 %v5799
  %v5973 = vunpack.c.h.b16 %v5799
  %v5974 = vunpack.c.l.b16 %v5800
  %v5975 = vunpack.c.h.b16 %v5800
  %v5976 = vunpack.c.l.b16 %v5801
  %v5977 = vunpack.c.h.b16 %v5801
  %v5978 = vunpack.c.l.b16 %v5802
  %v5979 = vunpack.c.h.b16 %v5802
  %v5980 = vunpack.c.l.b16 %v5803
  %v5981 = vunpack.c.h.b16 %v5803
  %v5982 = vunpack.c.l.b16 %v5804
  %v5983 = vunpack.c.h.b16 %v5804
  %v5984 = vunpack.c.l.b16 %v5805
  %v5985 = vunpack.c.h.b16 %v5805
  %v5986 = vunpack.c.l.b16 %v5806
  %v5987 = vunpack.c.h.b16 %v5806
  %v5988 = vunpack.c.l.b16 %v5807
  %v5989 = vunpack.c.h.b16 %v5807
  %v5990 = vunpack.c.l.b16 %v5808
  %v5991 = vunpack.c.h.b16 %v5808
  %v5992 = vunpack.c.l.b16 %v5809
  %v5993 = vunpack.c.h.b16 %v5809
  %v5994 = vunpack.c.l.b16 %v5810
  %v5995 = vunpack.c.h.b16 %v5810
  %v5996 = vunpack.c.l.b16 %v5811
  %v5997 = vunpack.c.h.b16 %v5811
  %v5998 = vunpack.c.l.b16 %v5812
  %v5999 = vunpack.c.h.b16 %v5812
  %v6000 = vunpack.c.l.b16 %v5813
  %v6001 = vunpack.c.h.b16 %v5813
  %v6002 = vunpack.c.l.b16 %v5814
  %v6003 = vunpack.c.h.b16 %v5814
  %v6004 = vunpack.c.l.b16 %v5815
  %v6005 = vunpack.c.h.b16 %v5815
  %v6006 = vunpack.c.l.b16 %v5816
  %v6007 = vunpack.c.h.b16 %v5816
  %v6008 = vunpack.c.l.b16 %v5817
  %v6009 = vunpack.c.h.b16 %v5817
  %v6010 = vunpack.c.l.b16 %v5818
  %v6011 = vunpack.c.h.b16 %v5818
  %v6012 = vunpack.c.l.b16 %v5819
  %v6013 = vunpack.c.h.b16 %v5819
  %v6014 = vunpack.c.l.b16 %v5820
  %v6015 = vunpack.c.h.b16 %v5820
  %v6016 = vunpack.c.l.b16 %v5821
  %v6017 = vunpack.c.h.b16 %v5821
  %v6018 = vunpack.c.l.b16 %v5822
  %v6019 = vunpack.c.h.b16 %v5822
  %v6020 = vpack.c.b16 %v5900, %v5892
  %v6021 = vpack.c.b16 %v5901, %v5893
  %v6022 = vpack.c.b16 %v5902, %v5894
  %v6023 = vpack.c.b16 %v5903, %v5895
  %v6024 = vpack.c.b16 %v5904, %v5896
  %v6025 = vpack.c.b16 %v5905, %v5897
  %v6026 = vpack.c.b16 %v5906, %v5898
  %v6027 = vpack.c.b16 %v5907, %v5899
  %v6028 = vpack.c.b16 %v5916, %v5908
  %v6029 = vpack.c.b16 %v5917, %v5909
  %v6030 = vpack.c.b16 %v5918, %v5910
  %v6031 = vpack.c.b16 %v5919, %v5911
  %v6032 = vpack.c.b16 %v5920, %v5912
  %v6033 = vpack.c.b16 %v5921, %v5913
  %v6034 = vpack.c.b16 %v5922, %v5914
  %v6035 = vpack.c.b16 %v5923, %v5915
  %v6036 = vpack.c.b16 %v5932, %v5924
  %v6037 = vpack.c.b16 %v5933, %v5925
  %v6038 = vpack.c.b16 %v5934, %v5926
  %v6039 = vpack.c.b16 %v5935, %v5927
  %v6040 = vpack.c.b16 %v5936, %v5928
  %v6041 = vpack.c.b16 %v5937, %v5929
  %v6042 = vpack.c.b16 %v5938, %v5930
  %v6043 = vpack.c.b16 %v5939, %v5931
  %v6044 = vpack.c.b16 %v5948, %v5940
  %v6045 = vpack.c.b16 %v5949, %v5941
  %v6046 = vpack.c.b16 %v5950, %v5942
  %v6047 = vpack.c.b16 %v5951, %v5943
  %v6048 = vpack.c.b16 %v5952, %v5944
  %v6049 = vpack.c.b16 %v5953, %v5945
  %v6050 = vpack.c.b16 %v5954, %v5946
  %v6051 = vpack.c.b16 %v5955, %v5947
  %v6052 = vpack.c.b16 %v5964, %v5956
  %v6053 = vpack.c.b16 %v5965, %v5957
  %v6054 = vpack.c.b16 %v5966, %v5958
  %v6055 = vpack.c.b16 %v5967, %v5959
  %v6056 = vpack.c.b16 %v5968, %v5960
  %v6057 = vpack.c.b16 %v5969, %v5961
  %v6058 = vpack.c.b16 %v5970, %v5962
  %v6059 = vpack.c.b16 %v5971, %v5963
  %v6060 = vpack.c.b16 %v5980, %v5972
  %v6061 = vpack.c.b16 %v5981, %v5973
  %v6062 = vpack.c.b16 %v5982, %v5974
  %v6063 = vpack.c.b16 %v5983, %v5975
  %v6064 = vpack.c.b16 %v5984, %v5976
  %v6065 = vpack.c.b16 %v5985, %v5977
  %v6066 = vpack.c.b16 %v5986, %v5978
  %v6067 = vpack.c.b16 %v5987, %v5979
  %v6068 = vpack.c.b16 %v5996, %v5988
  %v6069 = vpack.c.b16 %v5997, %v5989
  %v6070 = vpack.c.b16 %v5998, %v5990
  %v6071 = vpack.c.b16 %v5999, %v5991
  %v6072 = vpack.c.b16 %v6000, %v5992
  %v6073 = vpack.c.b16 %v6001, %v5993
  %v6074 = vpack.c.b16 %v6002, %v5994
  %v6075 = vpack.c.b16 %v6003, %v5995
  %v6076 = vpack.c.b16 %v6012, %v6004
  %v6077 = vpack.c.b16 %v6013, %v6005
  %v6078 = vpack.c.b16 %v6014, %v6006
  %v6079 = vpack.c.b16 %v6015, %v6007
  %v6080 = vpack.c.b16 %v6016, %v6008
  %v6081 = vpack.c.b16 %v6017, %v6009
  %v6082 = vpack.c.b16 %v6018, %v6010
  %v6083 = vpack.c.b16 %v6019, %v6011
  %6148 = vmatprep.subr.bf16.mxu0 %v6021
  %6149 = vmatpush1.bf16.msra.mxu0 %v6020
  %6150 = vmatprep.subr.bf16.mxu0 %v6029
  %6151 = vmatpush1.bf16.msra.mxu0 %v6028
  %6152 = vmatprep.subr.bf16.mxu0 %v6037
  %6153 = vmatpush1.bf16.msra.mxu0 %v6036
  %6154 = vmatprep.subr.bf16.mxu0 %v6045
  %6155 = vmatpush1.bf16.msra.mxu0 %v6044
  %6156 = vmatprep.subr.bf16.mxu0 %v6053
  %6157 = vmatpush1.bf16.msra.mxu0 %v6052
  %6158 = vmatprep.subr.bf16.mxu0 %v6061
  %6159 = vmatpush1.bf16.msra.mxu0 %v6060
  %6160 = vmatprep.subr.bf16.mxu0 %v6069
  %6161 = vmatpush1.bf16.msra.mxu0 %v6068
  %6162 = vmatprep.subr.bf16.mxu0 %v6077
  %6163 = vmatpush1.bf16.msra.mxu0 %v6076
  %6164 = vmatprep.subr.bf16.mxu0 0
  %6165 = vmatpush1.bf16.msra.mxu0 0
  %6166 = vmatprep.subr.bf16.mxu0 0
  %6167 = vmatpush1.bf16.msra.mxu0 0
  %6168 = vmatprep.subr.bf16.mxu0 0
  %6169 = vmatpush1.bf16.msra.mxu0 0
  %6170 = vmatprep.subr.bf16.mxu0 0
  %6171 = vmatpush1.bf16.msra.mxu0 0
  %6172 = vmatprep.subr.bf16.mxu0 0
  %6173 = vmatpush1.bf16.msra.mxu0 0
  %6174 = vmatprep.subr.bf16.mxu0 0
  %6175 = vmatpush1.bf16.msra.mxu0 0
  %6176 = vmatprep.subr.bf16.mxu0 0
  %6177 = vmatpush1.bf16.msra.mxu0 0
  %6178 = vmatprep.subr.bf16.mxu0 0
  %6179 = vmatpush1.bf16.msra.mxu0 0
  %6180 = vmatprep.mubr.bf16.mxu0 0
  %6181 = vmatmul.mubr.bf16.gmra.mrb[0].mxu0 %v5826
  %v6182 = vpop.f32.mrb[0].mxu0
  %v6183 = vadd.f32 0.0, %v6182
  %v6184 = vpop.f32.mrb[0].mxu0
  %v6185 = vadd.f32 0.0, %v6184
  %v6186 = vpop.f32.mrb[0].mxu0
  %v6187 = vpop.f32.mrb[0].mxu0
  %6188 = vdwg.mxu0
  %6189 = vmatprep.subr.bf16.mxu0 %v6023
  %6190 = vmatpush1.bf16.msra.mxu0 %v6022
  %6191 = vmatprep.subr.bf16.mxu0 %v6031
  %6192 = vmatpush1.bf16.msra.mxu0 %v6030
  %6193 = vmatprep.subr.bf16.mxu0 %v6039
  %6194 = vmatpush1.bf16.msra.mxu0 %v6038
  %6195 = vmatprep.subr.bf16.mxu0 %v6047
  %6196 = vmatpush1.bf16.msra.mxu0 %v6046
  %6197 = vmatprep.subr.bf16.mxu0 %v6055
  %6198 = vmatpush1.bf16.msra.mxu0 %v6054
  %6199 = vmatprep.subr.bf16.mxu0 %v6063
  %6200 = vmatpush1.bf16.msra.mxu0 %v6062
  %6201 = vmatprep.subr.bf16.mxu0 %v6071
  %6202 = vmatpush1.bf16.msra.mxu0 %v6070
  %6203 = vmatprep.subr.bf16.mxu0 %v6079
  %6204 = vmatpush1.bf16.msra.mxu0 %v6078
  %6205 = vmatprep.subr.bf16.mxu0 0
  %6206 = vmatpush1.bf16.msra.mxu0 0
  %6207 = vmatprep.subr.bf16.mxu0 0
  %6208 = vmatpush1.bf16.msra.mxu0 0
  %6209 = vmatprep.subr.bf16.mxu0 0
  %6210 = vmatpush1.bf16.msra.mxu0 0
  %6211 = vmatprep.subr.bf16.mxu0 0
  %6212 = vmatpush1.bf16.msra.mxu0 0
  %6213 = vmatprep.subr.bf16.mxu0 0
  %6214 = vmatpush1.bf16.msra.mxu0 0
  %6215 = vmatprep.subr.bf16.mxu0 0
  %6216 = vmatpush1.bf16.msra.mxu0 0
  %6217 = vmatprep.subr.bf16.mxu0 0
  %6218 = vmatpush1.bf16.msra.mxu0 0
  %6219 = vmatprep.subr.bf16.mxu0 0
  %6220 = vmatpush1.bf16.msra.mxu0 0
  %6221 = vmatprep.mubr.bf16.mxu0 0
  %6222 = vmatmul.mubr.bf16.gmra.mrb[0].mxu0 %v5826
  %v6223 = vpop.f32.mrb[0].mxu0
  %v6224 = vadd.f32 0.0, %v6223
  %v6225 = vpop.f32.mrb[0].mxu0
  %v6226 = vadd.f32 0.0, %v6225
  %v6227 = vpop.f32.mrb[0].mxu0
  %v6228 = vpop.f32.mrb[0].mxu0
  %6229 = vdwg.mxu0
  %6230 = vmatprep.subr.bf16.mxu0 %v6025
  %6231 = vmatpush1.bf16.msra.mxu0 %v6024
  %6232 = vmatprep.subr.bf16.mxu0 %v6033
  %6233 = vmatpush1.bf16.msra.mxu0 %v6032
  %6234 = vmatprep.subr.bf16.mxu0 %v6041
  %6235 = vmatpush1.bf16.msra.mxu0 %v6040
  %6236 = vmatprep.subr.bf16.mxu0 %v6049
  %6237 = vmatpush1.bf16.msra.mxu0 %v6048
  %6238 = vmatprep.subr.bf16.mxu0 %v6057
  %6239 = vmatpush1.bf16.msra.mxu0 %v6056
  %6240 = vmatprep.subr.bf16.mxu0 %v6065
  %6241 = vmatpush1.bf16.msra.mxu0 %v6064
  %6242 = vmatprep.subr.bf16.mxu0 %v6073
  %6243 = vmatpush1.bf16.msra.mxu0 %v6072
  %6244 = vmatprep.subr.bf16.mxu0 %v6081
  %6245 = vmatpush1.bf16.msra.mxu0 %v6080
  %6246 = vmatprep.subr.bf16.mxu0 0
  %6247 = vmatpush1.bf16.msra.mxu0 0
  %6248 = vmatprep.subr.bf16.mxu0 0
  %6249 = vmatpush1.bf16.msra.mxu0 0
  %6250 = vmatprep.subr.bf16.mxu0 0
  %6251 = vmatpush1.bf16.msra.mxu0 0
  %6252 = vmatprep.subr.bf16.mxu0 0
  %6253 = vmatpush1.bf16.msra.mxu0 0
  %6254 = vmatprep.subr.bf16.mxu0 0
  %6255 = vmatpush1.bf16.msra.mxu0 0
  %6256 = vmatprep.subr.bf16.mxu0 0
  %6257 = vmatpush1.bf16.msra.mxu0 0
  %6258 = vmatprep.subr.bf16.mxu0 0
  %6259 = vmatpush1.bf16.msra.mxu0 0
  %6260 = vmatprep.subr.bf16.mxu0 0
  %6261 = vmatpush1.bf16.msra.mxu0 0
  %6262 = vmatprep.mubr.bf16.mxu0 0
  %6263 = vmatmul.mubr.bf16.gmra.mrb[0].mxu0 %v5826
  %v6264 = vpop.f32.mrb[0].mxu0
  %v6265 = vadd.f32 0.0, %v6264
  %v6266 = vpop.f32.mrb[0].mxu0
  %v6267 = vadd.f32 0.0, %v6266
  %v6268 = vpop.f32.mrb[0].mxu0
  %v6269 = vpop.f32.mrb[0].mxu0
  %6270 = vdwg.mxu0
  %6271 = vmatprep.subr.bf16.mxu0 %v6027
  %6272 = vmatpush1.bf16.msra.mxu0 %v6026
  %6273 = vmatprep.subr.bf16.mxu0 %v6035
  %6274 = vmatpush1.bf16.msra.mxu0 %v6034
  %6275 = vmatprep.subr.bf16.mxu0 %v6043
  %6276 = vmatpush1.bf16.msra.mxu0 %v6042
  %6277 = vmatprep.subr.bf16.mxu0 %v6051
  %6278 = vmatpush1.bf16.msra.mxu0 %v6050
  %6279 = vmatprep.subr.bf16.mxu0 %v6059
  %6280 = vmatpush1.bf16.msra.mxu0 %v6058
  %6281 = vmatprep.subr.bf16.mxu0 %v6067
  %6282 = vmatpush1.bf16.msra.mxu0 %v6066
  %6283 = vmatprep.subr.bf16.mxu0 %v6075
  %6284 = vmatpush1.bf16.msra.mxu0 %v6074
  %6285 = vmatprep.subr.bf16.mxu0 %v6083
  %6286 = vmatpush1.bf16.msra.mxu0 %v6082
  %6287 = vmatprep.subr.bf16.mxu0 0
  %6288 = vmatpush1.bf16.msra.mxu0 0
  %6289 = vmatprep.subr.bf16.mxu0 0
  %6290 = vmatpush1.bf16.msra.mxu0 0
  %6291 = vmatprep.subr.bf16.mxu0 0
  %6292 = vmatpush1.bf16.msra.mxu0 0
  %6293 = vmatprep.subr.bf16.mxu0 0
  %6294 = vmatpush1.bf16.msra.mxu0 0
  %6295 = vmatprep.subr.bf16.mxu0 0
  %6296 = vmatpush1.bf16.msra.mxu0 0
  %6297 = vmatprep.subr.bf16.mxu0 0
  %6298 = vmatpush1.bf16.msra.mxu0 0
  %6299 = vmatprep.subr.bf16.mxu0 0
  %6300 = vmatpush1.bf16.msra.mxu0 0
  %6301 = vmatprep.subr.bf16.mxu0 0
  %6302 = vmatpush1.bf16.msra.mxu0 0
  %6303 = vmatprep.mubr.bf16.mxu0 0
  %6304 = vmatmul.mubr.bf16.gmra.mrb[0].mxu0 %v5826
  %v6305 = vpop.f32.mrb[0].mxu0
  %v6306 = vadd.f32 0.0, %v6305
  %v6307 = vpop.f32.mrb[0].mxu0
  %v6308 = vadd.f32 0.0, %v6307
  %v6309 = vpop.f32.mrb[0].mxu0
  %v6310 = vpop.f32.mrb[0].mxu0
  %6311 = vdwg.mxu0
  %v6312 = vadd.f32 %v5750, %v6183
  %v6313 = vadd.f32 %v5751, %v6185
  %v6314 = vadd.f32 %v5752, %v6224
  %v6315 = vadd.f32 %v5753, %v6226
  %v6316 = vadd.f32 %v5754, %v6265
  %v6317 = vadd.f32 %v5755, %v6267
  %v6318 = vadd.f32 %v5756, %v6306
  %v6319 = vadd.f32 %v5757, %v6308
  %v6320 = vld [vmem:[%s10] sm:$0xff]
  %v6321 = vld [vmem:[%s10 + $0x8] sm:$0xff]
  %v6322 = vld [vmem:[%s10 + $0x10] sm:$0xff]
  %v6323 = vld [vmem:[%s10 + $0x18] sm:$0xff]
  %v6324 = vld [vmem:[%s10 + $0x20] sm:$0xff]
  %v6325 = vld [vmem:[%s10 + $0x28] sm:$0xff]
  %v6326 = vld [vmem:[%s10 + $0x30] sm:$0xff]
  %v6327 = vld [vmem:[%s10 + $0x38] sm:$0xff]
  %v6328 = vld [vmem:[%s10 + $0x40] sm:$0xff]
  %v6329 = vld [vmem:[%s10 + $0x48] sm:$0xff]
  %v6330 = vld [vmem:[%s10 + $0x50] sm:$0xff]
  %v6331 = vld [vmem:[%s10 + $0x58] sm:$0xff]
  %v6332 = vld [vmem:[%s10 + $0x60] sm:$0xff]
  %v6333 = vld [vmem:[%s10 + $0x68] sm:$0xff]
  %v6334 = vld [vmem:[%s10 + $0x70] sm:$0xff]
  %v6335 = vld [vmem:[%s10 + $0x78] sm:$0xff]
  %v6336 = vld [vmem:[%s10 + $0x80] sm:$0xff]
  %v6337 = vld [vmem:[%s10 + $0x88] sm:$0xff]
  %v6338 = vld [vmem:[%s10 + $0x90] sm:$0xff]
  %v6339 = vld [vmem:[%s10 + $0x98] sm:$0xff]
  %v6340 = vld [vmem:[%s10 + $0xa0] sm:$0xff]
  %v6341 = vld [vmem:[%s10 + $0xa8] sm:$0xff]
  %v6342 = vld [vmem:[%s10 + $0xb0] sm:$0xff]
  %v6343 = vld [vmem:[%s10 + $0xb8] sm:$0xff]
  %v6344 = vld [vmem:[%s10 + $0xc0] sm:$0xff]
  %v6345 = vld [vmem:[%s10 + $0xc8] sm:$0xff]
  %v6346 = vld [vmem:[%s10 + $0xd0] sm:$0xff]
  %v6347 = vld [vmem:[%s10 + $0xd8] sm:$0xff]
  %v6348 = vld [vmem:[%s10 + $0xe0] sm:$0xff]
  %v6349 = vld [vmem:[%s10 + $0xe8] sm:$0xff]
  %v6350 = vld [vmem:[%s10 + $0xf0] sm:$0xff]
  %v6351 = vld [vmem:[%s10 + $0xf8] sm:$0xff]
  %v6352 = vld [vmem:[%s10 + $0x100] sm:$0xff]
  %v6353 = vld [vmem:[%s10 + $0x108] sm:$0xff]
  %v6354 = vld [vmem:[%s10 + $0x110] sm:$0xff]
  %v6355 = vld [vmem:[%s10 + $0x118] sm:$0xff]
  %v6356 = vld [vmem:[%s10 + $0x120] sm:$0xff]
  %v6357 = vld [vmem:[%s10 + $0x128] sm:$0xff]
  %v6358 = vld [vmem:[%s10 + $0x130] sm:$0xff]
  %v6359 = vld [vmem:[%s10 + $0x138] sm:$0xff]
  %v6360 = vld [vmem:[%s10 + $0x140] sm:$0xff]
  %v6361 = vld [vmem:[%s10 + $0x148] sm:$0xff]
  %v6362 = vld [vmem:[%s10 + $0x150] sm:$0xff]
  %v6363 = vld [vmem:[%s10 + $0x158] sm:$0xff]
  %v6364 = vld [vmem:[%s10 + $0x160] sm:$0xff]
  %v6365 = vld [vmem:[%s10 + $0x168] sm:$0xff]
  %v6366 = vld [vmem:[%s10 + $0x170] sm:$0xff]
  %v6367 = vld [vmem:[%s10 + $0x178] sm:$0xff]
  %v6368 = vld [vmem:[%s10 + $0x180] sm:$0xff]
  %v6369 = vld [vmem:[%s10 + $0x188] sm:$0xff]
  %v6370 = vld [vmem:[%s10 + $0x190] sm:$0xff]
  %v6371 = vld [vmem:[%s10 + $0x198] sm:$0xff]
  %v6372 = vld [vmem:[%s10 + $0x1a0] sm:$0xff]
  %v6373 = vld [vmem:[%s10 + $0x1a8] sm:$0xff]
  %v6374 = vld [vmem:[%s10 + $0x1b0] sm:$0xff]
  %v6375 = vld [vmem:[%s10 + $0x1b8] sm:$0xff]
  %v6376 = vld [vmem:[%s10 + $0x1c0] sm:$0xff]
  %v6377 = vld [vmem:[%s10 + $0x1c8] sm:$0xff]
  %v6378 = vld [vmem:[%s10 + $0x1d0] sm:$0xff]
  %v6379 = vld [vmem:[%s10 + $0x1d8] sm:$0xff]
  %v6380 = vld [vmem:[%s10 + $0x1e0] sm:$0xff]
  %v6381 = vld [vmem:[%s10 + $0x1e8] sm:$0xff]
  %v6382 = vld [vmem:[%s10 + $0x1f0] sm:$0xff]
  %v6383 = vld [vmem:[%s10 + $0x1f8] sm:$0xff]
  %v6384 = vld [vmem:[%s10 + $0x200] sm:$0xff]
  %v6385 = vld [vmem:[%s10 + $0x208] sm:$0xff]
  %v6386 = vld [vmem:[%s10 + $0x210] sm:$0xff]
  %v6387 = vld [vmem:[%s10 + $0x218] sm:$0xff]
  %v6388 = vld [vmem:[%s10 + $0x220] sm:$0xff]
  %v6389 = vld [vmem:[%s10 + $0x228] sm:$0xff]
  %v6390 = vld [vmem:[%s10 + $0x230] sm:$0xff]
  %v6391 = vld [vmem:[%s10 + $0x238] sm:$0xff]
  %v6392 = vld [vmem:[%s10 + $0x240] sm:$0xff]
  %v6393 = vld [vmem:[%s10 + $0x248] sm:$0xff]
  %v6394 = vld [vmem:[%s10 + $0x250] sm:$0xff]
  %v6395 = vld [vmem:[%s10 + $0x258] sm:$0xff]
  %v6396 = vld [vmem:[%s10 + $0x260] sm:$0xff]
  %v6397 = vld [vmem:[%s10 + $0x268] sm:$0xff]
  %v6398 = vld [vmem:[%s10 + $0x270] sm:$0xff]
  %v6399 = vld [vmem:[%s10 + $0x278] sm:$0xff]
  %v6400 = vld [vmem:[%s10 + $0x280] sm:$0xff]
  %v6401 = vld [vmem:[%s10 + $0x288] sm:$0xff]
  %v6402 = vld [vmem:[%s10 + $0x290] sm:$0xff]
  %v6403 = vld [vmem:[%s10 + $0x298] sm:$0xff]
  %v6404 = vld [vmem:[%s10 + $0x2a0] sm:$0xff]
  %v6405 = vld [vmem:[%s10 + $0x2a8] sm:$0xff]
  %v6406 = vld [vmem:[%s10 + $0x2b0] sm:$0xff]
  %v6407 = vld [vmem:[%s10 + $0x2b8] sm:$0xff]
  %v6408 = vld [vmem:[%s10 + $0x2c0] sm:$0xff]
  %v6409 = vld [vmem:[%s10 + $0x2c8] sm:$0xff]
  %v6410 = vld [vmem:[%s10 + $0x2d0] sm:$0xff]
  %v6411 = vld [vmem:[%s10 + $0x2d8] sm:$0xff]
  %v6412 = vld [vmem:[%s10 + $0x2e0] sm:$0xff]
  %v6413 = vld [vmem:[%s10 + $0x2e8] sm:$0xff]
  %v6414 = vld [vmem:[%s10 + $0x2f0] sm:$0xff]
  %v6415 = vld [vmem:[%s10 + $0x2f8] sm:$0xff]
  %v6416 = vld [vmem:[%s10 + $0x300] sm:$0xff]
  %v6417 = vld [vmem:[%s10 + $0x308] sm:$0xff]
  %v6418 = vld [vmem:[%s10 + $0x310] sm:$0xff]
  %v6419 = vld [vmem:[%s10 + $0x318] sm:$0xff]
  %v6420 = vld [vmem:[%s10 + $0x320] sm:$0xff]
  %v6421 = vld [vmem:[%s10 + $0x328] sm:$0xff]
  %v6422 = vld [vmem:[%s10 + $0x330] sm:$0xff]
  %v6423 = vld [vmem:[%s10 + $0x338] sm:$0xff]
  %v6424 = vld [vmem:[%s10 + $0x340] sm:$0xff]
  %v6425 = vld [vmem:[%s10 + $0x348] sm:$0xff]
  %v6426 = vld [vmem:[%s10 + $0x350] sm:$0xff]
  %v6427 = vld [vmem:[%s10 + $0x358] sm:$0xff]
  %v6428 = vld [vmem:[%s10 + $0x360] sm:$0xff]
  %v6429 = vld [vmem:[%s10 + $0x368] sm:$0xff]
  %v6430 = vld [vmem:[%s10 + $0x370] sm:$0xff]
  %v6431 = vld [vmem:[%s10 + $0x378] sm:$0xff]
  %v6432 = vld [vmem:[%s10 + $0x380] sm:$0xff]
  %v6433 = vld [vmem:[%s10 + $0x388] sm:$0xff]
  %v6434 = vld [vmem:[%s10 + $0x390] sm:$0xff]
  %v6435 = vld [vmem:[%s10 + $0x398] sm:$0xff]
  %v6436 = vld [vmem:[%s10 + $0x3a0] sm:$0xff]
  %v6437 = vld [vmem:[%s10 + $0x3a8] sm:$0xff]
  %v6438 = vld [vmem:[%s10 + $0x3b0] sm:$0xff]
  %v6439 = vld [vmem:[%s10 + $0x3b8] sm:$0xff]
  %v6440 = vld [vmem:[%s10 + $0x3c0] sm:$0xff]
  %v6441 = vld [vmem:[%s10 + $0x3c8] sm:$0xff]
  %v6442 = vld [vmem:[%s10 + $0x3d0] sm:$0xff]
  %v6443 = vld [vmem:[%s10 + $0x3d8] sm:$0xff]
  %v6444 = vld [vmem:[%s10 + $0x3e0] sm:$0xff]
  %v6445 = vld [vmem:[%s10 + $0x3e8] sm:$0xff]
  %v6446 = vld [vmem:[%s10 + $0x3f0] sm:$0xff]
  %v6447 = vld [vmem:[%s10 + $0x3f8] sm:$0xff]
  %v6448 = vld [vmem:[%s11] sm:$0xff]
  %v6449 = vld [vmem:[%s11 + $0x8] sm:$0xff]
  %v6450 = vld [vmem:[%s11 + $0x10] sm:$0xff]
  %v6451 = vld [vmem:[%s11 + $0x18] sm:$0xff]
  %v6452 = vld [vmem:[%s11 + $0x20] sm:$0xff]
  %v6453 = vld [vmem:[%s11 + $0x28] sm:$0xff]
  %v6454 = vld [vmem:[%s11 + $0x30] sm:$0xff]
  %v6455 = vld [vmem:[%s11 + $0x38] sm:$0xff]
  %v6456 = vld [vmem:[%s11 + $0x40] sm:$0xff]
  %v6457 = vld [vmem:[%s11 + $0x48] sm:$0xff]
  %v6458 = vld [vmem:[%s11 + $0x50] sm:$0xff]
  %v6459 = vld [vmem:[%s11 + $0x58] sm:$0xff]
  %v6460 = vld [vmem:[%s11 + $0x60] sm:$0xff]
  %v6461 = vld [vmem:[%s11 + $0x68] sm:$0xff]
  %v6462 = vld [vmem:[%s11 + $0x70] sm:$0xff]
  %v6463 = vld [vmem:[%s11 + $0x78] sm:$0xff]
  %v6464 = vand.u32 %v6321, 4294901760
  %6465 = vmatprep.subr.mxu0 %v6464
  %v6466 = vand.u32 %v6320, 4294901760
  %6467 = vmatpush1.msra.mxu0 %v6466
  %v6468 = vand.u32 %v6329, 4294901760
  %6469 = vmatprep.subr.mxu0 %v6468
  %v6470 = vand.u32 %v6328, 4294901760
  %6471 = vmatpush1.msra.mxu0 %v6470
  %v6472 = vand.u32 %v6337, 4294901760
  %6473 = vmatprep.subr.mxu0 %v6472
  %v6474 = vand.u32 %v6336, 4294901760
  %6475 = vmatpush1.msra.mxu0 %v6474
  %v6476 = vand.u32 %v6345, 4294901760
  %6477 = vmatprep.subr.mxu0 %v6476
  %v6478 = vand.u32 %v6344, 4294901760
  %6479 = vmatpush1.msra.mxu0 %v6478
  %v6480 = vand.u32 %v6353, 4294901760
  %6481 = vmatprep.subr.mxu0 %v6480
  %v6482 = vand.u32 %v6352, 4294901760
  %6483 = vmatpush1.msra.mxu0 %v6482
  %v6484 = vand.u32 %v6361, 4294901760
  %6485 = vmatprep.subr.mxu0 %v6484
  %v6486 = vand.u32 %v6360, 4294901760
  %6487 = vmatpush1.msra.mxu0 %v6486
  %v6488 = vand.u32 %v6369, 4294901760
  %6489 = vmatprep.subr.mxu0 %v6488
  %v6490 = vand.u32 %v6368, 4294901760
  %6491 = vmatpush1.msra.mxu0 %v6490
  %v6492 = vand.u32 %v6377, 4294901760
  %6493 = vmatprep.subr.mxu0 %v6492
  %v6494 = vand.u32 %v6376, 4294901760
  %6495 = vmatpush1.msra.mxu0 %v6494
  %v6496 = vand.u32 %v6385, 4294901760
  %6497 = vmatprep.subr.mxu0 %v6496
  %v6498 = vand.u32 %v6384, 4294901760
  %6499 = vmatpush1.msra.mxu0 %v6498
  %v6500 = vand.u32 %v6393, 4294901760
  %6501 = vmatprep.subr.mxu0 %v6500
  %v6502 = vand.u32 %v6392, 4294901760
  %6503 = vmatpush1.msra.mxu0 %v6502
  %v6504 = vand.u32 %v6401, 4294901760
  %6505 = vmatprep.subr.mxu0 %v6504
  %v6506 = vand.u32 %v6400, 4294901760
  %6507 = vmatpush1.msra.mxu0 %v6506
  %v6508 = vand.u32 %v6409, 4294901760
  %6509 = vmatprep.subr.mxu0 %v6508
  %v6510 = vand.u32 %v6408, 4294901760
  %6511 = vmatpush1.msra.mxu0 %v6510
  %v6512 = vand.u32 %v6417, 4294901760
  %6513 = vmatprep.subr.mxu0 %v6512
  %v6514 = vand.u32 %v6416, 4294901760
  %6515 = vmatpush1.msra.mxu0 %v6514
  %v6516 = vand.u32 %v6425, 4294901760
  %6517 = vmatprep.subr.mxu0 %v6516
  %v6518 = vand.u32 %v6424, 4294901760
  %6519 = vmatpush1.msra.mxu0 %v6518
  %v6520 = vand.u32 %v6433, 4294901760
  %6521 = vmatprep.subr.mxu0 %v6520
  %v6522 = vand.u32 %v6432, 4294901760
  %6523 = vmatpush1.msra.mxu0 %v6522
  %v6524 = vand.u32 %v6441, 4294901760
  %6525 = vmatprep.subr.mxu0 %v6524
  %v6526 = vand.u32 %v6440, 4294901760
  %6527 = vmatpush1.msra.mxu0 %v6526
  %6528 = vmatprep.subr.mxu0 0.0
  %6529 = vmatpush1.msra.mxu0 0.0
  %6530 = vmatprep.subr.mxu0 0.0
  %6531 = vmatpush1.msra.mxu0 0.0
  %6532 = vmatprep.subr.mxu0 0.0
  %6533 = vmatpush1.msra.mxu0 0.0
  %6534 = vmatprep.subr.mxu0 0.0
  %6535 = vmatpush1.msra.mxu0 0.0
  %6536 = vmatprep.subr.mxu0 0.0
  %6537 = vmatpush1.msra.mxu0 0.0
  %6538 = vmatprep.subr.mxu0 0.0
  %6539 = vmatpush1.msra.mxu0 0.0
  %6540 = vmatprep.subr.mxu0 0.0
  %6541 = vmatpush1.msra.mxu0 0.0
  %6542 = vmatprep.subr.mxu0 0.0
  %6543 = vmatpush1.msra.mxu0 0.0
  %6544 = vmatprep.subr.mxu0 0.0
  %6545 = vmatpush1.msra.mxu0 0.0
  %6546 = vmatprep.subr.mxu0 0.0
  %6547 = vmatpush1.msra.mxu0 0.0
  %6548 = vmatprep.subr.mxu0 0.0
  %6549 = vmatpush1.msra.mxu0 0.0
  %6550 = vmatprep.subr.mxu0 0.0
  %6551 = vmatpush1.msra.mxu0 0.0
  %6552 = vmatprep.subr.mxu0 0.0
  %6553 = vmatpush1.msra.mxu0 0.0
  %6554 = vmatprep.subr.mxu0 0.0
  %6555 = vmatpush1.msra.mxu0 0.0
  %6556 = vmatprep.subr.mxu0 0.0
  %6557 = vmatpush1.msra.mxu0 0.0
  %6558 = vmatprep.subr.mxu0 0.0
  %6559 = vmatpush1.msra.mxu0 0.0
  %6560 = vmatprep.mubr.f32.mxu0 0.0
  %v6561 = vand.u32 %v1776, 4294901760
  %v6562 = vsub.f32 %v1776, %v6561
  %v6563 = vand.u32 %v6562, 4294901760
  %v6564 = vsub.f32 %v6562, %v6563
  %v6565 = vand.u32 %v6564, 4294901760
  %6566 = vmatmul.mubr.f32.gmra.mrb[0].mxu0 %v6565
  %v6567 = vpop.f32.mrb[0].mxu0
  %v6568 = vadd.f32 %v6448, %v6567
  %v6569 = vpop.f32.mrb[0].mxu0
  %v6570 = vadd.f32 %v6449, %v6569
  %6571 = vmatprep.mubr.f32.mxu0 0.0
  %v6572 = vand.u32 %v1777, 4294901760
  %v6573 = vsub.f32 %v1777, %v6572
  %v6574 = vand.u32 %v6573, 4294901760
  %v6575 = vsub.f32 %v6573, %v6574
  %v6576 = vand.u32 %v6575, 4294901760
  %6577 = vmatmul.mubr.f32.gmra.mrb[0].mxu0 %v6576
  %v6578 = vpop.f32.mrb[0].mxu0
  %v6579 = vadd.f32 %v6456, %v6578
  %v6580 = vpop.f32.mrb[0].mxu0
  %v6581 = vadd.f32 %v6457, %v6580
  %6582 = vdwg.mxu0
  %v6583 = vand.u32 %v6321, 4294901760
  %v6584 = vsub.f32 %v6321, %v6583
  %v6585 = vand.u32 %v6584, 4294901760
  %v6586 = vsub.f32 %v6584, %v6585
  %v6587 = vand.u32 %v6586, 4294901760
  %6588 = vmatprep.subr.mxu0 %v6587
  %v6589 = vand.u32 %v6320, 4294901760
  %v6590 = vsub.f32 %v6320, %v6589
  %v6591 = vand.u32 %v6590, 4294901760
  %v6592 = vsub.f32 %v6590, %v6591
  %v6593 = vand.u32 %v6592, 4294901760
  %6594 = vmatpush1.msra.mxu0 %v6593
  %v6595 = vand.u32 %v6329, 4294901760
  %v6596 = vsub.f32 %v6329, %v6595
  %v6597 = vand.u32 %v6596, 4294901760
  %v6598 = vsub.f32 %v6596, %v6597
  %v6599 = vand.u32 %v6598, 4294901760
  %6600 = vmatprep.subr.mxu0 %v6599
  %v6601 = vand.u32 %v6328, 4294901760
  %v6602 = vsub.f32 %v6328, %v6601
  %v6603 = vand.u32 %v6602, 4294901760
  %v6604 = vsub.f32 %v6602, %v6603
  %v6605 = vand.u32 %v6604, 4294901760
  %6606 = vmatpush1.msra.mxu0 %v6605
  %v6607 = vand.u32 %v6337, 4294901760
  %v6608 = vsub.f32 %v6337, %v6607
  %v6609 = vand.u32 %v6608, 4294901760
  %v6610 = vsub.f32 %v6608, %v6609
  %v6611 = vand.u32 %v6610, 4294901760
  %6612 = vmatprep.subr.mxu0 %v6611
  %v6613 = vand.u32 %v6336, 4294901760
  %v6614 = vsub.f32 %v6336, %v6613
  %v6615 = vand.u32 %v6614, 4294901760
  %v6616 = vsub.f32 %v6614, %v6615
  %v6617 = vand.u32 %v6616, 4294901760
  %6618 = vmatpush1.msra.mxu0 %v6617
  %v6619 = vand.u32 %v6345, 4294901760
  %v6620 = vsub.f32 %v6345, %v6619
  %v6621 = vand.u32 %v6620, 4294901760
  %v6622 = vsub.f32 %v6620, %v6621
  %v6623 = vand.u32 %v6622, 4294901760
  %6624 = vmatprep.subr.mxu0 %v6623
  %v6625 = vand.u32 %v6344, 4294901760
  %v6626 = vsub.f32 %v6344, %v6625
  %v6627 = vand.u32 %v6626, 4294901760
  %v6628 = vsub.f32 %v6626, %v6627
  %v6629 = vand.u32 %v6628, 4294901760
  %6630 = vmatpush1.msra.mxu0 %v6629
  %v6631 = vand.u32 %v6353, 4294901760
  %v6632 = vsub.f32 %v6353, %v6631
  %v6633 = vand.u32 %v6632, 4294901760
  %v6634 = vsub.f32 %v6632, %v6633
  %v6635 = vand.u32 %v6634, 4294901760
  %6636 = vmatprep.subr.mxu0 %v6635
  %v6637 = vand.u32 %v6352, 4294901760
  %v6638 = vsub.f32 %v6352, %v6637
  %v6639 = vand.u32 %v6638, 4294901760
  %v6640 = vsub.f32 %v6638, %v6639
  %v6641 = vand.u32 %v6640, 4294901760
  %6642 = vmatpush1.msra.mxu0 %v6641
  %v6643 = vand.u32 %v6361, 4294901760
  %v6644 = vsub.f32 %v6361, %v6643
  %v6645 = vand.u32 %v6644, 4294901760
  %v6646 = vsub.f32 %v6644, %v6645
  %v6647 = vand.u32 %v6646, 4294901760
  %6648 = vmatprep.subr.mxu0 %v6647
  %v6649 = vand.u32 %v6360, 4294901760
  %v6650 = vsub.f32 %v6360, %v6649
  %v6651 = vand.u32 %v6650, 4294901760
  %v6652 = vsub.f32 %v6650, %v6651
  %v6653 = vand.u32 %v6652, 4294901760
  %6654 = vmatpush1.msra.mxu0 %v6653
  %v6655 = vand.u32 %v6369, 4294901760
  %v6656 = vsub.f32 %v6369, %v6655
  %v6657 = vand.u32 %v6656, 4294901760
  %v6658 = vsub.f32 %v6656, %v6657
  %v6659 = vand.u32 %v6658, 4294901760
  %6660 = vmatprep.subr.mxu0 %v6659
  %v6661 = vand.u32 %v6368, 4294901760
  %v6662 = vsub.f32 %v6368, %v6661
  %v6663 = vand.u32 %v6662, 4294901760
  %v6664 = vsub.f32 %v6662, %v6663
  %v6665 = vand.u32 %v6664, 4294901760
  %6666 = vmatpush1.msra.mxu0 %v6665
  %v6667 = vand.u32 %v6377, 4294901760
  %v6668 = vsub.f32 %v6377, %v6667
  %v6669 = vand.u32 %v6668, 4294901760
  %v6670 = vsub.f32 %v6668, %v6669
  %v6671 = vand.u32 %v6670, 4294901760
  %6672 = vmatprep.subr.mxu0 %v6671
  %v6673 = vand.u32 %v6376, 4294901760
  %v6674 = vsub.f32 %v6376, %v6673
  %v6675 = vand.u32 %v6674, 4294901760
  %v6676 = vsub.f32 %v6674, %v6675
  %v6677 = vand.u32 %v6676, 4294901760
  %6678 = vmatpush1.msra.mxu0 %v6677
  %v6679 = vand.u32 %v6385, 4294901760
  %v6680 = vsub.f32 %v6385, %v6679
  %v6681 = vand.u32 %v6680, 4294901760
  %v6682 = vsub.f32 %v6680, %v6681
  %v6683 = vand.u32 %v6682, 4294901760
  %6684 = vmatprep.subr.mxu0 %v6683
  %v6685 = vand.u32 %v6384, 4294901760
  %v6686 = vsub.f32 %v6384, %v6685
  %v6687 = vand.u32 %v6686, 4294901760
  %v6688 = vsub.f32 %v6686, %v6687
  %v6689 = vand.u32 %v6688, 4294901760
  %6690 = vmatpush1.msra.mxu0 %v6689
  %v6691 = vand.u32 %v6393, 4294901760
  %v6692 = vsub.f32 %v6393, %v6691
  %v6693 = vand.u32 %v6692, 4294901760
  %v6694 = vsub.f32 %v6692, %v6693
  %v6695 = vand.u32 %v6694, 4294901760
  %6696 = vmatprep.subr.mxu0 %v6695
  %v6697 = vand.u32 %v6392, 4294901760
  %v6698 = vsub.f32 %v6392, %v6697
  %v6699 = vand.u32 %v6698, 4294901760
  %v6700 = vsub.f32 %v6698, %v6699
  %v6701 = vand.u32 %v6700, 4294901760
  %6702 = vmatpush1.msra.mxu0 %v6701
  %v6703 = vand.u32 %v6401, 4294901760
  %v6704 = vsub.f32 %v6401, %v6703
  %v6705 = vand.u32 %v6704, 4294901760
  %v6706 = vsub.f32 %v6704, %v6705
  %v6707 = vand.u32 %v6706, 4294901760
  %6708 = vmatprep.subr.mxu0 %v6707
  %v6709 = vand.u32 %v6400, 4294901760
  %v6710 = vsub.f32 %v6400, %v6709
  %v6711 = vand.u32 %v6710, 4294901760
  %v6712 = vsub.f32 %v6710, %v6711
  %v6713 = vand.u32 %v6712, 4294901760
  %6714 = vmatpush1.msra.mxu0 %v6713
  %v6715 = vand.u32 %v6409, 4294901760
  %v6716 = vsub.f32 %v6409, %v6715
  %v6717 = vand.u32 %v6716, 4294901760
  %v6718 = vsub.f32 %v6716, %v6717
  %v6719 = vand.u32 %v6718, 4294901760
  %6720 = vmatprep.subr.mxu0 %v6719
  %v6721 = vand.u32 %v6408, 4294901760
  %v6722 = vsub.f32 %v6408, %v6721
  %v6723 = vand.u32 %v6722, 4294901760
  %v6724 = vsub.f32 %v6722, %v6723
  %v6725 = vand.u32 %v6724, 4294901760
  %6726 = vmatpush1.msra.mxu0 %v6725
  %v6727 = vand.u32 %v6417, 4294901760
  %v6728 = vsub.f32 %v6417, %v6727
  %v6729 = vand.u32 %v6728, 4294901760
  %v6730 = vsub.f32 %v6728, %v6729
  %v6731 = vand.u32 %v6730, 4294901760
  %6732 = vmatprep.subr.mxu0 %v6731
  %v6733 = vand.u32 %v6416, 4294901760
  %v6734 = vsub.f32 %v6416, %v6733
  %v6735 = vand.u32 %v6734, 4294901760
  %v6736 = vsub.f32 %v6734, %v6735
  %v6737 = vand.u32 %v6736, 4294901760
  %6738 = vmatpush1.msra.mxu0 %v6737
  %v6739 = vand.u32 %v6425, 4294901760
  %v6740 = vsub.f32 %v6425, %v6739
  %v6741 = vand.u32 %v6740, 4294901760
  %v6742 = vsub.f32 %v6740, %v6741
  %v6743 = vand.u32 %v6742, 4294901760
  %6744 = vmatprep.subr.mxu0 %v6743
  %v6745 = vand.u32 %v6424, 4294901760
  %v6746 = vsub.f32 %v6424, %v6745
  %v6747 = vand.u32 %v6746, 4294901760
  %v6748 = vsub.f32 %v6746, %v6747
  %v6749 = vand.u32 %v6748, 4294901760
  %6750 = vmatpush1.msra.mxu0 %v6749
  %v6751 = vand.u32 %v6433, 4294901760
  %v6752 = vsub.f32 %v6433, %v6751
  %v6753 = vand.u32 %v6752, 4294901760
  %v6754 = vsub.f32 %v6752, %v6753
  %v6755 = vand.u32 %v6754, 4294901760
  %6756 = vmatprep.subr.mxu0 %v6755
  %v6757 = vand.u32 %v6432, 4294901760
  %v6758 = vsub.f32 %v6432, %v6757
  %v6759 = vand.u32 %v6758, 4294901760
  %v6760 = vsub.f32 %v6758, %v6759
  %v6761 = vand.u32 %v6760, 4294901760
  %6762 = vmatpush1.msra.mxu0 %v6761
  %v6763 = vand.u32 %v6441, 4294901760
  %v6764 = vsub.f32 %v6441, %v6763
  %v6765 = vand.u32 %v6764, 4294901760
  %v6766 = vsub.f32 %v6764, %v6765
  %v6767 = vand.u32 %v6766, 4294901760
  %6768 = vmatprep.subr.mxu0 %v6767
  %v6769 = vand.u32 %v6440, 4294901760
  %v6770 = vsub.f32 %v6440, %v6769
  %v6771 = vand.u32 %v6770, 4294901760
  %v6772 = vsub.f32 %v6770, %v6771
  %v6773 = vand.u32 %v6772, 4294901760
  %6774 = vmatpush1.msra.mxu0 %v6773
  %6775 = vmatprep.subr.mxu0 0.0
  %6776 = vmatpush1.msra.mxu0 0.0
  %6777 = vmatprep.subr.mxu0 0.0
  %6778 = vmatpush1.msra.mxu0 0.0
  %6779 = vmatprep.subr.mxu0 0.0
  %6780 = vmatpush1.msra.mxu0 0.0
  %6781 = vmatprep.subr.mxu0 0.0
  %6782 = vmatpush1.msra.mxu0 0.0
  %6783 = vmatprep.subr.mxu0 0.0
  %6784 = vmatpush1.msra.mxu0 0.0
  %6785 = vmatprep.subr.mxu0 0.0
  %6786 = vmatpush1.msra.mxu0 0.0
  %6787 = vmatprep.subr.mxu0 0.0
  %6788 = vmatpush1.msra.mxu0 0.0
  %6789 = vmatprep.subr.mxu0 0.0
  %6790 = vmatpush1.msra.mxu0 0.0
  %6791 = vmatprep.subr.mxu0 0.0
  %6792 = vmatpush1.msra.mxu0 0.0
  %6793 = vmatprep.subr.mxu0 0.0
  %6794 = vmatpush1.msra.mxu0 0.0
  %6795 = vmatprep.subr.mxu0 0.0
  %6796 = vmatpush1.msra.mxu0 0.0
  %6797 = vmatprep.subr.mxu0 0.0
  %6798 = vmatpush1.msra.mxu0 0.0
  %6799 = vmatprep.subr.mxu0 0.0
  %6800 = vmatpush1.msra.mxu0 0.0
  %6801 = vmatprep.subr.mxu0 0.0
  %6802 = vmatpush1.msra.mxu0 0.0
  %6803 = vmatprep.subr.mxu0 0.0
  %6804 = vmatpush1.msra.mxu0 0.0
  %6805 = vmatprep.subr.mxu0 0.0
  %6806 = vmatpush1.msra.mxu0 0.0
  %6807 = vmatprep.mubr.f32.mxu0 0.0
  %v6808 = vand.u32 %v1776, 4294901760
  %6809 = vmatmul.mubr.f32.gmra.mrb[0].mxu0 %v6808
  %v6810 = vpop.f32.mrb[0].mxu0
  %v6811 = vadd.f32 %v6568, %v6810
  %v6812 = vpop.f32.mrb[0].mxu0
  %v6813 = vadd.f32 %v6570, %v6812
  %6814 = vmatprep.mubr.f32.mxu0 0.0
  %v6815 = vand.u32 %v1777, 4294901760
  %6816 = vmatmul.mubr.f32.gmra.mrb[0].mxu0 %v6815
  %v6817 = vpop.f32.mrb[0].mxu0
  %v6818 = vadd.f32 %v6579, %v6817
  %v6819 = vpop.f32.mrb[0].mxu0
  %v6820 = vadd.f32 %v6581, %v6819
  %6821 = vdwg.mxu0
  %v6822 = vand.u32 %v6321, 4294901760
  %v6823 = vsub.f32 %v6321, %v6822
  %6824 = vmatprep.subr.mxu0 %v6823
  %v6825 = vand.u32 %v6320, 4294901760
  %v6826 = vsub.f32 %v6320, %v6825
  %6827 = vmatpush1.msra.mxu0 %v6826
  %v6828 = vand.u32 %v6329, 4294901760
  %v6829 = vsub.f32 %v6329, %v6828
  %6830 = vmatprep.subr.mxu0 %v6829
  %v6831 = vand.u32 %v6328, 4294901760
  %v6832 = vsub.f32 %v6328, %v6831
  %6833 = vmatpush1.msra.mxu0 %v6832
  %v6834 = vand.u32 %v6337, 4294901760
  %v6835 = vsub.f32 %v6337, %v6834
  %6836 = vmatprep.subr.mxu0 %v6835
  %v6837 = vand.u32 %v6336, 4294901760
  %v6838 = vsub.f32 %v6336, %v6837
  %6839 = vmatpush1.msra.mxu0 %v6838
  %v6840 = vand.u32 %v6345, 4294901760
  %v6841 = vsub.f32 %v6345, %v6840
  %6842 = vmatprep.subr.mxu0 %v6841
  %v6843 = vand.u32 %v6344, 4294901760
  %v6844 = vsub.f32 %v6344, %v6843
  %6845 = vmatpush1.msra.mxu0 %v6844
  %v6846 = vand.u32 %v6353, 4294901760
  %v6847 = vsub.f32 %v6353, %v6846
  %6848 = vmatprep.subr.mxu0 %v6847
  %v6849 = vand.u32 %v6352, 4294901760
  %v6850 = vsub.f32 %v6352, %v6849
  %6851 = vmatpush1.msra.mxu0 %v6850
  %v6852 = vand.u32 %v6361, 4294901760
  %v6853 = vsub.f32 %v6361, %v6852
  %6854 = vmatprep.subr.mxu0 %v6853
  %v6855 = vand.u32 %v6360, 4294901760
  %v6856 = vsub.f32 %v6360, %v6855
  %6857 = vmatpush1.msra.mxu0 %v6856
  %v6858 = vand.u32 %v6369, 4294901760
  %v6859 = vsub.f32 %v6369, %v6858
  %6860 = vmatprep.subr.mxu0 %v6859
  %v6861 = vand.u32 %v6368, 4294901760
  %v6862 = vsub.f32 %v6368, %v6861
  %6863 = vmatpush1.msra.mxu0 %v6862
  %v6864 = vand.u32 %v6377, 4294901760
  %v6865 = vsub.f32 %v6377, %v6864
  %6866 = vmatprep.subr.mxu0 %v6865
  %v6867 = vand.u32 %v6376, 4294901760
  %v6868 = vsub.f32 %v6376, %v6867
  %6869 = vmatpush1.msra.mxu0 %v6868
  %v6870 = vand.u32 %v6385, 4294901760
  %v6871 = vsub.f32 %v6385, %v6870
  %6872 = vmatprep.subr.mxu0 %v6871
  %v6873 = vand.u32 %v6384, 4294901760
  %v6874 = vsub.f32 %v6384, %v6873
  %6875 = vmatpush1.msra.mxu0 %v6874
  %v6876 = vand.u32 %v6393, 4294901760
  %v6877 = vsub.f32 %v6393, %v6876
  %6878 = vmatprep.subr.mxu0 %v6877
  %v6879 = vand.u32 %v6392, 4294901760
  %v6880 = vsub.f32 %v6392, %v6879
  %6881 = vmatpush1.msra.mxu0 %v6880
  %v6882 = vand.u32 %v6401, 4294901760
  %v6883 = vsub.f32 %v6401, %v6882
  %6884 = vmatprep.subr.mxu0 %v6883
  %v6885 = vand.u32 %v6400, 4294901760
  %v6886 = vsub.f32 %v6400, %v6885
  %6887 = vmatpush1.msra.mxu0 %v6886
  %v6888 = vand.u32 %v6409, 4294901760
  %v6889 = vsub.f32 %v6409, %v6888
  %6890 = vmatprep.subr.mxu0 %v6889
  %v6891 = vand.u32 %v6408, 4294901760
  %v6892 = vsub.f32 %v6408, %v6891
  %6893 = vmatpush1.msra.mxu0 %v6892
  %v6894 = vand.u32 %v6417, 4294901760
  %v6895 = vsub.f32 %v6417, %v6894
  %6896 = vmatprep.subr.mxu0 %v6895
  %v6897 = vand.u32 %v6416, 4294901760
  %v6898 = vsub.f32 %v6416, %v6897
  %6899 = vmatpush1.msra.mxu0 %v6898
  %v6900 = vand.u32 %v6425, 4294901760
  %v6901 = vsub.f32 %v6425, %v6900
  %6902 = vmatprep.subr.mxu0 %v6901
  %v6903 = vand.u32 %v6424, 4294901760
  %v6904 = vsub.f32 %v6424, %v6903
  %6905 = vmatpush1.msra.mxu0 %v6904
  %v6906 = vand.u32 %v6433, 4294901760
  %v6907 = vsub.f32 %v6433, %v6906
  %6908 = vmatprep.subr.mxu0 %v6907
  %v6909 = vand.u32 %v6432, 4294901760
  %v6910 = vsub.f32 %v6432, %v6909
  %6911 = vmatpush1.msra.mxu0 %v6910
  %v6912 = vand.u32 %v6441, 4294901760
  %v6913 = vsub.f32 %v6441, %v6912
  %6914 = vmatprep.subr.mxu0 %v6913
  %v6915 = vand.u32 %v6440, 4294901760
  %v6916 = vsub.f32 %v6440, %v6915
  %6917 = vmatpush1.msra.mxu0 %v6916
  %6918 = vmatprep.subr.mxu0 0.0
  %6919 = vmatpush1.msra.mxu0 0.0
  %6920 = vmatprep.subr.mxu0 0.0
  %6921 = vmatpush1.msra.mxu0 0.0
  %6922 = vmatprep.subr.mxu0 0.0
  %6923 = vmatpush1.msra.mxu0 0.0
  %6924 = vmatprep.subr.mxu0 0.0
  %6925 = vmatpush1.msra.mxu0 0.0
  %6926 = vmatprep.subr.mxu0 0.0
  %6927 = vmatpush1.msra.mxu0 0.0
  %6928 = vmatprep.subr.mxu0 0.0
  %6929 = vmatpush1.msra.mxu0 0.0
  %6930 = vmatprep.subr.mxu0 0.0
  %6931 = vmatpush1.msra.mxu0 0.0
  %6932 = vmatprep.subr.mxu0 0.0
  %6933 = vmatpush1.msra.mxu0 0.0
  %6934 = vmatprep.subr.mxu0 0.0
  %6935 = vmatpush1.msra.mxu0 0.0
  %6936 = vmatprep.subr.mxu0 0.0
  %6937 = vmatpush1.msra.mxu0 0.0
  %6938 = vmatprep.subr.mxu0 0.0
  %6939 = vmatpush1.msra.mxu0 0.0
  %6940 = vmatprep.subr.mxu0 0.0
  %6941 = vmatpush1.msra.mxu0 0.0
  %6942 = vmatprep.subr.mxu0 0.0
  %6943 = vmatpush1.msra.mxu0 0.0
  %6944 = vmatprep.subr.mxu0 0.0
  %6945 = vmatpush1.msra.mxu0 0.0
  %6946 = vmatprep.subr.mxu0 0.0
  %6947 = vmatpush1.msra.mxu0 0.0
  %6948 = vmatprep.subr.mxu0 0.0
  %6949 = vmatpush1.msra.mxu0 0.0
  %6950 = vmatprep.mubr.f32.mxu0 0.0
  %v6951 = vand.u32 %v1776, 4294901760
  %v6952 = vsub.f32 %v1776, %v6951
  %6953 = vmatmul.mubr.f32.gmra.mrb[0].mxu0 %v6952
  %v6954 = vpop.f32.mrb[0].mxu0
  %v6955 = vadd.f32 %v6811, %v6954
  %v6956 = vpop.f32.mrb[0].mxu0
  %v6957 = vadd.f32 %v6813, %v6956
  %6958 = vmatprep.mubr.f32.mxu0 0.0
  %v6959 = vand.u32 %v1777, 4294901760
  %v6960 = vsub.f32 %v1777, %v6959
  %6961 = vmatmul.mubr.f32.gmra.mrb[0].mxu0 %v6960
  %v6962 = vpop.f32.mrb[0].mxu0
  %v6963 = vadd.f32 %v6818, %v6962
  %v6964 = vpop.f32.mrb[0].mxu0
  %v6965 = vadd.f32 %v6820, %v6964
  %6966 = vdwg.mxu0
  %v6967 = vand.u32 %v6321, 4294901760
  %6968 = vmatprep.subr.mxu0 %v6967
  %v6969 = vand.u32 %v6320, 4294901760
  %6970 = vmatpush1.msra.mxu0 %v6969
  %v6971 = vand.u32 %v6329, 4294901760
  %6972 = vmatprep.subr.mxu0 %v6971
  %v6973 = vand.u32 %v6328, 4294901760
  %6974 = vmatpush1.msra.mxu0 %v6973
  %v6975 = vand.u32 %v6337, 4294901760
  %6976 = vmatprep.subr.mxu0 %v6975
  %v6977 = vand.u32 %v6336, 4294901760
  %6978 = vmatpush1.msra.mxu0 %v6977
  %v6979 = vand.u32 %v6345, 4294901760
  %6980 = vmatprep.subr.mxu0 %v6979
  %v6981 = vand.u32 %v6344, 4294901760
  %6982 = vmatpush1.msra.mxu0 %v6981
  %v6983 = vand.u32 %v6353, 4294901760
  %6984 = vmatprep.subr.mxu0 %v6983
  %v6985 = vand.u32 %v6352, 4294901760
  %6986 = vmatpush1.msra.mxu0 %v6985
  %v6987 = vand.u32 %v6361, 4294901760
  %6988 = vmatprep.subr.mxu0 %v6987
  %v6989 = vand.u32 %v6360, 4294901760
  %6990 = vmatpush1.msra.mxu0 %v6989
  %v6991 = vand.u32 %v6369, 4294901760
  %6992 = vmatprep.subr.mxu0 %v6991
  %v6993 = vand.u32 %v6368, 4294901760
  %6994 = vmatpush1.msra.mxu0 %v6993
  %v6995 = vand.u32 %v6377, 4294901760
  %6996 = vmatprep.subr.mxu0 %v6995
  %v6997 = vand.u32 %v6376, 4294901760
  %6998 = vmatpush1.msra.mxu0 %v6997
  %v6999 = vand.u32 %v6385, 4294901760
  %7000 = vmatprep.subr.mxu0 %v6999
  %v7001 = vand.u32 %v6384, 4294901760
  %7002 = vmatpush1.msra.mxu0 %v7001
  %v7003 = vand.u32 %v6393, 4294901760
  %7004 = vmatprep.subr.mxu0 %v7003
  %v7005 = vand.u32 %v6392, 4294901760
  %7006 = vmatpush1.msra.mxu0 %v7005
  %v7007 = vand.u32 %v6401, 4294901760
  %7008 = vmatprep.subr.mxu0 %v7007
  %v7009 = vand.u32 %v6400, 4294901760
  %7010 = vmatpush1.msra.mxu0 %v7009
  %v7011 = vand.u32 %v6409, 4294901760
  %7012 = vmatprep.subr.mxu0 %v7011
  %v7013 = vand.u32 %v6408, 4294901760
  %7014 = vmatpush1.msra.mxu0 %v7013
  %v7015 = vand.u32 %v6417, 4294901760
  %7016 = vmatprep.subr.mxu0 %v7015
  %v7017 = vand.u32 %v6416, 4294901760
  %7018 = vmatpush1.msra.mxu0 %v7017
  %v7019 = vand.u32 %v6425, 4294901760
  %7020 = vmatprep.subr.mxu0 %v7019
  %v7021 = vand.u32 %v6424, 4294901760
  %7022 = vmatpush1.msra.mxu0 %v7021
  %v7023 = vand.u32 %v6433, 4294901760
  %7024 = vmatprep.subr.mxu0 %v7023
  %v7025 = vand.u32 %v6432, 4294901760
  %7026 = vmatpush1.msra.mxu0 %v7025
  %v7027 = vand.u32 %v6441, 4294901760
  %7028 = vmatprep.subr.mxu0 %v7027
  %v7029 = vand.u32 %v6440, 4294901760
  %7030 = vmatpush1.msra.mxu0 %v7029
  %7031 = vmatprep.subr.mxu0 0.0
  %7032 = vmatpush1.msra.mxu0 0.0
  %7033 = vmatprep.subr.mxu0 0.0
  %7034 = vmatpush1.msra.mxu0 0.0
  %7035 = vmatprep.subr.mxu0 0.0
  %7036 = vmatpush1.msra.mxu0 0.0
  %7037 = vmatprep.subr.mxu0 0.0
  %7038 = vmatpush1.msra.mxu0 0.0
  %7039 = vmatprep.subr.mxu0 0.0
  %7040 = vmatpush1.msra.mxu0 0.0
  %7041 = vmatprep.subr.mxu0 0.0
  %7042 = vmatpush1.msra.mxu0 0.0
  %7043 = vmatprep.subr.mxu0 0.0
  %7044 = vmatpush1.msra.mxu0 0.0
  %7045 = vmatprep.subr.mxu0 0.0
  %7046 = vmatpush1.msra.mxu0 0.0
  %7047 = vmatprep.subr.mxu0 0.0
  %7048 = vmatpush1.msra.mxu0 0.0
  %7049 = vmatprep.subr.mxu0 0.0
  %7050 = vmatpush1.msra.mxu0 0.0
  %7051 = vmatprep.subr.mxu0 0.0
  %7052 = vmatpush1.msra.mxu0 0.0
  %7053 = vmatprep.subr.mxu0 0.0
  %7054 = vmatpush1.msra.mxu0 0.0
  %7055 = vmatprep.subr.mxu0 0.0
  %7056 = vmatpush1.msra.mxu0 0.0
  %7057 = vmatprep.subr.mxu0 0.0
  %7058 = vmatpush1.msra.mxu0 0.0
  %7059 = vmatprep.subr.mxu0 0.0
  %7060 = vmatpush1.msra.mxu0 0.0
  %7061 = vmatprep.subr.mxu0 0.0
  %7062 = vmatpush1.msra.mxu0 0.0
  %7063 = vmatprep.mubr.f32.mxu0 0.0
  %v7064 = vand.u32 %v1776, 4294901760
  %v7065 = vsub.f32 %v1776, %v7064
  %v7066 = vand.u32 %v7065, 4294901760
  %7067 = vmatmul.mubr.f32.gmra.mrb[0].mxu0 %v7066
  %v7068 = vpop.f32.mrb[0].mxu0
  %v7069 = vadd.f32 %v6955, %v7068
  %v7070 = vpop.f32.mrb[0].mxu0
  %v7071 = vadd.f32 %v6957, %v7070
  %7072 = vmatprep.mubr.f32.mxu0 0.0
  %v7073 = vand.u32 %v1777, 4294901760
  %v7074 = vsub.f32 %v1777, %v7073
  %v7075 = vand.u32 %v7074, 4294901760
  %7076 = vmatmul.mubr.f32.gmra.mrb[0].mxu0 %v7075
  %v7077 = vpop.f32.mrb[0].mxu0
  %v7078 = vadd.f32 %v6963, %v7077
  %v7079 = vpop.f32.mrb[0].mxu0
  %v7080 = vadd.f32 %v6965, %v7079
  %7081 = vdwg.mxu0
  %v7082 = vand.u32 %v6321, 4294901760
  %v7083 = vsub.f32 %v6321, %v7082
  %v7084 = vand.u32 %v7083, 4294901760
  %7085 = vmatprep.subr.mxu0 %v7084
  %v7086 = vand.u32 %v6320, 4294901760
  %v7087 = vsub.f32 %v6320, %v7086
  %v7088 = vand.u32 %v7087, 4294901760
  %7089 = vmatpush1.msra.mxu0 %v7088
  %v7090 = vand.u32 %v6329, 4294901760
  %v7091 = vsub.f32 %v6329, %v7090
  %v7092 = vand.u32 %v7091, 4294901760
  %7093 = vmatprep.subr.mxu0 %v7092
  %v7094 = vand.u32 %v6328, 4294901760
  %v7095 = vsub.f32 %v6328, %v7094
  %v7096 = vand.u32 %v7095, 4294901760
  %7097 = vmatpush1.msra.mxu0 %v7096
  %v7098 = vand.u32 %v6337, 4294901760
  %v7099 = vsub.f32 %v6337, %v7098
  %v7100 = vand.u32 %v7099, 4294901760
  %7101 = vmatprep.subr.mxu0 %v7100
  %v7102 = vand.u32 %v6336, 4294901760
  %v7103 = vsub.f32 %v6336, %v7102
  %v7104 = vand.u32 %v7103, 4294901760
  %7105 = vmatpush1.msra.mxu0 %v7104
  %v7106 = vand.u32 %v6345, 4294901760
  %v7107 = vsub.f32 %v6345, %v7106
  %v7108 = vand.u32 %v7107, 4294901760
  %7109 = vmatprep.subr.mxu0 %v7108
  %v7110 = vand.u32 %v6344, 4294901760
  %v7111 = vsub.f32 %v6344, %v7110
  %v7112 = vand.u32 %v7111, 4294901760
  %7113 = vmatpush1.msra.mxu0 %v7112
  %v7114 = vand.u32 %v6353, 4294901760
  %v7115 = vsub.f32 %v6353, %v7114
  %v7116 = vand.u32 %v7115, 4294901760
  %7117 = vmatprep.subr.mxu0 %v7116
  %v7118 = vand.u32 %v6352, 4294901760
  %v7119 = vsub.f32 %v6352, %v7118
  %v7120 = vand.u32 %v7119, 4294901760
  %7121 = vmatpush1.msra.mxu0 %v7120
  %v7122 = vand.u32 %v6361, 4294901760
  %v7123 = vsub.f32 %v6361, %v7122
  %v7124 = vand.u32 %v7123, 4294901760
  %7125 = vmatprep.subr.mxu0 %v7124
  %v7126 = vand.u32 %v6360, 4294901760
  %v7127 = vsub.f32 %v6360, %v7126
  %v7128 = vand.u32 %v7127, 4294901760
  %7129 = vmatpush1.msra.mxu0 %v7128
  %v7130 = vand.u32 %v6369, 4294901760
  %v7131 = vsub.f32 %v6369, %v7130
  %v7132 = vand.u32 %v7131, 4294901760
  %7133 = vmatprep.subr.mxu0 %v7132
  %v7134 = vand.u32 %v6368, 4294901760
  %v7135 = vsub.f32 %v6368, %v7134
  %v7136 = vand.u32 %v7135, 4294901760
  %7137 = vmatpush1.msra.mxu0 %v7136
  %v7138 = vand.u32 %v6377, 4294901760
  %v7139 = vsub.f32 %v6377, %v7138
  %v7140 = vand.u32 %v7139, 4294901760
  %7141 = vmatprep.subr.mxu0 %v7140
  %v7142 = vand.u32 %v6376, 4294901760
  %v7143 = vsub.f32 %v6376, %v7142
  %v7144 = vand.u32 %v7143, 4294901760
  %7145 = vmatpush1.msra.mxu0 %v7144
  %v7146 = vand.u32 %v6385, 4294901760
  %v7147 = vsub.f32 %v6385, %v7146
  %v7148 = vand.u32 %v7147, 4294901760
  %7149 = vmatprep.subr.mxu0 %v7148
  %v7150 = vand.u32 %v6384, 4294901760
  %v7151 = vsub.f32 %v6384, %v7150
  %v7152 = vand.u32 %v7151, 4294901760
  %7153 = vmatpush1.msra.mxu0 %v7152
  %v7154 = vand.u32 %v6393, 4294901760
  %v7155 = vsub.f32 %v6393, %v7154
  %v7156 = vand.u32 %v7155, 4294901760
  %7157 = vmatprep.subr.mxu0 %v7156
  %v7158 = vand.u32 %v6392, 4294901760
  %v7159 = vsub.f32 %v6392, %v7158
  %v7160 = vand.u32 %v7159, 4294901760
  %7161 = vmatpush1.msra.mxu0 %v7160
  %v7162 = vand.u32 %v6401, 4294901760
  %v7163 = vsub.f32 %v6401, %v7162
  %v7164 = vand.u32 %v7163, 4294901760
  %7165 = vmatprep.subr.mxu0 %v7164
  %v7166 = vand.u32 %v6400, 4294901760
  %v7167 = vsub.f32 %v6400, %v7166
  %v7168 = vand.u32 %v7167, 4294901760
  %7169 = vmatpush1.msra.mxu0 %v7168
  %v7170 = vand.u32 %v6409, 4294901760
  %v7171 = vsub.f32 %v6409, %v7170
  %v7172 = vand.u32 %v7171, 4294901760
  %7173 = vmatprep.subr.mxu0 %v7172
  %v7174 = vand.u32 %v6408, 4294901760
  %v7175 = vsub.f32 %v6408, %v7174
  %v7176 = vand.u32 %v7175, 4294901760
  %7177 = vmatpush1.msra.mxu0 %v7176
  %v7178 = vand.u32 %v6417, 4294901760
  %v7179 = vsub.f32 %v6417, %v7178
  %v7180 = vand.u32 %v7179, 4294901760
  %7181 = vmatprep.subr.mxu0 %v7180
  %v7182 = vand.u32 %v6416, 4294901760
  %v7183 = vsub.f32 %v6416, %v7182
  %v7184 = vand.u32 %v7183, 4294901760
  %7185 = vmatpush1.msra.mxu0 %v7184
  %v7186 = vand.u32 %v6425, 4294901760
  %v7187 = vsub.f32 %v6425, %v7186
  %v7188 = vand.u32 %v7187, 4294901760
  %7189 = vmatprep.subr.mxu0 %v7188
  %v7190 = vand.u32 %v6424, 4294901760
  %v7191 = vsub.f32 %v6424, %v7190
  %v7192 = vand.u32 %v7191, 4294901760
  %7193 = vmatpush1.msra.mxu0 %v7192
  %v7194 = vand.u32 %v6433, 4294901760
  %v7195 = vsub.f32 %v6433, %v7194
  %v7196 = vand.u32 %v7195, 4294901760
  %7197 = vmatprep.subr.mxu0 %v7196
  %v7198 = vand.u32 %v6432, 4294901760
  %v7199 = vsub.f32 %v6432, %v7198
  %v7200 = vand.u32 %v7199, 4294901760
  %7201 = vmatpush1.msra.mxu0 %v7200
  %v7202 = vand.u32 %v6441, 4294901760
  %v7203 = vsub.f32 %v6441, %v7202
  %v7204 = vand.u32 %v7203, 4294901760
  %7205 = vmatprep.subr.mxu0 %v7204
  %v7206 = vand.u32 %v6440, 4294901760
  %v7207 = vsub.f32 %v6440, %v7206
  %v7208 = vand.u32 %v7207, 4294901760
  %7209 = vmatpush1.msra.mxu0 %v7208
  %7210 = vmatprep.subr.mxu0 0.0
  %7211 = vmatpush1.msra.mxu0 0.0
  %7212 = vmatprep.subr.mxu0 0.0
  %7213 = vmatpush1.msra.mxu0 0.0
  %7214 = vmatprep.subr.mxu0 0.0
  %7215 = vmatpush1.msra.mxu0 0.0
  %7216 = vmatprep.subr.mxu0 0.0
  %7217 = vmatpush1.msra.mxu0 0.0
  %7218 = vmatprep.subr.mxu0 0.0
  %7219 = vmatpush1.msra.mxu0 0.0
  %7220 = vmatprep.subr.mxu0 0.0
  %7221 = vmatpush1.msra.mxu0 0.0
  %7222 = vmatprep.subr.mxu0 0.0
  %7223 = vmatpush1.msra.mxu0 0.0
  %7224 = vmatprep.subr.mxu0 0.0
  %7225 = vmatpush1.msra.mxu0 0.0
  %7226 = vmatprep.subr.mxu0 0.0
  %7227 = vmatpush1.msra.mxu0 0.0
  %7228 = vmatprep.subr.mxu0 0.0
  %7229 = vmatpush1.msra.mxu0 0.0
  %7230 = vmatprep.subr.mxu0 0.0
  %7231 = vmatpush1.msra.mxu0 0.0
  %7232 = vmatprep.subr.mxu0 0.0
  %7233 = vmatpush1.msra.mxu0 0.0
  %7234 = vmatprep.subr.mxu0 0.0
  %7235 = vmatpush1.msra.mxu0 0.0
  %7236 = vmatprep.subr.mxu0 0.0
  %7237 = vmatpush1.msra.mxu0 0.0
  %7238 = vmatprep.subr.mxu0 0.0
  %7239 = vmatpush1.msra.mxu0 0.0
  %7240 = vmatprep.subr.mxu0 0.0
  %7241 = vmatpush1.msra.mxu0 0.0
  %7242 = vmatprep.mubr.f32.mxu0 0.0
  %v7243 = vand.u32 %v1776, 4294901760
  %7244 = vmatmul.mubr.f32.gmra.mrb[0].mxu0 %v7243
  %v7245 = vpop.f32.mrb[0].mxu0
  %v7246 = vadd.f32 %v7069, %v7245
  %v7247 = vpop.f32.mrb[0].mxu0
  %v7248 = vadd.f32 %v7071, %v7247
  %7249 = vmatprep.mubr.f32.mxu0 0.0
  %v7250 = vand.u32 %v1777, 4294901760
  %7251 = vmatmul.mubr.f32.gmra.mrb[0].mxu0 %v7250
  %v7252 = vpop.f32.mrb[0].mxu0
  %v7253 = vadd.f32 %v7078, %v7252
  %v7254 = vpop.f32.mrb[0].mxu0
  %v7255 = vadd.f32 %v7080, %v7254
  %7256 = vdwg.mxu0
  %v7257 = vand.u32 %v6321, 4294901760
  %7258 = vmatprep.subr.mxu0 %v7257
  %v7259 = vand.u32 %v6320, 4294901760
  %7260 = vmatpush1.msra.mxu0 %v7259
  %v7261 = vand.u32 %v6329, 4294901760
  %7262 = vmatprep.subr.mxu0 %v7261
  %v7263 = vand.u32 %v6328, 4294901760
  %7264 = vmatpush1.msra.mxu0 %v7263
  %v7265 = vand.u32 %v6337, 4294901760
  %7266 = vmatprep.subr.mxu0 %v7265
  %v7267 = vand.u32 %v6336, 4294901760
  %7268 = vmatpush1.msra.mxu0 %v7267
  %v7269 = vand.u32 %v6345, 4294901760
  %7270 = vmatprep.subr.mxu0 %v7269
  %v7271 = vand.u32 %v6344, 4294901760
  %7272 = vmatpush1.msra.mxu0 %v7271
  %v7273 = vand.u32 %v6353, 4294901760
  %7274 = vmatprep.subr.mxu0 %v7273
  %v7275 = vand.u32 %v6352, 4294901760
  %7276 = vmatpush1.msra.mxu0 %v7275
  %v7277 = vand.u32 %v6361, 4294901760
  %7278 = vmatprep.subr.mxu0 %v7277
  %v7279 = vand.u32 %v6360, 4294901760
  %7280 = vmatpush1.msra.mxu0 %v7279
  %v7281 = vand.u32 %v6369, 4294901760
  %7282 = vmatprep.subr.mxu0 %v7281
  %v7283 = vand.u32 %v6368, 4294901760
  %7284 = vmatpush1.msra.mxu0 %v7283
  %v7285 = vand.u32 %v6377, 4294901760
  %7286 = vmatprep.subr.mxu0 %v7285
  %v7287 = vand.u32 %v6376, 4294901760
  %7288 = vmatpush1.msra.mxu0 %v7287
  %v7289 = vand.u32 %v6385, 4294901760
  %7290 = vmatprep.subr.mxu0 %v7289
  %v7291 = vand.u32 %v6384, 4294901760
  %7292 = vmatpush1.msra.mxu0 %v7291
  %v7293 = vand.u32 %v6393, 4294901760
  %7294 = vmatprep.subr.mxu0 %v7293
  %v7295 = vand.u32 %v6392, 4294901760
  %7296 = vmatpush1.msra.mxu0 %v7295
  %v7297 = vand.u32 %v6401, 4294901760
  %7298 = vmatprep.subr.mxu0 %v7297
  %v7299 = vand.u32 %v6400, 4294901760
  %7300 = vmatpush1.msra.mxu0 %v7299
  %v7301 = vand.u32 %v6409, 4294901760
  %7302 = vmatprep.subr.mxu0 %v7301
  %v7303 = vand.u32 %v6408, 4294901760
  %7304 = vmatpush1.msra.mxu0 %v7303
  %v7305 = vand.u32 %v6417, 4294901760
  %7306 = vmatprep.subr.mxu0 %v7305
  %v7307 = vand.u32 %v6416, 4294901760
  %7308 = vmatpush1.msra.mxu0 %v7307
  %v7309 = vand.u32 %v6425, 4294901760
  %7310 = vmatprep.subr.mxu0 %v7309
  %v7311 = vand.u32 %v6424, 4294901760
  %7312 = vmatpush1.msra.mxu0 %v7311
  %v7313 = vand.u32 %v6433, 4294901760
  %7314 = vmatprep.subr.mxu0 %v7313
  %v7315 = vand.u32 %v6432, 4294901760
  %7316 = vmatpush1.msra.mxu0 %v7315
  %v7317 = vand.u32 %v6441, 4294901760
  %7318 = vmatprep.subr.mxu0 %v7317
  %v7319 = vand.u32 %v6440, 4294901760
  %7320 = vmatpush1.msra.mxu0 %v7319
  %7321 = vmatprep.subr.mxu0 0.0
  %7322 = vmatpush1.msra.mxu0 0.0
  %7323 = vmatprep.subr.mxu0 0.0
  %7324 = vmatpush1.msra.mxu0 0.0
  %7325 = vmatprep.subr.mxu0 0.0
  %7326 = vmatpush1.msra.mxu0 0.0
  %7327 = vmatprep.subr.mxu0 0.0
  %7328 = vmatpush1.msra.mxu0 0.0
  %7329 = vmatprep.subr.mxu0 0.0
  %7330 = vmatpush1.msra.mxu0 0.0
  %7331 = vmatprep.subr.mxu0 0.0
  %7332 = vmatpush1.msra.mxu0 0.0
  %7333 = vmatprep.subr.mxu0 0.0
  %7334 = vmatpush1.msra.mxu0 0.0
  %7335 = vmatprep.subr.mxu0 0.0
  %7336 = vmatpush1.msra.mxu0 0.0
  %7337 = vmatprep.subr.mxu0 0.0
  %7338 = vmatpush1.msra.mxu0 0.0
  %7339 = vmatprep.subr.mxu0 0.0
  %7340 = vmatpush1.msra.mxu0 0.0
  %7341 = vmatprep.subr.mxu0 0.0
  %7342 = vmatpush1.msra.mxu0 0.0
  %7343 = vmatprep.subr.mxu0 0.0
  %7344 = vmatpush1.msra.mxu0 0.0
  %7345 = vmatprep.subr.mxu0 0.0
  %7346 = vmatpush1.msra.mxu0 0.0
  %7347 = vmatprep.subr.mxu0 0.0
  %7348 = vmatpush1.msra.mxu0 0.0
  %7349 = vmatprep.subr.mxu0 0.0
  %7350 = vmatpush1.msra.mxu0 0.0
  %7351 = vmatprep.subr.mxu0 0.0
  %7352 = vmatpush1.msra.mxu0 0.0
  %7353 = vmatprep.mubr.f32.mxu0 0.0
  %v7354 = vand.u32 %v1776, 4294901760
  %7355 = vmatmul.mubr.f32.gmra.mrb[0].mxu0 %v7354
  %v7356 = vpop.f32.mrb[0].mxu0
  %v7357 = vadd.f32 %v7246, %v7356
  %v7358 = vpop.f32.mrb[0].mxu0
  %v7359 = vadd.f32 %v7248, %v7358
  %7360 = vmatprep.mubr.f32.mxu0 0.0
  %v7361 = vand.u32 %v1777, 4294901760
  %7362 = vmatmul.mubr.f32.gmra.mrb[0].mxu0 %v7361
  %v7363 = vpop.f32.mrb[0].mxu0
  %v7364 = vadd.f32 %v7253, %v7363
  %v7365 = vpop.f32.mrb[0].mxu0
  %v7366 = vadd.f32 %v7255, %v7365
  %7367 = vdwg.mxu0
  %v7368 = vand.u32 %v6323, 4294901760
  %7369 = vmatprep.subr.mxu0 %v7368
  %v7370 = vand.u32 %v6322, 4294901760
  %7371 = vmatpush1.msra.mxu0 %v7370
  %v7372 = vand.u32 %v6331, 4294901760
  %7373 = vmatprep.subr.mxu0 %v7372
  %v7374 = vand.u32 %v6330, 4294901760
  %7375 = vmatpush1.msra.mxu0 %v7374
  %v7376 = vand.u32 %v6339, 4294901760
  %7377 = vmatprep.subr.mxu0 %v7376
  %v7378 = vand.u32 %v6338, 4294901760
  %7379 = vmatpush1.msra.mxu0 %v7378
  %v7380 = vand.u32 %v6347, 4294901760
  %7381 = vmatprep.subr.mxu0 %v7380
  %v7382 = vand.u32 %v6346, 4294901760
  %7383 = vmatpush1.msra.mxu0 %v7382
  %v7384 = vand.u32 %v6355, 4294901760
  %7385 = vmatprep.subr.mxu0 %v7384
  %v7386 = vand.u32 %v6354, 4294901760
  %7387 = vmatpush1.msra.mxu0 %v7386
  %v7388 = vand.u32 %v6363, 4294901760
  %7389 = vmatprep.subr.mxu0 %v7388
  %v7390 = vand.u32 %v6362, 4294901760
  %7391 = vmatpush1.msra.mxu0 %v7390
  %v7392 = vand.u32 %v6371, 4294901760
  %7393 = vmatprep.subr.mxu0 %v7392
  %v7394 = vand.u32 %v6370, 4294901760
  %7395 = vmatpush1.msra.mxu0 %v7394
  %v7396 = vand.u32 %v6379, 4294901760
  %7397 = vmatprep.subr.mxu0 %v7396
  %v7398 = vand.u32 %v6378, 4294901760
  %7399 = vmatpush1.msra.mxu0 %v7398
  %v7400 = vand.u32 %v6387, 4294901760
  %7401 = vmatprep.subr.mxu0 %v7400
  %v7402 = vand.u32 %v6386, 4294901760
  %7403 = vmatpush1.msra.mxu0 %v7402
  %v7404 = vand.u32 %v6395, 4294901760
  %7405 = vmatprep.subr.mxu0 %v7404
  %v7406 = vand.u32 %v6394, 4294901760
  %7407 = vmatpush1.msra.mxu0 %v7406
  %v7408 = vand.u32 %v6403, 4294901760
  %7409 = vmatprep.subr.mxu0 %v7408
  %v7410 = vand.u32 %v6402, 4294901760
  %7411 = vmatpush1.msra.mxu0 %v7410
  %v7412 = vand.u32 %v6411, 4294901760
  %7413 = vmatprep.subr.mxu0 %v7412
  %v7414 = vand.u32 %v6410, 4294901760
  %7415 = vmatpush1.msra.mxu0 %v7414
  %v7416 = vand.u32 %v6419, 4294901760
  %7417 = vmatprep.subr.mxu0 %v7416
  %v7418 = vand.u32 %v6418, 4294901760
  %7419 = vmatpush1.msra.mxu0 %v7418
  %v7420 = vand.u32 %v6427, 4294901760
  %7421 = vmatprep.subr.mxu0 %v7420
  %v7422 = vand.u32 %v6426, 4294901760
  %7423 = vmatpush1.msra.mxu0 %v7422
  %v7424 = vand.u32 %v6435, 4294901760
  %7425 = vmatprep.subr.mxu0 %v7424
  %v7426 = vand.u32 %v6434, 4294901760
  %7427 = vmatpush1.msra.mxu0 %v7426
  %v7428 = vand.u32 %v6443, 4294901760
  %7429 = vmatprep.subr.mxu0 %v7428
  %v7430 = vand.u32 %v6442, 4294901760
  %7431 = vmatpush1.msra.mxu0 %v7430
  %7432 = vmatprep.subr.mxu0 0.0
  %7433 = vmatpush1.msra.mxu0 0.0
  %7434 = vmatprep.subr.mxu0 0.0
  %7435 = vmatpush1.msra.mxu0 0.0
  %7436 = vmatprep.subr.mxu0 0.0
  %7437 = vmatpush1.msra.mxu0 0.0
  %7438 = vmatprep.subr.mxu0 0.0
  %7439 = vmatpush1.msra.mxu0 0.0
  %7440 = vmatprep.subr.mxu0 0.0
  %7441 = vmatpush1.msra.mxu0 0.0
  %7442 = vmatprep.subr.mxu0 0.0
  %7443 = vmatpush1.msra.mxu0 0.0
  %7444 = vmatprep.subr.mxu0 0.0
  %7445 = vmatpush1.msra.mxu0 0.0
  %7446 = vmatprep.subr.mxu0 0.0
  %7447 = vmatpush1.msra.mxu0 0.0
  %7448 = vmatprep.subr.mxu0 0.0
  %7449 = vmatpush1.msra.mxu0 0.0
  %7450 = vmatprep.subr.mxu0 0.0
  %7451 = vmatpush1.msra.mxu0 0.0
  %7452 = vmatprep.subr.mxu0 0.0
  %7453 = vmatpush1.msra.mxu0 0.0
  %7454 = vmatprep.subr.mxu0 0.0
  %7455 = vmatpush1.msra.mxu0 0.0
  %7456 = vmatprep.subr.mxu0 0.0
  %7457 = vmatpush1.msra.mxu0 0.0
  %7458 = vmatprep.subr.mxu0 0.0
  %7459 = vmatpush1.msra.mxu0 0.0
  %7460 = vmatprep.subr.mxu0 0.0
  %7461 = vmatpush1.msra.mxu0 0.0
  %7462 = vmatprep.subr.mxu0 0.0
  %7463 = vmatpush1.msra.mxu0 0.0
  %7464 = vmatprep.mubr.f32.mxu0 0.0
  %v7465 = vand.u32 %v1776, 4294901760
  %v7466 = vsub.f32 %v1776, %v7465
  %v7467 = vand.u32 %v7466, 4294901760
  %v7468 = vsub.f32 %v7466, %v7467
  %v7469 = vand.u32 %v7468, 4294901760
  %7470 = vmatmul.mubr.f32.gmra.mrb[0].mxu0 %v7469
  %v7471 = vpop.f32.mrb[0].mxu0
  %v7472 = vadd.f32 %v6450, %v7471
  %v7473 = vpop.f32.mrb[0].mxu0
  %v7474 = vadd.f32 %v6451, %v7473
  %7475 = vmatprep.mubr.f32.mxu0 0.0
  %v7476 = vand.u32 %v1777, 4294901760
  %v7477 = vsub.f32 %v1777, %v7476
  %v7478 = vand.u32 %v7477, 4294901760
  %v7479 = vsub.f32 %v7477, %v7478
  %v7480 = vand.u32 %v7479, 4294901760
  %7481 = vmatmul.mubr.f32.gmra.mrb[0].mxu0 %v7480
  %v7482 = vpop.f32.mrb[0].mxu0
  %v7483 = vadd.f32 %v6458, %v7482
  %v7484 = vpop.f32.mrb[0].mxu0
  %v7485 = vadd.f32 %v6459, %v7484
  %7486 = vdwg.mxu0
  %v7487 = vand.u32 %v6323, 4294901760
  %v7488 = vsub.f32 %v6323, %v7487
  %v7489 = vand.u32 %v7488, 4294901760
  %v7490 = vsub.f32 %v7488, %v7489
  %v7491 = vand.u32 %v7490, 4294901760
  %7492 = vmatprep.subr.mxu0 %v7491
  %v7493 = vand.u32 %v6322, 4294901760
  %v7494 = vsub.f32 %v6322, %v7493
  %v7495 = vand.u32 %v7494, 4294901760
  %v7496 = vsub.f32 %v7494, %v7495
  %v7497 = vand.u32 %v7496, 4294901760
  %7498 = vmatpush1.msra.mxu0 %v7497
  %v7499 = vand.u32 %v6331, 4294901760
  %v7500 = vsub.f32 %v6331, %v7499
  %v7501 = vand.u32 %v7500, 4294901760
  %v7502 = vsub.f32 %v7500, %v7501
  %v7503 = vand.u32 %v7502, 4294901760
  %7504 = vmatprep.subr.mxu0 %v7503
  %v7505 = vand.u32 %v6330, 4294901760
  %v7506 = vsub.f32 %v6330, %v7505
  %v7507 = vand.u32 %v7506, 4294901760
  %v7508 = vsub.f32 %v7506, %v7507
  %v7509 = vand.u32 %v7508, 4294901760
  %7510 = vmatpush1.msra.mxu0 %v7509
  %v7511 = vand.u32 %v6339, 4294901760
  %v7512 = vsub.f32 %v6339, %v7511
  %v7513 = vand.u32 %v7512, 4294901760
  %v7514 = vsub.f32 %v7512, %v7513
  %v7515 = vand.u32 %v7514, 4294901760
  %7516 = vmatprep.subr.mxu0 %v7515
  %v7517 = vand.u32 %v6338, 4294901760
  %v7518 = vsub.f32 %v6338, %v7517
  %v7519 = vand.u32 %v7518, 4294901760
  %v7520 = vsub.f32 %v7518, %v7519
  %v7521 = vand.u32 %v7520, 4294901760
  %7522 = vmatpush1.msra.mxu0 %v7521
  %v7523 = vand.u32 %v6347, 4294901760
  %v7524 = vsub.f32 %v6347, %v7523
  %v7525 = vand.u32 %v7524, 4294901760
  %v7526 = vsub.f32 %v7524, %v7525
  %v7527 = vand.u32 %v7526, 4294901760
  %7528 = vmatprep.subr.mxu0 %v7527
  %v7529 = vand.u32 %v6346, 4294901760
  %v7530 = vsub.f32 %v6346, %v7529
  %v7531 = vand.u32 %v7530, 4294901760
  %v7532 = vsub.f32 %v7530, %v7531
  %v7533 = vand.u32 %v7532, 4294901760
  %7534 = vmatpush1.msra.mxu0 %v7533
  %v7535 = vand.u32 %v6355, 4294901760
  %v7536 = vsub.f32 %v6355, %v7535
  %v7537 = vand.u32 %v7536, 4294901760
  %v7538 = vsub.f32 %v7536, %v7537
  %v7539 = vand.u32 %v7538, 4294901760
  %7540 = vmatprep.subr.mxu0 %v7539
  %v7541 = vand.u32 %v6354, 4294901760
  %v7542 = vsub.f32 %v6354, %v7541
  %v7543 = vand.u32 %v7542, 4294901760
  %v7544 = vsub.f32 %v7542, %v7543
  %v7545 = vand.u32 %v7544, 4294901760
  %7546 = vmatpush1.msra.mxu0 %v7545
  %v7547 = vand.u32 %v6363, 4294901760
  %v7548 = vsub.f32 %v6363, %v7547
  %v7549 = vand.u32 %v7548, 4294901760
  %v7550 = vsub.f32 %v7548, %v7549
  %v7551 = vand.u32 %v7550, 4294901760
  %7552 = vmatprep.subr.mxu0 %v7551
  %v7553 = vand.u32 %v6362, 4294901760
  %v7554 = vsub.f32 %v6362, %v7553
  %v7555 = vand.u32 %v7554, 4294901760
  %v7556 = vsub.f32 %v7554, %v7555
  %v7557 = vand.u32 %v7556, 4294901760
  %7558 = vmatpush1.msra.mxu0 %v7557
  %v7559 = vand.u32 %v6371, 4294901760
  %v7560 = vsub.f32 %v6371, %v7559
  %v7561 = vand.u32 %v7560, 4294901760
  %v7562 = vsub.f32 %v7560, %v7561
  %v7563 = vand.u32 %v7562, 4294901760
  %7564 = vmatprep.subr.mxu0 %v7563
  %v7565 = vand.u32 %v6370, 4294901760
  %v7566 = vsub.f32 %v6370, %v7565
  %v7567 = vand.u32 %v7566, 4294901760
  %v7568 = vsub.f32 %v7566, %v7567
  %v7569 = vand.u32 %v7568, 4294901760
  %7570 = vmatpush1.msra.mxu0 %v7569
  %v7571 = vand.u32 %v6379, 4294901760
  %v7572 = vsub.f32 %v6379, %v7571
  %v7573 = vand.u32 %v7572, 4294901760
  %v7574 = vsub.f32 %v7572, %v7573
  %v7575 = vand.u32 %v7574, 4294901760
  %7576 = vmatprep.subr.mxu0 %v7575
  %v7577 = vand.u32 %v6378, 4294901760
  %v7578 = vsub.f32 %v6378, %v7577
  %v7579 = vand.u32 %v7578, 4294901760
  %v7580 = vsub.f32 %v7578, %v7579
  %v7581 = vand.u32 %v7580, 4294901760
  %7582 = vmatpush1.msra.mxu0 %v7581
  %v7583 = vand.u32 %v6387, 4294901760
  %v7584 = vsub.f32 %v6387, %v7583
  %v7585 = vand.u32 %v7584, 4294901760
  %v7586 = vsub.f32 %v7584, %v7585
  %v7587 = vand.u32 %v7586, 4294901760
  %7588 = vmatprep.subr.mxu0 %v7587
  %v7589 = vand.u32 %v6386, 4294901760
  %v7590 = vsub.f32 %v6386, %v7589
  %v7591 = vand.u32 %v7590, 4294901760
  %v7592 = vsub.f32 %v7590, %v7591
  %v7593 = vand.u32 %v7592, 4294901760
  %7594 = vmatpush1.msra.mxu0 %v7593
  %v7595 = vand.u32 %v6395, 4294901760
  %v7596 = vsub.f32 %v6395, %v7595
  %v7597 = vand.u32 %v7596, 4294901760
  %v7598 = vsub.f32 %v7596, %v7597
  %v7599 = vand.u32 %v7598, 4294901760
  %7600 = vmatprep.subr.mxu0 %v7599
  %v7601 = vand.u32 %v6394, 4294901760
  %v7602 = vsub.f32 %v6394, %v7601
  %v7603 = vand.u32 %v7602, 4294901760
  %v7604 = vsub.f32 %v7602, %v7603
  %v7605 = vand.u32 %v7604, 4294901760
  %7606 = vmatpush1.msra.mxu0 %v7605
  %v7607 = vand.u32 %v6403, 4294901760
  %v7608 = vsub.f32 %v6403, %v7607
  %v7609 = vand.u32 %v7608, 4294901760
  %v7610 = vsub.f32 %v7608, %v7609
  %v7611 = vand.u32 %v7610, 4294901760
  %7612 = vmatprep.subr.mxu0 %v7611
  %v7613 = vand.u32 %v6402, 4294901760
  %v7614 = vsub.f32 %v6402, %v7613
  %v7615 = vand.u32 %v7614, 4294901760
  %v7616 = vsub.f32 %v7614, %v7615
  %v7617 = vand.u32 %v7616, 4294901760
  %7618 = vmatpush1.msra.mxu0 %v7617
  %v7619 = vand.u32 %v6411, 4294901760
  %v7620 = vsub.f32 %v6411, %v7619
  %v7621 = vand.u32 %v7620, 4294901760
  %v7622 = vsub.f32 %v7620, %v7621
  %v7623 = vand.u32 %v7622, 4294901760
  %7624 = vmatprep.subr.mxu0 %v7623
  %v7625 = vand.u32 %v6410, 4294901760
  %v7626 = vsub.f32 %v6410, %v7625
  %v7627 = vand.u32 %v7626, 4294901760
  %v7628 = vsub.f32 %v7626, %v7627
  %v7629 = vand.u32 %v7628, 4294901760
  %7630 = vmatpush1.msra.mxu0 %v7629
  %v7631 = vand.u32 %v6419, 4294901760
  %v7632 = vsub.f32 %v6419, %v7631
  %v7633 = vand.u32 %v7632, 4294901760
  %v7634 = vsub.f32 %v7632, %v7633
  %v7635 = vand.u32 %v7634, 4294901760
  %7636 = vmatprep.subr.mxu0 %v7635
  %v7637 = vand.u32 %v6418, 4294901760
  %v7638 = vsub.f32 %v6418, %v7637
  %v7639 = vand.u32 %v7638, 4294901760
  %v7640 = vsub.f32 %v7638, %v7639
  %v7641 = vand.u32 %v7640, 4294901760
  %7642 = vmatpush1.msra.mxu0 %v7641
  %v7643 = vand.u32 %v6427, 4294901760
  %v7644 = vsub.f32 %v6427, %v7643
  %v7645 = vand.u32 %v7644, 4294901760
  %v7646 = vsub.f32 %v7644, %v7645
  %v7647 = vand.u32 %v7646, 4294901760
  %7648 = vmatprep.subr.mxu0 %v7647
  %v7649 = vand.u32 %v6426, 4294901760
  %v7650 = vsub.f32 %v6426, %v7649
  %v7651 = vand.u32 %v7650, 4294901760
  %v7652 = vsub.f32 %v7650, %v7651
  %v7653 = vand.u32 %v7652, 4294901760
  %7654 = vmatpush1.msra.mxu0 %v7653
  %v7655 = vand.u32 %v6435, 4294901760
  %v7656 = vsub.f32 %v6435, %v7655
  %v7657 = vand.u32 %v7656, 4294901760
  %v7658 = vsub.f32 %v7656, %v7657
  %v7659 = vand.u32 %v7658, 4294901760
  %7660 = vmatprep.subr.mxu0 %v7659
  %v7661 = vand.u32 %v6434, 4294901760
  %v7662 = vsub.f32 %v6434, %v7661
  %v7663 = vand.u32 %v7662, 4294901760
  %v7664 = vsub.f32 %v7662, %v7663
  %v7665 = vand.u32 %v7664, 4294901760
  %7666 = vmatpush1.msra.mxu0 %v7665
  %v7667 = vand.u32 %v6443, 4294901760
  %v7668 = vsub.f32 %v6443, %v7667
  %v7669 = vand.u32 %v7668, 4294901760
  %v7670 = vsub.f32 %v7668, %v7669
  %v7671 = vand.u32 %v7670, 4294901760
  %7672 = vmatprep.subr.mxu0 %v7671
  %v7673 = vand.u32 %v6442, 4294901760
  %v7674 = vsub.f32 %v6442, %v7673
  %v7675 = vand.u32 %v7674, 4294901760
  %v7676 = vsub.f32 %v7674, %v7675
  %v7677 = vand.u32 %v7676, 4294901760
  %7678 = vmatpush1.msra.mxu0 %v7677
  %7679 = vmatprep.subr.mxu0 0.0
  %7680 = vmatpush1.msra.mxu0 0.0
  %7681 = vmatprep.subr.mxu0 0.0
  %7682 = vmatpush1.msra.mxu0 0.0
  %7683 = vmatprep.subr.mxu0 0.0
  %7684 = vmatpush1.msra.mxu0 0.0
  %7685 = vmatprep.subr.mxu0 0.0
  %7686 = vmatpush1.msra.mxu0 0.0
  %7687 = vmatprep.subr.mxu0 0.0
  %7688 = vmatpush1.msra.mxu0 0.0
  %7689 = vmatprep.subr.mxu0 0.0
  %7690 = vmatpush1.msra.mxu0 0.0
  %7691 = vmatprep.subr.mxu0 0.0
  %7692 = vmatpush1.msra.mxu0 0.0
  %7693 = vmatprep.subr.mxu0 0.0
  %7694 = vmatpush1.msra.mxu0 0.0
  %7695 = vmatprep.subr.mxu0 0.0
  %7696 = vmatpush1.msra.mxu0 0.0
  %7697 = vmatprep.subr.mxu0 0.0
  %7698 = vmatpush1.msra.mxu0 0.0
  %7699 = vmatprep.subr.mxu0 0.0
  %7700 = vmatpush1.msra.mxu0 0.0
  %7701 = vmatprep.subr.mxu0 0.0
  %7702 = vmatpush1.msra.mxu0 0.0
  %7703 = vmatprep.subr.mxu0 0.0
  %7704 = vmatpush1.msra.mxu0 0.0
  %7705 = vmatprep.subr.mxu0 0.0
  %7706 = vmatpush1.msra.mxu0 0.0
  %7707 = vmatprep.subr.mxu0 0.0
  %7708 = vmatpush1.msra.mxu0 0.0
  %7709 = vmatprep.subr.mxu0 0.0
  %7710 = vmatpush1.msra.mxu0 0.0
  %7711 = vmatprep.mubr.f32.mxu0 0.0
  %v7712 = vand.u32 %v1776, 4294901760
  %7713 = vmatmul.mubr.f32.gmra.mrb[0].mxu0 %v7712
  %v7714 = vpop.f32.mrb[0].mxu0
  %v7715 = vadd.f32 %v7472, %v7714
  %v7716 = vpop.f32.mrb[0].mxu0
  %v7717 = vadd.f32 %v7474, %v7716
  %7718 = vmatprep.mubr.f32.mxu0 0.0
  %v7719 = vand.u32 %v1777, 4294901760
  %7720 = vmatmul.mubr.f32.gmra.mrb[0].mxu0 %v7719
  %v7721 = vpop.f32.mrb[0].mxu0
  %v7722 = vadd.f32 %v7483, %v7721
  %v7723 = vpop.f32.mrb[0].mxu0
  %v7724 = vadd.f32 %v7485, %v7723
  %7725 = vdwg.mxu0
  %v7726 = vand.u32 %v6323, 4294901760
  %v7727 = vsub.f32 %v6323, %v7726
  %7728 = vmatprep.subr.mxu0 %v7727
  %v7729 = vand.u32 %v6322, 4294901760
  %v7730 = vsub.f32 %v6322, %v7729
  %7731 = vmatpush1.msra.mxu0 %v7730
  %v7732 = vand.u32 %v6331, 4294901760
  %v7733 = vsub.f32 %v6331, %v7732
  %7734 = vmatprep.subr.mxu0 %v7733
  %v7735 = vand.u32 %v6330, 4294901760
  %v7736 = vsub.f32 %v6330, %v7735
  %7737 = vmatpush1.msra.mxu0 %v7736
  %v7738 = vand.u32 %v6339, 4294901760
  %v7739 = vsub.f32 %v6339, %v7738
  %7740 = vmatprep.subr.mxu0 %v7739
  %v7741 = vand.u32 %v6338, 4294901760
  %v7742 = vsub.f32 %v6338, %v7741
  %7743 = vmatpush1.msra.mxu0 %v7742
  %v7744 = vand.u32 %v6347, 4294901760
  %v7745 = vsub.f32 %v6347, %v7744
  %7746 = vmatprep.subr.mxu0 %v7745
  %v7747 = vand.u32 %v6346, 4294901760
  %v7748 = vsub.f32 %v6346, %v7747
  %7749 = vmatpush1.msra.mxu0 %v7748
  %v7750 = vand.u32 %v6355, 4294901760
  %v7751 = vsub.f32 %v6355, %v7750
  %7752 = vmatprep.subr.mxu0 %v7751
  %v7753 = vand.u32 %v6354, 4294901760
  %v7754 = vsub.f32 %v6354, %v7753
  %7755 = vmatpush1.msra.mxu0 %v7754
  %v7756 = vand.u32 %v6363, 4294901760
  %v7757 = vsub.f32 %v6363, %v7756
  %7758 = vmatprep.subr.mxu0 %v7757
  %v7759 = vand.u32 %v6362, 4294901760
  %v7760 = vsub.f32 %v6362, %v7759
  %7761 = vmatpush1.msra.mxu0 %v7760
  %v7762 = vand.u32 %v6371, 4294901760
  %v7763 = vsub.f32 %v6371, %v7762
  %7764 = vmatprep.subr.mxu0 %v7763
  %v7765 = vand.u32 %v6370, 4294901760
  %v7766 = vsub.f32 %v6370, %v7765
  %7767 = vmatpush1.msra.mxu0 %v7766
  %v7768 = vand.u32 %v6379, 4294901760
  %v7769 = vsub.f32 %v6379, %v7768
  %7770 = vmatprep.subr.mxu0 %v7769
  %v7771 = vand.u32 %v6378, 4294901760
  %v7772 = vsub.f32 %v6378, %v7771
  %7773 = vmatpush1.msra.mxu0 %v7772
  %v7774 = vand.u32 %v6387, 4294901760
  %v7775 = vsub.f32 %v6387, %v7774
  %7776 = vmatprep.subr.mxu0 %v7775
  %v7777 = vand.u32 %v6386, 4294901760
  %v7778 = vsub.f32 %v6386, %v7777
  %7779 = vmatpush1.msra.mxu0 %v7778
  %v7780 = vand.u32 %v6395, 4294901760
  %v7781 = vsub.f32 %v6395, %v7780
  %7782 = vmatprep.subr.mxu0 %v7781
  %v7783 = vand.u32 %v6394, 4294901760
  %v7784 = vsub.f32 %v6394, %v7783
  %7785 = vmatpush1.msra.mxu0 %v7784
  %v7786 = vand.u32 %v6403, 4294901760
  %v7787 = vsub.f32 %v6403, %v7786
  %7788 = vmatprep.subr.mxu0 %v7787
  %v7789 = vand.u32 %v6402, 4294901760
  %v7790 = vsub.f32 %v6402, %v7789
  %7791 = vmatpush1.msra.mxu0 %v7790
  %v7792 = vand.u32 %v6411, 4294901760
  %v7793 = vsub.f32 %v6411, %v7792
  %7794 = vmatprep.subr.mxu0 %v7793
  %v7795 = vand.u32 %v6410, 4294901760
  %v7796 = vsub.f32 %v6410, %v7795
  %7797 = vmatpush1.msra.mxu0 %v7796
  %v7798 = vand.u32 %v6419, 4294901760
  %v7799 = vsub.f32 %v6419, %v7798
  %7800 = vmatprep.subr.mxu0 %v7799
  %v7801 = vand.u32 %v6418, 4294901760
  %v7802 = vsub.f32 %v6418, %v7801
  %7803 = vmatpush1.msra.mxu0 %v7802
  %v7804 = vand.u32 %v6427, 4294901760
  %v7805 = vsub.f32 %v6427, %v7804
  %7806 = vmatprep.subr.mxu0 %v7805
  %v7807 = vand.u32 %v6426, 4294901760
  %v7808 = vsub.f32 %v6426, %v7807
  %7809 = vmatpush1.msra.mxu0 %v7808
  %v7810 = vand.u32 %v6435, 4294901760
  %v7811 = vsub.f32 %v6435, %v7810
  %7812 = vmatprep.subr.mxu0 %v7811
  %v7813 = vand.u32 %v6434, 4294901760
  %v7814 = vsub.f32 %v6434, %v7813
  %7815 = vmatpush1.msra.mxu0 %v7814
  %v7816 = vand.u32 %v6443, 4294901760
  %v7817 = vsub.f32 %v6443, %v7816
  %7818 = vmatprep.subr.mxu0 %v7817
  %v7819 = vand.u32 %v6442, 4294901760
  %v7820 = vsub.f32 %v6442, %v7819
  %7821 = vmatpush1.msra.mxu0 %v7820
  %7822 = vmatprep.subr.mxu0 0.0
  %7823 = vmatpush1.msra.mxu0 0.0
  %7824 = vmatprep.subr.mxu0 0.0
  %7825 = vmatpush1.msra.mxu0 0.0
  %7826 = vmatprep.subr.mxu0 0.0
  %7827 = vmatpush1.msra.mxu0 0.0
  %7828 = vmatprep.subr.mxu0 0.0
  %7829 = vmatpush1.msra.mxu0 0.0
  %7830 = vmatprep.subr.mxu0 0.0
  %7831 = vmatpush1.msra.mxu0 0.0
  %7832 = vmatprep.subr.mxu0 0.0
  %7833 = vmatpush1.msra.mxu0 0.0
  %7834 = vmatprep.subr.mxu0 0.0
  %7835 = vmatpush1.msra.mxu0 0.0
  %7836 = vmatprep.subr.mxu0 0.0
  %7837 = vmatpush1.msra.mxu0 0.0
  %7838 = vmatprep.subr.mxu0 0.0
  %7839 = vmatpush1.msra.mxu0 0.0
  %7840 = vmatprep.subr.mxu0 0.0
  %7841 = vmatpush1.msra.mxu0 0.0
  %7842 = vmatprep.subr.mxu0 0.0
  %7843 = vmatpush1.msra.mxu0 0.0
  %7844 = vmatprep.subr.mxu0 0.0
  %7845 = vmatpush1.msra.mxu0 0.0
  %7846 = vmatprep.subr.mxu0 0.0
  %7847 = vmatpush1.msra.mxu0 0.0
  %7848 = vmatprep.subr.mxu0 0.0
  %7849 = vmatpush1.msra.mxu0 0.0
  %7850 = vmatprep.subr.mxu0 0.0
  %7851 = vmatpush1.msra.mxu0 0.0
  %7852 = vmatprep.subr.mxu0 0.0
  %7853 = vmatpush1.msra.mxu0 0.0
  %7854 = vmatprep.mubr.f32.mxu0 0.0
  %v7855 = vand.u32 %v1776, 4294901760
  %v7856 = vsub.f32 %v1776, %v7855
  %7857 = vmatmul.mubr.f32.gmra.mrb[0].mxu0 %v7856
  %v7858 = vpop.f32.mrb[0].mxu0
  %v7859 = vadd.f32 %v7715, %v7858
  %v7860 = vpop.f32.mrb[0].mxu0
  %v7861 = vadd.f32 %v7717, %v7860
  %7862 = vmatprep.mubr.f32.mxu0 0.0
  %v7863 = vand.u32 %v1777, 4294901760
  %v7864 = vsub.f32 %v1777, %v7863
  %7865 = vmatmul.mubr.f32.gmra.mrb[0].mxu0 %v7864
  %v7866 = vpop.f32.mrb[0].mxu0
  %v7867 = vadd.f32 %v7722, %v7866
  %v7868 = vpop.f32.mrb[0].mxu0
  %v7869 = vadd.f32 %v7724, %v7868
  %7870 = vdwg.mxu0
  %v7871 = vand.u32 %v6323, 4294901760
  %7872 = vmatprep.subr.mxu0 %v7871
  %v7873 = vand.u32 %v6322, 4294901760
  %7874 = vmatpush1.msra.mxu0 %v7873
  %v7875 = vand.u32 %v6331, 4294901760
  %7876 = vmatprep.subr.mxu0 %v7875
  %v7877 = vand.u32 %v6330, 4294901760
  %7878 = vmatpush1.msra.mxu0 %v7877
  %v7879 = vand.u32 %v6339, 4294901760
  %7880 = vmatprep.subr.mxu0 %v7879
  %v7881 = vand.u32 %v6338, 4294901760
  %7882 = vmatpush1.msra.mxu0 %v7881
  %v7883 = vand.u32 %v6347, 4294901760
  %7884 = vmatprep.subr.mxu0 %v7883
  %v7885 = vand.u32 %v6346, 4294901760
  %7886 = vmatpush1.msra.mxu0 %v7885
  %v7887 = vand.u32 %v6355, 4294901760
  %7888 = vmatprep.subr.mxu0 %v7887
  %v7889 = vand.u32 %v6354, 4294901760
  %7890 = vmatpush1.msra.mxu0 %v7889
  %v7891 = vand.u32 %v6363, 4294901760
  %7892 = vmatprep.subr.mxu0 %v7891
  %v7893 = vand.u32 %v6362, 4294901760
  %7894 = vmatpush1.msra.mxu0 %v7893
  %v7895 = vand.u32 %v6371, 4294901760
  %7896 = vmatprep.subr.mxu0 %v7895
  %v7897 = vand.u32 %v6370, 4294901760
  %7898 = vmatpush1.msra.mxu0 %v7897
  %v7899 = vand.u32 %v6379, 4294901760
  %7900 = vmatprep.subr.mxu0 %v7899
  %v7901 = vand.u32 %v6378, 4294901760
  %7902 = vmatpush1.msra.mxu0 %v7901
  %v7903 = vand.u32 %v6387, 4294901760
  %7904 = vmatprep.subr.mxu0 %v7903
  %v7905 = vand.u32 %v6386, 4294901760
  %7906 = vmatpush1.msra.mxu0 %v7905
  %v7907 = vand.u32 %v6395, 4294901760
  %7908 = vmatprep.subr.mxu0 %v7907
  %v7909 = vand.u32 %v6394, 4294901760
  %7910 = vmatpush1.msra.mxu0 %v7909
  %v7911 = vand.u32 %v6403, 4294901760
  %7912 = vmatprep.subr.mxu0 %v7911
  %v7913 = vand.u32 %v6402, 4294901760
  %7914 = vmatpush1.msra.mxu0 %v7913
  %v7915 = vand.u32 %v6411, 4294901760
  %7916 = vmatprep.subr.mxu0 %v7915
  %v7917 = vand.u32 %v6410, 4294901760
  %7918 = vmatpush1.msra.mxu0 %v7917
  %v7919 = vand.u32 %v6419, 4294901760
  %7920 = vmatprep.subr.mxu0 %v7919
  %v7921 = vand.u32 %v6418, 4294901760
  %7922 = vmatpush1.msra.mxu0 %v7921
  %v7923 = vand.u32 %v6427, 4294901760
  %7924 = vmatprep.subr.mxu0 %v7923
  %v7925 = vand.u32 %v6426, 4294901760
  %7926 = vmatpush1.msra.mxu0 %v7925
  %v7927 = vand.u32 %v6435, 4294901760
  %7928 = vmatprep.subr.mxu0 %v7927
  %v7929 = vand.u32 %v6434, 4294901760
  %7930 = vmatpush1.msra.mxu0 %v7929
  %v7931 = vand.u32 %v6443, 4294901760
  %7932 = vmatprep.subr.mxu0 %v7931
  %v7933 = vand.u32 %v6442, 4294901760
  %7934 = vmatpush1.msra.mxu0 %v7933
  %7935 = vmatprep.subr.mxu0 0.0
  %7936 = vmatpush1.msra.mxu0 0.0
  %7937 = vmatprep.subr.mxu0 0.0
  %7938 = vmatpush1.msra.mxu0 0.0
  %7939 = vmatprep.subr.mxu0 0.0
  %7940 = vmatpush1.msra.mxu0 0.0
  %7941 = vmatprep.subr.mxu0 0.0
  %7942 = vmatpush1.msra.mxu0 0.0
  %7943 = vmatprep.subr.mxu0 0.0
  %7944 = vmatpush1.msra.mxu0 0.0
  %7945 = vmatprep.subr.mxu0 0.0
  %7946 = vmatpush1.msra.mxu0 0.0
  %7947 = vmatprep.subr.mxu0 0.0
  %7948 = vmatpush1.msra.mxu0 0.0
  %7949 = vmatprep.subr.mxu0 0.0
  %7950 = vmatpush1.msra.mxu0 0.0
  %7951 = vmatprep.subr.mxu0 0.0
  %7952 = vmatpush1.msra.mxu0 0.0
  %7953 = vmatprep.subr.mxu0 0.0
  %7954 = vmatpush1.msra.mxu0 0.0
  %7955 = vmatprep.subr.mxu0 0.0
  %7956 = vmatpush1.msra.mxu0 0.0
  %7957 = vmatprep.subr.mxu0 0.0
  %7958 = vmatpush1.msra.mxu0 0.0
  %7959 = vmatprep.subr.mxu0 0.0
  %7960 = vmatpush1.msra.mxu0 0.0
  %7961 = vmatprep.subr.mxu0 0.0
  %7962 = vmatpush1.msra.mxu0 0.0
  %7963 = vmatprep.subr.mxu0 0.0
  %7964 = vmatpush1.msra.mxu0 0.0
  %7965 = vmatprep.subr.mxu0 0.0
  %7966 = vmatpush1.msra.mxu0 0.0
  %7967 = vmatprep.mubr.f32.mxu0 0.0
  %v7968 = vand.u32 %v1776, 4294901760
  %v7969 = vsub.f32 %v1776, %v7968
  %v7970 = vand.u32 %v7969, 4294901760
  %7971 = vmatmul.mubr.f32.gmra.mrb[0].mxu0 %v7970
  %v7972 = vpop.f32.mrb[0].mxu0
  %v7973 = vadd.f32 %v7859, %v7972
  %v7974 = vpop.f32.mrb[0].mxu0
  %v7975 = vadd.f32 %v7861, %v7974
  %7976 = vmatprep.mubr.f32.mxu0 0.0
  %v7977 = vand.u32 %v1777, 4294901760
  %v7978 = vsub.f32 %v1777, %v7977
  %v7979 = vand.u32 %v7978, 4294901760
  %7980 = vmatmul.mubr.f32.gmra.mrb[0].mxu0 %v7979
  %v7981 = vpop.f32.mrb[0].mxu0
  %v7982 = vadd.f32 %v7867, %v7981
  %v7983 = vpop.f32.mrb[0].mxu0
  %v7984 = vadd.f32 %v7869, %v7983
  %7985 = vdwg.mxu0
  %v7986 = vand.u32 %v6323, 4294901760
  %v7987 = vsub.f32 %v6323, %v7986
  %v7988 = vand.u32 %v7987, 4294901760
  %7989 = vmatprep.subr.mxu0 %v7988
  %v7990 = vand.u32 %v6322, 4294901760
  %v7991 = vsub.f32 %v6322, %v7990
  %v7992 = vand.u32 %v7991, 4294901760
  %7993 = vmatpush1.msra.mxu0 %v7992
  %v7994 = vand.u32 %v6331, 4294901760
  %v7995 = vsub.f32 %v6331, %v7994
  %v7996 = vand.u32 %v7995, 4294901760
  %7997 = vmatprep.subr.mxu0 %v7996
  %v7998 = vand.u32 %v6330, 4294901760
  %v7999 = vsub.f32 %v6330, %v7998
  %v8000 = vand.u32 %v7999, 4294901760
  %8001 = vmatpush1.msra.mxu0 %v8000
  %v8002 = vand.u32 %v6339, 4294901760
  %v8003 = vsub.f32 %v6339, %v8002
  %v8004 = vand.u32 %v8003, 4294901760
  %8005 = vmatprep.subr.mxu0 %v8004
  %v8006 = vand.u32 %v6338, 4294901760
  %v8007 = vsub.f32 %v6338, %v8006
  %v8008 = vand.u32 %v8007, 4294901760
  %8009 = vmatpush1.msra.mxu0 %v8008
  %v8010 = vand.u32 %v6347, 4294901760
  %v8011 = vsub.f32 %v6347, %v8010
  %v8012 = vand.u32 %v8011, 4294901760
  %8013 = vmatprep.subr.mxu0 %v8012
  %v8014 = vand.u32 %v6346, 4294901760
  %v8015 = vsub.f32 %v6346, %v8014
  %v8016 = vand.u32 %v8015, 4294901760
  %8017 = vmatpush1.msra.mxu0 %v8016
  %v8018 = vand.u32 %v6355, 4294901760
  %v8019 = vsub.f32 %v6355, %v8018
  %v8020 = vand.u32 %v8019, 4294901760
  %8021 = vmatprep.subr.mxu0 %v8020
  %v8022 = vand.u32 %v6354, 4294901760
  %v8023 = vsub.f32 %v6354, %v8022
  %v8024 = vand.u32 %v8023, 4294901760
  %8025 = vmatpush1.msra.mxu0 %v8024
  %v8026 = vand.u32 %v6363, 4294901760
  %v8027 = vsub.f32 %v6363, %v8026
  %v8028 = vand.u32 %v8027, 4294901760
  %8029 = vmatprep.subr.mxu0 %v8028
  %v8030 = vand.u32 %v6362, 4294901760
  %v8031 = vsub.f32 %v6362, %v8030
  %v8032 = vand.u32 %v8031, 4294901760
  %8033 = vmatpush1.msra.mxu0 %v8032
  %v8034 = vand.u32 %v6371, 4294901760
  %v8035 = vsub.f32 %v6371, %v8034
  %v8036 = vand.u32 %v8035, 4294901760
  %8037 = vmatprep.subr.mxu0 %v8036
  %v8038 = vand.u32 %v6370, 4294901760
  %v8039 = vsub.f32 %v6370, %v8038
  %v8040 = vand.u32 %v8039, 4294901760
  %8041 = vmatpush1.msra.mxu0 %v8040
  %v8042 = vand.u32 %v6379, 4294901760
  %v8043 = vsub.f32 %v6379, %v8042
  %v8044 = vand.u32 %v8043, 4294901760
  %8045 = vmatprep.subr.mxu0 %v8044
  %v8046 = vand.u32 %v6378, 4294901760
  %v8047 = vsub.f32 %v6378, %v8046
  %v8048 = vand.u32 %v8047, 4294901760
  %8049 = vmatpush1.msra.mxu0 %v8048
  %v8050 = vand.u32 %v6387, 4294901760
  %v8051 = vsub.f32 %v6387, %v8050
  %v8052 = vand.u32 %v8051, 4294901760
  %8053 = vmatprep.subr.mxu0 %v8052
  %v8054 = vand.u32 %v6386, 4294901760
  %v8055 = vsub.f32 %v6386, %v8054
  %v8056 = vand.u32 %v8055, 4294901760
  %8057 = vmatpush1.msra.mxu0 %v8056
  %v8058 = vand.u32 %v6395, 4294901760
  %v8059 = vsub.f32 %v6395, %v8058
  %v8060 = vand.u32 %v8059, 4294901760
  %8061 = vmatprep.subr.mxu0 %v8060
  %v8062 = vand.u32 %v6394, 4294901760
  %v8063 = vsub.f32 %v6394, %v8062
  %v8064 = vand.u32 %v8063, 4294901760
  %8065 = vmatpush1.msra.mxu0 %v8064
  %v8066 = vand.u32 %v6403, 4294901760
  %v8067 = vsub.f32 %v6403, %v8066
  %v8068 = vand.u32 %v8067, 4294901760
  %8069 = vmatprep.subr.mxu0 %v8068
  %v8070 = vand.u32 %v6402, 4294901760
  %v8071 = vsub.f32 %v6402, %v8070
  %v8072 = vand.u32 %v8071, 4294901760
  %8073 = vmatpush1.msra.mxu0 %v8072
  %v8074 = vand.u32 %v6411, 4294901760
  %v8075 = vsub.f32 %v6411, %v8074
  %v8076 = vand.u32 %v8075, 4294901760
  %8077 = vmatprep.subr.mxu0 %v8076
  %v8078 = vand.u32 %v6410, 4294901760
  %v8079 = vsub.f32 %v6410, %v8078
  %v8080 = vand.u32 %v8079, 4294901760
  %8081 = vmatpush1.msra.mxu0 %v8080
  %v8082 = vand.u32 %v6419, 4294901760
  %v8083 = vsub.f32 %v6419, %v8082
  %v8084 = vand.u32 %v8083, 4294901760
  %8085 = vmatprep.subr.mxu0 %v8084
  %v8086 = vand.u32 %v6418, 4294901760
  %v8087 = vsub.f32 %v6418, %v8086
  %v8088 = vand.u32 %v8087, 4294901760
  %8089 = vmatpush1.msra.mxu0 %v8088
  %v8090 = vand.u32 %v6427, 4294901760
  %v8091 = vsub.f32 %v6427, %v8090
  %v8092 = vand.u32 %v8091, 4294901760
  %8093 = vmatprep.subr.mxu0 %v8092
  %v8094 = vand.u32 %v6426, 4294901760
  %v8095 = vsub.f32 %v6426, %v8094
  %v8096 = vand.u32 %v8095, 4294901760
  %8097 = vmatpush1.msra.mxu0 %v8096
  %v8098 = vand.u32 %v6435, 4294901760
  %v8099 = vsub.f32 %v6435, %v8098
  %v8100 = vand.u32 %v8099, 4294901760
  %8101 = vmatprep.subr.mxu0 %v8100
  %v8102 = vand.u32 %v6434, 4294901760
  %v8103 = vsub.f32 %v6434, %v8102
  %v8104 = vand.u32 %v8103, 4294901760
  %8105 = vmatpush1.msra.mxu0 %v8104
  %v8106 = vand.u32 %v6443, 4294901760
  %v8107 = vsub.f32 %v6443, %v8106
  %v8108 = vand.u32 %v8107, 4294901760
  %8109 = vmatprep.subr.mxu0 %v8108
  %v8110 = vand.u32 %v6442, 4294901760
  %v8111 = vsub.f32 %v6442, %v8110
  %v8112 = vand.u32 %v8111, 4294901760
  %8113 = vmatpush1.msra.mxu0 %v8112
  %8114 = vmatprep.subr.mxu0 0.0
  %8115 = vmatpush1.msra.mxu0 0.0
  %8116 = vmatprep.subr.mxu0 0.0
  %8117 = vmatpush1.msra.mxu0 0.0
  %8118 = vmatprep.subr.mxu0 0.0
  %8119 = vmatpush1.msra.mxu0 0.0
  %8120 = vmatprep.subr.mxu0 0.0
  %8121 = vmatpush1.msra.mxu0 0.0
  %8122 = vmatprep.subr.mxu0 0.0
  %8123 = vmatpush1.msra.mxu0 0.0
  %8124 = vmatprep.subr.mxu0 0.0
  %8125 = vmatpush1.msra.mxu0 0.0
  %8126 = vmatprep.subr.mxu0 0.0
  %8127 = vmatpush1.msra.mxu0 0.0
  %8128 = vmatprep.subr.mxu0 0.0
  %8129 = vmatpush1.msra.mxu0 0.0
  %8130 = vmatprep.subr.mxu0 0.0
  %8131 = vmatpush1.msra.mxu0 0.0
  %8132 = vmatprep.subr.mxu0 0.0
  %8133 = vmatpush1.msra.mxu0 0.0
  %8134 = vmatprep.subr.mxu0 0.0
  %8135 = vmatpush1.msra.mxu0 0.0
  %8136 = vmatprep.subr.mxu0 0.0
  %8137 = vmatpush1.msra.mxu0 0.0
  %8138 = vmatprep.subr.mxu0 0.0
  %8139 = vmatpush1.msra.mxu0 0.0
  %8140 = vmatprep.subr.mxu0 0.0
  %8141 = vmatpush1.msra.mxu0 0.0
  %8142 = vmatprep.subr.mxu0 0.0
  %8143 = vmatpush1.msra.mxu0 0.0
  %8144 = vmatprep.subr.mxu0 0.0
  %8145 = vmatpush1.msra.mxu0 0.0
  %8146 = vmatprep.mubr.f32.mxu0 0.0
  %v8147 = vand.u32 %v1776, 4294901760
  %8148 = vmatmul.mubr.f32.gmra.mrb[0].mxu0 %v8147
  %v8149 = vpop.f32.mrb[0].mxu0
  %v8150 = vadd.f32 %v7973, %v8149
  %v8151 = vpop.f32.mrb[0].mxu0
  %v8152 = vadd.f32 %v7975, %v8151
  %8153 = vmatprep.mubr.f32.mxu0 0.0
  %v8154 = vand.u32 %v1777, 4294901760
  %8155 = vmatmul.mubr.f32.gmra.mrb[0].mxu0 %v8154
  %v8156 = vpop.f32.mrb[0].mxu0
  %v8157 = vadd.f32 %v7982, %v8156
  %v8158 = vpop.f32.mrb[0].mxu0
  %v8159 = vadd.f32 %v7984, %v8158
  %8160 = vdwg.mxu0
  %v8161 = vand.u32 %v6323, 4294901760
  %8162 = vmatprep.subr.mxu0 %v8161
  %v8163 = vand.u32 %v6322, 4294901760
  %8164 = vmatpush1.msra.mxu0 %v8163
  %v8165 = vand.u32 %v6331, 4294901760
  %8166 = vmatprep.subr.mxu0 %v8165
  %v8167 = vand.u32 %v6330, 4294901760
  %8168 = vmatpush1.msra.mxu0 %v8167
  %v8169 = vand.u32 %v6339, 4294901760
  %8170 = vmatprep.subr.mxu0 %v8169
  %v8171 = vand.u32 %v6338, 4294901760
  %8172 = vmatpush1.msra.mxu0 %v8171
  %v8173 = vand.u32 %v6347, 4294901760
  %8174 = vmatprep.subr.mxu0 %v8173
  %v8175 = vand.u32 %v6346, 4294901760
  %8176 = vmatpush1.msra.mxu0 %v8175
  %v8177 = vand.u32 %v6355, 4294901760
  %8178 = vmatprep.subr.mxu0 %v8177
  %v8179 = vand.u32 %v6354, 4294901760
  %8180 = vmatpush1.msra.mxu0 %v8179
  %v8181 = vand.u32 %v6363, 4294901760
  %8182 = vmatprep.subr.mxu0 %v8181
  %v8183 = vand.u32 %v6362, 4294901760
  %8184 = vmatpush1.msra.mxu0 %v8183
  %v8185 = vand.u32 %v6371, 4294901760
  %8186 = vmatprep.subr.mxu0 %v8185
  %v8187 = vand.u32 %v6370, 4294901760
  %8188 = vmatpush1.msra.mxu0 %v8187
  %v8189 = vand.u32 %v6379, 4294901760
  %8190 = vmatprep.subr.mxu0 %v8189
  %v8191 = vand.u32 %v6378, 4294901760
  %8192 = vmatpush1.msra.mxu0 %v8191
  %v8193 = vand.u32 %v6387, 4294901760
  %8194 = vmatprep.subr.mxu0 %v8193
  %v8195 = vand.u32 %v6386, 4294901760
  %8196 = vmatpush1.msra.mxu0 %v8195
  %v8197 = vand.u32 %v6395, 4294901760
  %8198 = vmatprep.subr.mxu0 %v8197
  %v8199 = vand.u32 %v6394, 4294901760
  %8200 = vmatpush1.msra.mxu0 %v8199
  %v8201 = vand.u32 %v6403, 4294901760
  %8202 = vmatprep.subr.mxu0 %v8201
  %v8203 = vand.u32 %v6402, 4294901760
  %8204 = vmatpush1.msra.mxu0 %v8203
  %v8205 = vand.u32 %v6411, 4294901760
  %8206 = vmatprep.subr.mxu0 %v8205
  %v8207 = vand.u32 %v6410, 4294901760
  %8208 = vmatpush1.msra.mxu0 %v8207
  %v8209 = vand.u32 %v6419, 4294901760
  %8210 = vmatprep.subr.mxu0 %v8209
  %v8211 = vand.u32 %v6418, 4294901760
  %8212 = vmatpush1.msra.mxu0 %v8211
  %v8213 = vand.u32 %v6427, 4294901760
  %8214 = vmatprep.subr.mxu0 %v8213
  %v8215 = vand.u32 %v6426, 4294901760
  %8216 = vmatpush1.msra.mxu0 %v8215
  %v8217 = vand.u32 %v6435, 4294901760
  %8218 = vmatprep.subr.mxu0 %v8217
  %v8219 = vand.u32 %v6434, 4294901760
  %8220 = vmatpush1.msra.mxu0 %v8219
  %v8221 = vand.u32 %v6443, 4294901760
  %8222 = vmatprep.subr.mxu0 %v8221
  %v8223 = vand.u32 %v6442, 4294901760
  %8224 = vmatpush1.msra.mxu0 %v8223
  %8225 = vmatprep.subr.mxu0 0.0
  %8226 = vmatpush1.msra.mxu0 0.0
  %8227 = vmatprep.subr.mxu0 0.0
  %8228 = vmatpush1.msra.mxu0 0.0
  %8229 = vmatprep.subr.mxu0 0.0
  %8230 = vmatpush1.msra.mxu0 0.0
  %8231 = vmatprep.subr.mxu0 0.0
  %8232 = vmatpush1.msra.mxu0 0.0
  %8233 = vmatprep.subr.mxu0 0.0
  %8234 = vmatpush1.msra.mxu0 0.0
  %8235 = vmatprep.subr.mxu0 0.0
  %8236 = vmatpush1.msra.mxu0 0.0
  %8237 = vmatprep.subr.mxu0 0.0
  %8238 = vmatpush1.msra.mxu0 0.0
  %8239 = vmatprep.subr.mxu0 0.0
  %8240 = vmatpush1.msra.mxu0 0.0
  %8241 = vmatprep.subr.mxu0 0.0
  %8242 = vmatpush1.msra.mxu0 0.0
  %8243 = vmatprep.subr.mxu0 0.0
  %8244 = vmatpush1.msra.mxu0 0.0
  %8245 = vmatprep.subr.mxu0 0.0
  %8246 = vmatpush1.msra.mxu0 0.0
  %8247 = vmatprep.subr.mxu0 0.0
  %8248 = vmatpush1.msra.mxu0 0.0
  %8249 = vmatprep.subr.mxu0 0.0
  %8250 = vmatpush1.msra.mxu0 0.0
  %8251 = vmatprep.subr.mxu0 0.0
  %8252 = vmatpush1.msra.mxu0 0.0
  %8253 = vmatprep.subr.mxu0 0.0
  %8254 = vmatpush1.msra.mxu0 0.0
  %8255 = vmatprep.subr.mxu0 0.0
  %8256 = vmatpush1.msra.mxu0 0.0
  %8257 = vmatprep.mubr.f32.mxu0 0.0
  %v8258 = vand.u32 %v1776, 4294901760
  %8259 = vmatmul.mubr.f32.gmra.mrb[0].mxu0 %v8258
  %v8260 = vpop.f32.mrb[0].mxu0
  %v8261 = vadd.f32 %v8150, %v8260
  %v8262 = vpop.f32.mrb[0].mxu0
  %v8263 = vadd.f32 %v8152, %v8262
  %8264 = vmatprep.mubr.f32.mxu0 0.0
  %v8265 = vand.u32 %v1777, 4294901760
  %8266 = vmatmul.mubr.f32.gmra.mrb[0].mxu0 %v8265
  %v8267 = vpop.f32.mrb[0].mxu0
  %v8268 = vadd.f32 %v8157, %v8267
  %v8269 = vpop.f32.mrb[0].mxu0
  %v8270 = vadd.f32 %v8159, %v8269
  %8271 = vdwg.mxu0
  %v8272 = vand.u32 %v6325, 4294901760
  %8273 = vmatprep.subr.mxu0 %v8272
  %v8274 = vand.u32 %v6324, 4294901760
  %8275 = vmatpush1.msra.mxu0 %v8274
  %v8276 = vand.u32 %v6333, 4294901760
  %8277 = vmatprep.subr.mxu0 %v8276
  %v8278 = vand.u32 %v6332, 4294901760
  %8279 = vmatpush1.msra.mxu0 %v8278
  %v8280 = vand.u32 %v6341, 4294901760
  %8281 = vmatprep.subr.mxu0 %v8280
  %v8282 = vand.u32 %v6340, 4294901760
  %8283 = vmatpush1.msra.mxu0 %v8282
  %v8284 = vand.u32 %v6349, 4294901760
  %8285 = vmatprep.subr.mxu0 %v8284
  %v8286 = vand.u32 %v6348, 4294901760
  %8287 = vmatpush1.msra.mxu0 %v8286
  %v8288 = vand.u32 %v6357, 4294901760
  %8289 = vmatprep.subr.mxu0 %v8288
  %v8290 = vand.u32 %v6356, 4294901760
  %8291 = vmatpush1.msra.mxu0 %v8290
  %v8292 = vand.u32 %v6365, 4294901760
  %8293 = vmatprep.subr.mxu0 %v8292
  %v8294 = vand.u32 %v6364, 4294901760
  %8295 = vmatpush1.msra.mxu0 %v8294
  %v8296 = vand.u32 %v6373, 4294901760
  %8297 = vmatprep.subr.mxu0 %v8296
  %v8298 = vand.u32 %v6372, 4294901760
  %8299 = vmatpush1.msra.mxu0 %v8298
  %v8300 = vand.u32 %v6381, 4294901760
  %8301 = vmatprep.subr.mxu0 %v8300
  %v8302 = vand.u32 %v6380, 4294901760
  %8303 = vmatpush1.msra.mxu0 %v8302
  %v8304 = vand.u32 %v6389, 4294901760
  %8305 = vmatprep.subr.mxu0 %v8304
  %v8306 = vand.u32 %v6388, 4294901760
  %8307 = vmatpush1.msra.mxu0 %v8306
  %v8308 = vand.u32 %v6397, 4294901760
  %8309 = vmatprep.subr.mxu0 %v8308
  %v8310 = vand.u32 %v6396, 4294901760
  %8311 = vmatpush1.msra.mxu0 %v8310
  %v8312 = vand.u32 %v6405, 4294901760
  %8313 = vmatprep.subr.mxu0 %v8312
  %v8314 = vand.u32 %v6404, 4294901760
  %8315 = vmatpush1.msra.mxu0 %v8314
  %v8316 = vand.u32 %v6413, 4294901760
  %8317 = vmatprep.subr.mxu0 %v8316
  %v8318 = vand.u32 %v6412, 4294901760
  %8319 = vmatpush1.msra.mxu0 %v8318
  %v8320 = vand.u32 %v6421, 4294901760
  %8321 = vmatprep.subr.mxu0 %v8320
  %v8322 = vand.u32 %v6420, 4294901760
  %8323 = vmatpush1.msra.mxu0 %v8322
  %v8324 = vand.u32 %v6429, 4294901760
  %8325 = vmatprep.subr.mxu0 %v8324
  %v8326 = vand.u32 %v6428, 4294901760
  %8327 = vmatpush1.msra.mxu0 %v8326
  %v8328 = vand.u32 %v6437, 4294901760
  %8329 = vmatprep.subr.mxu0 %v8328
  %v8330 = vand.u32 %v6436, 4294901760
  %8331 = vmatpush1.msra.mxu0 %v8330
  %v8332 = vand.u32 %v6445, 4294901760
  %8333 = vmatprep.subr.mxu0 %v8332
  %v8334 = vand.u32 %v6444, 4294901760
  %8335 = vmatpush1.msra.mxu0 %v8334
  %8336 = vmatprep.subr.mxu0 0.0
  %8337 = vmatpush1.msra.mxu0 0.0
  %8338 = vmatprep.subr.mxu0 0.0
  %8339 = vmatpush1.msra.mxu0 0.0
  %8340 = vmatprep.subr.mxu0 0.0
  %8341 = vmatpush1.msra.mxu0 0.0
  %8342 = vmatprep.subr.mxu0 0.0
  %8343 = vmatpush1.msra.mxu0 0.0
  %8344 = vmatprep.subr.mxu0 0.0
  %8345 = vmatpush1.msra.mxu0 0.0
  %8346 = vmatprep.subr.mxu0 0.0
  %8347 = vmatpush1.msra.mxu0 0.0
  %8348 = vmatprep.subr.mxu0 0.0
  %8349 = vmatpush1.msra.mxu0 0.0
  %8350 = vmatprep.subr.mxu0 0.0
  %8351 = vmatpush1.msra.mxu0 0.0
  %8352 = vmatprep.subr.mxu0 0.0
  %8353 = vmatpush1.msra.mxu0 0.0
  %8354 = vmatprep.subr.mxu0 0.0
  %8355 = vmatpush1.msra.mxu0 0.0
  %8356 = vmatprep.subr.mxu0 0.0
  %8357 = vmatpush1.msra.mxu0 0.0
  %8358 = vmatprep.subr.mxu0 0.0
  %8359 = vmatpush1.msra.mxu0 0.0
  %8360 = vmatprep.subr.mxu0 0.0
  %8361 = vmatpush1.msra.mxu0 0.0
  %8362 = vmatprep.subr.mxu0 0.0
  %8363 = vmatpush1.msra.mxu0 0.0
  %8364 = vmatprep.subr.mxu0 0.0
  %8365 = vmatpush1.msra.mxu0 0.0
  %8366 = vmatprep.subr.mxu0 0.0
  %8367 = vmatpush1.msra.mxu0 0.0
  %8368 = vmatprep.mubr.f32.mxu0 0.0
  %v8369 = vand.u32 %v1776, 4294901760
  %v8370 = vsub.f32 %v1776, %v8369
  %v8371 = vand.u32 %v8370, 4294901760
  %v8372 = vsub.f32 %v8370, %v8371
  %v8373 = vand.u32 %v8372, 4294901760
  %8374 = vmatmul.mubr.f32.gmra.mrb[0].mxu0 %v8373
  %v8375 = vpop.f32.mrb[0].mxu0
  %v8376 = vadd.f32 %v6452, %v8375
  %v8377 = vpop.f32.mrb[0].mxu0
  %v8378 = vadd.f32 %v6453, %v8377
  %8379 = vmatprep.mubr.f32.mxu0 0.0
  %v8380 = vand.u32 %v1777, 4294901760
  %v8381 = vsub.f32 %v1777, %v8380
  %v8382 = vand.u32 %v8381, 4294901760
  %v8383 = vsub.f32 %v8381, %v8382
  %v8384 = vand.u32 %v8383, 4294901760
  %8385 = vmatmul.mubr.f32.gmra.mrb[0].mxu0 %v8384
  %v8386 = vpop.f32.mrb[0].mxu0
  %v8387 = vadd.f32 %v6460, %v8386
  %v8388 = vpop.f32.mrb[0].mxu0
  %v8389 = vadd.f32 %v6461, %v8388
  %8390 = vdwg.mxu0
  %v8391 = vand.u32 %v6325, 4294901760
  %v8392 = vsub.f32 %v6325, %v8391
  %v8393 = vand.u32 %v8392, 4294901760
  %v8394 = vsub.f32 %v8392, %v8393
  %v8395 = vand.u32 %v8394, 4294901760
  %8396 = vmatprep.subr.mxu0 %v8395
  %v8397 = vand.u32 %v6324, 4294901760
  %v8398 = vsub.f32 %v6324, %v8397
  %v8399 = vand.u32 %v8398, 4294901760
  %v8400 = vsub.f32 %v8398, %v8399
  %v8401 = vand.u32 %v8400, 4294901760
  %8402 = vmatpush1.msra.mxu0 %v8401
  %v8403 = vand.u32 %v6333, 4294901760
  %v8404 = vsub.f32 %v6333, %v8403
  %v8405 = vand.u32 %v8404, 4294901760
  %v8406 = vsub.f32 %v8404, %v8405
  %v8407 = vand.u32 %v8406, 4294901760
  %8408 = vmatprep.subr.mxu0 %v8407
  %v8409 = vand.u32 %v6332, 4294901760
  %v8410 = vsub.f32 %v6332, %v8409
  %v8411 = vand.u32 %v8410, 4294901760
  %v8412 = vsub.f32 %v8410, %v8411
  %v8413 = vand.u32 %v8412, 4294901760
  %8414 = vmatpush1.msra.mxu0 %v8413
  %v8415 = vand.u32 %v6341, 4294901760
  %v8416 = vsub.f32 %v6341, %v8415
  %v8417 = vand.u32 %v8416, 4294901760
  %v8418 = vsub.f32 %v8416, %v8417
  %v8419 = vand.u32 %v8418, 4294901760
  %8420 = vmatprep.subr.mxu0 %v8419
  %v8421 = vand.u32 %v6340, 4294901760
  %v8422 = vsub.f32 %v6340, %v8421
  %v8423 = vand.u32 %v8422, 4294901760
  %v8424 = vsub.f32 %v8422, %v8423
  %v8425 = vand.u32 %v8424, 4294901760
  %8426 = vmatpush1.msra.mxu0 %v8425
  %v8427 = vand.u32 %v6349, 4294901760
  %v8428 = vsub.f32 %v6349, %v8427
  %v8429 = vand.u32 %v8428, 4294901760
  %v8430 = vsub.f32 %v8428, %v8429
  %v8431 = vand.u32 %v8430, 4294901760
  %8432 = vmatprep.subr.mxu0 %v8431
  %v8433 = vand.u32 %v6348, 4294901760
  %v8434 = vsub.f32 %v6348, %v8433
  %v8435 = vand.u32 %v8434, 4294901760
  %v8436 = vsub.f32 %v8434, %v8435
  %v8437 = vand.u32 %v8436, 4294901760
  %8438 = vmatpush1.msra.mxu0 %v8437
  %v8439 = vand.u32 %v6357, 4294901760
  %v8440 = vsub.f32 %v6357, %v8439
  %v8441 = vand.u32 %v8440, 4294901760
  %v8442 = vsub.f32 %v8440, %v8441
  %v8443 = vand.u32 %v8442, 4294901760
  %8444 = vmatprep.subr.mxu0 %v8443
  %v8445 = vand.u32 %v6356, 4294901760
  %v8446 = vsub.f32 %v6356, %v8445
  %v8447 = vand.u32 %v8446, 4294901760
  %v8448 = vsub.f32 %v8446, %v8447
  %v8449 = vand.u32 %v8448, 4294901760
  %8450 = vmatpush1.msra.mxu0 %v8449
  %v8451 = vand.u32 %v6365, 4294901760
  %v8452 = vsub.f32 %v6365, %v8451
  %v8453 = vand.u32 %v8452, 4294901760
  %v8454 = vsub.f32 %v8452, %v8453
  %v8455 = vand.u32 %v8454, 4294901760
  %8456 = vmatprep.subr.mxu0 %v8455
  %v8457 = vand.u32 %v6364, 4294901760
  %v8458 = vsub.f32 %v6364, %v8457
  %v8459 = vand.u32 %v8458, 4294901760
  %v8460 = vsub.f32 %v8458, %v8459
  %v8461 = vand.u32 %v8460, 4294901760
  %8462 = vmatpush1.msra.mxu0 %v8461
  %v8463 = vand.u32 %v6373, 4294901760
  %v8464 = vsub.f32 %v6373, %v8463
  %v8465 = vand.u32 %v8464, 4294901760
  %v8466 = vsub.f32 %v8464, %v8465
  %v8467 = vand.u32 %v8466, 4294901760
  %8468 = vmatprep.subr.mxu0 %v8467
  %v8469 = vand.u32 %v6372, 4294901760
  %v8470 = vsub.f32 %v6372, %v8469
  %v8471 = vand.u32 %v8470, 4294901760
  %v8472 = vsub.f32 %v8470, %v8471
  %v8473 = vand.u32 %v8472, 4294901760
  %8474 = vmatpush1.msra.mxu0 %v8473
  %v8475 = vand.u32 %v6381, 4294901760
  %v8476 = vsub.f32 %v6381, %v8475
  %v8477 = vand.u32 %v8476, 4294901760
  %v8478 = vsub.f32 %v8476, %v8477
  %v8479 = vand.u32 %v8478, 4294901760
  %8480 = vmatprep.subr.mxu0 %v8479
  %v8481 = vand.u32 %v6380, 4294901760
  %v8482 = vsub.f32 %v6380, %v8481
  %v8483 = vand.u32 %v8482, 4294901760
  %v8484 = vsub.f32 %v8482, %v8483
  %v8485 = vand.u32 %v8484, 4294901760
  %8486 = vmatpush1.msra.mxu0 %v8485
  %v8487 = vand.u32 %v6389, 4294901760
  %v8488 = vsub.f32 %v6389, %v8487
  %v8489 = vand.u32 %v8488, 4294901760
  %v8490 = vsub.f32 %v8488, %v8489
  %v8491 = vand.u32 %v8490, 4294901760
  %8492 = vmatprep.subr.mxu0 %v8491
  %v8493 = vand.u32 %v6388, 4294901760
  %v8494 = vsub.f32 %v6388, %v8493
  %v8495 = vand.u32 %v8494, 4294901760
  %v8496 = vsub.f32 %v8494, %v8495
  %v8497 = vand.u32 %v8496, 4294901760
  %8498 = vmatpush1.msra.mxu0 %v8497
  %v8499 = vand.u32 %v6397, 4294901760
  %v8500 = vsub.f32 %v6397, %v8499
  %v8501 = vand.u32 %v8500, 4294901760
  %v8502 = vsub.f32 %v8500, %v8501
  %v8503 = vand.u32 %v8502, 4294901760
  %8504 = vmatprep.subr.mxu0 %v8503
  %v8505 = vand.u32 %v6396, 4294901760
  %v8506 = vsub.f32 %v6396, %v8505
  %v8507 = vand.u32 %v8506, 4294901760
  %v8508 = vsub.f32 %v8506, %v8507
  %v8509 = vand.u32 %v8508, 4294901760
  %8510 = vmatpush1.msra.mxu0 %v8509
  %v8511 = vand.u32 %v6405, 4294901760
  %v8512 = vsub.f32 %v6405, %v8511
  %v8513 = vand.u32 %v8512, 4294901760
  %v8514 = vsub.f32 %v8512, %v8513
  %v8515 = vand.u32 %v8514, 4294901760
  %8516 = vmatprep.subr.mxu0 %v8515
  %v8517 = vand.u32 %v6404, 4294901760
  %v8518 = vsub.f32 %v6404, %v8517
  %v8519 = vand.u32 %v8518, 4294901760
  %v8520 = vsub.f32 %v8518, %v8519
  %v8521 = vand.u32 %v8520, 4294901760
  %8522 = vmatpush1.msra.mxu0 %v8521
  %v8523 = vand.u32 %v6413, 4294901760
  %v8524 = vsub.f32 %v6413, %v8523
  %v8525 = vand.u32 %v8524, 4294901760
  %v8526 = vsub.f32 %v8524, %v8525
  %v8527 = vand.u32 %v8526, 4294901760
  %8528 = vmatprep.subr.mxu0 %v8527
  %v8529 = vand.u32 %v6412, 4294901760
  %v8530 = vsub.f32 %v6412, %v8529
  %v8531 = vand.u32 %v8530, 4294901760
  %v8532 = vsub.f32 %v8530, %v8531
  %v8533 = vand.u32 %v8532, 4294901760
  %8534 = vmatpush1.msra.mxu0 %v8533
  %v8535 = vand.u32 %v6421, 4294901760
  %v8536 = vsub.f32 %v6421, %v8535
  %v8537 = vand.u32 %v8536, 4294901760
  %v8538 = vsub.f32 %v8536, %v8537
  %v8539 = vand.u32 %v8538, 4294901760
  %8540 = vmatprep.subr.mxu0 %v8539
  %v8541 = vand.u32 %v6420, 4294901760
  %v8542 = vsub.f32 %v6420, %v8541
  %v8543 = vand.u32 %v8542, 4294901760
  %v8544 = vsub.f32 %v8542, %v8543
  %v8545 = vand.u32 %v8544, 4294901760
  %8546 = vmatpush1.msra.mxu0 %v8545
  %v8547 = vand.u32 %v6429, 4294901760
  %v8548 = vsub.f32 %v6429, %v8547
  %v8549 = vand.u32 %v8548, 4294901760
  %v8550 = vsub.f32 %v8548, %v8549
  %v8551 = vand.u32 %v8550, 4294901760
  %8552 = vmatprep.subr.mxu0 %v8551
  %v8553 = vand.u32 %v6428, 4294901760
  %v8554 = vsub.f32 %v6428, %v8553
  %v8555 = vand.u32 %v8554, 4294901760
  %v8556 = vsub.f32 %v8554, %v8555
  %v8557 = vand.u32 %v8556, 4294901760
  %8558 = vmatpush1.msra.mxu0 %v8557
  %v8559 = vand.u32 %v6437, 4294901760
  %v8560 = vsub.f32 %v6437, %v8559
  %v8561 = vand.u32 %v8560, 4294901760
  %v8562 = vsub.f32 %v8560, %v8561
  %v8563 = vand.u32 %v8562, 4294901760
  %8564 = vmatprep.subr.mxu0 %v8563
  %v8565 = vand.u32 %v6436, 4294901760
  %v8566 = vsub.f32 %v6436, %v8565
  %v8567 = vand.u32 %v8566, 4294901760
  %v8568 = vsub.f32 %v8566, %v8567
  %v8569 = vand.u32 %v8568, 4294901760
  %8570 = vmatpush1.msra.mxu0 %v8569
  %v8571 = vand.u32 %v6445, 4294901760
  %v8572 = vsub.f32 %v6445, %v8571
  %v8573 = vand.u32 %v8572, 4294901760
  %v8574 = vsub.f32 %v8572, %v8573
  %v8575 = vand.u32 %v8574, 4294901760
  %8576 = vmatprep.subr.mxu0 %v8575
  %v8577 = vand.u32 %v6444, 4294901760
  %v8578 = vsub.f32 %v6444, %v8577
  %v8579 = vand.u32 %v8578, 4294901760
  %v8580 = vsub.f32 %v8578, %v8579
  %v8581 = vand.u32 %v8580, 4294901760
  %8582 = vmatpush1.msra.mxu0 %v8581
  %8583 = vmatprep.subr.mxu0 0.0
  %8584 = vmatpush1.msra.mxu0 0.0
  %8585 = vmatprep.subr.mxu0 0.0
  %8586 = vmatpush1.msra.mxu0 0.0
  %8587 = vmatprep.subr.mxu0 0.0
  %8588 = vmatpush1.msra.mxu0 0.0
  %8589 = vmatprep.subr.mxu0 0.0
  %8590 = vmatpush1.msra.mxu0 0.0
  %8591 = vmatprep.subr.mxu0 0.0
  %8592 = vmatpush1.msra.mxu0 0.0
  %8593 = vmatprep.subr.mxu0 0.0
  %8594 = vmatpush1.msra.mxu0 0.0
  %8595 = vmatprep.subr.mxu0 0.0
  %8596 = vmatpush1.msra.mxu0 0.0
  %8597 = vmatprep.subr.mxu0 0.0
  %8598 = vmatpush1.msra.mxu0 0.0
  %8599 = vmatprep.subr.mxu0 0.0
  %8600 = vmatpush1.msra.mxu0 0.0
  %8601 = vmatprep.subr.mxu0 0.0
  %8602 = vmatpush1.msra.mxu0 0.0
  %8603 = vmatprep.subr.mxu0 0.0
  %8604 = vmatpush1.msra.mxu0 0.0
  %8605 = vmatprep.subr.mxu0 0.0
  %8606 = vmatpush1.msra.mxu0 0.0
  %8607 = vmatprep.subr.mxu0 0.0
  %8608 = vmatpush1.msra.mxu0 0.0
  %8609 = vmatprep.subr.mxu0 0.0
  %8610 = vmatpush1.msra.mxu0 0.0
  %8611 = vmatprep.subr.mxu0 0.0
  %8612 = vmatpush1.msra.mxu0 0.0
  %8613 = vmatprep.subr.mxu0 0.0
  %8614 = vmatpush1.msra.mxu0 0.0
  %8615 = vmatprep.mubr.f32.mxu0 0.0
  %v8616 = vand.u32 %v1776, 4294901760
  %8617 = vmatmul.mubr.f32.gmra.mrb[0].mxu0 %v8616
  %v8618 = vpop.f32.mrb[0].mxu0
  %v8619 = vadd.f32 %v8376, %v8618
  %v8620 = vpop.f32.mrb[0].mxu0
  %v8621 = vadd.f32 %v8378, %v8620
  %8622 = vmatprep.mubr.f32.mxu0 0.0
  %v8623 = vand.u32 %v1777, 4294901760
  %8624 = vmatmul.mubr.f32.gmra.mrb[0].mxu0 %v8623
  %v8625 = vpop.f32.mrb[0].mxu0
  %v8626 = vadd.f32 %v8387, %v8625
  %v8627 = vpop.f32.mrb[0].mxu0
  %v8628 = vadd.f32 %v8389, %v8627
  %8629 = vdwg.mxu0
  %v8630 = vand.u32 %v6325, 4294901760
  %v8631 = vsub.f32 %v6325, %v8630
  %8632 = vmatprep.subr.mxu0 %v8631
  %v8633 = vand.u32 %v6324, 4294901760
  %v8634 = vsub.f32 %v6324, %v8633
  %8635 = vmatpush1.msra.mxu0 %v8634
  %v8636 = vand.u32 %v6333, 4294901760
  %v8637 = vsub.f32 %v6333, %v8636
  %8638 = vmatprep.subr.mxu0 %v8637
  %v8639 = vand.u32 %v6332, 4294901760
  %v8640 = vsub.f32 %v6332, %v8639
  %8641 = vmatpush1.msra.mxu0 %v8640
  %v8642 = vand.u32 %v6341, 4294901760
  %v8643 = vsub.f32 %v6341, %v8642
  %8644 = vmatprep.subr.mxu0 %v8643
  %v8645 = vand.u32 %v6340, 4294901760
  %v8646 = vsub.f32 %v6340, %v8645
  %8647 = vmatpush1.msra.mxu0 %v8646
  %v8648 = vand.u32 %v6349, 4294901760
  %v8649 = vsub.f32 %v6349, %v8648
  %8650 = vmatprep.subr.mxu0 %v8649
  %v8651 = vand.u32 %v6348, 4294901760
  %v8652 = vsub.f32 %v6348, %v8651
  %8653 = vmatpush1.msra.mxu0 %v8652
  %v8654 = vand.u32 %v6357, 4294901760
  %v8655 = vsub.f32 %v6357, %v8654
  %8656 = vmatprep.subr.mxu0 %v8655
  %v8657 = vand.u32 %v6356, 4294901760
  %v8658 = vsub.f32 %v6356, %v8657
  %8659 = vmatpush1.msra.mxu0 %v8658
  %v8660 = vand.u32 %v6365, 4294901760
  %v8661 = vsub.f32 %v6365, %v8660
  %8662 = vmatprep.subr.mxu0 %v8661
  %v8663 = vand.u32 %v6364, 4294901760
  %v8664 = vsub.f32 %v6364, %v8663
  %8665 = vmatpush1.msra.mxu0 %v8664
  %v8666 = vand.u32 %v6373, 4294901760
  %v8667 = vsub.f32 %v6373, %v8666
  %8668 = vmatprep.subr.mxu0 %v8667
  %v8669 = vand.u32 %v6372, 4294901760
  %v8670 = vsub.f32 %v6372, %v8669
  %8671 = vmatpush1.msra.mxu0 %v8670
  %v8672 = vand.u32 %v6381, 4294901760
  %v8673 = vsub.f32 %v6381, %v8672
  %8674 = vmatprep.subr.mxu0 %v8673
  %v8675 = vand.u32 %v6380, 4294901760
  %v8676 = vsub.f32 %v6380, %v8675
  %8677 = vmatpush1.msra.mxu0 %v8676
  %v8678 = vand.u32 %v6389, 4294901760
  %v8679 = vsub.f32 %v6389, %v8678
  %8680 = vmatprep.subr.mxu0 %v8679
  %v8681 = vand.u32 %v6388, 4294901760
  %v8682 = vsub.f32 %v6388, %v8681
  %8683 = vmatpush1.msra.mxu0 %v8682
  %v8684 = vand.u32 %v6397, 4294901760
  %v8685 = vsub.f32 %v6397, %v8684
  %8686 = vmatprep.subr.mxu0 %v8685
  %v8687 = vand.u32 %v6396, 4294901760
  %v8688 = vsub.f32 %v6396, %v8687
  %8689 = vmatpush1.msra.mxu0 %v8688
  %v8690 = vand.u32 %v6405, 4294901760
  %v8691 = vsub.f32 %v6405, %v8690
  %8692 = vmatprep.subr.mxu0 %v8691
  %v8693 = vand.u32 %v6404, 4294901760
  %v8694 = vsub.f32 %v6404, %v8693
  %8695 = vmatpush1.msra.mxu0 %v8694
  %v8696 = vand.u32 %v6413, 4294901760
  %v8697 = vsub.f32 %v6413, %v8696
  %8698 = vmatprep.subr.mxu0 %v8697
  %v8699 = vand.u32 %v6412, 4294901760
  %v8700 = vsub.f32 %v6412, %v8699
  %8701 = vmatpush1.msra.mxu0 %v8700
  %v8702 = vand.u32 %v6421, 4294901760
  %v8703 = vsub.f32 %v6421, %v8702
  %8704 = vmatprep.subr.mxu0 %v8703
  %v8705 = vand.u32 %v6420, 4294901760
  %v8706 = vsub.f32 %v6420, %v8705
  %8707 = vmatpush1.msra.mxu0 %v8706
  %v8708 = vand.u32 %v6429, 4294901760
  %v8709 = vsub.f32 %v6429, %v8708
  %8710 = vmatprep.subr.mxu0 %v8709
  %v8711 = vand.u32 %v6428, 4294901760
  %v8712 = vsub.f32 %v6428, %v8711
  %8713 = vmatpush1.msra.mxu0 %v8712
  %v8714 = vand.u32 %v6437, 4294901760
  %v8715 = vsub.f32 %v6437, %v8714
  %8716 = vmatprep.subr.mxu0 %v8715
  %v8717 = vand.u32 %v6436, 4294901760
  %v8718 = vsub.f32 %v6436, %v8717
  %8719 = vmatpush1.msra.mxu0 %v8718
  %v8720 = vand.u32 %v6445, 4294901760
  %v8721 = vsub.f32 %v6445, %v8720
  %8722 = vmatprep.subr.mxu0 %v8721
  %v8723 = vand.u32 %v6444, 4294901760
  %v8724 = vsub.f32 %v6444, %v8723
  %8725 = vmatpush1.msra.mxu0 %v8724
  %8726 = vmatprep.subr.mxu0 0.0
  %8727 = vmatpush1.msra.mxu0 0.0
  %8728 = vmatprep.subr.mxu0 0.0
  %8729 = vmatpush1.msra.mxu0 0.0
  %8730 = vmatprep.subr.mxu0 0.0
  %8731 = vmatpush1.msra.mxu0 0.0
  %8732 = vmatprep.subr.mxu0 0.0
  %8733 = vmatpush1.msra.mxu0 0.0
  %8734 = vmatprep.subr.mxu0 0.0
  %8735 = vmatpush1.msra.mxu0 0.0
  %8736 = vmatprep.subr.mxu0 0.0
  %8737 = vmatpush1.msra.mxu0 0.0
  %8738 = vmatprep.subr.mxu0 0.0
  %8739 = vmatpush1.msra.mxu0 0.0
  %8740 = vmatprep.subr.mxu0 0.0
  %8741 = vmatpush1.msra.mxu0 0.0
  %8742 = vmatprep.subr.mxu0 0.0
  %8743 = vmatpush1.msra.mxu0 0.0
  %8744 = vmatprep.subr.mxu0 0.0
  %8745 = vmatpush1.msra.mxu0 0.0
  %8746 = vmatprep.subr.mxu0 0.0
  %8747 = vmatpush1.msra.mxu0 0.0
  %8748 = vmatprep.subr.mxu0 0.0
  %8749 = vmatpush1.msra.mxu0 0.0
  %8750 = vmatprep.subr.mxu0 0.0
  %8751 = vmatpush1.msra.mxu0 0.0
  %8752 = vmatprep.subr.mxu0 0.0
  %8753 = vmatpush1.msra.mxu0 0.0
  %8754 = vmatprep.subr.mxu0 0.0
  %8755 = vmatpush1.msra.mxu0 0.0
  %8756 = vmatprep.subr.mxu0 0.0
  %8757 = vmatpush1.msra.mxu0 0.0
  %8758 = vmatprep.mubr.f32.mxu0 0.0
  %v8759 = vand.u32 %v1776, 4294901760
  %v8760 = vsub.f32 %v1776, %v8759
  %8761 = vmatmul.mubr.f32.gmra.mrb[0].mxu0 %v8760
  %v8762 = vpop.f32.mrb[0].mxu0
  %v8763 = vadd.f32 %v8619, %v8762
  %v8764 = vpop.f32.mrb[0].mxu0
  %v8765 = vadd.f32 %v8621, %v8764
  %8766 = vmatprep.mubr.f32.mxu0 0.0
  %v8767 = vand.u32 %v1777, 4294901760
  %v8768 = vsub.f32 %v1777, %v8767
  %8769 = vmatmul.mubr.f32.gmra.mrb[0].mxu0 %v8768
  %v8770 = vpop.f32.mrb[0].mxu0
  %v8771 = vadd.f32 %v8626, %v8770
  %v8772 = vpop.f32.mrb[0].mxu0
  %v8773 = vadd.f32 %v8628, %v8772
  %8774 = vdwg.mxu0
  %v8775 = vand.u32 %v6325, 4294901760
  %8776 = vmatprep.subr.mxu0 %v8775
  %v8777 = vand.u32 %v6324, 4294901760
  %8778 = vmatpush1.msra.mxu0 %v8777
  %v8779 = vand.u32 %v6333, 4294901760
  %8780 = vmatprep.subr.mxu0 %v8779
  %v8781 = vand.u32 %v6332, 4294901760
  %8782 = vmatpush1.msra.mxu0 %v8781
  %v8783 = vand.u32 %v6341, 4294901760
  %8784 = vmatprep.subr.mxu0 %v8783
  %v8785 = vand.u32 %v6340, 4294901760
  %8786 = vmatpush1.msra.mxu0 %v8785
  %v8787 = vand.u32 %v6349, 4294901760
  %8788 = vmatprep.subr.mxu0 %v8787
  %v8789 = vand.u32 %v6348, 4294901760
  %8790 = vmatpush1.msra.mxu0 %v8789
  %v8791 = vand.u32 %v6357, 4294901760
  %8792 = vmatprep.subr.mxu0 %v8791
  %v8793 = vand.u32 %v6356, 4294901760
  %8794 = vmatpush1.msra.mxu0 %v8793
  %v8795 = vand.u32 %v6365, 4294901760
  %8796 = vmatprep.subr.mxu0 %v8795
  %v8797 = vand.u32 %v6364, 4294901760
  %8798 = vmatpush1.msra.mxu0 %v8797
  %v8799 = vand.u32 %v6373, 4294901760
  %8800 = vmatprep.subr.mxu0 %v8799
  %v8801 = vand.u32 %v6372, 4294901760
  %8802 = vmatpush1.msra.mxu0 %v8801
  %v8803 = vand.u32 %v6381, 4294901760
  %8804 = vmatprep.subr.mxu0 %v8803
  %v8805 = vand.u32 %v6380, 4294901760
  %8806 = vmatpush1.msra.mxu0 %v8805
  %v8807 = vand.u32 %v6389, 4294901760
  %8808 = vmatprep.subr.mxu0 %v8807
  %v8809 = vand.u32 %v6388, 4294901760
  %8810 = vmatpush1.msra.mxu0 %v8809
  %v8811 = vand.u32 %v6397, 4294901760
  %8812 = vmatprep.subr.mxu0 %v8811
  %v8813 = vand.u32 %v6396, 4294901760
  %8814 = vmatpush1.msra.mxu0 %v8813
  %v8815 = vand.u32 %v6405, 4294901760
  %8816 = vmatprep.subr.mxu0 %v8815
  %v8817 = vand.u32 %v6404, 4294901760
  %8818 = vmatpush1.msra.mxu0 %v8817
  %v8819 = vand.u32 %v6413, 4294901760
  %8820 = vmatprep.subr.mxu0 %v8819
  %v8821 = vand.u32 %v6412, 4294901760
  %8822 = vmatpush1.msra.mxu0 %v8821
  %v8823 = vand.u32 %v6421, 4294901760
  %8824 = vmatprep.subr.mxu0 %v8823
  %v8825 = vand.u32 %v6420, 4294901760
  %8826 = vmatpush1.msra.mxu0 %v8825
  %v8827 = vand.u32 %v6429, 4294901760
  %8828 = vmatprep.subr.mxu0 %v8827
  %v8829 = vand.u32 %v6428, 4294901760
  %8830 = vmatpush1.msra.mxu0 %v8829
  %v8831 = vand.u32 %v6437, 4294901760
  %8832 = vmatprep.subr.mxu0 %v8831
  %v8833 = vand.u32 %v6436, 4294901760
  %8834 = vmatpush1.msra.mxu0 %v8833
  %v8835 = vand.u32 %v6445, 4294901760
  %8836 = vmatprep.subr.mxu0 %v8835
  %v8837 = vand.u32 %v6444, 4294901760
  %8838 = vmatpush1.msra.mxu0 %v8837
  %8839 = vmatprep.subr.mxu0 0.0
  %8840 = vmatpush1.msra.mxu0 0.0
  %8841 = vmatprep.subr.mxu0 0.0
  %8842 = vmatpush1.msra.mxu0 0.0
  %8843 = vmatprep.subr.mxu0 0.0
  %8844 = vmatpush1.msra.mxu0 0.0
  %8845 = vmatprep.subr.mxu0 0.0
  %8846 = vmatpush1.msra.mxu0 0.0
  %8847 = vmatprep.subr.mxu0 0.0
  %8848 = vmatpush1.msra.mxu0 0.0
  %8849 = vmatprep.subr.mxu0 0.0
  %8850 = vmatpush1.msra.mxu0 0.0
  %8851 = vmatprep.subr.mxu0 0.0
  %8852 = vmatpush1.msra.mxu0 0.0
  %8853 = vmatprep.subr.mxu0 0.0
  %8854 = vmatpush1.msra.mxu0 0.0
  %8855 = vmatprep.subr.mxu0 0.0
  %8856 = vmatpush1.msra.mxu0 0.0
  %8857 = vmatprep.subr.mxu0 0.0
  %8858 = vmatpush1.msra.mxu0 0.0
  %8859 = vmatprep.subr.mxu0 0.0
  %8860 = vmatpush1.msra.mxu0 0.0
  %8861 = vmatprep.subr.mxu0 0.0
  %8862 = vmatpush1.msra.mxu0 0.0
  %8863 = vmatprep.subr.mxu0 0.0
  %8864 = vmatpush1.msra.mxu0 0.0
  %8865 = vmatprep.subr.mxu0 0.0
  %8866 = vmatpush1.msra.mxu0 0.0
  %8867 = vmatprep.subr.mxu0 0.0
  %8868 = vmatpush1.msra.mxu0 0.0
  %8869 = vmatprep.subr.mxu0 0.0
  %8870 = vmatpush1.msra.mxu0 0.0
  %8871 = vmatprep.mubr.f32.mxu0 0.0
  %v8872 = vand.u32 %v1776, 4294901760
  %v8873 = vsub.f32 %v1776, %v8872
  %v8874 = vand.u32 %v8873, 4294901760
  %8875 = vmatmul.mubr.f32.gmra.mrb[0].mxu0 %v8874
  %v8876 = vpop.f32.mrb[0].mxu0
  %v8877 = vadd.f32 %v8763, %v8876
  %v8878 = vpop.f32.mrb[0].mxu0
  %v8879 = vadd.f32 %v8765, %v8878
  %8880 = vmatprep.mubr.f32.mxu0 0.0
  %v8881 = vand.u32 %v1777, 4294901760
  %v8882 = vsub.f32 %v1777, %v8881
  %v8883 = vand.u32 %v8882, 4294901760
  %8884 = vmatmul.mubr.f32.gmra.mrb[0].mxu0 %v8883
  %v8885 = vpop.f32.mrb[0].mxu0
  %v8886 = vadd.f32 %v8771, %v8885
  %v8887 = vpop.f32.mrb[0].mxu0
  %v8888 = vadd.f32 %v8773, %v8887
  %8889 = vdwg.mxu0
  %v8890 = vand.u32 %v6325, 4294901760
  %v8891 = vsub.f32 %v6325, %v8890
  %v8892 = vand.u32 %v8891, 4294901760
  %8893 = vmatprep.subr.mxu0 %v8892
  %v8894 = vand.u32 %v6324, 4294901760
  %v8895 = vsub.f32 %v6324, %v8894
  %v8896 = vand.u32 %v8895, 4294901760
  %8897 = vmatpush1.msra.mxu0 %v8896
  %v8898 = vand.u32 %v6333, 4294901760
  %v8899 = vsub.f32 %v6333, %v8898
  %v8900 = vand.u32 %v8899, 4294901760
  %8901 = vmatprep.subr.mxu0 %v8900
  %v8902 = vand.u32 %v6332, 4294901760
  %v8903 = vsub.f32 %v6332, %v8902
  %v8904 = vand.u32 %v8903, 4294901760
  %8905 = vmatpush1.msra.mxu0 %v8904
  %v8906 = vand.u32 %v6341, 4294901760
  %v8907 = vsub.f32 %v6341, %v8906
  %v8908 = vand.u32 %v8907, 4294901760
  %8909 = vmatprep.subr.mxu0 %v8908
  %v8910 = vand.u32 %v6340, 4294901760
  %v8911 = vsub.f32 %v6340, %v8910
  %v8912 = vand.u32 %v8911, 4294901760
  %8913 = vmatpush1.msra.mxu0 %v8912
  %v8914 = vand.u32 %v6349, 4294901760
  %v8915 = vsub.f32 %v6349, %v8914
  %v8916 = vand.u32 %v8915, 4294901760
  %8917 = vmatprep.subr.mxu0 %v8916
  %v8918 = vand.u32 %v6348, 4294901760
  %v8919 = vsub.f32 %v6348, %v8918
  %v8920 = vand.u32 %v8919, 4294901760
  %8921 = vmatpush1.msra.mxu0 %v8920
  %v8922 = vand.u32 %v6357, 4294901760
  %v8923 = vsub.f32 %v6357, %v8922
  %v8924 = vand.u32 %v8923, 4294901760
  %8925 = vmatprep.subr.mxu0 %v8924
  %v8926 = vand.u32 %v6356, 4294901760
  %v8927 = vsub.f32 %v6356, %v8926
  %v8928 = vand.u32 %v8927, 4294901760
  %8929 = vmatpush1.msra.mxu0 %v8928
  %v8930 = vand.u32 %v6365, 4294901760
  %v8931 = vsub.f32 %v6365, %v8930
  %v8932 = vand.u32 %v8931, 4294901760
  %8933 = vmatprep.subr.mxu0 %v8932
  %v8934 = vand.u32 %v6364, 4294901760
  %v8935 = vsub.f32 %v6364, %v8934
  %v8936 = vand.u32 %v8935, 4294901760
  %8937 = vmatpush1.msra.mxu0 %v8936
  %v8938 = vand.u32 %v6373, 4294901760
  %v8939 = vsub.f32 %v6373, %v8938
  %v8940 = vand.u32 %v8939, 4294901760
  %8941 = vmatprep.subr.mxu0 %v8940
  %v8942 = vand.u32 %v6372, 4294901760
  %v8943 = vsub.f32 %v6372, %v8942
  %v8944 = vand.u32 %v8943, 4294901760
  %8945 = vmatpush1.msra.mxu0 %v8944
  %v8946 = vand.u32 %v6381, 4294901760
  %v8947 = vsub.f32 %v6381, %v8946
  %v8948 = vand.u32 %v8947, 4294901760
  %8949 = vmatprep.subr.mxu0 %v8948
  %v8950 = vand.u32 %v6380, 4294901760
  %v8951 = vsub.f32 %v6380, %v8950
  %v8952 = vand.u32 %v8951, 4294901760
  %8953 = vmatpush1.msra.mxu0 %v8952
  %v8954 = vand.u32 %v6389, 4294901760
  %v8955 = vsub.f32 %v6389, %v8954
  %v8956 = vand.u32 %v8955, 4294901760
  %8957 = vmatprep.subr.mxu0 %v8956
  %v8958 = vand.u32 %v6388, 4294901760
  %v8959 = vsub.f32 %v6388, %v8958
  %v8960 = vand.u32 %v8959, 4294901760
  %8961 = vmatpush1.msra.mxu0 %v8960
  %v8962 = vand.u32 %v6397, 4294901760
  %v8963 = vsub.f32 %v6397, %v8962
  %v8964 = vand.u32 %v8963, 4294901760
  %8965 = vmatprep.subr.mxu0 %v8964
  %v8966 = vand.u32 %v6396, 4294901760
  %v8967 = vsub.f32 %v6396, %v8966
  %v8968 = vand.u32 %v8967, 4294901760
  %8969 = vmatpush1.msra.mxu0 %v8968
  %v8970 = vand.u32 %v6405, 4294901760
  %v8971 = vsub.f32 %v6405, %v8970
  %v8972 = vand.u32 %v8971, 4294901760
  %8973 = vmatprep.subr.mxu0 %v8972
  %v8974 = vand.u32 %v6404, 4294901760
  %v8975 = vsub.f32 %v6404, %v8974
  %v8976 = vand.u32 %v8975, 4294901760
  %8977 = vmatpush1.msra.mxu0 %v8976
  %v8978 = vand.u32 %v6413, 4294901760
  %v8979 = vsub.f32 %v6413, %v8978
  %v8980 = vand.u32 %v8979, 4294901760
  %8981 = vmatprep.subr.mxu0 %v8980
  %v8982 = vand.u32 %v6412, 4294901760
  %v8983 = vsub.f32 %v6412, %v8982
  %v8984 = vand.u32 %v8983, 4294901760
  %8985 = vmatpush1.msra.mxu0 %v8984
  %v8986 = vand.u32 %v6421, 4294901760
  %v8987 = vsub.f32 %v6421, %v8986
  %v8988 = vand.u32 %v8987, 4294901760
  %8989 = vmatprep.subr.mxu0 %v8988
  %v8990 = vand.u32 %v6420, 4294901760
  %v8991 = vsub.f32 %v6420, %v8990
  %v8992 = vand.u32 %v8991, 4294901760
  %8993 = vmatpush1.msra.mxu0 %v8992
  %v8994 = vand.u32 %v6429, 4294901760
  %v8995 = vsub.f32 %v6429, %v8994
  %v8996 = vand.u32 %v8995, 4294901760
  %8997 = vmatprep.subr.mxu0 %v8996
  %v8998 = vand.u32 %v6428, 4294901760
  %v8999 = vsub.f32 %v6428, %v8998
  %v9000 = vand.u32 %v8999, 4294901760
  %9001 = vmatpush1.msra.mxu0 %v9000
  %v9002 = vand.u32 %v6437, 4294901760
  %v9003 = vsub.f32 %v6437, %v9002
  %v9004 = vand.u32 %v9003, 4294901760
  %9005 = vmatprep.subr.mxu0 %v9004
  %v9006 = vand.u32 %v6436, 4294901760
  %v9007 = vsub.f32 %v6436, %v9006
  %v9008 = vand.u32 %v9007, 4294901760
  %9009 = vmatpush1.msra.mxu0 %v9008
  %v9010 = vand.u32 %v6445, 4294901760
  %v9011 = vsub.f32 %v6445, %v9010
  %v9012 = vand.u32 %v9011, 4294901760
  %9013 = vmatprep.subr.mxu0 %v9012
  %v9014 = vand.u32 %v6444, 4294901760
  %v9015 = vsub.f32 %v6444, %v9014
  %v9016 = vand.u32 %v9015, 4294901760
  %9017 = vmatpush1.msra.mxu0 %v9016
  %9018 = vmatprep.subr.mxu0 0.0
  %9019 = vmatpush1.msra.mxu0 0.0
  %9020 = vmatprep.subr.mxu0 0.0
  %9021 = vmatpush1.msra.mxu0 0.0
  %9022 = vmatprep.subr.mxu0 0.0
  %9023 = vmatpush1.msra.mxu0 0.0
  %9024 = vmatprep.subr.mxu0 0.0
  %9025 = vmatpush1.msra.mxu0 0.0
  %9026 = vmatprep.subr.mxu0 0.0
  %9027 = vmatpush1.msra.mxu0 0.0
  %9028 = vmatprep.subr.mxu0 0.0
  %9029 = vmatpush1.msra.mxu0 0.0
  %9030 = vmatprep.subr.mxu0 0.0
  %9031 = vmatpush1.msra.mxu0 0.0
  %9032 = vmatprep.subr.mxu0 0.0
  %9033 = vmatpush1.msra.mxu0 0.0
  %9034 = vmatprep.subr.mxu0 0.0
  %9035 = vmatpush1.msra.mxu0 0.0
  %9036 = vmatprep.subr.mxu0 0.0
  %9037 = vmatpush1.msra.mxu0 0.0
  %9038 = vmatprep.subr.mxu0 0.0
  %9039 = vmatpush1.msra.mxu0 0.0
  %9040 = vmatprep.subr.mxu0 0.0
  %9041 = vmatpush1.msra.mxu0 0.0
  %9042 = vmatprep.subr.mxu0 0.0
  %9043 = vmatpush1.msra.mxu0 0.0
  %9044 = vmatprep.subr.mxu0 0.0
  %9045 = vmatpush1.msra.mxu0 0.0
  %9046 = vmatprep.subr.mxu0 0.0
  %9047 = vmatpush1.msra.mxu0 0.0
  %9048 = vmatprep.subr.mxu0 0.0
  %9049 = vmatpush1.msra.mxu0 0.0
  %9050 = vmatprep.mubr.f32.mxu0 0.0
  %v9051 = vand.u32 %v1776, 4294901760
  %9052 = vmatmul.mubr.f32.gmra.mrb[0].mxu0 %v9051
  %v9053 = vpop.f32.mrb[0].mxu0
  %v9054 = vadd.f32 %v8877, %v9053
  %v9055 = vpop.f32.mrb[0].mxu0
  %v9056 = vadd.f32 %v8879, %v9055
  %9057 = vmatprep.mubr.f32.mxu0 0.0
  %v9058 = vand.u32 %v1777, 4294901760
  %9059 = vmatmul.mubr.f32.gmra.mrb[0].mxu0 %v9058
  %v9060 = vpop.f32.mrb[0].mxu0
  %v9061 = vadd.f32 %v8886, %v9060
  %v9062 = vpop.f32.mrb[0].mxu0
  %v9063 = vadd.f32 %v8888, %v9062
  %9064 = vdwg.mxu0
  %v9065 = vand.u32 %v6325, 4294901760
  %9066 = vmatprep.subr.mxu0 %v9065
  %v9067 = vand.u32 %v6324, 4294901760
  %9068 = vmatpush1.msra.mxu0 %v9067
  %v9069 = vand.u32 %v6333, 4294901760
  %9070 = vmatprep.subr.mxu0 %v9069
  %v9071 = vand.u32 %v6332, 4294901760
  %9072 = vmatpush1.msra.mxu0 %v9071
  %v9073 = vand.u32 %v6341, 4294901760
  %9074 = vmatprep.subr.mxu0 %v9073
  %v9075 = vand.u32 %v6340, 4294901760
  %9076 = vmatpush1.msra.mxu0 %v9075
  %v9077 = vand.u32 %v6349, 4294901760
  %9078 = vmatprep.subr.mxu0 %v9077
  %v9079 = vand.u32 %v6348, 4294901760
  %9080 = vmatpush1.msra.mxu0 %v9079
  %v9081 = vand.u32 %v6357, 4294901760
  %9082 = vmatprep.subr.mxu0 %v9081
  %v9083 = vand.u32 %v6356, 4294901760
  %9084 = vmatpush1.msra.mxu0 %v9083
  %v9085 = vand.u32 %v6365, 4294901760
  %9086 = vmatprep.subr.mxu0 %v9085
  %v9087 = vand.u32 %v6364, 4294901760
  %9088 = vmatpush1.msra.mxu0 %v9087
  %v9089 = vand.u32 %v6373, 4294901760
  %9090 = vmatprep.subr.mxu0 %v9089
  %v9091 = vand.u32 %v6372, 4294901760
  %9092 = vmatpush1.msra.mxu0 %v9091
  %v9093 = vand.u32 %v6381, 4294901760
  %9094 = vmatprep.subr.mxu0 %v9093
  %v9095 = vand.u32 %v6380, 4294901760
  %9096 = vmatpush1.msra.mxu0 %v9095
  %v9097 = vand.u32 %v6389, 4294901760
  %9098 = vmatprep.subr.mxu0 %v9097
  %v9099 = vand.u32 %v6388, 4294901760
  %9100 = vmatpush1.msra.mxu0 %v9099
  %v9101 = vand.u32 %v6397, 4294901760
  %9102 = vmatprep.subr.mxu0 %v9101
  %v9103 = vand.u32 %v6396, 4294901760
  %9104 = vmatpush1.msra.mxu0 %v9103
  %v9105 = vand.u32 %v6405, 4294901760
  %9106 = vmatprep.subr.mxu0 %v9105
  %v9107 = vand.u32 %v6404, 4294901760
  %9108 = vmatpush1.msra.mxu0 %v9107
  %v9109 = vand.u32 %v6413, 4294901760
  %9110 = vmatprep.subr.mxu0 %v9109
  %v9111 = vand.u32 %v6412, 4294901760
  %9112 = vmatpush1.msra.mxu0 %v9111
  %v9113 = vand.u32 %v6421, 4294901760
  %9114 = vmatprep.subr.mxu0 %v9113
  %v9115 = vand.u32 %v6420, 4294901760
  %9116 = vmatpush1.msra.mxu0 %v9115
  %v9117 = vand.u32 %v6429, 4294901760
  %9118 = vmatprep.subr.mxu0 %v9117
  %v9119 = vand.u32 %v6428, 4294901760
  %9120 = vmatpush1.msra.mxu0 %v9119
  %v9121 = vand.u32 %v6437, 4294901760
  %9122 = vmatprep.subr.mxu0 %v9121
  %v9123 = vand.u32 %v6436, 4294901760
  %9124 = vmatpush1.msra.mxu0 %v9123
  %v9125 = vand.u32 %v6445, 4294901760
  %9126 = vmatprep.subr.mxu0 %v9125
  %v9127 = vand.u32 %v6444, 4294901760
  %9128 = vmatpush1.msra.mxu0 %v9127
  %9129 = vmatprep.subr.mxu0 0.0
  %9130 = vmatpush1.msra.mxu0 0.0
  %9131 = vmatprep.subr.mxu0 0.0
  %9132 = vmatpush1.msra.mxu0 0.0
  %9133 = vmatprep.subr.mxu0 0.0
  %9134 = vmatpush1.msra.mxu0 0.0
  %9135 = vmatprep.subr.mxu0 0.0
  %9136 = vmatpush1.msra.mxu0 0.0
  %9137 = vmatprep.subr.mxu0 0.0
  %9138 = vmatpush1.msra.mxu0 0.0
  %9139 = vmatprep.subr.mxu0 0.0
  %9140 = vmatpush1.msra.mxu0 0.0
  %9141 = vmatprep.subr.mxu0 0.0
  %9142 = vmatpush1.msra.mxu0 0.0
  %9143 = vmatprep.subr.mxu0 0.0
  %9144 = vmatpush1.msra.mxu0 0.0
  %9145 = vmatprep.subr.mxu0 0.0
  %9146 = vmatpush1.msra.mxu0 0.0
  %9147 = vmatprep.subr.mxu0 0.0
  %9148 = vmatpush1.msra.mxu0 0.0
  %9149 = vmatprep.subr.mxu0 0.0
  %9150 = vmatpush1.msra.mxu0 0.0
  %9151 = vmatprep.subr.mxu0 0.0
  %9152 = vmatpush1.msra.mxu0 0.0
  %9153 = vmatprep.subr.mxu0 0.0
  %9154 = vmatpush1.msra.mxu0 0.0
  %9155 = vmatprep.subr.mxu0 0.0
  %9156 = vmatpush1.msra.mxu0 0.0
  %9157 = vmatprep.subr.mxu0 0.0
  %9158 = vmatpush1.msra.mxu0 0.0
  %9159 = vmatprep.subr.mxu0 0.0
  %9160 = vmatpush1.msra.mxu0 0.0
  %9161 = vmatprep.mubr.f32.mxu0 0.0
  %v9162 = vand.u32 %v1776, 4294901760
  %9163 = vmatmul.mubr.f32.gmra.mrb[0].mxu0 %v9162
  %v9164 = vpop.f32.mrb[0].mxu0
  %v9165 = vadd.f32 %v9054, %v9164
  %v9166 = vpop.f32.mrb[0].mxu0
  %v9167 = vadd.f32 %v9056, %v9166
  %9168 = vmatprep.mubr.f32.mxu0 0.0
  %v9169 = vand.u32 %v1777, 4294901760
  %9170 = vmatmul.mubr.f32.gmra.mrb[0].mxu0 %v9169
  %v9171 = vpop.f32.mrb[0].mxu0
  %v9172 = vadd.f32 %v9061, %v9171
  %v9173 = vpop.f32.mrb[0].mxu0
  %v9174 = vadd.f32 %v9063, %v9173
  %9175 = vdwg.mxu0
  %v9176 = vand.u32 %v6327, 4294901760
  %9177 = vmatprep.subr.mxu0 %v9176
  %v9178 = vand.u32 %v6326, 4294901760
  %9179 = vmatpush1.msra.mxu0 %v9178
  %v9180 = vand.u32 %v6335, 4294901760
  %9181 = vmatprep.subr.mxu0 %v9180
  %v9182 = vand.u32 %v6334, 4294901760
  %9183 = vmatpush1.msra.mxu0 %v9182
  %v9184 = vand.u32 %v6343, 4294901760
  %9185 = vmatprep.subr.mxu0 %v9184
  %v9186 = vand.u32 %v6342, 4294901760
  %9187 = vmatpush1.msra.mxu0 %v9186
  %v9188 = vand.u32 %v6351, 4294901760
  %9189 = vmatprep.subr.mxu0 %v9188
  %v9190 = vand.u32 %v6350, 4294901760
  %9191 = vmatpush1.msra.mxu0 %v9190
  %v9192 = vand.u32 %v6359, 4294901760
  %9193 = vmatprep.subr.mxu0 %v9192
  %v9194 = vand.u32 %v6358, 4294901760
  %9195 = vmatpush1.msra.mxu0 %v9194
  %v9196 = vand.u32 %v6367, 4294901760
  %9197 = vmatprep.subr.mxu0 %v9196
  %v9198 = vand.u32 %v6366, 4294901760
  %9199 = vmatpush1.msra.mxu0 %v9198
  %v9200 = vand.u32 %v6375, 4294901760
  %9201 = vmatprep.subr.mxu0 %v9200
  %v9202 = vand.u32 %v6374, 4294901760
  %9203 = vmatpush1.msra.mxu0 %v9202
  %v9204 = vand.u32 %v6383, 4294901760
  %9205 = vmatprep.subr.mxu0 %v9204
  %v9206 = vand.u32 %v6382, 4294901760
  %9207 = vmatpush1.msra.mxu0 %v9206
  %v9208 = vand.u32 %v6391, 4294901760
  %9209 = vmatprep.subr.mxu0 %v9208
  %v9210 = vand.u32 %v6390, 4294901760
  %9211 = vmatpush1.msra.mxu0 %v9210
  %v9212 = vand.u32 %v6399, 4294901760
  %9213 = vmatprep.subr.mxu0 %v9212
  %v9214 = vand.u32 %v6398, 4294901760
  %9215 = vmatpush1.msra.mxu0 %v9214
  %v9216 = vand.u32 %v6407, 4294901760
  %9217 = vmatprep.subr.mxu0 %v9216
  %v9218 = vand.u32 %v6406, 4294901760
  %9219 = vmatpush1.msra.mxu0 %v9218
  %v9220 = vand.u32 %v6415, 4294901760
  %9221 = vmatprep.subr.mxu0 %v9220
  %v9222 = vand.u32 %v6414, 4294901760
  %9223 = vmatpush1.msra.mxu0 %v9222
  %v9224 = vand.u32 %v6423, 4294901760
  %9225 = vmatprep.subr.mxu0 %v9224
  %v9226 = vand.u32 %v6422, 4294901760
  %9227 = vmatpush1.msra.mxu0 %v9226
  %v9228 = vand.u32 %v6431, 4294901760
  %9229 = vmatprep.subr.mxu0 %v9228
  %v9230 = vand.u32 %v6430, 4294901760
  %9231 = vmatpush1.msra.mxu0 %v9230
  %v9232 = vand.u32 %v6439, 4294901760
  %9233 = vmatprep.subr.mxu0 %v9232
  %v9234 = vand.u32 %v6438, 4294901760
  %9235 = vmatpush1.msra.mxu0 %v9234
  %v9236 = vand.u32 %v6447, 4294901760
  %9237 = vmatprep.subr.mxu0 %v9236
  %v9238 = vand.u32 %v6446, 4294901760
  %9239 = vmatpush1.msra.mxu0 %v9238
  %9240 = vmatprep.subr.mxu0 0.0
  %9241 = vmatpush1.msra.mxu0 0.0
  %9242 = vmatprep.subr.mxu0 0.0
  %9243 = vmatpush1.msra.mxu0 0.0
  %9244 = vmatprep.subr.mxu0 0.0
  %9245 = vmatpush1.msra.mxu0 0.0
  %9246 = vmatprep.subr.mxu0 0.0
  %9247 = vmatpush1.msra.mxu0 0.0
  %9248 = vmatprep.subr.mxu0 0.0
  %9249 = vmatpush1.msra.mxu0 0.0
  %9250 = vmatprep.subr.mxu0 0.0
  %9251 = vmatpush1.msra.mxu0 0.0
  %9252 = vmatprep.subr.mxu0 0.0
  %9253 = vmatpush1.msra.mxu0 0.0
  %9254 = vmatprep.subr.mxu0 0.0
  %9255 = vmatpush1.msra.mxu0 0.0
  %9256 = vmatprep.subr.mxu0 0.0
  %9257 = vmatpush1.msra.mxu0 0.0
  %9258 = vmatprep.subr.mxu0 0.0
  %9259 = vmatpush1.msra.mxu0 0.0
  %9260 = vmatprep.subr.mxu0 0.0
  %9261 = vmatpush1.msra.mxu0 0.0
  %9262 = vmatprep.subr.mxu0 0.0
  %9263 = vmatpush1.msra.mxu0 0.0
  %9264 = vmatprep.subr.mxu0 0.0
  %9265 = vmatpush1.msra.mxu0 0.0
  %9266 = vmatprep.subr.mxu0 0.0
  %9267 = vmatpush1.msra.mxu0 0.0
  %9268 = vmatprep.subr.mxu0 0.0
  %9269 = vmatpush1.msra.mxu0 0.0
  %9270 = vmatprep.subr.mxu0 0.0
  %9271 = vmatpush1.msra.mxu0 0.0
  %9272 = vmatprep.mubr.f32.mxu0 0.0
  %v9273 = vand.u32 %v1776, 4294901760
  %v9274 = vsub.f32 %v1776, %v9273
  %v9275 = vand.u32 %v9274, 4294901760
  %v9276 = vsub.f32 %v9274, %v9275
  %v9277 = vand.u32 %v9276, 4294901760
  %9278 = vmatmul.mubr.f32.gmra.mrb[0].mxu0 %v9277
  %v9279 = vpop.f32.mrb[0].mxu0
  %v9280 = vadd.f32 %v6454, %v9279
  %v9281 = vpop.f32.mrb[0].mxu0
  %v9282 = vadd.f32 %v6455, %v9281
  %9283 = vmatprep.mubr.f32.mxu0 0.0
  %v9284 = vand.u32 %v1777, 4294901760
  %v9285 = vsub.f32 %v1777, %v9284
  %v9286 = vand.u32 %v9285, 4294901760
  %v9287 = vsub.f32 %v9285, %v9286
  %v9288 = vand.u32 %v9287, 4294901760
  %9289 = vmatmul.mubr.f32.gmra.mrb[0].mxu0 %v9288
  %v9290 = vpop.f32.mrb[0].mxu0
  %v9291 = vadd.f32 %v6462, %v9290
  %v9292 = vpop.f32.mrb[0].mxu0
  %v9293 = vadd.f32 %v6463, %v9292
  %9294 = vdwg.mxu0
  %v9295 = vand.u32 %v6327, 4294901760
  %v9296 = vsub.f32 %v6327, %v9295
  %v9297 = vand.u32 %v9296, 4294901760
  %v9298 = vsub.f32 %v9296, %v9297
  %v9299 = vand.u32 %v9298, 4294901760
  %9300 = vmatprep.subr.mxu0 %v9299
  %v9301 = vand.u32 %v6326, 4294901760
  %v9302 = vsub.f32 %v6326, %v9301
  %v9303 = vand.u32 %v9302, 4294901760
  %v9304 = vsub.f32 %v9302, %v9303
  %v9305 = vand.u32 %v9304, 4294901760
  %9306 = vmatpush1.msra.mxu0 %v9305
  %v9307 = vand.u32 %v6335, 4294901760
  %v9308 = vsub.f32 %v6335, %v9307
  %v9309 = vand.u32 %v9308, 4294901760
  %v9310 = vsub.f32 %v9308, %v9309
  %v9311 = vand.u32 %v9310, 4294901760
  %9312 = vmatprep.subr.mxu0 %v9311
  %v9313 = vand.u32 %v6334, 4294901760
  %v9314 = vsub.f32 %v6334, %v9313
  %v9315 = vand.u32 %v9314, 4294901760
  %v9316 = vsub.f32 %v9314, %v9315
  %v9317 = vand.u32 %v9316, 4294901760
  %9318 = vmatpush1.msra.mxu0 %v9317
  %v9319 = vand.u32 %v6343, 4294901760
  %v9320 = vsub.f32 %v6343, %v9319
  %v9321 = vand.u32 %v9320, 4294901760
  %v9322 = vsub.f32 %v9320, %v9321
  %v9323 = vand.u32 %v9322, 4294901760
  %9324 = vmatprep.subr.mxu0 %v9323
  %v9325 = vand.u32 %v6342, 4294901760
  %v9326 = vsub.f32 %v6342, %v9325
  %v9327 = vand.u32 %v9326, 4294901760
  %v9328 = vsub.f32 %v9326, %v9327
  %v9329 = vand.u32 %v9328, 4294901760
  %9330 = vmatpush1.msra.mxu0 %v9329
  %v9331 = vand.u32 %v6351, 4294901760
  %v9332 = vsub.f32 %v6351, %v9331
  %v9333 = vand.u32 %v9332, 4294901760
  %v9334 = vsub.f32 %v9332, %v9333
  %v9335 = vand.u32 %v9334, 4294901760
  %9336 = vmatprep.subr.mxu0 %v9335
  %v9337 = vand.u32 %v6350, 4294901760
  %v9338 = vsub.f32 %v6350, %v9337
  %v9339 = vand.u32 %v9338, 4294901760
  %v9340 = vsub.f32 %v9338, %v9339
  %v9341 = vand.u32 %v9340, 4294901760
  %9342 = vmatpush1.msra.mxu0 %v9341
  %v9343 = vand.u32 %v6359, 4294901760
  %v9344 = vsub.f32 %v6359, %v9343
  %v9345 = vand.u32 %v9344, 4294901760
  %v9346 = vsub.f32 %v9344, %v9345
  %v9347 = vand.u32 %v9346, 4294901760
  %9348 = vmatprep.subr.mxu0 %v9347
  %v9349 = vand.u32 %v6358, 4294901760
  %v9350 = vsub.f32 %v6358, %v9349
  %v9351 = vand.u32 %v9350, 4294901760
  %v9352 = vsub.f32 %v9350, %v9351
  %v9353 = vand.u32 %v9352, 4294901760
  %9354 = vmatpush1.msra.mxu0 %v9353
  %v9355 = vand.u32 %v6367, 4294901760
  %v9356 = vsub.f32 %v6367, %v9355
  %v9357 = vand.u32 %v9356, 4294901760
  %v9358 = vsub.f32 %v9356, %v9357
  %v9359 = vand.u32 %v9358, 4294901760
  %9360 = vmatprep.subr.mxu0 %v9359
  %v9361 = vand.u32 %v6366, 4294901760
  %v9362 = vsub.f32 %v6366, %v9361
  %v9363 = vand.u32 %v9362, 4294901760
  %v9364 = vsub.f32 %v9362, %v9363
  %v9365 = vand.u32 %v9364, 4294901760
  %9366 = vmatpush1.msra.mxu0 %v9365
  %v9367 = vand.u32 %v6375, 4294901760
  %v9368 = vsub.f32 %v6375, %v9367
  %v9369 = vand.u32 %v9368, 4294901760
  %v9370 = vsub.f32 %v9368, %v9369
  %v9371 = vand.u32 %v9370, 4294901760
  %9372 = vmatprep.subr.mxu0 %v9371
  %v9373 = vand.u32 %v6374, 4294901760
  %v9374 = vsub.f32 %v6374, %v9373
  %v9375 = vand.u32 %v9374, 4294901760
  %v9376 = vsub.f32 %v9374, %v9375
  %v9377 = vand.u32 %v9376, 4294901760
  %9378 = vmatpush1.msra.mxu0 %v9377
  %v9379 = vand.u32 %v6383, 4294901760
  %v9380 = vsub.f32 %v6383, %v9379
  %v9381 = vand.u32 %v9380, 4294901760
  %v9382 = vsub.f32 %v9380, %v9381
  %v9383 = vand.u32 %v9382, 4294901760
  %9384 = vmatprep.subr.mxu0 %v9383
  %v9385 = vand.u32 %v6382, 4294901760
  %v9386 = vsub.f32 %v6382, %v9385
  %v9387 = vand.u32 %v9386, 4294901760
  %v9388 = vsub.f32 %v9386, %v9387
  %v9389 = vand.u32 %v9388, 4294901760
  %9390 = vmatpush1.msra.mxu0 %v9389
  %v9391 = vand.u32 %v6391, 4294901760
  %v9392 = vsub.f32 %v6391, %v9391
  %v9393 = vand.u32 %v9392, 4294901760
  %v9394 = vsub.f32 %v9392, %v9393
  %v9395 = vand.u32 %v9394, 4294901760
  %9396 = vmatprep.subr.mxu0 %v9395
  %v9397 = vand.u32 %v6390, 4294901760
  %v9398 = vsub.f32 %v6390, %v9397
  %v9399 = vand.u32 %v9398, 4294901760
  %v9400 = vsub.f32 %v9398, %v9399
  %v9401 = vand.u32 %v9400, 4294901760
  %9402 = vmatpush1.msra.mxu0 %v9401
  %v9403 = vand.u32 %v6399, 4294901760
  %v9404 = vsub.f32 %v6399, %v9403
  %v9405 = vand.u32 %v9404, 4294901760
  %v9406 = vsub.f32 %v9404, %v9405
  %v9407 = vand.u32 %v9406, 4294901760
  %9408 = vmatprep.subr.mxu0 %v9407
  %v9409 = vand.u32 %v6398, 4294901760
  %v9410 = vsub.f32 %v6398, %v9409
  %v9411 = vand.u32 %v9410, 4294901760
  %v9412 = vsub.f32 %v9410, %v9411
  %v9413 = vand.u32 %v9412, 4294901760
  %9414 = vmatpush1.msra.mxu0 %v9413
  %v9415 = vand.u32 %v6407, 4294901760
  %v9416 = vsub.f32 %v6407, %v9415
  %v9417 = vand.u32 %v9416, 4294901760
  %v9418 = vsub.f32 %v9416, %v9417
  %v9419 = vand.u32 %v9418, 4294901760
  %9420 = vmatprep.subr.mxu0 %v9419
  %v9421 = vand.u32 %v6406, 4294901760
  %v9422 = vsub.f32 %v6406, %v9421
  %v9423 = vand.u32 %v9422, 4294901760
  %v9424 = vsub.f32 %v9422, %v9423
  %v9425 = vand.u32 %v9424, 4294901760
  %9426 = vmatpush1.msra.mxu0 %v9425
  %v9427 = vand.u32 %v6415, 4294901760
  %v9428 = vsub.f32 %v6415, %v9427
  %v9429 = vand.u32 %v9428, 4294901760
  %v9430 = vsub.f32 %v9428, %v9429
  %v9431 = vand.u32 %v9430, 4294901760
  %9432 = vmatprep.subr.mxu0 %v9431
  %v9433 = vand.u32 %v6414, 4294901760
  %v9434 = vsub.f32 %v6414, %v9433
  %v9435 = vand.u32 %v9434, 4294901760
  %v9436 = vsub.f32 %v9434, %v9435
  %v9437 = vand.u32 %v9436, 4294901760
  %9438 = vmatpush1.msra.mxu0 %v9437
  %v9439 = vand.u32 %v6423, 4294901760
  %v9440 = vsub.f32 %v6423, %v9439
  %v9441 = vand.u32 %v9440, 4294901760
  %v9442 = vsub.f32 %v9440, %v9441
  %v9443 = vand.u32 %v9442, 4294901760
  %9444 = vmatprep.subr.mxu0 %v9443
  %v9445 = vand.u32 %v6422, 4294901760
  %v9446 = vsub.f32 %v6422, %v9445
  %v9447 = vand.u32 %v9446, 4294901760
  %v9448 = vsub.f32 %v9446, %v9447
  %v9449 = vand.u32 %v9448, 4294901760
  %9450 = vmatpush1.msra.mxu0 %v9449
  %v9451 = vand.u32 %v6431, 4294901760
  %v9452 = vsub.f32 %v6431, %v9451
  %v9453 = vand.u32 %v9452, 4294901760
  %v9454 = vsub.f32 %v9452, %v9453
  %v9455 = vand.u32 %v9454, 4294901760
  %9456 = vmatprep.subr.mxu0 %v9455
  %v9457 = vand.u32 %v6430, 4294901760
  %v9458 = vsub.f32 %v6430, %v9457
  %v9459 = vand.u32 %v9458, 4294901760
  %v9460 = vsub.f32 %v9458, %v9459
  %v9461 = vand.u32 %v9460, 4294901760
  %9462 = vmatpush1.msra.mxu0 %v9461
  %v9463 = vand.u32 %v6439, 4294901760
  %v9464 = vsub.f32 %v6439, %v9463
  %v9465 = vand.u32 %v9464, 4294901760
  %v9466 = vsub.f32 %v9464, %v9465
  %v9467 = vand.u32 %v9466, 4294901760
  %9468 = vmatprep.subr.mxu0 %v9467
  %v9469 = vand.u32 %v6438, 4294901760
  %v9470 = vsub.f32 %v6438, %v9469
  %v9471 = vand.u32 %v9470, 4294901760
  %v9472 = vsub.f32 %v9470, %v9471
  %v9473 = vand.u32 %v9472, 4294901760
  %9474 = vmatpush1.msra.mxu0 %v9473
  %v9475 = vand.u32 %v6447, 4294901760
  %v9476 = vsub.f32 %v6447, %v9475
  %v9477 = vand.u32 %v9476, 4294901760
  %v9478 = vsub.f32 %v9476, %v9477
  %v9479 = vand.u32 %v9478, 4294901760
  %9480 = vmatprep.subr.mxu0 %v9479
  %v9481 = vand.u32 %v6446, 4294901760
  %v9482 = vsub.f32 %v6446, %v9481
  %v9483 = vand.u32 %v9482, 4294901760
  %v9484 = vsub.f32 %v9482, %v9483
  %v9485 = vand.u32 %v9484, 4294901760
  %9486 = vmatpush1.msra.mxu0 %v9485
  %9487 = vmatprep.subr.mxu0 0.0
  %9488 = vmatpush1.msra.mxu0 0.0
  %9489 = vmatprep.subr.mxu0 0.0
  %9490 = vmatpush1.msra.mxu0 0.0
  %9491 = vmatprep.subr.mxu0 0.0
  %9492 = vmatpush1.msra.mxu0 0.0
  %9493 = vmatprep.subr.mxu0 0.0
  %9494 = vmatpush1.msra.mxu0 0.0
  %9495 = vmatprep.subr.mxu0 0.0
  %9496 = vmatpush1.msra.mxu0 0.0
  %9497 = vmatprep.subr.mxu0 0.0
  %9498 = vmatpush1.msra.mxu0 0.0
  %9499 = vmatprep.subr.mxu0 0.0
  %9500 = vmatpush1.msra.mxu0 0.0
  %9501 = vmatprep.subr.mxu0 0.0
  %9502 = vmatpush1.msra.mxu0 0.0
  %9503 = vmatprep.subr.mxu0 0.0
  %9504 = vmatpush1.msra.mxu0 0.0
  %9505 = vmatprep.subr.mxu0 0.0
  %9506 = vmatpush1.msra.mxu0 0.0
  %9507 = vmatprep.subr.mxu0 0.0
  %9508 = vmatpush1.msra.mxu0 0.0
  %9509 = vmatprep.subr.mxu0 0.0
  %9510 = vmatpush1.msra.mxu0 0.0
  %9511 = vmatprep.subr.mxu0 0.0
  %9512 = vmatpush1.msra.mxu0 0.0
  %9513 = vmatprep.subr.mxu0 0.0
  %9514 = vmatpush1.msra.mxu0 0.0
  %9515 = vmatprep.subr.mxu0 0.0
  %9516 = vmatpush1.msra.mxu0 0.0
  %9517 = vmatprep.subr.mxu0 0.0
  %9518 = vmatpush1.msra.mxu0 0.0
  %9519 = vmatprep.mubr.f32.mxu0 0.0
  %v9520 = vand.u32 %v1776, 4294901760
  %9521 = vmatmul.mubr.f32.gmra.mrb[0].mxu0 %v9520
  %v9522 = vpop.f32.mrb[0].mxu0
  %v9523 = vadd.f32 %v9280, %v9522
  %v9524 = vpop.f32.mrb[0].mxu0
  %v9525 = vadd.f32 %v9282, %v9524
  %9526 = vmatprep.mubr.f32.mxu0 0.0
  %v9527 = vand.u32 %v1777, 4294901760
  %9528 = vmatmul.mubr.f32.gmra.mrb[0].mxu0 %v9527
  %v9529 = vpop.f32.mrb[0].mxu0
  %v9530 = vadd.f32 %v9291, %v9529
  %v9531 = vpop.f32.mrb[0].mxu0
  %v9532 = vadd.f32 %v9293, %v9531
  %9533 = vdwg.mxu0
  %v9534 = vand.u32 %v6327, 4294901760
  %v9535 = vsub.f32 %v6327, %v9534
  %9536 = vmatprep.subr.mxu0 %v9535
  %v9537 = vand.u32 %v6326, 4294901760
  %v9538 = vsub.f32 %v6326, %v9537
  %9539 = vmatpush1.msra.mxu0 %v9538
  %v9540 = vand.u32 %v6335, 4294901760
  %v9541 = vsub.f32 %v6335, %v9540
  %9542 = vmatprep.subr.mxu0 %v9541
  %v9543 = vand.u32 %v6334, 4294901760
  %v9544 = vsub.f32 %v6334, %v9543
  %9545 = vmatpush1.msra.mxu0 %v9544
  %v9546 = vand.u32 %v6343, 4294901760
  %v9547 = vsub.f32 %v6343, %v9546
  %9548 = vmatprep.subr.mxu0 %v9547
  %v9549 = vand.u32 %v6342, 4294901760
  %v9550 = vsub.f32 %v6342, %v9549
  %9551 = vmatpush1.msra.mxu0 %v9550
  %v9552 = vand.u32 %v6351, 4294901760
  %v9553 = vsub.f32 %v6351, %v9552
  %9554 = vmatprep.subr.mxu0 %v9553
  %v9555 = vand.u32 %v6350, 4294901760
  %v9556 = vsub.f32 %v6350, %v9555
  %9557 = vmatpush1.msra.mxu0 %v9556
  %v9558 = vand.u32 %v6359, 4294901760
  %v9559 = vsub.f32 %v6359, %v9558
  %9560 = vmatprep.subr.mxu0 %v9559
  %v9561 = vand.u32 %v6358, 4294901760
  %v9562 = vsub.f32 %v6358, %v9561
  %9563 = vmatpush1.msra.mxu0 %v9562
  %v9564 = vand.u32 %v6367, 4294901760
  %v9565 = vsub.f32 %v6367, %v9564
  %9566 = vmatprep.subr.mxu0 %v9565
  %v9567 = vand.u32 %v6366, 4294901760
  %v9568 = vsub.f32 %v6366, %v9567
  %9569 = vmatpush1.msra.mxu0 %v9568
  %v9570 = vand.u32 %v6375, 4294901760
  %v9571 = vsub.f32 %v6375, %v9570
  %9572 = vmatprep.subr.mxu0 %v9571
  %v9573 = vand.u32 %v6374, 4294901760
  %v9574 = vsub.f32 %v6374, %v9573
  %9575 = vmatpush1.msra.mxu0 %v9574
  %v9576 = vand.u32 %v6383, 4294901760
  %v9577 = vsub.f32 %v6383, %v9576
  %9578 = vmatprep.subr.mxu0 %v9577
  %v9579 = vand.u32 %v6382, 4294901760
  %v9580 = vsub.f32 %v6382, %v9579
  %9581 = vmatpush1.msra.mxu0 %v9580
  %v9582 = vand.u32 %v6391, 4294901760
  %v9583 = vsub.f32 %v6391, %v9582
  %9584 = vmatprep.subr.mxu0 %v9583
  %v9585 = vand.u32 %v6390, 4294901760
  %v9586 = vsub.f32 %v6390, %v9585
  %9587 = vmatpush1.msra.mxu0 %v9586
  %v9588 = vand.u32 %v6399, 4294901760
  %v9589 = vsub.f32 %v6399, %v9588
  %9590 = vmatprep.subr.mxu0 %v9589
  %v9591 = vand.u32 %v6398, 4294901760
  %v9592 = vsub.f32 %v6398, %v9591
  %9593 = vmatpush1.msra.mxu0 %v9592
  %v9594 = vand.u32 %v6407, 4294901760
  %v9595 = vsub.f32 %v6407, %v9594
  %9596 = vmatprep.subr.mxu0 %v9595
  %v9597 = vand.u32 %v6406, 4294901760
  %v9598 = vsub.f32 %v6406, %v9597
  %9599 = vmatpush1.msra.mxu0 %v9598
  %v9600 = vand.u32 %v6415, 4294901760
  %v9601 = vsub.f32 %v6415, %v9600
  %9602 = vmatprep.subr.mxu0 %v9601
  %v9603 = vand.u32 %v6414, 4294901760
  %v9604 = vsub.f32 %v6414, %v9603
  %9605 = vmatpush1.msra.mxu0 %v9604
  %v9606 = vand.u32 %v6423, 4294901760
  %v9607 = vsub.f32 %v6423, %v9606
  %9608 = vmatprep.subr.mxu0 %v9607
  %v9609 = vand.u32 %v6422, 4294901760
  %v9610 = vsub.f32 %v6422, %v9609
  %9611 = vmatpush1.msra.mxu0 %v9610
  %v9612 = vand.u32 %v6431, 4294901760
  %v9613 = vsub.f32 %v6431, %v9612
  %9614 = vmatprep.subr.mxu0 %v9613
  %v9615 = vand.u32 %v6430, 4294901760
  %v9616 = vsub.f32 %v6430, %v9615
  %9617 = vmatpush1.msra.mxu0 %v9616
  %v9618 = vand.u32 %v6439, 4294901760
  %v9619 = vsub.f32 %v6439, %v9618
  %9620 = vmatprep.subr.mxu0 %v9619
  %v9621 = vand.u32 %v6438, 4294901760
  %v9622 = vsub.f32 %v6438, %v9621
  %9623 = vmatpush1.msra.mxu0 %v9622
  %v9624 = vand.u32 %v6447, 4294901760
  %v9625 = vsub.f32 %v6447, %v9624
  %9626 = vmatprep.subr.mxu0 %v9625
  %v9627 = vand.u32 %v6446, 4294901760
  %v9628 = vsub.f32 %v6446, %v9627
  %9629 = vmatpush1.msra.mxu0 %v9628
  %9630 = vmatprep.subr.mxu0 0.0
  %9631 = vmatpush1.msra.mxu0 0.0
  %9632 = vmatprep.subr.mxu0 0.0
  %9633 = vmatpush1.msra.mxu0 0.0
  %9634 = vmatprep.subr.mxu0 0.0
  %9635 = vmatpush1.msra.mxu0 0.0
  %9636 = vmatprep.subr.mxu0 0.0
  %9637 = vmatpush1.msra.mxu0 0.0
  %9638 = vmatprep.subr.mxu0 0.0
  %9639 = vmatpush1.msra.mxu0 0.0
  %9640 = vmatprep.subr.mxu0 0.0
  %9641 = vmatpush1.msra.mxu0 0.0
  %9642 = vmatprep.subr.mxu0 0.0
  %9643 = vmatpush1.msra.mxu0 0.0
  %9644 = vmatprep.subr.mxu0 0.0
  %9645 = vmatpush1.msra.mxu0 0.0
  %9646 = vmatprep.subr.mxu0 0.0
  %9647 = vmatpush1.msra.mxu0 0.0
  %9648 = vmatprep.subr.mxu0 0.0
  %9649 = vmatpush1.msra.mxu0 0.0
  %9650 = vmatprep.subr.mxu0 0.0
  %9651 = vmatpush1.msra.mxu0 0.0
  %9652 = vmatprep.subr.mxu0 0.0
  %9653 = vmatpush1.msra.mxu0 0.0
  %9654 = vmatprep.subr.mxu0 0.0
  %9655 = vmatpush1.msra.mxu0 0.0
  %9656 = vmatprep.subr.mxu0 0.0
  %9657 = vmatpush1.msra.mxu0 0.0
  %9658 = vmatprep.subr.mxu0 0.0
  %9659 = vmatpush1.msra.mxu0 0.0
  %9660 = vmatprep.subr.mxu0 0.0
  %9661 = vmatpush1.msra.mxu0 0.0
  %9662 = vmatprep.mubr.f32.mxu0 0.0
  %v9663 = vand.u32 %v1776, 4294901760
  %v9664 = vsub.f32 %v1776, %v9663
  %9665 = vmatmul.mubr.f32.gmra.mrb[0].mxu0 %v9664
  %v9666 = vpop.f32.mrb[0].mxu0
  %v9667 = vadd.f32 %v9523, %v9666
  %v9668 = vpop.f32.mrb[0].mxu0
  %v9669 = vadd.f32 %v9525, %v9668
  %9670 = vmatprep.mubr.f32.mxu0 0.0
  %v9671 = vand.u32 %v1777, 4294901760
  %v9672 = vsub.f32 %v1777, %v9671
  %9673 = vmatmul.mubr.f32.gmra.mrb[0].mxu0 %v9672
  %v9674 = vpop.f32.mrb[0].mxu0
  %v9675 = vadd.f32 %v9530, %v9674
  %v9676 = vpop.f32.mrb[0].mxu0
  %v9677 = vadd.f32 %v9532, %v9676
  %9678 = vdwg.mxu0
  %v9679 = vand.u32 %v6327, 4294901760
  %9680 = vmatprep.subr.mxu0 %v9679
  %v9681 = vand.u32 %v6326, 4294901760
  %9682 = vmatpush1.msra.mxu0 %v9681
  %v9683 = vand.u32 %v6335, 4294901760
  %9684 = vmatprep.subr.mxu0 %v9683
  %v9685 = vand.u32 %v6334, 4294901760
  %9686 = vmatpush1.msra.mxu0 %v9685
  %v9687 = vand.u32 %v6343, 4294901760
  %9688 = vmatprep.subr.mxu0 %v9687
  %v9689 = vand.u32 %v6342, 4294901760
  %9690 = vmatpush1.msra.mxu0 %v9689
  %v9691 = vand.u32 %v6351, 4294901760
  %9692 = vmatprep.subr.mxu0 %v9691
  %v9693 = vand.u32 %v6350, 4294901760
  %9694 = vmatpush1.msra.mxu0 %v9693
  %v9695 = vand.u32 %v6359, 4294901760
  %9696 = vmatprep.subr.mxu0 %v9695
  %v9697 = vand.u32 %v6358, 4294901760
  %9698 = vmatpush1.msra.mxu0 %v9697
  %v9699 = vand.u32 %v6367, 4294901760
  %9700 = vmatprep.subr.mxu0 %v9699
  %v9701 = vand.u32 %v6366, 4294901760
  %9702 = vmatpush1.msra.mxu0 %v9701
  %v9703 = vand.u32 %v6375, 4294901760
  %9704 = vmatprep.subr.mxu0 %v9703
  %v9705 = vand.u32 %v6374, 4294901760
  %9706 = vmatpush1.msra.mxu0 %v9705
  %v9707 = vand.u32 %v6383, 4294901760
  %9708 = vmatprep.subr.mxu0 %v9707
  %v9709 = vand.u32 %v6382, 4294901760
  %9710 = vmatpush1.msra.mxu0 %v9709
  %v9711 = vand.u32 %v6391, 4294901760
  %9712 = vmatprep.subr.mxu0 %v9711
  %v9713 = vand.u32 %v6390, 4294901760
  %9714 = vmatpush1.msra.mxu0 %v9713
  %v9715 = vand.u32 %v6399, 4294901760
  %9716 = vmatprep.subr.mxu0 %v9715
  %v9717 = vand.u32 %v6398, 4294901760
  %9718 = vmatpush1.msra.mxu0 %v9717
  %v9719 = vand.u32 %v6407, 4294901760
  %9720 = vmatprep.subr.mxu0 %v9719
  %v9721 = vand.u32 %v6406, 4294901760
  %9722 = vmatpush1.msra.mxu0 %v9721
  %v9723 = vand.u32 %v6415, 4294901760
  %9724 = vmatprep.subr.mxu0 %v9723
  %v9725 = vand.u32 %v6414, 4294901760
  %9726 = vmatpush1.msra.mxu0 %v9725
  %v9727 = vand.u32 %v6423, 4294901760
  %9728 = vmatprep.subr.mxu0 %v9727
  %v9729 = vand.u32 %v6422, 4294901760
  %9730 = vmatpush1.msra.mxu0 %v9729
  %v9731 = vand.u32 %v6431, 4294901760
  %9732 = vmatprep.subr.mxu0 %v9731
  %v9733 = vand.u32 %v6430, 4294901760
  %9734 = vmatpush1.msra.mxu0 %v9733
  %v9735 = vand.u32 %v6439, 4294901760
  %9736 = vmatprep.subr.mxu0 %v9735
  %v9737 = vand.u32 %v6438, 4294901760
  %9738 = vmatpush1.msra.mxu0 %v9737
  %v9739 = vand.u32 %v6447, 4294901760
  %9740 = vmatprep.subr.mxu0 %v9739
  %v9741 = vand.u32 %v6446, 4294901760
  %9742 = vmatpush1.msra.mxu0 %v9741
  %9743 = vmatprep.subr.mxu0 0.0
  %9744 = vmatpush1.msra.mxu0 0.0
  %9745 = vmatprep.subr.mxu0 0.0
  %9746 = vmatpush1.msra.mxu0 0.0
  %9747 = vmatprep.subr.mxu0 0.0
  %9748 = vmatpush1.msra.mxu0 0.0
  %9749 = vmatprep.subr.mxu0 0.0
  %9750 = vmatpush1.msra.mxu0 0.0
  %9751 = vmatprep.subr.mxu0 0.0
  %9752 = vmatpush1.msra.mxu0 0.0
  %9753 = vmatprep.subr.mxu0 0.0
  %9754 = vmatpush1.msra.mxu0 0.0
  %9755 = vmatprep.subr.mxu0 0.0
  %9756 = vmatpush1.msra.mxu0 0.0
  %9757 = vmatprep.subr.mxu0 0.0
  %9758 = vmatpush1.msra.mxu0 0.0
  %9759 = vmatprep.subr.mxu0 0.0
  %9760 = vmatpush1.msra.mxu0 0.0
  %9761 = vmatprep.subr.mxu0 0.0
  %9762 = vmatpush1.msra.mxu0 0.0
  %9763 = vmatprep.subr.mxu0 0.0
  %9764 = vmatpush1.msra.mxu0 0.0
  %9765 = vmatprep.subr.mxu0 0.0
  %9766 = vmatpush1.msra.mxu0 0.0
  %9767 = vmatprep.subr.mxu0 0.0
  %9768 = vmatpush1.msra.mxu0 0.0
  %9769 = vmatprep.subr.mxu0 0.0
  %9770 = vmatpush1.msra.mxu0 0.0
  %9771 = vmatprep.subr.mxu0 0.0
  %9772 = vmatpush1.msra.mxu0 0.0
  %9773 = vmatprep.subr.mxu0 0.0
  %9774 = vmatpush1.msra.mxu0 0.0
  %9775 = vmatprep.mubr.f32.mxu0 0.0
  %v9776 = vand.u32 %v1776, 4294901760
  %v9777 = vsub.f32 %v1776, %v9776
  %v9778 = vand.u32 %v9777, 4294901760
  %9779 = vmatmul.mubr.f32.gmra.mrb[0].mxu0 %v9778
  %v9780 = vpop.f32.mrb[0].mxu0
  %v9781 = vadd.f32 %v9667, %v9780
  %v9782 = vpop.f32.mrb[0].mxu0
  %v9783 = vadd.f32 %v9669, %v9782
  %9784 = vmatprep.mubr.f32.mxu0 0.0
  %v9785 = vand.u32 %v1777, 4294901760
  %v9786 = vsub.f32 %v1777, %v9785
  %v9787 = vand.u32 %v9786, 4294901760
  %9788 = vmatmul.mubr.f32.gmra.mrb[0].mxu0 %v9787
  %v9789 = vpop.f32.mrb[0].mxu0
  %v9790 = vadd.f32 %v9675, %v9789
  %v9791 = vpop.f32.mrb[0].mxu0
  %v9792 = vadd.f32 %v9677, %v9791
  %9793 = vdwg.mxu0
  %v9794 = vand.u32 %v6327, 4294901760
  %v9795 = vsub.f32 %v6327, %v9794
  %v9796 = vand.u32 %v9795, 4294901760
  %9797 = vmatprep.subr.mxu0 %v9796
  %v9798 = vand.u32 %v6326, 4294901760
  %v9799 = vsub.f32 %v6326, %v9798
  %v9800 = vand.u32 %v9799, 4294901760
  %9801 = vmatpush1.msra.mxu0 %v9800
  %v9802 = vand.u32 %v6335, 4294901760
  %v9803 = vsub.f32 %v6335, %v9802
  %v9804 = vand.u32 %v9803, 4294901760
  %9805 = vmatprep.subr.mxu0 %v9804
  %v9806 = vand.u32 %v6334, 4294901760
  %v9807 = vsub.f32 %v6334, %v9806
  %v9808 = vand.u32 %v9807, 4294901760
  %9809 = vmatpush1.msra.mxu0 %v9808
  %v9810 = vand.u32 %v6343, 4294901760
  %v9811 = vsub.f32 %v6343, %v9810
  %v9812 = vand.u32 %v9811, 4294901760
  %9813 = vmatprep.subr.mxu0 %v9812
  %v9814 = vand.u32 %v6342, 4294901760
  %v9815 = vsub.f32 %v6342, %v9814
  %v9816 = vand.u32 %v9815, 4294901760
  %9817 = vmatpush1.msra.mxu0 %v9816
  %v9818 = vand.u32 %v6351, 4294901760
  %v9819 = vsub.f32 %v6351, %v9818
  %v9820 = vand.u32 %v9819, 4294901760
  %9821 = vmatprep.subr.mxu0 %v9820
  %v9822 = vand.u32 %v6350, 4294901760
  %v9823 = vsub.f32 %v6350, %v9822
  %v9824 = vand.u32 %v9823, 4294901760
  %9825 = vmatpush1.msra.mxu0 %v9824
  %v9826 = vand.u32 %v6359, 4294901760
  %v9827 = vsub.f32 %v6359, %v9826
  %v9828 = vand.u32 %v9827, 4294901760
  %9829 = vmatprep.subr.mxu0 %v9828
  %v9830 = vand.u32 %v6358, 4294901760
  %v9831 = vsub.f32 %v6358, %v9830
  %v9832 = vand.u32 %v9831, 4294901760
  %9833 = vmatpush1.msra.mxu0 %v9832
  %v9834 = vand.u32 %v6367, 4294901760
  %v9835 = vsub.f32 %v6367, %v9834
  %v9836 = vand.u32 %v9835, 4294901760
  %9837 = vmatprep.subr.mxu0 %v9836
  %v9838 = vand.u32 %v6366, 4294901760
  %v9839 = vsub.f32 %v6366, %v9838
  %v9840 = vand.u32 %v9839, 4294901760
  %9841 = vmatpush1.msra.mxu0 %v9840
  %v9842 = vand.u32 %v6375, 4294901760
  %v9843 = vsub.f32 %v6375, %v9842
  %v9844 = vand.u32 %v9843, 4294901760
  %9845 = vmatprep.subr.mxu0 %v9844
  %v9846 = vand.u32 %v6374, 4294901760
  %v9847 = vsub.f32 %v6374, %v9846
  %v9848 = vand.u32 %v9847, 4294901760
  %9849 = vmatpush1.msra.mxu0 %v9848
  %v9850 = vand.u32 %v6383, 4294901760
  %v9851 = vsub.f32 %v6383, %v9850
  %v9852 = vand.u32 %v9851, 4294901760
  %9853 = vmatprep.subr.mxu0 %v9852
  %v9854 = vand.u32 %v6382, 4294901760
  %v9855 = vsub.f32 %v6382, %v9854
  %v9856 = vand.u32 %v9855, 4294901760
  %9857 = vmatpush1.msra.mxu0 %v9856
  %v9858 = vand.u32 %v6391, 4294901760
  %v9859 = vsub.f32 %v6391, %v9858
  %v9860 = vand.u32 %v9859, 4294901760
  %9861 = vmatprep.subr.mxu0 %v9860
  %v9862 = vand.u32 %v6390, 4294901760
  %v9863 = vsub.f32 %v6390, %v9862
  %v9864 = vand.u32 %v9863, 4294901760
  %9865 = vmatpush1.msra.mxu0 %v9864
  %v9866 = vand.u32 %v6399, 4294901760
  %v9867 = vsub.f32 %v6399, %v9866
  %v9868 = vand.u32 %v9867, 4294901760
  %9869 = vmatprep.subr.mxu0 %v9868
  %v9870 = vand.u32 %v6398, 4294901760
  %v9871 = vsub.f32 %v6398, %v9870
  %v9872 = vand.u32 %v9871, 4294901760
  %9873 = vmatpush1.msra.mxu0 %v9872
  %v9874 = vand.u32 %v6407, 4294901760
  %v9875 = vsub.f32 %v6407, %v9874
  %v9876 = vand.u32 %v9875, 4294901760
  %9877 = vmatprep.subr.mxu0 %v9876
  %v9878 = vand.u32 %v6406, 4294901760
  %v9879 = vsub.f32 %v6406, %v9878
  %v9880 = vand.u32 %v9879, 4294901760
  %9881 = vmatpush1.msra.mxu0 %v9880
  %v9882 = vand.u32 %v6415, 4294901760
  %v9883 = vsub.f32 %v6415, %v9882
  %v9884 = vand.u32 %v9883, 4294901760
  %9885 = vmatprep.subr.mxu0 %v9884
  %v9886 = vand.u32 %v6414, 4294901760
  %v9887 = vsub.f32 %v6414, %v9886
  %v9888 = vand.u32 %v9887, 4294901760
  %9889 = vmatpush1.msra.mxu0 %v9888
  %v9890 = vand.u32 %v6423, 4294901760
  %v9891 = vsub.f32 %v6423, %v9890
  %v9892 = vand.u32 %v9891, 4294901760
  %9893 = vmatprep.subr.mxu0 %v9892
  %v9894 = vand.u32 %v6422, 4294901760
  %v9895 = vsub.f32 %v6422, %v9894
  %v9896 = vand.u32 %v9895, 4294901760
  %9897 = vmatpush1.msra.mxu0 %v9896
  %v9898 = vand.u32 %v6431, 4294901760
  %v9899 = vsub.f32 %v6431, %v9898
  %v9900 = vand.u32 %v9899, 4294901760
  %9901 = vmatprep.subr.mxu0 %v9900
  %v9902 = vand.u32 %v6430, 4294901760
  %v9903 = vsub.f32 %v6430, %v9902
  %v9904 = vand.u32 %v9903, 4294901760
  %9905 = vmatpush1.msra.mxu0 %v9904
  %v9906 = vand.u32 %v6439, 4294901760
  %v9907 = vsub.f32 %v6439, %v9906
  %v9908 = vand.u32 %v9907, 4294901760
  %9909 = vmatprep.subr.mxu0 %v9908
  %v9910 = vand.u32 %v6438, 4294901760
  %v9911 = vsub.f32 %v6438, %v9910
  %v9912 = vand.u32 %v9911, 4294901760
  %9913 = vmatpush1.msra.mxu0 %v9912
  %v9914 = vand.u32 %v6447, 4294901760
  %v9915 = vsub.f32 %v6447, %v9914
  %v9916 = vand.u32 %v9915, 4294901760
  %9917 = vmatprep.subr.mxu0 %v9916
  %v9918 = vand.u32 %v6446, 4294901760
  %v9919 = vsub.f32 %v6446, %v9918
  %v9920 = vand.u32 %v9919, 4294901760
  %9921 = vmatpush1.msra.mxu0 %v9920
  %9922 = vmatprep.subr.mxu0 0.0
  %9923 = vmatpush1.msra.mxu0 0.0
  %9924 = vmatprep.subr.mxu0 0.0
  %9925 = vmatpush1.msra.mxu0 0.0
  %9926 = vmatprep.subr.mxu0 0.0
  %9927 = vmatpush1.msra.mxu0 0.0
  %9928 = vmatprep.subr.mxu0 0.0
  %9929 = vmatpush1.msra.mxu0 0.0
  %9930 = vmatprep.subr.mxu0 0.0
  %9931 = vmatpush1.msra.mxu0 0.0
  %9932 = vmatprep.subr.mxu0 0.0
  %9933 = vmatpush1.msra.mxu0 0.0
  %9934 = vmatprep.subr.mxu0 0.0
  %9935 = vmatpush1.msra.mxu0 0.0
  %9936 = vmatprep.subr.mxu0 0.0
  %9937 = vmatpush1.msra.mxu0 0.0
  %9938 = vmatprep.subr.mxu0 0.0
  %9939 = vmatpush1.msra.mxu0 0.0
  %9940 = vmatprep.subr.mxu0 0.0
  %9941 = vmatpush1.msra.mxu0 0.0
  %9942 = vmatprep.subr.mxu0 0.0
  %9943 = vmatpush1.msra.mxu0 0.0
  %9944 = vmatprep.subr.mxu0 0.0
  %9945 = vmatpush1.msra.mxu0 0.0
  %9946 = vmatprep.subr.mxu0 0.0
  %9947 = vmatpush1.msra.mxu0 0.0
  %9948 = vmatprep.subr.mxu0 0.0
  %9949 = vmatpush1.msra.mxu0 0.0
  %9950 = vmatprep.subr.mxu0 0.0
  %9951 = vmatpush1.msra.mxu0 0.0
  %9952 = vmatprep.subr.mxu0 0.0
  %9953 = vmatpush1.msra.mxu0 0.0
  %9954 = vmatprep.mubr.f32.mxu0 0.0
  %v9955 = vand.u32 %v1776, 4294901760
  %9956 = vmatmul.mubr.f32.gmra.mrb[0].mxu0 %v9955
  %v9957 = vpop.f32.mrb[0].mxu0
  %v9958 = vadd.f32 %v9781, %v9957
  %v9959 = vpop.f32.mrb[0].mxu0
  %v9960 = vadd.f32 %v9783, %v9959
  %9961 = vmatprep.mubr.f32.mxu0 0.0
  %v9962 = vand.u32 %v1777, 4294901760
  %9963 = vmatmul.mubr.f32.gmra.mrb[0].mxu0 %v9962
  %v9964 = vpop.f32.mrb[0].mxu0
  %v9965 = vadd.f32 %v9790, %v9964
  %v9966 = vpop.f32.mrb[0].mxu0
  %v9967 = vadd.f32 %v9792, %v9966
  %9968 = vdwg.mxu0
  %v9969 = vand.u32 %v6327, 4294901760
  %9970 = vmatprep.subr.mxu0 %v9969
  %v9971 = vand.u32 %v6326, 4294901760
  %9972 = vmatpush1.msra.mxu0 %v9971
  %v9973 = vand.u32 %v6335, 4294901760
  %9974 = vmatprep.subr.mxu0 %v9973
  %v9975 = vand.u32 %v6334, 4294901760
  %9976 = vmatpush1.msra.mxu0 %v9975
  %v9977 = vand.u32 %v6343, 4294901760
  %9978 = vmatprep.subr.mxu0 %v9977
  %v9979 = vand.u32 %v6342, 4294901760
  %9980 = vmatpush1.msra.mxu0 %v9979
  %v9981 = vand.u32 %v6351, 4294901760
  %9982 = vmatprep.subr.mxu0 %v9981
  %v9983 = vand.u32 %v6350, 4294901760
  %9984 = vmatpush1.msra.mxu0 %v9983
  %v9985 = vand.u32 %v6359, 4294901760
  %9986 = vmatprep.subr.mxu0 %v9985
  %v9987 = vand.u32 %v6358, 4294901760
  %9988 = vmatpush1.msra.mxu0 %v9987
  %v9989 = vand.u32 %v6367, 4294901760
  %9990 = vmatprep.subr.mxu0 %v9989
  %v9991 = vand.u32 %v6366, 4294901760
  %9992 = vmatpush1.msra.mxu0 %v9991
  %v9993 = vand.u32 %v6375, 4294901760
  %9994 = vmatprep.subr.mxu0 %v9993
  %v9995 = vand.u32 %v6374, 4294901760
  %9996 = vmatpush1.msra.mxu0 %v9995
  %v9997 = vand.u32 %v6383, 4294901760
  %9998 = vmatprep.subr.mxu0 %v9997
  %v9999 = vand.u32 %v6382, 4294901760
  %10000 = vmatpush1.msra.mxu0 %v9999
  %v10001 = vand.u32 %v6391, 4294901760
  %10002 = vmatprep.subr.mxu0 %v10001
  %v10003 = vand.u32 %v6390, 4294901760
  %10004 = vmatpush1.msra.mxu0 %v10003
  %v10005 = vand.u32 %v6399, 4294901760
  %10006 = vmatprep.subr.mxu0 %v10005
  %v10007 = vand.u32 %v6398, 4294901760
  %10008 = vmatpush1.msra.mxu0 %v10007
  %v10009 = vand.u32 %v6407, 4294901760
  %10010 = vmatprep.subr.mxu0 %v10009
  %v10011 = vand.u32 %v6406, 4294901760
  %10012 = vmatpush1.msra.mxu0 %v10011
  %v10013 = vand.u32 %v6415, 4294901760
  %10014 = vmatprep.subr.mxu0 %v10013
  %v10015 = vand.u32 %v6414, 4294901760
  %10016 = vmatpush1.msra.mxu0 %v10015
  %v10017 = vand.u32 %v6423, 4294901760
  %10018 = vmatprep.subr.mxu0 %v10017
  %v10019 = vand.u32 %v6422, 4294901760
  %10020 = vmatpush1.msra.mxu0 %v10019
  %v10021 = vand.u32 %v6431, 4294901760
  %10022 = vmatprep.subr.mxu0 %v10021
  %v10023 = vand.u32 %v6430, 4294901760
  %10024 = vmatpush1.msra.mxu0 %v10023
  %v10025 = vand.u32 %v6439, 4294901760
  %10026 = vmatprep.subr.mxu0 %v10025
  %v10027 = vand.u32 %v6438, 4294901760
  %10028 = vmatpush1.msra.mxu0 %v10027
  %v10029 = vand.u32 %v6447, 4294901760
  %10030 = vmatprep.subr.mxu0 %v10029
  %v10031 = vand.u32 %v6446, 4294901760
  %10032 = vmatpush1.msra.mxu0 %v10031
  %10033 = vmatprep.subr.mxu0 0.0
  %10034 = vmatpush1.msra.mxu0 0.0
  %10035 = vmatprep.subr.mxu0 0.0
  %10036 = vmatpush1.msra.mxu0 0.0
  %10037 = vmatprep.subr.mxu0 0.0
  %10038 = vmatpush1.msra.mxu0 0.0
  %10039 = vmatprep.subr.mxu0 0.0
  %10040 = vmatpush1.msra.mxu0 0.0
  %10041 = vmatprep.subr.mxu0 0.0
  %10042 = vmatpush1.msra.mxu0 0.0
  %10043 = vmatprep.subr.mxu0 0.0
  %10044 = vmatpush1.msra.mxu0 0.0
  %10045 = vmatprep.subr.mxu0 0.0
  %10046 = vmatpush1.msra.mxu0 0.0
  %10047 = vmatprep.subr.mxu0 0.0
  %10048 = vmatpush1.msra.mxu0 0.0
  %10049 = vmatprep.subr.mxu0 0.0
  %10050 = vmatpush1.msra.mxu0 0.0
  %10051 = vmatprep.subr.mxu0 0.0
  %10052 = vmatpush1.msra.mxu0 0.0
  %10053 = vmatprep.subr.mxu0 0.0
  %10054 = vmatpush1.msra.mxu0 0.0
  %10055 = vmatprep.subr.mxu0 0.0
  %10056 = vmatpush1.msra.mxu0 0.0
  %10057 = vmatprep.subr.mxu0 0.0
  %10058 = vmatpush1.msra.mxu0 0.0
  %10059 = vmatprep.subr.mxu0 0.0
  %10060 = vmatpush1.msra.mxu0 0.0
  %10061 = vmatprep.subr.mxu0 0.0
  %10062 = vmatpush1.msra.mxu0 0.0
  %10063 = vmatprep.subr.mxu0 0.0
  %10064 = vmatpush1.msra.mxu0 0.0
  %10065 = vmatprep.mubr.f32.mxu0 0.0
  %v10066 = vand.u32 %v1776, 4294901760
  %10067 = vmatmul.mubr.f32.gmra.mrb[0].mxu0 %v10066
  %v10068 = vpop.f32.mrb[0].mxu0
  %v10069 = vadd.f32 %v9958, %v10068
  %v10070 = vpop.f32.mrb[0].mxu0
  %v10071 = vadd.f32 %v9960, %v10070
  %10072 = vmatprep.mubr.f32.mxu0 0.0
  %v10073 = vand.u32 %v1777, 4294901760
  %10074 = vmatmul.mubr.f32.gmra.mrb[0].mxu0 %v10073
  %v10075 = vpop.f32.mrb[0].mxu0
  %v10076 = vadd.f32 %v9965, %v10075
  %v10077 = vpop.f32.mrb[0].mxu0
  %v10078 = vadd.f32 %v9967, %v10077
  %10079 = vdwg.mxu0
  %v10088 = vcombine.low %v6312, %v6313
  %v10089 = vcombine.low %v6314, %v6315
  %v10090 = vcombine.low %v6316, %v6317
  %v10091 = vcombine.low %v6318, %v6319
  %v10093 = vunpack.c.l.s4 1966171168
  %v10094 = vunpack.c.0.s8 %v10093
  %v10095 = vlaneseq
  %v10096 = vshrl.u32 %v10095, 7
  %v10097 = vsub.s32 %v10094, %v10096
  %v10098 = vrot.slane %v10088, %v10097
  %v10100 = vunpack.c.l.s4 1966171168
  %v10101 = vunpack.c.0.s8 %v10100
  %v10102 = vlaneseq
  %v10103 = vshrl.u32 %v10102, 7
  %v10104 = vsub.s32 %v10101, %v10103
  %v10105 = vrot.slane %v10089, %v10104
  %v10107 = vunpack.c.l.s4 1966171168
  %v10108 = vunpack.c.0.s8 %v10107
  %v10109 = vlaneseq
  %v10110 = vshrl.u32 %v10109, 7
  %v10111 = vsub.s32 %v10108, %v10110
  %v10112 = vrot.slane %v10090, %v10111
  %v10114 = vunpack.c.l.s4 1966171168
  %v10115 = vunpack.c.0.s8 %v10114
  %v10116 = vlaneseq
  %v10117 = vshrl.u32 %v10116, 7
  %v10118 = vsub.s32 %v10115, %v10117
  %v10119 = vrot.slane %v10091, %v10118
  %v10120 = vcombine.low %v10098, %v10105
  %v10121 = vcombine.high %v10098, %v10105
  %v10122 = vcombine.low %v10112, %v10119
  %v10123 = vcombine.high %v10112, %v10119
  %v10125 = vunpack.c.l.s4 1966171168
  %v10126 = vunpack.c.0.s8 %v10125
  %v10127 = vlaneseq
  %v10128 = vshrl.u32 %v10127, 7
  %v10129 = vsub.s32 %v10126, %v10128
  %v10130 = vrot.slane %v10120, %v10129
  %v10132 = vunpack.c.l.s4 1966171168
  %v10133 = vunpack.c.0.s8 %v10132
  %v10134 = vlaneseq
  %v10135 = vshrl.u32 %v10134, 7
  %v10136 = vsub.s32 %v10133, %v10135
  %v10137 = vrot.slane %v10121, %v10136
  %v10139 = vunpack.c.l.s4 1966171168
  %v10140 = vunpack.c.0.s8 %v10139
  %v10141 = vlaneseq
  %v10142 = vshrl.u32 %v10141, 7
  %v10143 = vsub.s32 %v10140, %v10142
  %v10144 = vrot.slane %v10122, %v10143
  %v10146 = vunpack.c.l.s4 1966171168
  %v10147 = vunpack.c.0.s8 %v10146
  %v10148 = vlaneseq
  %v10149 = vshrl.u32 %v10148, 7
  %v10150 = vsub.s32 %v10147, %v10149
  %v10151 = vrot.slane %v10123, %v10150
  %v10152 = vcombine.low %v10130, %v10144
  %v10153 = vcombine.low %v10137, %v10151
  %v10154 = vlaneseq
  %v10155 = vshrl.u32 %v10154, 7
  %v10156 = vsub.s32 0, %v10155
  %v10157 = vrot.slane %v10152, %v10156
  %v10158 = vlaneseq
  %v10159 = vshrl.u32 %v10158, 7
  %v10160 = vsub.s32 1, %v10159
  %v10161 = vrot.slane %v10152, %v10160
  %v10162 = vlaneseq
  %v10163 = vshrl.u32 %v10162, 7
  %v10164 = vsub.s32 2, %v10163
  %v10165 = vrot.slane %v10152, %v10164
  %v10166 = vlaneseq
  %v10167 = vshrl.u32 %v10166, 7
  %v10168 = vsub.s32 3, %v10167
  %v10169 = vrot.slane %v10152, %v10168
  %v10170 = vlaneseq
  %v10171 = vshrl.u32 %v10170, 7
  %v10172 = vsub.s32 4, %v10171
  %v10173 = vrot.slane %v10152, %v10172
  %v10174 = vlaneseq
  %v10175 = vshrl.u32 %v10174, 7
  %v10176 = vsub.s32 5, %v10175
  %v10177 = vrot.slane %v10152, %v10176
  %v10178 = vlaneseq
  %v10179 = vshrl.u32 %v10178, 7
  %v10180 = vsub.s32 6, %v10179
  %v10181 = vrot.slane %v10152, %v10180
  %v10182 = vlaneseq
  %v10183 = vshrl.u32 %v10182, 7
  %v10184 = vsub.s32 7, %v10183
  %v10185 = vrot.slane %v10152, %v10184
  %v10186 = vlaneseq
  %v10187 = vshrl.u32 %v10186, 7
  %v10188 = vsub.s32 0, %v10187
  %v10189 = vrot.slane %v10153, %v10188
  %v10190 = vlaneseq
  %v10191 = vshrl.u32 %v10190, 7
  %v10192 = vsub.s32 1, %v10191
  %v10193 = vrot.slane %v10153, %v10192
  %v10194 = vlaneseq
  %v10195 = vshrl.u32 %v10194, 7
  %v10196 = vsub.s32 2, %v10195
  %v10197 = vrot.slane %v10153, %v10196
  %v10198 = vlaneseq
  %v10199 = vshrl.u32 %v10198, 7
  %v10200 = vsub.s32 3, %v10199
  %v10201 = vrot.slane %v10153, %v10200
  %v10202 = vlaneseq
  %v10203 = vshrl.u32 %v10202, 7
  %v10204 = vsub.s32 4, %v10203
  %v10205 = vrot.slane %v10153, %v10204
  %v10206 = vlaneseq
  %v10207 = vshrl.u32 %v10206, 7
  %v10208 = vsub.s32 5, %v10207
  %v10209 = vrot.slane %v10153, %v10208
  %v10210 = vlaneseq
  %v10211 = vshrl.u32 %v10210, 7
  %v10212 = vsub.s32 6, %v10211
  %v10213 = vrot.slane %v10153, %v10212
  %v10214 = vlaneseq
  %v10215 = vshrl.u32 %v10214, 7
  %v10216 = vsub.s32 7, %v10215
  %v10217 = vrot.slane %v10153, %v10216
  %v10234 = vmul.f32 %v7357, %v10157
  %v10235 = vmul.f32 %v7359, %v10161
  %v10236 = vmul.f32 %v8261, %v10165
  %v10237 = vmul.f32 %v8263, %v10169
  %v10238 = vmul.f32 %v9165, %v10173
  %v10239 = vmul.f32 %v9167, %v10177
  %v10240 = vmul.f32 %v10069, %v10181
  %v10241 = vmul.f32 %v10071, %v10185
  %v10242 = vmul.f32 %v7364, %v10189
  %v10243 = vmul.f32 %v7366, %v10193
  %v10244 = vmul.f32 %v8268, %v10197
  %v10245 = vmul.f32 %v8270, %v10201
  %v10246 = vmul.f32 %v9172, %v10205
  %v10247 = vmul.f32 %v9174, %v10209
  %v10248 = vmul.f32 %v10076, %v10213
  %v10249 = vmul.f32 %v10078, %v10217
  %v10250 = vld [vmem:[%s12] sm:$0xff]
  %v10251 = vld [vmem:[%s12 + $0x8] sm:$0xff]
  %v10252 = vld [vmem:[%s12 + $0x10] sm:$0xff]
  %v10253 = vld [vmem:[%s12 + $0x18] sm:$0xff]
  %v10254 = vld [vmem:[%s12 + $0x20] sm:$0xff]
  %v10255 = vld [vmem:[%s12 + $0x28] sm:$0xff]
  %v10256 = vld [vmem:[%s12 + $0x30] sm:$0xff]
  %v10257 = vld [vmem:[%s12 + $0x38] sm:$0xff]
  %v10258 = vld [vmem:[%s12 + $0x40] sm:$0xff]
  %v10259 = vld [vmem:[%s12 + $0x48] sm:$0xff]
  %v10260 = vld [vmem:[%s12 + $0x50] sm:$0xff]
  %v10261 = vld [vmem:[%s12 + $0x58] sm:$0xff]
  %v10262 = vld [vmem:[%s12 + $0x60] sm:$0xff]
  %v10263 = vld [vmem:[%s12 + $0x68] sm:$0xff]
  %v10264 = vld [vmem:[%s12 + $0x70] sm:$0xff]
  %v10265 = vld [vmem:[%s12 + $0x78] sm:$0xff]
  %v10266 = vld [vmem:[%s12 + $0x80] sm:$0xff]
  %v10267 = vld [vmem:[%s12 + $0x88] sm:$0xff]
  %v10268 = vld [vmem:[%s12 + $0x90] sm:$0xff]
  %v10269 = vld [vmem:[%s12 + $0x98] sm:$0xff]
  %v10270 = vld [vmem:[%s12 + $0xa0] sm:$0xff]
  %v10271 = vld [vmem:[%s12 + $0xa8] sm:$0xff]
  %v10272 = vld [vmem:[%s12 + $0xb0] sm:$0xff]
  %v10273 = vld [vmem:[%s12 + $0xb8] sm:$0xff]
  %v10274 = vld [vmem:[%s12 + $0xc0] sm:$0xff]
  %v10275 = vld [vmem:[%s12 + $0xc8] sm:$0xff]
  %v10276 = vld [vmem:[%s12 + $0xd0] sm:$0xff]
  %v10277 = vld [vmem:[%s12 + $0xd8] sm:$0xff]
  %v10278 = vld [vmem:[%s12 + $0xe0] sm:$0xff]
  %v10279 = vld [vmem:[%s12 + $0xe8] sm:$0xff]
  %v10280 = vld [vmem:[%s12 + $0xf0] sm:$0xff]
  %v10281 = vld [vmem:[%s12 + $0xf8] sm:$0xff]
  %v10282 = vld [vmem:[%s12 + $0x100] sm:$0xff]
  %v10283 = vld [vmem:[%s12 + $0x108] sm:$0xff]
  %v10284 = vld [vmem:[%s12 + $0x110] sm:$0xff]
  %v10285 = vld [vmem:[%s12 + $0x118] sm:$0xff]
  %v10286 = vld [vmem:[%s12 + $0x120] sm:$0xff]
  %v10287 = vld [vmem:[%s12 + $0x128] sm:$0xff]
  %v10288 = vld [vmem:[%s12 + $0x130] sm:$0xff]
  %v10289 = vld [vmem:[%s12 + $0x138] sm:$0xff]
  %v10290 = vld [vmem:[%s12 + $0x140] sm:$0xff]
  %v10291 = vld [vmem:[%s12 + $0x148] sm:$0xff]
  %v10292 = vld [vmem:[%s12 + $0x150] sm:$0xff]
  %v10293 = vld [vmem:[%s12 + $0x158] sm:$0xff]
  %v10294 = vld [vmem:[%s12 + $0x160] sm:$0xff]
  %v10295 = vld [vmem:[%s12 + $0x168] sm:$0xff]
  %v10296 = vld [vmem:[%s12 + $0x170] sm:$0xff]
  %v10297 = vld [vmem:[%s12 + $0x178] sm:$0xff]
  %v10298 = vld [vmem:[%s12 + $0x180] sm:$0xff]
  %v10299 = vld [vmem:[%s12 + $0x188] sm:$0xff]
  %v10300 = vld [vmem:[%s12 + $0x190] sm:$0xff]
  %v10301 = vld [vmem:[%s12 + $0x198] sm:$0xff]
  %v10302 = vld [vmem:[%s12 + $0x1a0] sm:$0xff]
  %v10303 = vld [vmem:[%s12 + $0x1a8] sm:$0xff]
  %v10304 = vld [vmem:[%s12 + $0x1b0] sm:$0xff]
  %v10305 = vld [vmem:[%s12 + $0x1b8] sm:$0xff]
  %v10306 = vld [vmem:[%s12 + $0x1c0] sm:$0xff]
  %v10307 = vld [vmem:[%s12 + $0x1c8] sm:$0xff]
  %v10308 = vld [vmem:[%s12 + $0x1d0] sm:$0xff]
  %v10309 = vld [vmem:[%s12 + $0x1d8] sm:$0xff]
  %v10310 = vld [vmem:[%s12 + $0x1e0] sm:$0xff]
  %v10311 = vld [vmem:[%s12 + $0x1e8] sm:$0xff]
  %v10312 = vld [vmem:[%s12 + $0x1f0] sm:$0xff]
  %v10313 = vld [vmem:[%s12 + $0x1f8] sm:$0xff]
  %v10314 = vld [vmem:[%s12 + $0x200] sm:$0xff]
  %v10315 = vld [vmem:[%s12 + $0x208] sm:$0xff]
  %v10316 = vld [vmem:[%s12 + $0x210] sm:$0xff]
  %v10317 = vld [vmem:[%s12 + $0x218] sm:$0xff]
  %v10318 = vld [vmem:[%s12 + $0x220] sm:$0xff]
  %v10319 = vld [vmem:[%s12 + $0x228] sm:$0xff]
  %v10320 = vld [vmem:[%s12 + $0x230] sm:$0xff]
  %v10321 = vld [vmem:[%s12 + $0x238] sm:$0xff]
  %v10322 = vld [vmem:[%s12 + $0x240] sm:$0xff]
  %v10323 = vld [vmem:[%s12 + $0x248] sm:$0xff]
  %v10324 = vld [vmem:[%s12 + $0x250] sm:$0xff]
  %v10325 = vld [vmem:[%s12 + $0x258] sm:$0xff]
  %v10326 = vld [vmem:[%s12 + $0x260] sm:$0xff]
  %v10327 = vld [vmem:[%s12 + $0x268] sm:$0xff]
  %v10328 = vld [vmem:[%s12 + $0x270] sm:$0xff]
  %v10329 = vld [vmem:[%s12 + $0x278] sm:$0xff]
  %v10330 = vld [vmem:[%s12 + $0x280] sm:$0xff]
  %v10331 = vld [vmem:[%s12 + $0x288] sm:$0xff]
  %v10332 = vld [vmem:[%s12 + $0x290] sm:$0xff]
  %v10333 = vld [vmem:[%s12 + $0x298] sm:$0xff]
  %v10334 = vld [vmem:[%s12 + $0x2a0] sm:$0xff]
  %v10335 = vld [vmem:[%s12 + $0x2a8] sm:$0xff]
  %v10336 = vld [vmem:[%s12 + $0x2b0] sm:$0xff]
  %v10337 = vld [vmem:[%s12 + $0x2b8] sm:$0xff]
  %v10338 = vld [vmem:[%s12 + $0x2c0] sm:$0xff]
  %v10339 = vld [vmem:[%s12 + $0x2c8] sm:$0xff]
  %v10340 = vld [vmem:[%s12 + $0x2d0] sm:$0xff]
  %v10341 = vld [vmem:[%s12 + $0x2d8] sm:$0xff]
  %v10342 = vld [vmem:[%s12 + $0x2e0] sm:$0xff]
  %v10343 = vld [vmem:[%s12 + $0x2e8] sm:$0xff]
  %v10344 = vld [vmem:[%s12 + $0x2f0] sm:$0xff]
  %v10345 = vld [vmem:[%s12 + $0x2f8] sm:$0xff]
  %v10346 = vld [vmem:[%s12 + $0x300] sm:$0xff]
  %v10347 = vld [vmem:[%s12 + $0x308] sm:$0xff]
  %v10348 = vld [vmem:[%s12 + $0x310] sm:$0xff]
  %v10349 = vld [vmem:[%s12 + $0x318] sm:$0xff]
  %v10350 = vld [vmem:[%s12 + $0x320] sm:$0xff]
  %v10351 = vld [vmem:[%s12 + $0x328] sm:$0xff]
  %v10352 = vld [vmem:[%s12 + $0x330] sm:$0xff]
  %v10353 = vld [vmem:[%s12 + $0x338] sm:$0xff]
  %v10354 = vld [vmem:[%s12 + $0x340] sm:$0xff]
  %v10355 = vld [vmem:[%s12 + $0x348] sm:$0xff]
  %v10356 = vld [vmem:[%s12 + $0x350] sm:$0xff]
  %v10357 = vld [vmem:[%s12 + $0x358] sm:$0xff]
  %v10358 = vld [vmem:[%s12 + $0x360] sm:$0xff]
  %v10359 = vld [vmem:[%s12 + $0x368] sm:$0xff]
  %v10360 = vld [vmem:[%s12 + $0x370] sm:$0xff]
  %v10361 = vld [vmem:[%s12 + $0x378] sm:$0xff]
  %v10362 = vld [vmem:[%s12 + $0x380] sm:$0xff]
  %v10363 = vld [vmem:[%s12 + $0x388] sm:$0xff]
  %v10364 = vld [vmem:[%s12 + $0x390] sm:$0xff]
  %v10365 = vld [vmem:[%s12 + $0x398] sm:$0xff]
  %v10366 = vld [vmem:[%s12 + $0x3a0] sm:$0xff]
  %v10367 = vld [vmem:[%s12 + $0x3a8] sm:$0xff]
  %v10368 = vld [vmem:[%s12 + $0x3b0] sm:$0xff]
  %v10369 = vld [vmem:[%s12 + $0x3b8] sm:$0xff]
  %v10370 = vld [vmem:[%s12 + $0x3c0] sm:$0xff]
  %v10371 = vld [vmem:[%s12 + $0x3c8] sm:$0xff]
  %v10372 = vld [vmem:[%s12 + $0x3d0] sm:$0xff]
  %v10373 = vld [vmem:[%s12 + $0x3d8] sm:$0xff]
  %v10374 = vld [vmem:[%s12 + $0x3e0] sm:$0xff]
  %v10375 = vld [vmem:[%s12 + $0x3e8] sm:$0xff]
  %v10376 = vld [vmem:[%s12 + $0x3f0] sm:$0xff]
  %v10377 = vld [vmem:[%s12 + $0x3f8] sm:$0xff]
  %10378 = vmatprep.subr.mxu0 0.0
  %10379 = vmatpush1.msra.mxu0 %v10250
  %10380 = vmatprep.subr.mxu0 0.0
  %10381 = vmatpush1.msra.mxu0 %v10251
  %10382 = vmatprep.subr.mxu0 0.0
  %10383 = vmatpush1.msra.mxu0 %v10252
  %10384 = vmatprep.subr.mxu0 0.0
  %10385 = vmatpush1.msra.mxu0 %v10253
  %10386 = vmatprep.subr.mxu0 0.0
  %10387 = vmatpush1.msra.mxu0 %v10254
  %10388 = vmatprep.subr.mxu0 0.0
  %10389 = vmatpush1.msra.mxu0 %v10255
  %10390 = vmatprep.subr.mxu0 0.0
  %10391 = vmatpush1.msra.mxu0 %v10256
  %10392 = vmatprep.subr.mxu0 0.0
  %10393 = vmatpush1.msra.mxu0 %v10257
  %10394 = vmatprep.subr.mxu0 0.0
  %10395 = vmatpush1.msra.mxu0 %v10258
  %10396 = vmatprep.subr.mxu0 0.0
  %10397 = vmatpush1.msra.mxu0 %v10259
  %10398 = vmatprep.subr.mxu0 0.0
  %10399 = vmatpush1.msra.mxu0 %v10260
  %10400 = vmatprep.subr.mxu0 0.0
  %10401 = vmatpush1.msra.mxu0 %v10261
  %10402 = vmatprep.subr.mxu0 0.0
  %10403 = vmatpush1.msra.mxu0 %v10262
  %10404 = vmatprep.subr.mxu0 0.0
  %10405 = vmatpush1.msra.mxu0 %v10263
  %10406 = vmatprep.subr.mxu0 0.0
  %10407 = vmatpush1.msra.mxu0 %v10264
  %10408 = vmatprep.subr.mxu0 0.0
  %10409 = vmatpush1.msra.mxu0 %v10265
  %10410 = vmatprep.subr.mxu0 0.0
  %10411 = vmatpush1.msra.mxu0 %v10266
  %10412 = vmatprep.subr.mxu0 0.0
  %10413 = vmatpush1.msra.mxu0 %v10267
  %10414 = vmatprep.subr.mxu0 0.0
  %10415 = vmatpush1.msra.mxu0 %v10268
  %10416 = vmatprep.subr.mxu0 0.0
  %10417 = vmatpush1.msra.mxu0 %v10269
  %10418 = vmatprep.subr.mxu0 0.0
  %10419 = vmatpush1.msra.mxu0 %v10270
  %10420 = vmatprep.subr.mxu0 0.0
  %10421 = vmatpush1.msra.mxu0 %v10271
  %10422 = vmatprep.subr.mxu0 0.0
  %10423 = vmatpush1.msra.mxu0 %v10272
  %10424 = vmatprep.subr.mxu0 0.0
  %10425 = vmatpush1.msra.mxu0 %v10273
  %10426 = vmatprep.subr.mxu0 0.0
  %10427 = vmatpush1.msra.mxu0 %v10274
  %10428 = vmatprep.subr.mxu0 0.0
  %10429 = vmatpush1.msra.mxu0 %v10275
  %10430 = vmatprep.subr.mxu0 0.0
  %10431 = vmatpush1.msra.mxu0 %v10276
  %10432 = vmatprep.subr.mxu0 0.0
  %10433 = vmatpush1.msra.mxu0 %v10277
  %10434 = vmatprep.subr.mxu0 0.0
  %10435 = vmatpush1.msra.mxu0 %v10278
  %10436 = vmatprep.subr.mxu0 0.0
  %10437 = vmatpush1.msra.mxu0 %v10279
  %10438 = vmatprep.subr.mxu0 0.0
  %10439 = vmatpush1.msra.mxu0 %v10280
  %10440 = vmatprep.subr.mxu0 0.0
  %10441 = vmatpush1.msra.mxu0 %v10281
  %10442 = vmatprep.mubr.f32.mxu0 %v10235
  %10443 = vmatmul.mubr.f32.gmra.mrb[0].mxu0 %v10234
  %v10444 = vpop.f32.mrb[0].mxu0
  %v10445 = vadd.f32 0.0, %v10444
  %v10446 = vpop.f32.mrb[0].mxu0
  %10447 = vmatprep.mubr.f32.mxu0 %v10243
  %10448 = vmatmul.mubr.f32.gmra.mrb[0].mxu0 %v10242
  %v10449 = vpop.f32.mrb[0].mxu0
  %v10450 = vadd.f32 0.0, %v10449
  %v10451 = vpop.f32.mrb[0].mxu0
  %10452 = vdwg.mxu0
  %10453 = vmatprep.subr.mxu0 0.0
  %10454 = vmatpush1.msra.mxu0 %v10282
  %10455 = vmatprep.subr.mxu0 0.0
  %10456 = vmatpush1.msra.mxu0 %v10283
  %10457 = vmatprep.subr.mxu0 0.0
  %10458 = vmatpush1.msra.mxu0 %v10284
  %10459 = vmatprep.subr.mxu0 0.0
  %10460 = vmatpush1.msra.mxu0 %v10285
  %10461 = vmatprep.subr.mxu0 0.0
  %10462 = vmatpush1.msra.mxu0 %v10286
  %10463 = vmatprep.subr.mxu0 0.0
  %10464 = vmatpush1.msra.mxu0 %v10287
  %10465 = vmatprep.subr.mxu0 0.0
  %10466 = vmatpush1.msra.mxu0 %v10288
  %10467 = vmatprep.subr.mxu0 0.0
  %10468 = vmatpush1.msra.mxu0 %v10289
  %10469 = vmatprep.subr.mxu0 0.0
  %10470 = vmatpush1.msra.mxu0 %v10290
  %10471 = vmatprep.subr.mxu0 0.0
  %10472 = vmatpush1.msra.mxu0 %v10291
  %10473 = vmatprep.subr.mxu0 0.0
  %10474 = vmatpush1.msra.mxu0 %v10292
  %10475 = vmatprep.subr.mxu0 0.0
  %10476 = vmatpush1.msra.mxu0 %v10293
  %10477 = vmatprep.subr.mxu0 0.0
  %10478 = vmatpush1.msra.mxu0 %v10294
  %10479 = vmatprep.subr.mxu0 0.0
  %10480 = vmatpush1.msra.mxu0 %v10295
  %10481 = vmatprep.subr.mxu0 0.0
  %10482 = vmatpush1.msra.mxu0 %v10296
  %10483 = vmatprep.subr.mxu0 0.0
  %10484 = vmatpush1.msra.mxu0 %v10297
  %10485 = vmatprep.subr.mxu0 0.0
  %10486 = vmatpush1.msra.mxu0 %v10298
  %10487 = vmatprep.subr.mxu0 0.0
  %10488 = vmatpush1.msra.mxu0 %v10299
  %10489 = vmatprep.subr.mxu0 0.0
  %10490 = vmatpush1.msra.mxu0 %v10300
  %10491 = vmatprep.subr.mxu0 0.0
  %10492 = vmatpush1.msra.mxu0 %v10301
  %10493 = vmatprep.subr.mxu0 0.0
  %10494 = vmatpush1.msra.mxu0 %v10302
  %10495 = vmatprep.subr.mxu0 0.0
  %10496 = vmatpush1.msra.mxu0 %v10303
  %10497 = vmatprep.subr.mxu0 0.0
  %10498 = vmatpush1.msra.mxu0 %v10304
  %10499 = vmatprep.subr.mxu0 0.0
  %10500 = vmatpush1.msra.mxu0 %v10305
  %10501 = vmatprep.subr.mxu0 0.0
  %10502 = vmatpush1.msra.mxu0 %v10306
  %10503 = vmatprep.subr.mxu0 0.0
  %10504 = vmatpush1.msra.mxu0 %v10307
  %10505 = vmatprep.subr.mxu0 0.0
  %10506 = vmatpush1.msra.mxu0 %v10308
  %10507 = vmatprep.subr.mxu0 0.0
  %10508 = vmatpush1.msra.mxu0 %v10309
  %10509 = vmatprep.subr.mxu0 0.0
  %10510 = vmatpush1.msra.mxu0 %v10310
  %10511 = vmatprep.subr.mxu0 0.0
  %10512 = vmatpush1.msra.mxu0 %v10311
  %10513 = vmatprep.subr.mxu0 0.0
  %10514 = vmatpush1.msra.mxu0 %v10312
  %10515 = vmatprep.subr.mxu0 0.0
  %10516 = vmatpush1.msra.mxu0 %v10313
  %10517 = vmatprep.mubr.f32.mxu0 %v10237
  %10518 = vmatmul.mubr.f32.gmra.mrb[0].mxu0 %v10236
  %v10519 = vpop.f32.mrb[0].mxu0
  %v10520 = vadd.f32 %v10445, %v10519
  %v10521 = vpop.f32.mrb[0].mxu0
  %10522 = vmatprep.mubr.f32.mxu0 %v10245
  %10523 = vmatmul.mubr.f32.gmra.mrb[0].mxu0 %v10244
  %v10524 = vpop.f32.mrb[0].mxu0
  %v10525 = vadd.f32 %v10450, %v10524
  %v10526 = vpop.f32.mrb[0].mxu0
  %10527 = vdwg.mxu0
  %10528 = vmatprep.subr.mxu0 0.0
  %10529 = vmatpush1.msra.mxu0 %v10314
  %10530 = vmatprep.subr.mxu0 0.0
  %10531 = vmatpush1.msra.mxu0 %v10315
  %10532 = vmatprep.subr.mxu0 0.0
  %10533 = vmatpush1.msra.mxu0 %v10316
  %10534 = vmatprep.subr.mxu0 0.0
  %10535 = vmatpush1.msra.mxu0 %v10317
  %10536 = vmatprep.subr.mxu0 0.0
  %10537 = vmatpush1.msra.mxu0 %v10318
  %10538 = vmatprep.subr.mxu0 0.0
  %10539 = vmatpush1.msra.mxu0 %v10319
  %10540 = vmatprep.subr.mxu0 0.0
  %10541 = vmatpush1.msra.mxu0 %v10320
  %10542 = vmatprep.subr.mxu0 0.0
  %10543 = vmatpush1.msra.mxu0 %v10321
  %10544 = vmatprep.subr.mxu0 0.0
  %10545 = vmatpush1.msra.mxu0 %v10322
  %10546 = vmatprep.subr.mxu0 0.0
  %10547 = vmatpush1.msra.mxu0 %v10323
  %10548 = vmatprep.subr.mxu0 0.0
  %10549 = vmatpush1.msra.mxu0 %v10324
  %10550 = vmatprep.subr.mxu0 0.0
  %10551 = vmatpush1.msra.mxu0 %v10325
  %10552 = vmatprep.subr.mxu0 0.0
  %10553 = vmatpush1.msra.mxu0 %v10326
  %10554 = vmatprep.subr.mxu0 0.0
  %10555 = vmatpush1.msra.mxu0 %v10327
  %10556 = vmatprep.subr.mxu0 0.0
  %10557 = vmatpush1.msra.mxu0 %v10328
  %10558 = vmatprep.subr.mxu0 0.0
  %10559 = vmatpush1.msra.mxu0 %v10329
  %10560 = vmatprep.subr.mxu0 0.0
  %10561 = vmatpush1.msra.mxu0 %v10330
  %10562 = vmatprep.subr.mxu0 0.0
  %10563 = vmatpush1.msra.mxu0 %v10331
  %10564 = vmatprep.subr.mxu0 0.0
  %10565 = vmatpush1.msra.mxu0 %v10332
  %10566 = vmatprep.subr.mxu0 0.0
  %10567 = vmatpush1.msra.mxu0 %v10333
  %10568 = vmatprep.subr.mxu0 0.0
  %10569 = vmatpush1.msra.mxu0 %v10334
  %10570 = vmatprep.subr.mxu0 0.0
  %10571 = vmatpush1.msra.mxu0 %v10335
  %10572 = vmatprep.subr.mxu0 0.0
  %10573 = vmatpush1.msra.mxu0 %v10336
  %10574 = vmatprep.subr.mxu0 0.0
  %10575 = vmatpush1.msra.mxu0 %v10337
  %10576 = vmatprep.subr.mxu0 0.0
  %10577 = vmatpush1.msra.mxu0 %v10338
  %10578 = vmatprep.subr.mxu0 0.0
  %10579 = vmatpush1.msra.mxu0 %v10339
  %10580 = vmatprep.subr.mxu0 0.0
  %10581 = vmatpush1.msra.mxu0 %v10340
  %10582 = vmatprep.subr.mxu0 0.0
  %10583 = vmatpush1.msra.mxu0 %v10341
  %10584 = vmatprep.subr.mxu0 0.0
  %10585 = vmatpush1.msra.mxu0 %v10342
  %10586 = vmatprep.subr.mxu0 0.0
  %10587 = vmatpush1.msra.mxu0 %v10343
  %10588 = vmatprep.subr.mxu0 0.0
  %10589 = vmatpush1.msra.mxu0 %v10344
  %10590 = vmatprep.subr.mxu0 0.0
  %10591 = vmatpush1.msra.mxu0 %v10345
  %10592 = vmatprep.mubr.f32.mxu0 %v10239
  %10593 = vmatmul.mubr.f32.gmra.mrb[0].mxu0 %v10238
  %v10594 = vpop.f32.mrb[0].mxu0
  %v10595 = vadd.f32 %v10520, %v10594
  %v10596 = vpop.f32.mrb[0].mxu0
  %10597 = vmatprep.mubr.f32.mxu0 %v10247
  %10598 = vmatmul.mubr.f32.gmra.mrb[0].mxu0 %v10246
  %v10599 = vpop.f32.mrb[0].mxu0
  %v10600 = vadd.f32 %v10525, %v10599
  %v10601 = vpop.f32.mrb[0].mxu0
  %10602 = vdwg.mxu0
  %10603 = vmatprep.subr.mxu0 0.0
  %10604 = vmatpush1.msra.mxu0 %v10346
  %10605 = vmatprep.subr.mxu0 0.0
  %10606 = vmatpush1.msra.mxu0 %v10347
  %10607 = vmatprep.subr.mxu0 0.0
  %10608 = vmatpush1.msra.mxu0 %v10348
  %10609 = vmatprep.subr.mxu0 0.0
  %10610 = vmatpush1.msra.mxu0 %v10349
  %10611 = vmatprep.subr.mxu0 0.0
  %10612 = vmatpush1.msra.mxu0 %v10350
  %10613 = vmatprep.subr.mxu0 0.0
  %10614 = vmatpush1.msra.mxu0 %v10351
  %10615 = vmatprep.subr.mxu0 0.0
  %10616 = vmatpush1.msra.mxu0 %v10352
  %10617 = vmatprep.subr.mxu0 0.0
  %10618 = vmatpush1.msra.mxu0 %v10353
  %10619 = vmatprep.subr.mxu0 0.0
  %10620 = vmatpush1.msra.mxu0 %v10354
  %10621 = vmatprep.subr.mxu0 0.0
  %10622 = vmatpush1.msra.mxu0 %v10355
  %10623 = vmatprep.subr.mxu0 0.0
  %10624 = vmatpush1.msra.mxu0 %v10356
  %10625 = vmatprep.subr.mxu0 0.0
  %10626 = vmatpush1.msra.mxu0 %v10357
  %10627 = vmatprep.subr.mxu0 0.0
  %10628 = vmatpush1.msra.mxu0 %v10358
  %10629 = vmatprep.subr.mxu0 0.0
  %10630 = vmatpush1.msra.mxu0 %v10359
  %10631 = vmatprep.subr.mxu0 0.0
  %10632 = vmatpush1.msra.mxu0 %v10360
  %10633 = vmatprep.subr.mxu0 0.0
  %10634 = vmatpush1.msra.mxu0 %v10361
  %10635 = vmatprep.subr.mxu0 0.0
  %10636 = vmatpush1.msra.mxu0 %v10362
  %10637 = vmatprep.subr.mxu0 0.0
  %10638 = vmatpush1.msra.mxu0 %v10363
  %10639 = vmatprep.subr.mxu0 0.0
  %10640 = vmatpush1.msra.mxu0 %v10364
  %10641 = vmatprep.subr.mxu0 0.0
  %10642 = vmatpush1.msra.mxu0 %v10365
  %10643 = vmatprep.subr.mxu0 0.0
  %10644 = vmatpush1.msra.mxu0 %v10366
  %10645 = vmatprep.subr.mxu0 0.0
  %10646 = vmatpush1.msra.mxu0 %v10367
  %10647 = vmatprep.subr.mxu0 0.0
  %10648 = vmatpush1.msra.mxu0 %v10368
  %10649 = vmatprep.subr.mxu0 0.0
  %10650 = vmatpush1.msra.mxu0 %v10369
  %10651 = vmatprep.subr.mxu0 0.0
  %10652 = vmatpush1.msra.mxu0 %v10370
  %10653 = vmatprep.subr.mxu0 0.0
  %10654 = vmatpush1.msra.mxu0 %v10371
  %10655 = vmatprep.subr.mxu0 0.0
  %10656 = vmatpush1.msra.mxu0 %v10372
  %10657 = vmatprep.subr.mxu0 0.0
  %10658 = vmatpush1.msra.mxu0 %v10373
  %10659 = vmatprep.subr.mxu0 0.0
  %10660 = vmatpush1.msra.mxu0 %v10374
  %10661 = vmatprep.subr.mxu0 0.0
  %10662 = vmatpush1.msra.mxu0 %v10375
  %10663 = vmatprep.subr.mxu0 0.0
  %10664 = vmatpush1.msra.mxu0 %v10376
  %10665 = vmatprep.subr.mxu0 0.0
  %10666 = vmatpush1.msra.mxu0 %v10377
  %10667 = vmatprep.mubr.f32.mxu0 %v10241
  %10668 = vmatmul.mubr.f32.gmra.mrb[0].mxu0 %v10240
  %v10669 = vpop.f32.mrb[0].mxu0
  %v10670 = vadd.f32 %v10595, %v10669
  %v10671 = vpop.f32.mrb[0].mxu0
  %10672 = vmatprep.mubr.f32.mxu0 %v10249
  %10673 = vmatmul.mubr.f32.gmra.mrb[0].mxu0 %v10248
  %v10674 = vpop.f32.mrb[0].mxu0
  %v10675 = vadd.f32 %v10600, %v10674
  %v10676 = vpop.f32.mrb[0].mxu0
  %10677 = vdwg.mxu0
  %vm10678 = vcmask 523264
  %v10679 = vsel %vm10678, %v10670, -inf
  %v10680 = vrot.slane %v10679, 4
  %v10681 = vmax.f32 %v10679, %v10680
  %v10682 = vrot.slane %v10681, 2
  %v10683 = vmax.f32 %v10681, %v10682
  %v10684 = vrot.slane %v10683, 1
  %v10685 = vmax.f32 %v10683, %v10684
  %v10686 = vsel %vm10678, %v10675, -inf
  %v10687 = vrot.slane %v10686, 4
  %v10688 = vmax.f32 %v10686, %v10687
  %v10689 = vrot.slane %v10688, 2
  %v10690 = vmax.f32 %v10688, %v10689
  %v10691 = vrot.slane %v10690, 1
  %v10692 = vmax.f32 %v10690, %v10691
  %v10693 = vsub.f32 %v10670, %v10685
  %v10694 = vsub.f32 %v10675, %v10692
  %v10695 = vmul.f32 %v10693, 1.442695
  %v10696 = vpow.pop %v10695
  %v10697 = vmul.f32 %v10694, 1.442695
  %v10698 = vpow.pop %v10697
  %v10699 = vsel %vm10678, %v10696, 0.0
  %v10700 = vrot.slane %v10699, 4
  %v10701 = vadd.f32 %v10699, %v10700
  %v10702 = vrot.slane %v10701, 2
  %v10703 = vadd.f32 %v10701, %v10702
  %v10704 = vrot.slane %v10703, 1
  %v10705 = vadd.f32 %v10703, %v10704
  %v10706 = vsel %vm10678, %v10698, 0.0
  %v10707 = vrot.slane %v10706, 4
  %v10708 = vadd.f32 %v10706, %v10707
  %v10709 = vrot.slane %v10708, 2
  %v10710 = vadd.f32 %v10708, %v10709
  %v10711 = vrot.slane %v10710, 1
  %v10712 = vadd.f32 %v10710, %v10711
  %v10713 = vrcp.pop %v10705
  %v10714 = vrcp.pop %v10712
  %v10715 = vmul.f32 %v10696, %v10713
  %v10716 = vmul.f32 %v10698, %v10714
  %v10717 = vld [vmem:[%s13] sm:$0xff]
  %v10718 = vld [vmem:[%s13 + $0x8] sm:$0xff]
  %v10719 = vld [vmem:[%s13 + $0x10] sm:$0xff]
  %v10720 = vld [vmem:[%s13 + $0x18] sm:$0xff]
  %v10721 = vld [vmem:[%s13 + $0x20] sm:$0xff]
  %v10722 = vld [vmem:[%s13 + $0x28] sm:$0xff]
  %v10723 = vld [vmem:[%s13 + $0x30] sm:$0xff]
  %v10724 = vld [vmem:[%s13 + $0x38] sm:$0xff]
  %v10726 = vsel %vm10678, %v10715, 0
  %v10729 = vsel %vm10678, %v10716, 0
  %10731 = vmatprep.subr.mxu0 0.0
  %10732 = vmatpush1.msra.mxu0 %v10717
  %10733 = vmatprep.subr.mxu0 0.0
  %10734 = vmatpush1.msra.mxu0 %v10718
  %10735 = vmatprep.subr.mxu0 0.0
  %10736 = vmatpush1.msra.mxu0 %v10719
  %10737 = vmatprep.subr.mxu0 0.0
  %10738 = vmatpush1.msra.mxu0 %v10720
  %10739 = vmatprep.subr.mxu0 0.0
  %10740 = vmatpush1.msra.mxu0 %v10721
  %10741 = vmatprep.subr.mxu0 0.0
  %10742 = vmatpush1.msra.mxu0 %v10722
  %10743 = vmatprep.subr.mxu0 0.0
  %10744 = vmatpush1.msra.mxu0 %v10723
  %10745 = vmatprep.subr.mxu0 0.0
  %10746 = vmatpush1.msra.mxu0 %v10724
  %10747 = vmatprep.subr.mxu0 0.0
  %10748 = vmatpush1.msra.mxu0 0.0
  %10749 = vmatprep.subr.mxu0 0.0
  %10750 = vmatpush1.msra.mxu0 0.0
  %10751 = vmatprep.subr.mxu0 0.0
  %10752 = vmatpush1.msra.mxu0 0.0
  %10753 = vmatprep.subr.mxu0 0.0
  %10754 = vmatpush1.msra.mxu0 0.0
  %10755 = vmatprep.subr.mxu0 0.0
  %10756 = vmatpush1.msra.mxu0 0.0
  %10757 = vmatprep.subr.mxu0 0.0
  %10758 = vmatpush1.msra.mxu0 0.0
  %10759 = vmatprep.subr.mxu0 0.0
  %10760 = vmatpush1.msra.mxu0 0.0
  %10761 = vmatprep.subr.mxu0 0.0
  %10762 = vmatpush1.msra.mxu0 0.0
  %10763 = vmatprep.subr.mxu0 0.0
  %10764 = vmatpush1.msra.mxu0 0.0
  %10765 = vmatprep.subr.mxu0 0.0
  %10766 = vmatpush1.msra.mxu0 0.0
  %10767 = vmatprep.subr.mxu0 0.0
  %10768 = vmatpush1.msra.mxu0 0.0
  %10769 = vmatprep.subr.mxu0 0.0
  %10770 = vmatpush1.msra.mxu0 0.0
  %10771 = vmatprep.subr.mxu0 0.0
  %10772 = vmatpush1.msra.mxu0 0.0
  %10773 = vmatprep.subr.mxu0 0.0
  %10774 = vmatpush1.msra.mxu0 0.0
  %10775 = vmatprep.subr.mxu0 0.0
  %10776 = vmatpush1.msra.mxu0 0.0
  %10777 = vmatprep.subr.mxu0 0.0
  %10778 = vmatpush1.msra.mxu0 0.0
  %10779 = vmatprep.subr.mxu0 0.0
  %10780 = vmatpush1.msra.mxu0 0.0
  %10781 = vmatprep.subr.mxu0 0.0
  %10782 = vmatpush1.msra.mxu0 0.0
  %10783 = vmatprep.subr.mxu0 0.0
  %10784 = vmatpush1.msra.mxu0 0.0
  %10785 = vmatprep.subr.mxu0 0.0
  %10786 = vmatpush1.msra.mxu0 0.0
  %10787 = vmatprep.subr.mxu0 0.0
  %10788 = vmatpush1.msra.mxu0 0.0
  %10789 = vmatprep.subr.mxu0 0.0
  %10790 = vmatpush1.msra.mxu0 0.0
  %10791 = vmatprep.subr.mxu0 0.0
  %10792 = vmatpush1.msra.mxu0 0.0
  %10793 = vmatprep.subr.mxu0 0.0
  %10794 = vmatpush1.msra.mxu0 0.0
  %10795 = vmatprep.mubr.f32.mxu0 0.0
  %10796 = vmatmul.mubr.f32.gmra.mrb[0].mxu0 %v10726
  %v10797 = vpop.f32.mrb[0].mxu0
  %v10798 = vadd.f32 0.0, %v10797
  %v10799 = vpop.f32.mrb[0].mxu0
  %10800 = vmatprep.mubr.f32.mxu0 0.0
  %10801 = vmatmul.mubr.f32.gmra.mrb[0].mxu0 %v10729
  %v10802 = vpop.f32.mrb[0].mxu0
  %v10803 = vadd.f32 0.0, %v10802
  %v10804 = vpop.f32.mrb[0].mxu0
  %10805 = vdwg.mxu0
  %v10806 = vld [vmem:[%s14] sm:$0xff]
  %v10807 = vld [vmem:[%s14 + $0x8] sm:$0xff]
  %v10808 = vmul.f32 %v10798, %v10806
  %v10809 = vmul.f32 %v10803, %v10807
  %v10810 = vld [vmem:[%s7] sm:$0xff]
  %v10811 = vld [vmem:[%s7 + $0x8] sm:$0xff]
  %10812 = vxpose.xlu0.b32.start [1/16] %v1776, 128
  %10813 = vxpose.xlu0.b32.cont [2/16] %v1777, 128
  %10814 = vxpose.xlu0.b32.cont [3/16] 0.0, 128
  %10815 = vxpose.xlu0.b32.cont [4/16] 0.0, 128
  %10816 = vxpose.xlu0.b32.cont [5/16] 0.0, 128
  %10817 = vxpose.xlu0.b32.cont [6/16] 0.0, 128
  %10818 = vxpose.xlu0.b32.cont [7/16] 0.0, 128
  %10819 = vxpose.xlu0.b32.cont [8/16] 0.0, 128
  %10820 = vxpose.xlu0.b32.cont [9/16] 0.0, 128
  %10821 = vxpose.xlu0.b32.cont [10/16] 0.0, 128
  %10822 = vxpose.xlu0.b32.cont [11/16] 0.0, 128
  %10823 = vxpose.xlu0.b32.cont [12/16] 0.0, 128
  %10824 = vxpose.xlu0.b32.cont [13/16] 0.0, 128
  %10825 = vxpose.xlu0.b32.cont [14/16] 0.0, 128
  %10826 = vxpose.xlu0.b32.cont [15/16] 0.0, 128
  %10827 = vxpose.xlu0.b32.end [16/16] 0.0, 128
  %v10828 = vpop.trf.xlu0
  %v10829 = vpop.trf.xlu0
  %v10830 = vpop.trf.xlu0
  %v10831 = vpop.trf.xlu0
  %v10832 = vpop.trf.xlu0
  %v10833 = vpop.trf.xlu0
  %v10834 = vpop.trf.xlu0
  %v10835 = vpop.trf.xlu0
  %v10836 = vpop.trf.xlu0
  %v10837 = vpop.trf.xlu0
  %v10838 = vpop.trf.xlu0
  %v10839 = vpop.trf.xlu0
  %v10840 = vpop.trf.xlu0
  %v10841 = vpop.trf.xlu0
  %v10842 = vpop.trf.xlu0
  %v10843 = vpop.trf.xlu0
  %10844 = vxpose.xlu0.b32.start [1/16] %v10810, 128
  %10845 = vxpose.xlu0.b32.cont [2/16] %v10811, 128
  %10846 = vxpose.xlu0.b32.cont [3/16] 0.0, 128
  %10847 = vxpose.xlu0.b32.cont [4/16] 0.0, 128
  %10848 = vxpose.xlu0.b32.cont [5/16] 0.0, 128
  %10849 = vxpose.xlu0.b32.cont [6/16] 0.0, 128
  %10850 = vxpose.xlu0.b32.cont [7/16] 0.0, 128
  %10851 = vxpose.xlu0.b32.cont [8/16] 0.0, 128
  %10852 = vxpose.xlu0.b32.cont [9/16] 0.0, 128
  %10853 = vxpose.xlu0.b32.cont [10/16] 0.0, 128
  %10854 = vxpose.xlu0.b32.cont [11/16] 0.0, 128
  %10855 = vxpose.xlu0.b32.cont [12/16] 0.0, 128
  %10856 = vxpose.xlu0.b32.cont [13/16] 0.0, 128
  %10857 = vxpose.xlu0.b32.cont [14/16] 0.0, 128
  %10858 = vxpose.xlu0.b32.cont [15/16] 0.0, 128
  %10859 = vxpose.xlu0.b32.end [16/16] 0.0, 128
  %v10860 = vpop.trf.xlu0
  %v10861 = vpop.trf.xlu0
  %v10862 = vpop.trf.xlu0
  %v10863 = vpop.trf.xlu0
  %v10864 = vpop.trf.xlu0
  %v10865 = vpop.trf.xlu0
  %v10866 = vpop.trf.xlu0
  %v10867 = vpop.trf.xlu0
  %v10868 = vpop.trf.xlu0
  %v10869 = vpop.trf.xlu0
  %v10870 = vpop.trf.xlu0
  %v10871 = vpop.trf.xlu0
  %v10872 = vpop.trf.xlu0
  %v10873 = vpop.trf.xlu0
  %v10874 = vpop.trf.xlu0
  %v10875 = vpop.trf.xlu0
  %vm10876 = vcmask 130048
  %v10878 = vsel %vm10876, %v10828, 0
  %v10881 = vsel %vm10876, %v10829, 0
  %v10884 = vsel %vm10876, %v10830, 0
  %v10887 = vsel %vm10876, %v10831, 0
  %v10890 = vsel %vm10876, %v10832, 0
  %v10893 = vsel %vm10876, %v10833, 0
  %v10896 = vsel %vm10876, %v10834, 0
  %v10899 = vsel %vm10876, %v10835, 0
  %v10902 = vsel %vm10876, %v10836, 0
  %v10905 = vsel %vm10876, %v10837, 0
  %v10908 = vsel %vm10876, %v10838, 0
  %v10911 = vsel %vm10876, %v10839, 0
  %v10914 = vsel %vm10876, %v10840, 0
  %v10917 = vsel %vm10876, %v10841, 0
  %v10920 = vsel %vm10876, %v10842, 0
  %v10923 = vsel %vm10876, %v10843, 0
  %v10926 = vsel %vm10876, %v10860, 0
  %10928 = vmatprep.subr.mxu0 0.0
  %v10929 = vand.u32 %v10808, 4294901760
  %10930 = vmatpush1.msra.mxu0 %v10929
  %10931 = vmatprep.subr.mxu0 0.0
  %v10932 = vand.u32 %v10809, 4294901760
  %10933 = vmatpush1.msra.mxu0 %v10932
  %10934 = vmatprep.subr.mxu0 0.0
  %10935 = vmatpush1.msra.mxu0 0.0
  %10936 = vmatprep.subr.mxu0 0.0
  %10937 = vmatpush1.msra.mxu0 0.0
  %10938 = vmatprep.subr.mxu0 0.0
  %10939 = vmatpush1.msra.mxu0 0.0
  %10940 = vmatprep.subr.mxu0 0.0
  %10941 = vmatpush1.msra.mxu0 0.0
  %10942 = vmatprep.subr.mxu0 0.0
  %10943 = vmatpush1.msra.mxu0 0.0
  %10944 = vmatprep.subr.mxu0 0.0
  %10945 = vmatpush1.msra.mxu0 0.0
  %10946 = vmatprep.subr.mxu0 0.0
  %10947 = vmatpush1.msra.mxu0 0.0
  %10948 = vmatprep.subr.mxu0 0.0
  %10949 = vmatpush1.msra.mxu0 0.0
  %10950 = vmatprep.subr.mxu0 0.0
  %10951 = vmatpush1.msra.mxu0 0.0
  %10952 = vmatprep.subr.mxu0 0.0
  %10953 = vmatpush1.msra.mxu0 0.0
  %10954 = vmatprep.subr.mxu0 0.0
  %10955 = vmatpush1.msra.mxu0 0.0
  %10956 = vmatprep.subr.mxu0 0.0
  %10957 = vmatpush1.msra.mxu0 0.0
  %10958 = vmatprep.subr.mxu0 0.0
  %10959 = vmatpush1.msra.mxu0 0.0
  %10960 = vmatprep.subr.mxu0 0.0
  %10961 = vmatpush1.msra.mxu0 0.0
  %10962 = vmatprep.subr.mxu0 0.0
  %10963 = vmatpush1.msra.mxu0 0.0
  %10964 = vmatprep.subr.mxu0 0.0
  %10965 = vmatpush1.msra.mxu0 0.0
  %10966 = vmatprep.subr.mxu0 0.0
  %10967 = vmatpush1.msra.mxu0 0.0
  %10968 = vmatprep.subr.mxu0 0.0
  %10969 = vmatpush1.msra.mxu0 0.0
  %10970 = vmatprep.subr.mxu0 0.0
  %10971 = vmatpush1.msra.mxu0 0.0
  %10972 = vmatprep.subr.mxu0 0.0
  %10973 = vmatpush1.msra.mxu0 0.0
  %10974 = vmatprep.subr.mxu0 0.0
  %10975 = vmatpush1.msra.mxu0 0.0
  %10976 = vmatprep.subr.mxu0 0.0
  %10977 = vmatpush1.msra.mxu0 0.0
  %10978 = vmatprep.subr.mxu0 0.0
  %10979 = vmatpush1.msra.mxu0 0.0
  %10980 = vmatprep.subr.mxu0 0.0
  %10981 = vmatpush1.msra.mxu0 0.0
  %10982 = vmatprep.subr.mxu0 0.0
  %10983 = vmatpush1.msra.mxu0 0.0
  %10984 = vmatprep.subr.mxu0 0.0
  %10985 = vmatpush1.msra.mxu0 0.0
  %10986 = vmatprep.subr.mxu0 0.0
  %10987 = vmatpush1.msra.mxu0 0.0
  %10988 = vmatprep.subr.mxu0 0.0
  %10989 = vmatpush1.msra.mxu0 0.0
  %10990 = vmatprep.subr.mxu0 0.0
  %10991 = vmatpush1.msra.mxu0 0.0
  %10992 = vmatprep.subr.mxu0 0.0
  %10993 = vmatpush1.msra.mxu0 0.0
  %10994 = vmatprep.mubr.f32.mxu0 0.0
  %v10995 = vand.u32 %v10878, 4294901760
  %v10996 = vsub.f32 %v10878, %v10995
  %v10997 = vand.u32 %v10996, 4294901760
  %v10998 = vsub.f32 %v10996, %v10997
  %v10999 = vand.u32 %v10998, 4294901760
  %11000 = vmatmul.mubr.f32.gmra.mrb[0].mxu0 %v10999
  %v11001 = vpop.f32.mrb[0].mxu0
  %v11002 = vadd.f32 0.0, %v11001
  %v11003 = vpop.f32.mrb[0].mxu0
  %11004 = vmatprep.mubr.f32.mxu0 0.0
  %v11005 = vand.u32 %v10881, 4294901760
  %v11006 = vsub.f32 %v10881, %v11005
  %v11007 = vand.u32 %v11006, 4294901760
  %v11008 = vsub.f32 %v11006, %v11007
  %v11009 = vand.u32 %v11008, 4294901760
  %11010 = vmatmul.mubr.f32.gmra.mrb[0].mxu0 %v11009
  %v11011 = vpop.f32.mrb[0].mxu0
  %v11012 = vadd.f32 0.0, %v11011
  %v11013 = vpop.f32.mrb[0].mxu0
  %11014 = vmatprep.mubr.f32.mxu0 0.0
  %v11015 = vand.u32 %v10884, 4294901760
  %v11016 = vsub.f32 %v10884, %v11015
  %v11017 = vand.u32 %v11016, 4294901760
  %v11018 = vsub.f32 %v11016, %v11017
  %v11019 = vand.u32 %v11018, 4294901760
  %11020 = vmatmul.mubr.f32.gmra.mrb[0].mxu0 %v11019
  %v11021 = vpop.f32.mrb[0].mxu0
  %v11022 = vadd.f32 0.0, %v11021
  %v11023 = vpop.f32.mrb[0].mxu0
  %11024 = vmatprep.mubr.f32.mxu0 0.0
  %v11025 = vand.u32 %v10887, 4294901760
  %v11026 = vsub.f32 %v10887, %v11025
  %v11027 = vand.u32 %v11026, 4294901760
  %v11028 = vsub.f32 %v11026, %v11027
  %v11029 = vand.u32 %v11028, 4294901760
  %11030 = vmatmul.mubr.f32.gmra.mrb[0].mxu0 %v11029
  %v11031 = vpop.f32.mrb[0].mxu0
  %v11032 = vadd.f32 0.0, %v11031
  %v11033 = vpop.f32.mrb[0].mxu0
  %11034 = vmatprep.mubr.f32.mxu0 0.0
  %v11035 = vand.u32 %v10890, 4294901760
  %v11036 = vsub.f32 %v10890, %v11035
  %v11037 = vand.u32 %v11036, 4294901760
  %v11038 = vsub.f32 %v11036, %v11037
  %v11039 = vand.u32 %v11038, 4294901760
  %11040 = vmatmul.mubr.f32.gmra.mrb[0].mxu0 %v11039
  %v11041 = vpop.f32.mrb[0].mxu0
  %v11042 = vadd.f32 0.0, %v11041
  %v11043 = vpop.f32.mrb[0].mxu0
  %11044 = vmatprep.mubr.f32.mxu0 0.0
  %v11045 = vand.u32 %v10893, 4294901760
  %v11046 = vsub.f32 %v10893, %v11045
  %v11047 = vand.u32 %v11046, 4294901760
  %v11048 = vsub.f32 %v11046, %v11047
  %v11049 = vand.u32 %v11048, 4294901760
  %11050 = vmatmul.mubr.f32.gmra.mrb[0].mxu0 %v11049
  %v11051 = vpop.f32.mrb[0].mxu0
  %v11052 = vadd.f32 0.0, %v11051
  %v11053 = vpop.f32.mrb[0].mxu0
  %11054 = vmatprep.mubr.f32.mxu0 0.0
  %v11055 = vand.u32 %v10896, 4294901760
  %v11056 = vsub.f32 %v10896, %v11055
  %v11057 = vand.u32 %v11056, 4294901760
  %v11058 = vsub.f32 %v11056, %v11057
  %v11059 = vand.u32 %v11058, 4294901760
  %11060 = vmatmul.mubr.f32.gmra.mrb[0].mxu0 %v11059
  %v11061 = vpop.f32.mrb[0].mxu0
  %v11062 = vadd.f32 0.0, %v11061
  %v11063 = vpop.f32.mrb[0].mxu0
  %11064 = vmatprep.mubr.f32.mxu0 0.0
  %v11065 = vand.u32 %v10899, 4294901760
  %v11066 = vsub.f32 %v10899, %v11065
  %v11067 = vand.u32 %v11066, 4294901760
  %v11068 = vsub.f32 %v11066, %v11067
  %v11069 = vand.u32 %v11068, 4294901760
  %11070 = vmatmul.mubr.f32.gmra.mrb[0].mxu0 %v11069
  %v11071 = vpop.f32.mrb[0].mxu0
  %v11072 = vadd.f32 0.0, %v11071
  %v11073 = vpop.f32.mrb[0].mxu0
  %11074 = vmatprep.mubr.f32.mxu0 0.0
  %v11075 = vand.u32 %v10902, 4294901760
  %v11076 = vsub.f32 %v10902, %v11075
  %v11077 = vand.u32 %v11076, 4294901760
  %v11078 = vsub.f32 %v11076, %v11077
  %v11079 = vand.u32 %v11078, 4294901760
  %11080 = vmatmul.mubr.f32.gmra.mrb[0].mxu0 %v11079
  %v11081 = vpop.f32.mrb[0].mxu0
  %v11082 = vadd.f32 0.0, %v11081
  %v11083 = vpop.f32.mrb[0].mxu0
  %11084 = vmatprep.mubr.f32.mxu0 0.0
  %v11085 = vand.u32 %v10905, 4294901760
  %v11086 = vsub.f32 %v10905, %v11085
  %v11087 = vand.u32 %v11086, 4294901760
  %v11088 = vsub.f32 %v11086, %v11087
  %v11089 = vand.u32 %v11088, 4294901760
  %11090 = vmatmul.mubr.f32.gmra.mrb[0].mxu0 %v11089
  %v11091 = vpop.f32.mrb[0].mxu0
  %v11092 = vadd.f32 0.0, %v11091
  %v11093 = vpop.f32.mrb[0].mxu0
  %11094 = vmatprep.mubr.f32.mxu0 0.0
  %v11095 = vand.u32 %v10908, 4294901760
  %v11096 = vsub.f32 %v10908, %v11095
  %v11097 = vand.u32 %v11096, 4294901760
  %v11098 = vsub.f32 %v11096, %v11097
  %v11099 = vand.u32 %v11098, 4294901760
  %11100 = vmatmul.mubr.f32.gmra.mrb[0].mxu0 %v11099
  %v11101 = vpop.f32.mrb[0].mxu0
  %v11102 = vadd.f32 0.0, %v11101
  %v11103 = vpop.f32.mrb[0].mxu0
  %11104 = vmatprep.mubr.f32.mxu0 0.0
  %v11105 = vand.u32 %v10911, 4294901760
  %v11106 = vsub.f32 %v10911, %v11105
  %v11107 = vand.u32 %v11106, 4294901760
  %v11108 = vsub.f32 %v11106, %v11107
  %v11109 = vand.u32 %v11108, 4294901760
  %11110 = vmatmul.mubr.f32.gmra.mrb[0].mxu0 %v11109
  %v11111 = vpop.f32.mrb[0].mxu0
  %v11112 = vadd.f32 0.0, %v11111
  %v11113 = vpop.f32.mrb[0].mxu0
  %11114 = vmatprep.mubr.f32.mxu0 0.0
  %v11115 = vand.u32 %v10914, 4294901760
  %v11116 = vsub.f32 %v10914, %v11115
  %v11117 = vand.u32 %v11116, 4294901760
  %v11118 = vsub.f32 %v11116, %v11117
  %v11119 = vand.u32 %v11118, 4294901760
  %11120 = vmatmul.mubr.f32.gmra.mrb[0].mxu0 %v11119
  %v11121 = vpop.f32.mrb[0].mxu0
  %v11122 = vadd.f32 0.0, %v11121
  %v11123 = vpop.f32.mrb[0].mxu0
  %11124 = vmatprep.mubr.f32.mxu0 0.0
  %v11125 = vand.u32 %v10917, 4294901760
  %v11126 = vsub.f32 %v10917, %v11125
  %v11127 = vand.u32 %v11126, 4294901760
  %v11128 = vsub.f32 %v11126, %v11127
  %v11129 = vand.u32 %v11128, 4294901760
  %11130 = vmatmul.mubr.f32.gmra.mrb[0].mxu0 %v11129
  %v11131 = vpop.f32.mrb[0].mxu0
  %v11132 = vadd.f32 0.0, %v11131
  %v11133 = vpop.f32.mrb[0].mxu0
  %11134 = vmatprep.mubr.f32.mxu0 0.0
  %v11135 = vand.u32 %v10920, 4294901760
  %v11136 = vsub.f32 %v10920, %v11135
  %v11137 = vand.u32 %v11136, 4294901760
  %v11138 = vsub.f32 %v11136, %v11137
  %v11139 = vand.u32 %v11138, 4294901760
  %11140 = vmatmul.mubr.f32.gmra.mrb[0].mxu0 %v11139
  %v11141 = vpop.f32.mrb[0].mxu0
  %v11142 = vadd.f32 0.0, %v11141
  %v11143 = vpop.f32.mrb[0].mxu0
  %11144 = vmatprep.mubr.f32.mxu0 0.0
  %v11145 = vand.u32 %v10923, 4294901760
  %v11146 = vsub.f32 %v10923, %v11145
  %v11147 = vand.u32 %v11146, 4294901760
  %v11148 = vsub.f32 %v11146, %v11147
  %v11149 = vand.u32 %v11148, 4294901760
  %11150 = vmatmul.mubr.f32.gmra.mrb[0].mxu0 %v11149
  %v11151 = vpop.f32.mrb[0].mxu0
  %v11152 = vadd.f32 0.0, %v11151
  %v11153 = vpop.f32.mrb[0].mxu0
  %11154 = vmatprep.mubr.f32.mxu0 0.0
  %v11155 = vand.u32 %v10926, 4294901760
  %v11156 = vsub.f32 %v10926, %v11155
  %v11157 = vand.u32 %v11156, 4294901760
  %v11158 = vsub.f32 %v11156, %v11157
  %v11159 = vand.u32 %v11158, 4294901760
  %11160 = vmatmul.mubr.f32.gmra.mrb[0].mxu0 %v11159
  %v11161 = vpop.f32.mrb[0].mxu0
  %v11162 = vadd.f32 0.0, %v11161
  %v11163 = vpop.f32.mrb[0].mxu0
  %11164 = vdwg.mxu0
  %11165 = vmatprep.subr.mxu0 0.0
  %v11166 = vand.u32 %v10808, 4294901760
  %v11167 = vsub.f32 %v10808, %v11166
  %v11168 = vand.u32 %v11167, 4294901760
  %v11169 = vsub.f32 %v11167, %v11168
  %v11170 = vand.u32 %v11169, 4294901760
  %11171 = vmatpush1.msra.mxu0 %v11170
  %11172 = vmatprep.subr.mxu0 0.0
  %v11173 = vand.u32 %v10809, 4294901760
  %v11174 = vsub.f32 %v10809, %v11173
  %v11175 = vand.u32 %v11174, 4294901760
  %v11176 = vsub.f32 %v11174, %v11175
  %v11177 = vand.u32 %v11176, 4294901760
  %11178 = vmatpush1.msra.mxu0 %v11177
  %11179 = vmatprep.subr.mxu0 0.0
  %11180 = vmatpush1.msra.mxu0 0.0
  %11181 = vmatprep.subr.mxu0 0.0
  %11182 = vmatpush1.msra.mxu0 0.0
  %11183 = vmatprep.subr.mxu0 0.0
  %11184 = vmatpush1.msra.mxu0 0.0
  %11185 = vmatprep.subr.mxu0 0.0
  %11186 = vmatpush1.msra.mxu0 0.0
  %11187 = vmatprep.subr.mxu0 0.0
  %11188 = vmatpush1.msra.mxu0 0.0
  %11189 = vmatprep.subr.mxu0 0.0
  %11190 = vmatpush1.msra.mxu0 0.0
  %11191 = vmatprep.subr.mxu0 0.0
  %11192 = vmatpush1.msra.mxu0 0.0
  %11193 = vmatprep.subr.mxu0 0.0
  %11194 = vmatpush1.msra.mxu0 0.0
  %11195 = vmatprep.subr.mxu0 0.0
  %11196 = vmatpush1.msra.mxu0 0.0
  %11197 = vmatprep.subr.mxu0 0.0
  %11198 = vmatpush1.msra.mxu0 0.0
  %11199 = vmatprep.subr.mxu0 0.0
  %11200 = vmatpush1.msra.mxu0 0.0
  %11201 = vmatprep.subr.mxu0 0.0
  %11202 = vmatpush1.msra.mxu0 0.0
  %11203 = vmatprep.subr.mxu0 0.0
  %11204 = vmatpush1.msra.mxu0 0.0
  %11205 = vmatprep.subr.mxu0 0.0
  %11206 = vmatpush1.msra.mxu0 0.0
  %11207 = vmatprep.subr.mxu0 0.0
  %11208 = vmatpush1.msra.mxu0 0.0
  %11209 = vmatprep.subr.mxu0 0.0
  %11210 = vmatpush1.msra.mxu0 0.0
  %11211 = vmatprep.subr.mxu0 0.0
  %11212 = vmatpush1.msra.mxu0 0.0
  %11213 = vmatprep.subr.mxu0 0.0
  %11214 = vmatpush1.msra.mxu0 0.0
  %11215 = vmatprep.subr.mxu0 0.0
  %11216 = vmatpush1.msra.mxu0 0.0
  %11217 = vmatprep.subr.mxu0 0.0
  %11218 = vmatpush1.msra.mxu0 0.0
  %11219 = vmatprep.subr.mxu0 0.0
  %11220 = vmatpush1.msra.mxu0 0.0
  %11221 = vmatprep.subr.mxu0 0.0
  %11222 = vmatpush1.msra.mxu0 0.0
  %11223 = vmatprep.subr.mxu0 0.0
  %11224 = vmatpush1.msra.mxu0 0.0
  %11225 = vmatprep.subr.mxu0 0.0
  %11226 = vmatpush1.msra.mxu0 0.0
  %11227 = vmatprep.subr.mxu0 0.0
  %11228 = vmatpush1.msra.mxu0 0.0
  %11229 = vmatprep.subr.mxu0 0.0
  %11230 = vmatpush1.msra.mxu0 0.0
  %11231 = vmatprep.subr.mxu0 0.0
  %11232 = vmatpush1.msra.mxu0 0.0
  %11233 = vmatprep.subr.mxu0 0.0
  %11234 = vmatpush1.msra.mxu0 0.0
  %11235 = vmatprep.subr.mxu0 0.0
  %11236 = vmatpush1.msra.mxu0 0.0
  %11237 = vmatprep.subr.mxu0 0.0
  %11238 = vmatpush1.msra.mxu0 0.0
  %11239 = vmatprep.mubr.f32.mxu0 0.0
  %v11240 = vand.u32 %v10878, 4294901760
  %11241 = vmatmul.mubr.f32.gmra.mrb[0].mxu0 %v11240
  %v11242 = vpop.f32.mrb[0].mxu0
  %v11243 = vadd.f32 %v11002, %v11242
  %v11244 = vpop.f32.mrb[0].mxu0
  %11245 = vmatprep.mubr.f32.mxu0 0.0
  %v11246 = vand.u32 %v10881, 4294901760
  %11247 = vmatmul.mubr.f32.gmra.mrb[0].mxu0 %v11246
  %v11248 = vpop.f32.mrb[0].mxu0
  %v11249 = vadd.f32 %v11012, %v11248
  %v11250 = vpop.f32.mrb[0].mxu0
  %11251 = vmatprep.mubr.f32.mxu0 0.0
  %v11252 = vand.u32 %v10884, 4294901760
  %11253 = vmatmul.mubr.f32.gmra.mrb[0].mxu0 %v11252
  %v11254 = vpop.f32.mrb[0].mxu0
  %v11255 = vadd.f32 %v11022, %v11254
  %v11256 = vpop.f32.mrb[0].mxu0
  %11257 = vmatprep.mubr.f32.mxu0 0.0
  %v11258 = vand.u32 %v10887, 4294901760
  %11259 = vmatmul.mubr.f32.gmra.mrb[0].mxu0 %v11258
  %v11260 = vpop.f32.mrb[0].mxu0
  %v11261 = vadd.f32 %v11032, %v11260
  %v11262 = vpop.f32.mrb[0].mxu0
  %11263 = vmatprep.mubr.f32.mxu0 0.0
  %v11264 = vand.u32 %v10890, 4294901760
  %11265 = vmatmul.mubr.f32.gmra.mrb[0].mxu0 %v11264
  %v11266 = vpop.f32.mrb[0].mxu0
  %v11267 = vadd.f32 %v11042, %v11266
  %v11268 = vpop.f32.mrb[0].mxu0
  %11269 = vmatprep.mubr.f32.mxu0 0.0
  %v11270 = vand.u32 %v10893, 4294901760
  %11271 = vmatmul.mubr.f32.gmra.mrb[0].mxu0 %v11270
  %v11272 = vpop.f32.mrb[0].mxu0
  %v11273 = vadd.f32 %v11052, %v11272
  %v11274 = vpop.f32.mrb[0].mxu0
  %11275 = vmatprep.mubr.f32.mxu0 0.0
  %v11276 = vand.u32 %v10896, 4294901760
  %11277 = vmatmul.mubr.f32.gmra.mrb[0].mxu0 %v11276
  %v11278 = vpop.f32.mrb[0].mxu0
  %v11279 = vadd.f32 %v11062, %v11278
  %v11280 = vpop.f32.mrb[0].mxu0
  %11281 = vmatprep.mubr.f32.mxu0 0.0
  %v11282 = vand.u32 %v10899, 4294901760
  %11283 = vmatmul.mubr.f32.gmra.mrb[0].mxu0 %v11282
  %v11284 = vpop.f32.mrb[0].mxu0
  %v11285 = vadd.f32 %v11072, %v11284
  %v11286 = vpop.f32.mrb[0].mxu0
  %11287 = vmatprep.mubr.f32.mxu0 0.0
  %v11288 = vand.u32 %v10902, 4294901760
  %11289 = vmatmul.mubr.f32.gmra.mrb[0].mxu0 %v11288
  %v11290 = vpop.f32.mrb[0].mxu0
  %v11291 = vadd.f32 %v11082, %v11290
  %v11292 = vpop.f32.mrb[0].mxu0
  %11293 = vmatprep.mubr.f32.mxu0 0.0
  %v11294 = vand.u32 %v10905, 4294901760
  %11295 = vmatmul.mubr.f32.gmra.mrb[0].mxu0 %v11294
  %v11296 = vpop.f32.mrb[0].mxu0
  %v11297 = vadd.f32 %v11092, %v11296
  %v11298 = vpop.f32.mrb[0].mxu0
  %11299 = vmatprep.mubr.f32.mxu0 0.0
  %v11300 = vand.u32 %v10908, 4294901760
  %11301 = vmatmul.mubr.f32.gmra.mrb[0].mxu0 %v11300
  %v11302 = vpop.f32.mrb[0].mxu0
  %v11303 = vadd.f32 %v11102, %v11302
  %v11304 = vpop.f32.mrb[0].mxu0
  %11305 = vmatprep.mubr.f32.mxu0 0.0
  %v11306 = vand.u32 %v10911, 4294901760
  %11307 = vmatmul.mubr.f32.gmra.mrb[0].mxu0 %v11306
  %v11308 = vpop.f32.mrb[0].mxu0
  %v11309 = vadd.f32 %v11112, %v11308
  %v11310 = vpop.f32.mrb[0].mxu0
  %11311 = vmatprep.mubr.f32.mxu0 0.0
  %v11312 = vand.u32 %v10914, 4294901760
  %11313 = vmatmul.mubr.f32.gmra.mrb[0].mxu0 %v11312
  %v11314 = vpop.f32.mrb[0].mxu0
  %v11315 = vadd.f32 %v11122, %v11314
  %v11316 = vpop.f32.mrb[0].mxu0
  %11317 = vmatprep.mubr.f32.mxu0 0.0
  %v11318 = vand.u32 %v10917, 4294901760
  %11319 = vmatmul.mubr.f32.gmra.mrb[0].mxu0 %v11318
  %v11320 = vpop.f32.mrb[0].mxu0
  %v11321 = vadd.f32 %v11132, %v11320
  %v11322 = vpop.f32.mrb[0].mxu0
  %11323 = vmatprep.mubr.f32.mxu0 0.0
  %v11324 = vand.u32 %v10920, 4294901760
  %11325 = vmatmul.mubr.f32.gmra.mrb[0].mxu0 %v11324
  %v11326 = vpop.f32.mrb[0].mxu0
  %v11327 = vadd.f32 %v11142, %v11326
  %v11328 = vpop.f32.mrb[0].mxu0
  %11329 = vmatprep.mubr.f32.mxu0 0.0
  %v11330 = vand.u32 %v10923, 4294901760
  %11331 = vmatmul.mubr.f32.gmra.mrb[0].mxu0 %v11330
  %v11332 = vpop.f32.mrb[0].mxu0
  %v11333 = vadd.f32 %v11152, %v11332
  %v11334 = vpop.f32.mrb[0].mxu0
  %11335 = vmatprep.mubr.f32.mxu0 0.0
  %v11336 = vand.u32 %v10926, 4294901760
  %11337 = vmatmul.mubr.f32.gmra.mrb[0].mxu0 %v11336
  %v11338 = vpop.f32.mrb[0].mxu0
  %v11339 = vadd.f32 %v11162, %v11338
  %v11340 = vpop.f32.mrb[0].mxu0
  %11341 = vdwg.mxu0
  %11342 = vmatprep.subr.mxu0 0.0
  %v11343 = vand.u32 %v10808, 4294901760
  %v11344 = vsub.f32 %v10808, %v11343
  %11345 = vmatpush1.msra.mxu0 %v11344
  %11346 = vmatprep.subr.mxu0 0.0
  %v11347 = vand.u32 %v10809, 4294901760
  %v11348 = vsub.f32 %v10809, %v11347
  %11349 = vmatpush1.msra.mxu0 %v11348
  %11350 = vmatprep.subr.mxu0 0.0
  %11351 = vmatpush1.msra.mxu0 0.0
  %11352 = vmatprep.subr.mxu0 0.0
  %11353 = vmatpush1.msra.mxu0 0.0
  %11354 = vmatprep.subr.mxu0 0.0
  %11355 = vmatpush1.msra.mxu0 0.0
  %11356 = vmatprep.subr.mxu0 0.0
  %11357 = vmatpush1.msra.mxu0 0.0
  %11358 = vmatprep.subr.mxu0 0.0
  %11359 = vmatpush1.msra.mxu0 0.0
  %11360 = vmatprep.subr.mxu0 0.0
  %11361 = vmatpush1.msra.mxu0 0.0
  %11362 = vmatprep.subr.mxu0 0.0
  %11363 = vmatpush1.msra.mxu0 0.0
  %11364 = vmatprep.subr.mxu0 0.0
  %11365 = vmatpush1.msra.mxu0 0.0
  %11366 = vmatprep.subr.mxu0 0.0
  %11367 = vmatpush1.msra.mxu0 0.0
  %11368 = vmatprep.subr.mxu0 0.0
  %11369 = vmatpush1.msra.mxu0 0.0
  %11370 = vmatprep.subr.mxu0 0.0
  %11371 = vmatpush1.msra.mxu0 0.0
  %11372 = vmatprep.subr.mxu0 0.0
  %11373 = vmatpush1.msra.mxu0 0.0
  %11374 = vmatprep.subr.mxu0 0.0
  %11375 = vmatpush1.msra.mxu0 0.0
  %11376 = vmatprep.subr.mxu0 0.0
  %11377 = vmatpush1.msra.mxu0 0.0
  %11378 = vmatprep.subr.mxu0 0.0
  %11379 = vmatpush1.msra.mxu0 0.0
  %11380 = vmatprep.subr.mxu0 0.0
  %11381 = vmatpush1.msra.mxu0 0.0
  %11382 = vmatprep.subr.mxu0 0.0
  %11383 = vmatpush1.msra.mxu0 0.0
  %11384 = vmatprep.subr.mxu0 0.0
  %11385 = vmatpush1.msra.mxu0 0.0
  %11386 = vmatprep.subr.mxu0 0.0
  %11387 = vmatpush1.msra.mxu0 0.0
  %11388 = vmatprep.subr.mxu0 0.0
  %11389 = vmatpush1.msra.mxu0 0.0
  %11390 = vmatprep.subr.mxu0 0.0
  %11391 = vmatpush1.msra.mxu0 0.0
  %11392 = vmatprep.subr.mxu0 0.0
  %11393 = vmatpush1.msra.mxu0 0.0
  %11394 = vmatprep.subr.mxu0 0.0
  %11395 = vmatpush1.msra.mxu0 0.0
  %11396 = vmatprep.subr.mxu0 0.0
  %11397 = vmatpush1.msra.mxu0 0.0
  %11398 = vmatprep.subr.mxu0 0.0
  %11399 = vmatpush1.msra.mxu0 0.0
  %11400 = vmatprep.subr.mxu0 0.0
  %11401 = vmatpush1.msra.mxu0 0.0
  %11402 = vmatprep.subr.mxu0 0.0
  %11403 = vmatpush1.msra.mxu0 0.0
  %11404 = vmatprep.subr.mxu0 0.0
  %11405 = vmatpush1.msra.mxu0 0.0
  %11406 = vmatprep.subr.mxu0 0.0
  %11407 = vmatpush1.msra.mxu0 0.0
  %11408 = vmatprep.subr.mxu0 0.0
  %11409 = vmatpush1.msra.mxu0 0.0
  %11410 = vmatprep.mubr.f32.mxu0 0.0
  %v11411 = vand.u32 %v10878, 4294901760
  %v11412 = vsub.f32 %v10878, %v11411
  %11413 = vmatmul.mubr.f32.gmra.mrb[0].mxu0 %v11412
  %v11414 = vpop.f32.mrb[0].mxu0
  %v11415 = vadd.f32 %v11243, %v11414
  %v11416 = vpop.f32.mrb[0].mxu0
  %11417 = vmatprep.mubr.f32.mxu0 0.0
  %v11418 = vand.u32 %v10881, 4294901760
  %v11419 = vsub.f32 %v10881, %v11418
  %11420 = vmatmul.mubr.f32.gmra.mrb[0].mxu0 %v11419
  %v11421 = vpop.f32.mrb[0].mxu0
  %v11422 = vadd.f32 %v11249, %v11421
  %v11423 = vpop.f32.mrb[0].mxu0
  %11424 = vmatprep.mubr.f32.mxu0 0.0
  %v11425 = vand.u32 %v10884, 4294901760
  %v11426 = vsub.f32 %v10884, %v11425
  %11427 = vmatmul.mubr.f32.gmra.mrb[0].mxu0 %v11426
  %v11428 = vpop.f32.mrb[0].mxu0
  %v11429 = vadd.f32 %v11255, %v11428
  %v11430 = vpop.f32.mrb[0].mxu0
  %11431 = vmatprep.mubr.f32.mxu0 0.0
  %v11432 = vand.u32 %v10887, 4294901760
  %v11433 = vsub.f32 %v10887, %v11432
  %11434 = vmatmul.mubr.f32.gmra.mrb[0].mxu0 %v11433
  %v11435 = vpop.f32.mrb[0].mxu0
  %v11436 = vadd.f32 %v11261, %v11435
  %v11437 = vpop.f32.mrb[0].mxu0
  %11438 = vmatprep.mubr.f32.mxu0 0.0
  %v11439 = vand.u32 %v10890, 4294901760
  %v11440 = vsub.f32 %v10890, %v11439
  %11441 = vmatmul.mubr.f32.gmra.mrb[0].mxu0 %v11440
  %v11442 = vpop.f32.mrb[0].mxu0
  %v11443 = vadd.f32 %v11267, %v11442
  %v11444 = vpop.f32.mrb[0].mxu0
  %11445 = vmatprep.mubr.f32.mxu0 0.0
  %v11446 = vand.u32 %v10893, 4294901760
  %v11447 = vsub.f32 %v10893, %v11446
  %11448 = vmatmul.mubr.f32.gmra.mrb[0].mxu0 %v11447
  %v11449 = vpop.f32.mrb[0].mxu0
  %v11450 = vadd.f32 %v11273, %v11449
  %v11451 = vpop.f32.mrb[0].mxu0
  %11452 = vmatprep.mubr.f32.mxu0 0.0
  %v11453 = vand.u32 %v10896, 4294901760
  %v11454 = vsub.f32 %v10896, %v11453
  %11455 = vmatmul.mubr.f32.gmra.mrb[0].mxu0 %v11454
  %v11456 = vpop.f32.mrb[0].mxu0
  %v11457 = vadd.f32 %v11279, %v11456
  %v11458 = vpop.f32.mrb[0].mxu0
  %11459 = vmatprep.mubr.f32.mxu0 0.0
  %v11460 = vand.u32 %v10899, 4294901760
  %v11461 = vsub.f32 %v10899, %v11460
  %11462 = vmatmul.mubr.f32.gmra.mrb[0].mxu0 %v11461
  %v11463 = vpop.f32.mrb[0].mxu0
  %v11464 = vadd.f32 %v11285, %v11463
  %v11465 = vpop.f32.mrb[0].mxu0
  %11466 = vmatprep.mubr.f32.mxu0 0.0
  %v11467 = vand.u32 %v10902, 4294901760
  %v11468 = vsub.f32 %v10902, %v11467
  %11469 = vmatmul.mubr.f32.gmra.mrb[0].mxu0 %v11468
  %v11470 = vpop.f32.mrb[0].mxu0
  %v11471 = vadd.f32 %v11291, %v11470
  %v11472 = vpop.f32.mrb[0].mxu0
  %11473 = vmatprep.mubr.f32.mxu0 0.0
  %v11474 = vand.u32 %v10905, 4294901760
  %v11475 = vsub.f32 %v10905, %v11474
  %11476 = vmatmul.mubr.f32.gmra.mrb[0].mxu0 %v11475
  %v11477 = vpop.f32.mrb[0].mxu0
  %v11478 = vadd.f32 %v11297, %v11477
  %v11479 = vpop.f32.mrb[0].mxu0
  %11480 = vmatprep.mubr.f32.mxu0 0.0
  %v11481 = vand.u32 %v10908, 4294901760
  %v11482 = vsub.f32 %v10908, %v11481
  %11483 = vmatmul.mubr.f32.gmra.mrb[0].mxu0 %v11482
  %v11484 = vpop.f32.mrb[0].mxu0
  %v11485 = vadd.f32 %v11303, %v11484
  %v11486 = vpop.f32.mrb[0].mxu0
  %11487 = vmatprep.mubr.f32.mxu0 0.0
  %v11488 = vand.u32 %v10911, 4294901760
  %v11489 = vsub.f32 %v10911, %v11488
  %11490 = vmatmul.mubr.f32.gmra.mrb[0].mxu0 %v11489
  %v11491 = vpop.f32.mrb[0].mxu0
  %v11492 = vadd.f32 %v11309, %v11491
  %v11493 = vpop.f32.mrb[0].mxu0
  %11494 = vmatprep.mubr.f32.mxu0 0.0
  %v11495 = vand.u32 %v10914, 4294901760
  %v11496 = vsub.f32 %v10914, %v11495
  %11497 = vmatmul.mubr.f32.gmra.mrb[0].mxu0 %v11496
  %v11498 = vpop.f32.mrb[0].mxu0
  %v11499 = vadd.f32 %v11315, %v11498
  %v11500 = vpop.f32.mrb[0].mxu0
  %11501 = vmatprep.mubr.f32.mxu0 0.0
  %v11502 = vand.u32 %v10917, 4294901760
  %v11503 = vsub.f32 %v10917, %v11502
  %11504 = vmatmul.mubr.f32.gmra.mrb[0].mxu0 %v11503
  %v11505 = vpop.f32.mrb[0].mxu0
  %v11506 = vadd.f32 %v11321, %v11505
  %v11507 = vpop.f32.mrb[0].mxu0
  %11508 = vmatprep.mubr.f32.mxu0 0.0
  %v11509 = vand.u32 %v10920, 4294901760
  %v11510 = vsub.f32 %v10920, %v11509
  %11511 = vmatmul.mubr.f32.gmra.mrb[0].mxu0 %v11510
  %v11512 = vpop.f32.mrb[0].mxu0
  %v11513 = vadd.f32 %v11327, %v11512
  %v11514 = vpop.f32.mrb[0].mxu0
  %11515 = vmatprep.mubr.f32.mxu0 0.0
  %v11516 = vand.u32 %v10923, 4294901760
  %v11517 = vsub.f32 %v10923, %v11516
  %11518 = vmatmul.mubr.f32.gmra.mrb[0].mxu0 %v11517
  %v11519 = vpop.f32.mrb[0].mxu0
  %v11520 = vadd.f32 %v11333, %v11519
  %v11521 = vpop.f32.mrb[0].mxu0
  %11522 = vmatprep.mubr.f32.mxu0 0.0
  %v11523 = vand.u32 %v10926, 4294901760
  %v11524 = vsub.f32 %v10926, %v11523
  %11525 = vmatmul.mubr.f32.gmra.mrb[0].mxu0 %v11524
  %v11526 = vpop.f32.mrb[0].mxu0
  %v11527 = vadd.f32 %v11339, %v11526
  %v11528 = vpop.f32.mrb[0].mxu0
  %11529 = vdwg.mxu0
  %11530 = vmatprep.subr.mxu0 0.0
  %v11531 = vand.u32 %v10808, 4294901760
  %11532 = vmatpush1.msra.mxu0 %v11531
  %11533 = vmatprep.subr.mxu0 0.0
  %v11534 = vand.u32 %v10809, 4294901760
  %11535 = vmatpush1.msra.mxu0 %v11534
  %11536 = vmatprep.subr.mxu0 0.0
  %11537 = vmatpush1.msra.mxu0 0.0
  %11538 = vmatprep.subr.mxu0 0.0
  %11539 = vmatpush1.msra.mxu0 0.0
  %11540 = vmatprep.subr.mxu0 0.0
  %11541 = vmatpush1.msra.mxu0 0.0
  %11542 = vmatprep.subr.mxu0 0.0
  %11543 = vmatpush1.msra.mxu0 0.0
  %11544 = vmatprep.subr.mxu0 0.0
  %11545 = vmatpush1.msra.mxu0 0.0
  %11546 = vmatprep.subr.mxu0 0.0
  %11547 = vmatpush1.msra.mxu0 0.0
  %11548 = vmatprep.subr.mxu0 0.0
  %11549 = vmatpush1.msra.mxu0 0.0
  %11550 = vmatprep.subr.mxu0 0.0
  %11551 = vmatpush1.msra.mxu0 0.0
  %11552 = vmatprep.subr.mxu0 0.0
  %11553 = vmatpush1.msra.mxu0 0.0
  %11554 = vmatprep.subr.mxu0 0.0
  %11555 = vmatpush1.msra.mxu0 0.0
  %11556 = vmatprep.subr.mxu0 0.0
  %11557 = vmatpush1.msra.mxu0 0.0
  %11558 = vmatprep.subr.mxu0 0.0
  %11559 = vmatpush1.msra.mxu0 0.0
  %11560 = vmatprep.subr.mxu0 0.0
  %11561 = vmatpush1.msra.mxu0 0.0
  %11562 = vmatprep.subr.mxu0 0.0
  %11563 = vmatpush1.msra.mxu0 0.0
  %11564 = vmatprep.subr.mxu0 0.0
  %11565 = vmatpush1.msra.mxu0 0.0
  %11566 = vmatprep.subr.mxu0 0.0
  %11567 = vmatpush1.msra.mxu0 0.0
  %11568 = vmatprep.subr.mxu0 0.0
  %11569 = vmatpush1.msra.mxu0 0.0
  %11570 = vmatprep.subr.mxu0 0.0
  %11571 = vmatpush1.msra.mxu0 0.0
  %11572 = vmatprep.subr.mxu0 0.0
  %11573 = vmatpush1.msra.mxu0 0.0
  %11574 = vmatprep.subr.mxu0 0.0
  %11575 = vmatpush1.msra.mxu0 0.0
  %11576 = vmatprep.subr.mxu0 0.0
  %11577 = vmatpush1.msra.mxu0 0.0
  %11578 = vmatprep.subr.mxu0 0.0
  %11579 = vmatpush1.msra.mxu0 0.0
  %11580 = vmatprep.subr.mxu0 0.0
  %11581 = vmatpush1.msra.mxu0 0.0
  %11582 = vmatprep.subr.mxu0 0.0
  %11583 = vmatpush1.msra.mxu0 0.0
  %11584 = vmatprep.subr.mxu0 0.0
  %11585 = vmatpush1.msra.mxu0 0.0
  %11586 = vmatprep.subr.mxu0 0.0
  %11587 = vmatpush1.msra.mxu0 0.0
  %11588 = vmatprep.subr.mxu0 0.0
  %11589 = vmatpush1.msra.mxu0 0.0
  %11590 = vmatprep.subr.mxu0 0.0
  %11591 = vmatpush1.msra.mxu0 0.0
  %11592 = vmatprep.subr.mxu0 0.0
  %11593 = vmatpush1.msra.mxu0 0.0
  %11594 = vmatprep.subr.mxu0 0.0
  %11595 = vmatpush1.msra.mxu0 0.0
  %11596 = vmatprep.mubr.f32.mxu0 0.0
  %v11597 = vand.u32 %v10878, 4294901760
  %v11598 = vsub.f32 %v10878, %v11597
  %v11599 = vand.u32 %v11598, 4294901760
  %11600 = vmatmul.mubr.f32.gmra.mrb[0].mxu0 %v11599
  %v11601 = vpop.f32.mrb[0].mxu0
  %v11602 = vadd.f32 %v11415, %v11601
  %v11603 = vpop.f32.mrb[0].mxu0
  %11604 = vmatprep.mubr.f32.mxu0 0.0
  %v11605 = vand.u32 %v10881, 4294901760
  %v11606 = vsub.f32 %v10881, %v11605
  %v11607 = vand.u32 %v11606, 4294901760
  %11608 = vmatmul.mubr.f32.gmra.mrb[0].mxu0 %v11607
  %v11609 = vpop.f32.mrb[0].mxu0
  %v11610 = vadd.f32 %v11422, %v11609
  %v11611 = vpop.f32.mrb[0].mxu0
  %11612 = vmatprep.mubr.f32.mxu0 0.0
  %v11613 = vand.u32 %v10884, 4294901760
  %v11614 = vsub.f32 %v10884, %v11613
  %v11615 = vand.u32 %v11614, 4294901760
  %11616 = vmatmul.mubr.f32.gmra.mrb[0].mxu0 %v11615
  %v11617 = vpop.f32.mrb[0].mxu0
  %v11618 = vadd.f32 %v11429, %v11617
  %v11619 = vpop.f32.mrb[0].mxu0
  %11620 = vmatprep.mubr.f32.mxu0 0.0
  %v11621 = vand.u32 %v10887, 4294901760
  %v11622 = vsub.f32 %v10887, %v11621
  %v11623 = vand.u32 %v11622, 4294901760
  %11624 = vmatmul.mubr.f32.gmra.mrb[0].mxu0 %v11623
  %v11625 = vpop.f32.mrb[0].mxu0
  %v11626 = vadd.f32 %v11436, %v11625
  %v11627 = vpop.f32.mrb[0].mxu0
  %11628 = vmatprep.mubr.f32.mxu0 0.0
  %v11629 = vand.u32 %v10890, 4294901760
  %v11630 = vsub.f32 %v10890, %v11629
  %v11631 = vand.u32 %v11630, 4294901760
  %11632 = vmatmul.mubr.f32.gmra.mrb[0].mxu0 %v11631
  %v11633 = vpop.f32.mrb[0].mxu0
  %v11634 = vadd.f32 %v11443, %v11633
  %v11635 = vpop.f32.mrb[0].mxu0
  %11636 = vmatprep.mubr.f32.mxu0 0.0
  %v11637 = vand.u32 %v10893, 4294901760
  %v11638 = vsub.f32 %v10893, %v11637
  %v11639 = vand.u32 %v11638, 4294901760
  %11640 = vmatmul.mubr.f32.gmra.mrb[0].mxu0 %v11639
  %v11641 = vpop.f32.mrb[0].mxu0
  %v11642 = vadd.f32 %v11450, %v11641
  %v11643 = vpop.f32.mrb[0].mxu0
  %11644 = vmatprep.mubr.f32.mxu0 0.0
  %v11645 = vand.u32 %v10896, 4294901760
  %v11646 = vsub.f32 %v10896, %v11645
  %v11647 = vand.u32 %v11646, 4294901760
  %11648 = vmatmul.mubr.f32.gmra.mrb[0].mxu0 %v11647
  %v11649 = vpop.f32.mrb[0].mxu0
  %v11650 = vadd.f32 %v11457, %v11649
  %v11651 = vpop.f32.mrb[0].mxu0
  %11652 = vmatprep.mubr.f32.mxu0 0.0
  %v11653 = vand.u32 %v10899, 4294901760
  %v11654 = vsub.f32 %v10899, %v11653
  %v11655 = vand.u32 %v11654, 4294901760
  %11656 = vmatmul.mubr.f32.gmra.mrb[0].mxu0 %v11655
  %v11657 = vpop.f32.mrb[0].mxu0
  %v11658 = vadd.f32 %v11464, %v11657
  %v11659 = vpop.f32.mrb[0].mxu0
  %11660 = vmatprep.mubr.f32.mxu0 0.0
  %v11661 = vand.u32 %v10902, 4294901760
  %v11662 = vsub.f32 %v10902, %v11661
  %v11663 = vand.u32 %v11662, 4294901760
  %11664 = vmatmul.mubr.f32.gmra.mrb[0].mxu0 %v11663
  %v11665 = vpop.f32.mrb[0].mxu0
  %v11666 = vadd.f32 %v11471, %v11665
  %v11667 = vpop.f32.mrb[0].mxu0
  %11668 = vmatprep.mubr.f32.mxu0 0.0
  %v11669 = vand.u32 %v10905, 4294901760
  %v11670 = vsub.f32 %v10905, %v11669
  %v11671 = vand.u32 %v11670, 4294901760
  %11672 = vmatmul.mubr.f32.gmra.mrb[0].mxu0 %v11671
  %v11673 = vpop.f32.mrb[0].mxu0
  %v11674 = vadd.f32 %v11478, %v11673
  %v11675 = vpop.f32.mrb[0].mxu0
  %11676 = vmatprep.mubr.f32.mxu0 0.0
  %v11677 = vand.u32 %v10908, 4294901760
  %v11678 = vsub.f32 %v10908, %v11677
  %v11679 = vand.u32 %v11678, 4294901760
  %11680 = vmatmul.mubr.f32.gmra.mrb[0].mxu0 %v11679
  %v11681 = vpop.f32.mrb[0].mxu0
  %v11682 = vadd.f32 %v11485, %v11681
  %v11683 = vpop.f32.mrb[0].mxu0
  %11684 = vmatprep.mubr.f32.mxu0 0.0
  %v11685 = vand.u32 %v10911, 4294901760
  %v11686 = vsub.f32 %v10911, %v11685
  %v11687 = vand.u32 %v11686, 4294901760
  %11688 = vmatmul.mubr.f32.gmra.mrb[0].mxu0 %v11687
  %v11689 = vpop.f32.mrb[0].mxu0
  %v11690 = vadd.f32 %v11492, %v11689
  %v11691 = vpop.f32.mrb[0].mxu0
  %11692 = vmatprep.mubr.f32.mxu0 0.0
  %v11693 = vand.u32 %v10914, 4294901760
  %v11694 = vsub.f32 %v10914, %v11693
  %v11695 = vand.u32 %v11694, 4294901760
  %11696 = vmatmul.mubr.f32.gmra.mrb[0].mxu0 %v11695
  %v11697 = vpop.f32.mrb[0].mxu0
  %v11698 = vadd.f32 %v11499, %v11697
  %v11699 = vpop.f32.mrb[0].mxu0
  %11700 = vmatprep.mubr.f32.mxu0 0.0
  %v11701 = vand.u32 %v10917, 4294901760
  %v11702 = vsub.f32 %v10917, %v11701
  %v11703 = vand.u32 %v11702, 4294901760
  %11704 = vmatmul.mubr.f32.gmra.mrb[0].mxu0 %v11703
  %v11705 = vpop.f32.mrb[0].mxu0
  %v11706 = vadd.f32 %v11506, %v11705
  %v11707 = vpop.f32.mrb[0].mxu0
  %11708 = vmatprep.mubr.f32.mxu0 0.0
  %v11709 = vand.u32 %v10920, 4294901760
  %v11710 = vsub.f32 %v10920, %v11709
  %v11711 = vand.u32 %v11710, 4294901760
  %11712 = vmatmul.mubr.f32.gmra.mrb[0].mxu0 %v11711
  %v11713 = vpop.f32.mrb[0].mxu0
  %v11714 = vadd.f32 %v11513, %v11713
  %v11715 = vpop.f32.mrb[0].mxu0
  %11716 = vmatprep.mubr.f32.mxu0 0.0
  %v11717 = vand.u32 %v10923, 4294901760
  %v11718 = vsub.f32 %v10923, %v11717
  %v11719 = vand.u32 %v11718, 4294901760
  %11720 = vmatmul.mubr.f32.gmra.mrb[0].mxu0 %v11719
  %v11721 = vpop.f32.mrb[0].mxu0
  %v11722 = vadd.f32 %v11520, %v11721
  %v11723 = vpop.f32.mrb[0].mxu0
  %11724 = vmatprep.mubr.f32.mxu0 0.0
  %v11725 = vand.u32 %v10926, 4294901760
  %v11726 = vsub.f32 %v10926, %v11725
  %v11727 = vand.u32 %v11726, 4294901760
  %11728 = vmatmul.mubr.f32.gmra.mrb[0].mxu0 %v11727
  %v11729 = vpop.f32.mrb[0].mxu0
  %v11730 = vadd.f32 %v11527, %v11729
  %v11731 = vpop.f32.mrb[0].mxu0
  %11732 = vdwg.mxu0
  %11733 = vmatprep.subr.mxu0 0.0
  %v11734 = vand.u32 %v10808, 4294901760
  %v11735 = vsub.f32 %v10808, %v11734
  %v11736 = vand.u32 %v11735, 4294901760
  %11737 = vmatpush1.msra.mxu0 %v11736
  %11738 = vmatprep.subr.mxu0 0.0
  %v11739 = vand.u32 %v10809, 4294901760
  %v11740 = vsub.f32 %v10809, %v11739
  %v11741 = vand.u32 %v11740, 4294901760
  %11742 = vmatpush1.msra.mxu0 %v11741
  %11743 = vmatprep.subr.mxu0 0.0
  %11744 = vmatpush1.msra.mxu0 0.0
  %11745 = vmatprep.subr.mxu0 0.0
  %11746 = vmatpush1.msra.mxu0 0.0
  %11747 = vmatprep.subr.mxu0 0.0
  %11748 = vmatpush1.msra.mxu0 0.0
  %11749 = vmatprep.subr.mxu0 0.0
  %11750 = vmatpush1.msra.mxu0 0.0
  %11751 = vmatprep.subr.mxu0 0.0
  %11752 = vmatpush1.msra.mxu0 0.0
  %11753 = vmatprep.subr.mxu0 0.0
  %11754 = vmatpush1.msra.mxu0 0.0
  %11755 = vmatprep.subr.mxu0 0.0
  %11756 = vmatpush1.msra.mxu0 0.0
  %11757 = vmatprep.subr.mxu0 0.0
  %11758 = vmatpush1.msra.mxu0 0.0
  %11759 = vmatprep.subr.mxu0 0.0
  %11760 = vmatpush1.msra.mxu0 0.0
  %11761 = vmatprep.subr.mxu0 0.0
  %11762 = vmatpush1.msra.mxu0 0.0
  %11763 = vmatprep.subr.mxu0 0.0
  %11764 = vmatpush1.msra.mxu0 0.0
  %11765 = vmatprep.subr.mxu0 0.0
  %11766 = vmatpush1.msra.mxu0 0.0
  %11767 = vmatprep.subr.mxu0 0.0
  %11768 = vmatpush1.msra.mxu0 0.0
  %11769 = vmatprep.subr.mxu0 0.0
  %11770 = vmatpush1.msra.mxu0 0.0
  %11771 = vmatprep.subr.mxu0 0.0
  %11772 = vmatpush1.msra.mxu0 0.0
  %11773 = vmatprep.subr.mxu0 0.0
  %11774 = vmatpush1.msra.mxu0 0.0
  %11775 = vmatprep.subr.mxu0 0.0
  %11776 = vmatpush1.msra.mxu0 0.0
  %11777 = vmatprep.subr.mxu0 0.0
  %11778 = vmatpush1.msra.mxu0 0.0
  %11779 = vmatprep.subr.mxu0 0.0
  %11780 = vmatpush1.msra.mxu0 0.0
  %11781 = vmatprep.subr.mxu0 0.0
  %11782 = vmatpush1.msra.mxu0 0.0
  %11783 = vmatprep.subr.mxu0 0.0
  %11784 = vmatpush1.msra.mxu0 0.0
  %11785 = vmatprep.subr.mxu0 0.0
  %11786 = vmatpush1.msra.mxu0 0.0
  %11787 = vmatprep.subr.mxu0 0.0
  %11788 = vmatpush1.msra.mxu0 0.0
  %11789 = vmatprep.subr.mxu0 0.0
  %11790 = vmatpush1.msra.mxu0 0.0
  %11791 = vmatprep.subr.mxu0 0.0
  %11792 = vmatpush1.msra.mxu0 0.0
  %11793 = vmatprep.subr.mxu0 0.0
  %11794 = vmatpush1.msra.mxu0 0.0
  %11795 = vmatprep.subr.mxu0 0.0
  %11796 = vmatpush1.msra.mxu0 0.0
  %11797 = vmatprep.subr.mxu0 0.0
  %11798 = vmatpush1.msra.mxu0 0.0
  %11799 = vmatprep.subr.mxu0 0.0
  %11800 = vmatpush1.msra.mxu0 0.0
  %11801 = vmatprep.subr.mxu0 0.0
  %11802 = vmatpush1.msra.mxu0 0.0
  %11803 = vmatprep.mubr.f32.mxu0 0.0
  %v11804 = vand.u32 %v10878, 4294901760
  %11805 = vmatmul.mubr.f32.gmra.mrb[0].mxu0 %v11804
  %v11806 = vpop.f32.mrb[0].mxu0
  %v11807 = vadd.f32 %v11602, %v11806
  %v11808 = vpop.f32.mrb[0].mxu0
  %11809 = vmatprep.mubr.f32.mxu0 0.0
  %v11810 = vand.u32 %v10881, 4294901760
  %11811 = vmatmul.mubr.f32.gmra.mrb[0].mxu0 %v11810
  %v11812 = vpop.f32.mrb[0].mxu0
  %v11813 = vadd.f32 %v11610, %v11812
  %v11814 = vpop.f32.mrb[0].mxu0
  %11815 = vmatprep.mubr.f32.mxu0 0.0
  %v11816 = vand.u32 %v10884, 4294901760
  %11817 = vmatmul.mubr.f32.gmra.mrb[0].mxu0 %v11816
  %v11818 = vpop.f32.mrb[0].mxu0
  %v11819 = vadd.f32 %v11618, %v11818
  %v11820 = vpop.f32.mrb[0].mxu0
  %11821 = vmatprep.mubr.f32.mxu0 0.0
  %v11822 = vand.u32 %v10887, 4294901760
  %11823 = vmatmul.mubr.f32.gmra.mrb[0].mxu0 %v11822
  %v11824 = vpop.f32.mrb[0].mxu0
  %v11825 = vadd.f32 %v11626, %v11824
  %v11826 = vpop.f32.mrb[0].mxu0
  %11827 = vmatprep.mubr.f32.mxu0 0.0
  %v11828 = vand.u32 %v10890, 4294901760
  %11829 = vmatmul.mubr.f32.gmra.mrb[0].mxu0 %v11828
  %v11830 = vpop.f32.mrb[0].mxu0
  %v11831 = vadd.f32 %v11634, %v11830
  %v11832 = vpop.f32.mrb[0].mxu0
  %11833 = vmatprep.mubr.f32.mxu0 0.0
  %v11834 = vand.u32 %v10893, 4294901760
  %11835 = vmatmul.mubr.f32.gmra.mrb[0].mxu0 %v11834
  %v11836 = vpop.f32.mrb[0].mxu0
  %v11837 = vadd.f32 %v11642, %v11836
  %v11838 = vpop.f32.mrb[0].mxu0
  %11839 = vmatprep.mubr.f32.mxu0 0.0
  %v11840 = vand.u32 %v10896, 4294901760
  %11841 = vmatmul.mubr.f32.gmra.mrb[0].mxu0 %v11840
  %v11842 = vpop.f32.mrb[0].mxu0
  %v11843 = vadd.f32 %v11650, %v11842
  %v11844 = vpop.f32.mrb[0].mxu0
  %11845 = vmatprep.mubr.f32.mxu0 0.0
  %v11846 = vand.u32 %v10899, 4294901760
  %11847 = vmatmul.mubr.f32.gmra.mrb[0].mxu0 %v11846
  %v11848 = vpop.f32.mrb[0].mxu0
  %v11849 = vadd.f32 %v11658, %v11848
  %v11850 = vpop.f32.mrb[0].mxu0
  %11851 = vmatprep.mubr.f32.mxu0 0.0
  %v11852 = vand.u32 %v10902, 4294901760
  %11853 = vmatmul.mubr.f32.gmra.mrb[0].mxu0 %v11852
  %v11854 = vpop.f32.mrb[0].mxu0
  %v11855 = vadd.f32 %v11666, %v11854
  %v11856 = vpop.f32.mrb[0].mxu0
  %11857 = vmatprep.mubr.f32.mxu0 0.0
  %v11858 = vand.u32 %v10905, 4294901760
  %11859 = vmatmul.mubr.f32.gmra.mrb[0].mxu0 %v11858
  %v11860 = vpop.f32.mrb[0].mxu0
  %v11861 = vadd.f32 %v11674, %v11860
  %v11862 = vpop.f32.mrb[0].mxu0
  %11863 = vmatprep.mubr.f32.mxu0 0.0
  %v11864 = vand.u32 %v10908, 4294901760
  %11865 = vmatmul.mubr.f32.gmra.mrb[0].mxu0 %v11864
  %v11866 = vpop.f32.mrb[0].mxu0
  %v11867 = vadd.f32 %v11682, %v11866
  %v11868 = vpop.f32.mrb[0].mxu0
  %11869 = vmatprep.mubr.f32.mxu0 0.0
  %v11870 = vand.u32 %v10911, 4294901760
  %11871 = vmatmul.mubr.f32.gmra.mrb[0].mxu0 %v11870
  %v11872 = vpop.f32.mrb[0].mxu0
  %v11873 = vadd.f32 %v11690, %v11872
  %v11874 = vpop.f32.mrb[0].mxu0
  %11875 = vmatprep.mubr.f32.mxu0 0.0
  %v11876 = vand.u32 %v10914, 4294901760
  %11877 = vmatmul.mubr.f32.gmra.mrb[0].mxu0 %v11876
  %v11878 = vpop.f32.mrb[0].mxu0
  %v11879 = vadd.f32 %v11698, %v11878
  %v11880 = vpop.f32.mrb[0].mxu0
  %11881 = vmatprep.mubr.f32.mxu0 0.0
  %v11882 = vand.u32 %v10917, 4294901760
  %11883 = vmatmul.mubr.f32.gmra.mrb[0].mxu0 %v11882
  %v11884 = vpop.f32.mrb[0].mxu0
  %v11885 = vadd.f32 %v11706, %v11884
  %v11886 = vpop.f32.mrb[0].mxu0
  %11887 = vmatprep.mubr.f32.mxu0 0.0
  %v11888 = vand.u32 %v10920, 4294901760
  %11889 = vmatmul.mubr.f32.gmra.mrb[0].mxu0 %v11888
  %v11890 = vpop.f32.mrb[0].mxu0
  %v11891 = vadd.f32 %v11714, %v11890
  %v11892 = vpop.f32.mrb[0].mxu0
  %11893 = vmatprep.mubr.f32.mxu0 0.0
  %v11894 = vand.u32 %v10923, 4294901760
  %11895 = vmatmul.mubr.f32.gmra.mrb[0].mxu0 %v11894
  %v11896 = vpop.f32.mrb[0].mxu0
  %v11897 = vadd.f32 %v11722, %v11896
  %v11898 = vpop.f32.mrb[0].mxu0
  %11899 = vmatprep.mubr.f32.mxu0 0.0
  %v11900 = vand.u32 %v10926, 4294901760
  %11901 = vmatmul.mubr.f32.gmra.mrb[0].mxu0 %v11900
  %v11902 = vpop.f32.mrb[0].mxu0
  %v11903 = vadd.f32 %v11730, %v11902
  %v11904 = vpop.f32.mrb[0].mxu0
  %11905 = vdwg.mxu0
  %11906 = vmatprep.subr.mxu0 0.0
  %v11907 = vand.u32 %v10808, 4294901760
  %11908 = vmatpush1.msra.mxu0 %v11907
  %11909 = vmatprep.subr.mxu0 0.0
  %v11910 = vand.u32 %v10809, 4294901760
  %11911 = vmatpush1.msra.mxu0 %v11910
  %11912 = vmatprep.subr.mxu0 0.0
  %11913 = vmatpush1.msra.mxu0 0.0
  %11914 = vmatprep.subr.mxu0 0.0
  %11915 = vmatpush1.msra.mxu0 0.0
  %11916 = vmatprep.subr.mxu0 0.0
  %11917 = vmatpush1.msra.mxu0 0.0
  %11918 = vmatprep.subr.mxu0 0.0
  %11919 = vmatpush1.msra.mxu0 0.0
  %11920 = vmatprep.subr.mxu0 0.0
  %11921 = vmatpush1.msra.mxu0 0.0
  %11922 = vmatprep.subr.mxu0 0.0
  %11923 = vmatpush1.msra.mxu0 0.0
  %11924 = vmatprep.subr.mxu0 0.0
  %11925 = vmatpush1.msra.mxu0 0.0
  %11926 = vmatprep.subr.mxu0 0.0
  %11927 = vmatpush1.msra.mxu0 0.0
  %11928 = vmatprep.subr.mxu0 0.0
  %11929 = vmatpush1.msra.mxu0 0.0
  %11930 = vmatprep.subr.mxu0 0.0
  %11931 = vmatpush1.msra.mxu0 0.0
  %11932 = vmatprep.subr.mxu0 0.0
  %11933 = vmatpush1.msra.mxu0 0.0
  %11934 = vmatprep.subr.mxu0 0.0
  %11935 = vmatpush1.msra.mxu0 0.0
  %11936 = vmatprep.subr.mxu0 0.0
  %11937 = vmatpush1.msra.mxu0 0.0
  %11938 = vmatprep.subr.mxu0 0.0
  %11939 = vmatpush1.msra.mxu0 0.0
  %11940 = vmatprep.subr.mxu0 0.0
  %11941 = vmatpush1.msra.mxu0 0.0
  %11942 = vmatprep.subr.mxu0 0.0
  %11943 = vmatpush1.msra.mxu0 0.0
  %11944 = vmatprep.subr.mxu0 0.0
  %11945 = vmatpush1.msra.mxu0 0.0
  %11946 = vmatprep.subr.mxu0 0.0
  %11947 = vmatpush1.msra.mxu0 0.0
  %11948 = vmatprep.subr.mxu0 0.0
  %11949 = vmatpush1.msra.mxu0 0.0
  %11950 = vmatprep.subr.mxu0 0.0
  %11951 = vmatpush1.msra.mxu0 0.0
  %11952 = vmatprep.subr.mxu0 0.0
  %11953 = vmatpush1.msra.mxu0 0.0
  %11954 = vmatprep.subr.mxu0 0.0
  %11955 = vmatpush1.msra.mxu0 0.0
  %11956 = vmatprep.subr.mxu0 0.0
  %11957 = vmatpush1.msra.mxu0 0.0
  %11958 = vmatprep.subr.mxu0 0.0
  %11959 = vmatpush1.msra.mxu0 0.0
  %11960 = vmatprep.subr.mxu0 0.0
  %11961 = vmatpush1.msra.mxu0 0.0
  %11962 = vmatprep.subr.mxu0 0.0
  %11963 = vmatpush1.msra.mxu0 0.0
  %11964 = vmatprep.subr.mxu0 0.0
  %11965 = vmatpush1.msra.mxu0 0.0
  %11966 = vmatprep.subr.mxu0 0.0
  %11967 = vmatpush1.msra.mxu0 0.0
  %11968 = vmatprep.subr.mxu0 0.0
  %11969 = vmatpush1.msra.mxu0 0.0
  %11970 = vmatprep.subr.mxu0 0.0
  %11971 = vmatpush1.msra.mxu0 0.0
  %11972 = vmatprep.mubr.f32.mxu0 0.0
  %v11973 = vand.u32 %v10878, 4294901760
  %11974 = vmatmul.mubr.f32.gmra.mrb[0].mxu0 %v11973
  %v11975 = vpop.f32.mrb[0].mxu0
  %v11976 = vadd.f32 %v11807, %v11975
  %v11977 = vpop.f32.mrb[0].mxu0
  %11978 = vmatprep.mubr.f32.mxu0 0.0
  %v11979 = vand.u32 %v10881, 4294901760
  %11980 = vmatmul.mubr.f32.gmra.mrb[0].mxu0 %v11979
  %v11981 = vpop.f32.mrb[0].mxu0
  %v11982 = vadd.f32 %v11813, %v11981
  %v11983 = vpop.f32.mrb[0].mxu0
  %11984 = vmatprep.mubr.f32.mxu0 0.0
  %v11985 = vand.u32 %v10884, 4294901760
  %11986 = vmatmul.mubr.f32.gmra.mrb[0].mxu0 %v11985
  %v11987 = vpop.f32.mrb[0].mxu0
  %v11988 = vadd.f32 %v11819, %v11987
  %v11989 = vpop.f32.mrb[0].mxu0
  %11990 = vmatprep.mubr.f32.mxu0 0.0
  %v11991 = vand.u32 %v10887, 4294901760
  %11992 = vmatmul.mubr.f32.gmra.mrb[0].mxu0 %v11991
  %v11993 = vpop.f32.mrb[0].mxu0
  %v11994 = vadd.f32 %v11825, %v11993
  %v11995 = vpop.f32.mrb[0].mxu0
  %11996 = vmatprep.mubr.f32.mxu0 0.0
  %v11997 = vand.u32 %v10890, 4294901760
  %11998 = vmatmul.mubr.f32.gmra.mrb[0].mxu0 %v11997
  %v11999 = vpop.f32.mrb[0].mxu0
  %v12000 = vadd.f32 %v11831, %v11999
  %v12001 = vpop.f32.mrb[0].mxu0
  %12002 = vmatprep.mubr.f32.mxu0 0.0
  %v12003 = vand.u32 %v10893, 4294901760
  %12004 = vmatmul.mubr.f32.gmra.mrb[0].mxu0 %v12003
  %v12005 = vpop.f32.mrb[0].mxu0
  %v12006 = vadd.f32 %v11837, %v12005
  %v12007 = vpop.f32.mrb[0].mxu0
  %12008 = vmatprep.mubr.f32.mxu0 0.0
  %v12009 = vand.u32 %v10896, 4294901760
  %12010 = vmatmul.mubr.f32.gmra.mrb[0].mxu0 %v12009
  %v12011 = vpop.f32.mrb[0].mxu0
  %v12012 = vadd.f32 %v11843, %v12011
  %v12013 = vpop.f32.mrb[0].mxu0
  %12014 = vmatprep.mubr.f32.mxu0 0.0
  %v12015 = vand.u32 %v10899, 4294901760
  %12016 = vmatmul.mubr.f32.gmra.mrb[0].mxu0 %v12015
  %v12017 = vpop.f32.mrb[0].mxu0
  %v12018 = vadd.f32 %v11849, %v12017
  %v12019 = vpop.f32.mrb[0].mxu0
  %12020 = vmatprep.mubr.f32.mxu0 0.0
  %v12021 = vand.u32 %v10902, 4294901760
  %12022 = vmatmul.mubr.f32.gmra.mrb[0].mxu0 %v12021
  %v12023 = vpop.f32.mrb[0].mxu0
  %v12024 = vadd.f32 %v11855, %v12023
  %v12025 = vpop.f32.mrb[0].mxu0
  %12026 = vmatprep.mubr.f32.mxu0 0.0
  %v12027 = vand.u32 %v10905, 4294901760
  %12028 = vmatmul.mubr.f32.gmra.mrb[0].mxu0 %v12027
  %v12029 = vpop.f32.mrb[0].mxu0
  %v12030 = vadd.f32 %v11861, %v12029
  %v12031 = vpop.f32.mrb[0].mxu0
  %12032 = vmatprep.mubr.f32.mxu0 0.0
  %v12033 = vand.u32 %v10908, 4294901760
  %12034 = vmatmul.mubr.f32.gmra.mrb[0].mxu0 %v12033
  %v12035 = vpop.f32.mrb[0].mxu0
  %v12036 = vadd.f32 %v11867, %v12035
  %v12037 = vpop.f32.mrb[0].mxu0
  %12038 = vmatprep.mubr.f32.mxu0 0.0
  %v12039 = vand.u32 %v10911, 4294901760
  %12040 = vmatmul.mubr.f32.gmra.mrb[0].mxu0 %v12039
  %v12041 = vpop.f32.mrb[0].mxu0
  %v12042 = vadd.f32 %v11873, %v12041
  %v12043 = vpop.f32.mrb[0].mxu0
  %12044 = vmatprep.mubr.f32.mxu0 0.0
  %v12045 = vand.u32 %v10914, 4294901760
  %12046 = vmatmul.mubr.f32.gmra.mrb[0].mxu0 %v12045
  %v12047 = vpop.f32.mrb[0].mxu0
  %v12048 = vadd.f32 %v11879, %v12047
  %v12049 = vpop.f32.mrb[0].mxu0
  %12050 = vmatprep.mubr.f32.mxu0 0.0
  %v12051 = vand.u32 %v10917, 4294901760
  %12052 = vmatmul.mubr.f32.gmra.mrb[0].mxu0 %v12051
  %v12053 = vpop.f32.mrb[0].mxu0
  %v12054 = vadd.f32 %v11885, %v12053
  %v12055 = vpop.f32.mrb[0].mxu0
  %12056 = vmatprep.mubr.f32.mxu0 0.0
  %v12057 = vand.u32 %v10920, 4294901760
  %12058 = vmatmul.mubr.f32.gmra.mrb[0].mxu0 %v12057
  %v12059 = vpop.f32.mrb[0].mxu0
  %v12060 = vadd.f32 %v11891, %v12059
  %v12061 = vpop.f32.mrb[0].mxu0
  %12062 = vmatprep.mubr.f32.mxu0 0.0
  %v12063 = vand.u32 %v10923, 4294901760
  %12064 = vmatmul.mubr.f32.gmra.mrb[0].mxu0 %v12063
  %v12065 = vpop.f32.mrb[0].mxu0
  %v12066 = vadd.f32 %v11897, %v12065
  %v12067 = vpop.f32.mrb[0].mxu0
  %12068 = vmatprep.mubr.f32.mxu0 0.0
  %v12069 = vand.u32 %v10926, 4294901760
  %12070 = vmatmul.mubr.f32.gmra.mrb[0].mxu0 %v12069
  %v12071 = vpop.f32.mrb[0].mxu0
  %v12072 = vadd.f32 %v11903, %v12071
  %v12073 = vpop.f32.mrb[0].mxu0
  %12074 = vdwg.mxu0
  %12075 = vst [vmem:[%s15] sm:$0xff] %v11976
  %12076 = vst [vmem:[%s15 + $0x8] sm:$0xff] %v11982
  %12077 = vst [vmem:[%s15 + $0x10] sm:$0xff] %v11988
  %12078 = vst [vmem:[%s15 + $0x18] sm:$0xff] %v11994
  %12079 = vst [vmem:[%s15 + $0x20] sm:$0xff] %v12000
  %12080 = vst [vmem:[%s15 + $0x28] sm:$0xff] %v12006
  %12081 = vst [vmem:[%s15 + $0x30] sm:$0xff] %v12012
  %12082 = vst [vmem:[%s15 + $0x38] sm:$0xff] %v12018
  %12083 = vst [vmem:[%s15 + $0x40] sm:$0xff] %v12024
  %12084 = vst [vmem:[%s15 + $0x48] sm:$0xff] %v12030
  %12085 = vst [vmem:[%s15 + $0x50] sm:$0xff] %v12036
  %12086 = vst [vmem:[%s15 + $0x58] sm:$0xff] %v12042
  %12087 = vst [vmem:[%s15 + $0x60] sm:$0xff] %v12048
  %12088 = vst [vmem:[%s15 + $0x68] sm:$0xff] %v12054
  %12089 = vst [vmem:[%s15 + $0x70] sm:$0xff] %v12060
  %12090 = vst [vmem:[%s15 + $0x78] sm:$0xff] %v12066
  %12091 = vst [vmem:[%s15 + $0x80] sm:$0xff] %v12072
  // Predicated region
  $region62: #{predinet_pallas.1} parent=0 // pred_check
    _
  $region63: #{predinet_pallas.1} parent=0 // pred_check_branch
    %12093 = sbr.rel (0) target = $region65
  $region64: #{predinet_pallas.1} parent=0 // pred_region
    _
  $region65: #{predinet_pallas.1} parent=0 // pred_fallthru
    _
  // Predicated region
  $region66: #{predinet_pallas.1} parent=0 // pred_check
    _
  $region67: #{predinet_pallas.1} parent=0 // pred_check_branch
    %12095 = sbr.rel (0) target = $region69
  $region68: #{predinet_pallas.1} parent=0 // pred_region
    _
  $region69: #{predinet_pallas.1} parent=0 // pred_fallthru
    _

</llo_original>
